<compile_context>
chip_gen: v7x
topology: tpu7x:2x2x1
jax: 0.10.0
libtpu: 0.0.40
codegen_flags: <defaults>
</compile_context>

<pallas_src>
import jax
import jax.numpy as jnp
from jax.experimental import pallas as pl
from jax.experimental.pallas import tpu as pltpu

# Config consistent with the module (fea_map_dim['myInception_v3'] = 768);
# small batch / frames / classes / resolution for the demo.
FEA_MAP_DIM = 768
NUM_CLASSES = 8
B, T = 2, 3            # batch, N_f frames
IH, IW = 12, 20        # toy per-frame resolution
C_IN = 3
LANE = 128


def _make_kernel(b, t, rows_per_frame, c_in, fea_dim):
    """Build the fused frame-path kernel for the given static shapes."""
    inv_count = 1.0 / float(t * rows_per_frame)   # spatial + temporal mean

    def kernel(x_ref, wb_ref, bb_ref, wc_ref, bc_ref, out_ref):
        # TODO(synk): the real pretrained CNN_backbone (myInception_v3 / I3D)
        # has no clean Pallas equivalent; stubbed as 1x1 conv + bias + ReLU.
        bbv = bb_ref[...]                                      # (1, fea)
        wb_rows = [wb_ref[k:k + 1, :] for k in range(c_in)]    # c_in x (1, fea)

        pooled_per_batch = []
        for bi in range(b):
            acc = jnp.zeros((1, fea_dim), jnp.float32)
            for ti in range(t):
                r0 = (bi * t + ti) * rows_per_frame
                xc = x_ref[r0:r0 + rows_per_frame, :]          # (rows, c_in) f32
                # 1x1-conv stub on the VPU: c_in broadcast multiply-adds
                # ((rows,1) x (1,fea) outer-product style), keeps the MXU free.
                fm = xc[:, 0:1] * wb_rows[0]
                for k in range(1, c_in):
                    fm = fm + xc[:, k:k + 1] * wb_rows[k]
                fm = jnp.maximum(fm + bbv, 0.0)                # bias + ReLU
                # adaptive_avg_pool2d(.,(1,1)) contribution of this frame
                # (sublane reduction, accumulated in f32).
                acc = acc + jnp.sum(fm, axis=0, keepdims=True)  # (1, fea)
            pooled_per_batch.append(acc)

        # Spatial + temporal mean fused; valid because the classifier is linear
        # (mean_T(Linear(f_t)) == Linear(mean_T(f_t))) and ReLU sits before it.
        pooled = jnp.concatenate(pooled_per_batch, axis=0) * inv_count  # (b, fea)

        # frame_classifier = nn.Linear(fea_map_dim, num_classes), padded to a
        # lane-dense 128-wide output; bf16 MXU operands, f32 accumulation.
        scores = jnp.dot(pooled.astype(jnp.bfloat16), wc_ref[...],
                         preferred_element_type=jnp.float32)   # (b, nc_pad)
        out_ref[...] = scores + bc_ref[...]

    return kernel


def in_frame_forward(imgs, wb, bb2, wc_p, bc_p):
    """imgs: (B, T, C_IN, IH, IW) NCHW frames; weights pre-padded/cast outside.
    Returns (B, num_classes) frame scores."""
    b, t, c_in, ih, iw = imgs.shape
    fea = wb.shape[1]
    nc_pad = wc_p.shape[1]
    rows_per_frame = ih * iw

    # Only remaining XLA-side prep: NCHW frames -> channels-last pixel rows
    # (one small transpose+reshape; ~17 KB copy).
    x = jnp.transpose(imgs, (0, 1, 3, 4, 2)).reshape(b * t * rows_per_frame, c_in)

    kernel = _make_kernel(b, t, rows_per_frame, c_in, fea)
    vmem = pltpu.MemorySpace.VMEM
    out = pl.pallas_call(
        kernel,
        out_shape=jax.ShapeDtypeStruct((b, nc_pad), jnp.float32),
        in_specs=[pl.BlockSpec(memory_space=vmem)] * 5,
        out_specs=pl.BlockSpec(memory_space=vmem),
    )(x, wb, bb2, wc_p, bc_p)

    return out[:, :NUM_CLASSES]


in_forward = jax.jit(in_frame_forward)


if __name__ == "__main__":
    key = jax.random.PRNGKey(0)
    k_img, k_wb, k_bb, k_wc = jax.random.split(key, 4)

    # PyTorch-style input imgs: (B, T, 3, IH, IW) NCHW per frame.
    imgs = jax.random.normal(k_img, (B, T, C_IN, IH, IW), dtype=jnp.float32)

    # Backbone stub parameters (deterministic): 1x1 conv + bias + ReLU.
    wb = 0.1 * jax.random.normal(k_wb, (C_IN, FEA_MAP_DIM), dtype=jnp.float32)
    bb = 0.1 * jax.random.normal(k_bb, (FEA_MAP_DIM,), dtype=jnp.float32)

    # frame_classifier = nn.Linear(fea_map_dim, num_classes);
    # kaiming_normal_ weight (std = sqrt(2/fan_in)), zero bias.
    wc = (jnp.sqrt(2.0 / FEA_MAP_DIM)
          * jax.random.normal(k_wc, (FEA_MAP_DIM, NUM_CLASSES), dtype=jnp.float32))
    bc = jnp.zeros((NUM_CLASSES,), dtype=jnp.float32)

    # Static padded / cast parameters, built ONCE (hoisted out of the call path):
    bb2 = bb.reshape(1, FEA_MAP_DIM).astype(jnp.float32)
    wc_p = jnp.zeros((FEA_MAP_DIM, LANE), jnp.bfloat16).at[:, :NUM_CLASSES].set(
        wc.astype(jnp.bfloat16))
    bc_p = jnp.zeros((1, LANE), jnp.float32).at[:, :NUM_CLASSES].set(
        bc.reshape(1, NUM_CLASSES))

    out = in_forward(imgs, wb, bb2, wc_p, bc_p)
    jax.block_until_ready(out)

    # Pure-JAX reference of the same forward path (f32 end-to-end).
    hp = jax.lax.Precision.HIGHEST
    x_ref = jnp.transpose(imgs, (0, 1, 3, 4, 2)).reshape(B * T, IH * IW, C_IN)
    fm_ref = jnp.maximum(
        jnp.einsum('npc,cd->npd', x_ref, wb, precision=hp) + bb, 0.0)
    feas_ref = fm_ref.mean(axis=1).reshape(B, T, FEA_MAP_DIM)   # spatial pool
    scores_ref = jnp.einsum('btc,cn->btn', feas_ref, wc, precision=hp) + bc
    ref = scores_ref.mean(axis=1)                               # temporal mean

    assert out.shape == (B, NUM_CLASSES)
    # bf16 classifier operands -> relaxed tolerance vs f32 reference.
    assert jnp.allclose(out, ref, atol=1e-2, rtol=1e-2), (
        float(jnp.max(jnp.abs(out - ref))))

    print("KERNEL_OK")
</pallas_src>

<mosaic_0001>
module attributes {stable_mosaic.version = 11 : i64} {
  func.func @kernel(%arg0: memref<1440x3xf32, #tpu.memory_space<vmem>>, %arg1: memref<3x768xf32, #tpu.memory_space<vmem>>, %arg2: memref<1x768xf32, #tpu.memory_space<vmem>>, %arg3: memref<768x128xbf16, #tpu.memory_space<vmem>>, %arg4: memref<1x128xf32, #tpu.memory_space<vmem>>, %arg5: memref<2x128xf32, #tpu.memory_space<vmem>>) attributes {dimension_semantics = [], scalar_prefetch = 0 : i64, scratch_operands = 0 : i64, tpu.core_type = #tpu.core_type<tc>} {
    %c0 = arith.constant 0 : index
    %c0_0 = arith.constant 0 : index
    %0 = vector.load %arg2[%c0, %c0_0] : memref<1x768xf32, #tpu.memory_space<vmem>>, vector<1x768xf32>
    %c0_1 = arith.constant 0 : index
    %c0_2 = arith.constant 0 : index
    %1 = vector.load %arg1[%c0_1, %c0_2] : memref<3x768xf32, #tpu.memory_space<vmem>>, vector<1x768xf32>
    %c1 = arith.constant 1 : index
    %c0_3 = arith.constant 0 : index
    %2 = vector.load %arg1[%c1, %c0_3] : memref<3x768xf32, #tpu.memory_space<vmem>>, vector<1x768xf32>
    %c2 = arith.constant 2 : index
    %c0_4 = arith.constant 0 : index
    %3 = vector.load %arg1[%c2, %c0_4] : memref<3x768xf32, #tpu.memory_space<vmem>>, vector<1x768xf32>
    %cst = arith.constant 0.000000e+00 : f32
    %4 = vector.broadcast %cst : f32 to vector<1x768xf32>
    %c0_5 = arith.constant 0 : index
    %c0_6 = arith.constant 0 : index
    %5 = vector.load %arg0[%c0_5, %c0_6] : memref<1440x3xf32, #tpu.memory_space<vmem>>, vector<240x3xf32>
    %6 = vector.extract_strided_slice %5 {offsets = [0, 0], sizes = [240, 1], strides = [1, 1]} : vector<240x3xf32> to vector<240x1xf32>
    %7 = vector.broadcast %6 : vector<240x1xf32> to vector<240x768xf32>
    %8 = vector.broadcast %1 : vector<1x768xf32> to vector<240x768xf32>
    %9 = arith.mulf %7, %8 : vector<240x768xf32>
    %10 = vector.extract_strided_slice %5 {offsets = [0, 1], sizes = [240, 1], strides = [1, 1]} : vector<240x3xf32> to vector<240x1xf32>
    %11 = vector.broadcast %10 : vector<240x1xf32> to vector<240x768xf32>
    %12 = vector.broadcast %2 : vector<1x768xf32> to vector<240x768xf32>
    %13 = arith.mulf %11, %12 : vector<240x768xf32>
    %14 = arith.addf %9, %13 : vector<240x768xf32>
    %15 = vector.extract_strided_slice %5 {offsets = [0, 2], sizes = [240, 1], strides = [1, 1]} : vector<240x3xf32> to vector<240x1xf32>
    %16 = vector.broadcast %15 : vector<240x1xf32> to vector<240x768xf32>
    %17 = vector.broadcast %3 : vector<1x768xf32> to vector<240x768xf32>
    %18 = arith.mulf %16, %17 : vector<240x768xf32>
    %19 = arith.addf %14, %18 : vector<240x768xf32>
    %20 = vector.broadcast %0 : vector<1x768xf32> to vector<240x768xf32>
    %21 = arith.addf %19, %20 : vector<240x768xf32>
    %cst_7 = arith.constant 0.000000e+00 : f32
    %22 = vector.broadcast %cst_7 : f32 to vector<240x768xf32>
    %23 = arith.maximumf %21, %22 : vector<240x768xf32>
    %cst_8 = arith.constant dense<0.000000e+00> : vector<768xf32>
    %24 = vector.multi_reduction <add>, %23, %cst_8 [0] : vector<240x768xf32> to vector<768xf32>
    %25 = vector.shape_cast %24 : vector<768xf32> to vector<1x768xf32>
    %26 = arith.addf %4, %25 : vector<1x768xf32>
    %c240 = arith.constant 240 : index
    %c0_9 = arith.constant 0 : index
    %27 = vector.load %arg0[%c240, %c0_9] : memref<1440x3xf32, #tpu.memory_space<vmem>>, vector<240x3xf32>
    %28 = vector.extract_strided_slice %27 {offsets = [0, 0], sizes = [240, 1], strides = [1, 1]} : vector<240x3xf32> to vector<240x1xf32>
    %29 = vector.broadcast %28 : vector<240x1xf32> to vector<240x768xf32>
    %30 = vector.broadcast %1 : vector<1x768xf32> to vector<240x768xf32>
    %31 = arith.mulf %29, %30 : vector<240x768xf32>
    %32 = vector.extract_strided_slice %27 {offsets = [0, 1], sizes = [240, 1], strides = [1, 1]} : vector<240x3xf32> to vector<240x1xf32>
    %33 = vector.broadcast %32 : vector<240x1xf32> to vector<240x768xf32>
    %34 = vector.broadcast %2 : vector<1x768xf32> to vector<240x768xf32>
    %35 = arith.mulf %33, %34 : vector<240x768xf32>
    %36 = arith.addf %31, %35 : vector<240x768xf32>
    %37 = vector.extract_strided_slice %27 {offsets = [0, 2], sizes = [240, 1], strides = [1, 1]} : vector<240x3xf32> to vector<240x1xf32>
    %38 = vector.broadcast %37 : vector<240x1xf32> to vector<240x768xf32>
    %39 = vector.broadcast %3 : vector<1x768xf32> to vector<240x768xf32>
    %40 = arith.mulf %38, %39 : vector<240x768xf32>
    %41 = arith.addf %36, %40 : vector<240x768xf32>
    %42 = vector.broadcast %0 : vector<1x768xf32> to vector<240x768xf32>
    %43 = arith.addf %41, %42 : vector<240x768xf32>
    %cst_10 = arith.constant 0.000000e+00 : f32
    %44 = vector.broadcast %cst_10 : f32 to vector<240x768xf32>
    %45 = arith.maximumf %43, %44 : vector<240x768xf32>
    %cst_11 = arith.constant dense<0.000000e+00> : vector<768xf32>
    %46 = vector.multi_reduction <add>, %45, %cst_11 [0] : vector<240x768xf32> to vector<768xf32>
    %47 = vector.shape_cast %46 : vector<768xf32> to vector<1x768xf32>
    %48 = arith.addf %26, %47 : vector<1x768xf32>
    %c480 = arith.constant 480 : index
    %c0_12 = arith.constant 0 : index
    %49 = vector.load %arg0[%c480, %c0_12] : memref<1440x3xf32, #tpu.memory_space<vmem>>, vector<240x3xf32>
    %50 = vector.extract_strided_slice %49 {offsets = [0, 0], sizes = [240, 1], strides = [1, 1]} : vector<240x3xf32> to vector<240x1xf32>
    %51 = vector.broadcast %50 : vector<240x1xf32> to vector<240x768xf32>
    %52 = vector.broadcast %1 : vector<1x768xf32> to vector<240x768xf32>
    %53 = arith.mulf %51, %52 : vector<240x768xf32>
    %54 = vector.extract_strided_slice %49 {offsets = [0, 1], sizes = [240, 1], strides = [1, 1]} : vector<240x3xf32> to vector<240x1xf32>
    %55 = vector.broadcast %54 : vector<240x1xf32> to vector<240x768xf32>
    %56 = vector.broadcast %2 : vector<1x768xf32> to vector<240x768xf32>
    %57 = arith.mulf %55, %56 : vector<240x768xf32>
    %58 = arith.addf %53, %57 : vector<240x768xf32>
    %59 = vector.extract_strided_slice %49 {offsets = [0, 2], sizes = [240, 1], strides = [1, 1]} : vector<240x3xf32> to vector<240x1xf32>
    %60 = vector.broadcast %59 : vector<240x1xf32> to vector<240x768xf32>
    %61 = vector.broadcast %3 : vector<1x768xf32> to vector<240x768xf32>
    %62 = arith.mulf %60, %61 : vector<240x768xf32>
    %63 = arith.addf %58, %62 : vector<240x768xf32>
    %64 = vector.broadcast %0 : vector<1x768xf32> to vector<240x768xf32>
    %65 = arith.addf %63, %64 : vector<240x768xf32>
    %cst_13 = arith.constant 0.000000e+00 : f32
    %66 = vector.broadcast %cst_13 : f32 to vector<240x768xf32>
    %67 = arith.maximumf %65, %66 : vector<240x768xf32>
    %cst_14 = arith.constant dense<0.000000e+00> : vector<768xf32>
    %68 = vector.multi_reduction <add>, %67, %cst_14 [0] : vector<240x768xf32> to vector<768xf32>
    %69 = vector.shape_cast %68 : vector<768xf32> to vector<1x768xf32>
    %70 = arith.addf %48, %69 : vector<1x768xf32>
    %cst_15 = arith.constant 0.000000e+00 : f32
    %71 = vector.broadcast %cst_15 : f32 to vector<1x768xf32>
    %c720 = arith.constant 720 : index
    %c0_16 = arith.constant 0 : index
    %72 = vector.load %arg0[%c720, %c0_16] : memref<1440x3xf32, #tpu.memory_space<vmem>>, vector<240x3xf32>
    %73 = vector.extract_strided_slice %72 {offsets = [0, 0], sizes = [240, 1], strides = [1, 1]} : vector<240x3xf32> to vector<240x1xf32>
    %74 = vector.broadcast %73 : vector<240x1xf32> to vector<240x768xf32>
    %75 = vector.broadcast %1 : vector<1x768xf32> to vector<240x768xf32>
    %76 = arith.mulf %74, %75 : vector<240x768xf32>
    %77 = vector.extract_strided_slice %72 {offsets = [0, 1], sizes = [240, 1], strides = [1, 1]} : vector<240x3xf32> to vector<240x1xf32>
    %78 = vector.broadcast %77 : vector<240x1xf32> to vector<240x768xf32>
    %79 = vector.broadcast %2 : vector<1x768xf32> to vector<240x768xf32>
    %80 = arith.mulf %78, %79 : vector<240x768xf32>
    %81 = arith.addf %76, %80 : vector<240x768xf32>
    %82 = vector.extract_strided_slice %72 {offsets = [0, 2], sizes = [240, 1], strides = [1, 1]} : vector<240x3xf32> to vector<240x1xf32>
    %83 = vector.broadcast %82 : vector<240x1xf32> to vector<240x768xf32>
    %84 = vector.broadcast %3 : vector<1x768xf32> to vector<240x768xf32>
    %85 = arith.mulf %83, %84 : vector<240x768xf32>
    %86 = arith.addf %81, %85 : vector<240x768xf32>
    %87 = vector.broadcast %0 : vector<1x768xf32> to vector<240x768xf32>
    %88 = arith.addf %86, %87 : vector<240x768xf32>
    %cst_17 = arith.constant 0.000000e+00 : f32
    %89 = vector.broadcast %cst_17 : f32 to vector<240x768xf32>
    %90 = arith.maximumf %88, %89 : vector<240x768xf32>
    %cst_18 = arith.constant dense<0.000000e+00> : vector<768xf32>
    %91 = vector.multi_reduction <add>, %90, %cst_18 [0] : vector<240x768xf32> to vector<768xf32>
    %92 = vector.shape_cast %91 : vector<768xf32> to vector<1x768xf32>
    %93 = arith.addf %71, %92 : vector<1x768xf32>
    %c960 = arith.constant 960 : index
    %c0_19 = arith.constant 0 : index
    %94 = vector.load %arg0[%c960, %c0_19] : memref<1440x3xf32, #tpu.memory_space<vmem>>, vector<240x3xf32>
    %95 = vector.extract_strided_slice %94 {offsets = [0, 0], sizes = [240, 1], strides = [1, 1]} : vector<240x3xf32> to vector<240x1xf32>
    %96 = vector.broadcast %95 : vector<240x1xf32> to vector<240x768xf32>
    %97 = vector.broadcast %1 : vector<1x768xf32> to vector<240x768xf32>
    %98 = arith.mulf %96, %97 : vector<240x768xf32>
    %99 = vector.extract_strided_slice %94 {offsets = [0, 1], sizes = [240, 1], strides = [1, 1]} : vector<240x3xf32> to vector<240x1xf32>
    %100 = vector.broadcast %99 : vector<240x1xf32> to vector<240x768xf32>
    %101 = vector.broadcast %2 : vector<1x768xf32> to vector<240x768xf32>
    %102 = arith.mulf %100, %101 : vector<240x768xf32>
    %103 = arith.addf %98, %102 : vector<240x768xf32>
    %104 = vector.extract_strided_slice %94 {offsets = [0, 2], sizes = [240, 1], strides = [1, 1]} : vector<240x3xf32> to vector<240x1xf32>
    %105 = vector.broadcast %104 : vector<240x1xf32> to vector<240x768xf32>
    %106 = vector.broadcast %3 : vector<1x768xf32> to vector<240x768xf32>
    %107 = arith.mulf %105, %106 : vector<240x768xf32>
    %108 = arith.addf %103, %107 : vector<240x768xf32>
    %109 = vector.broadcast %0 : vector<1x768xf32> to vector<240x768xf32>
    %110 = arith.addf %108, %109 : vector<240x768xf32>
    %cst_20 = arith.constant 0.000000e+00 : f32
    %111 = vector.broadcast %cst_20 : f32 to vector<240x768xf32>
    %112 = arith.maximumf %110, %111 : vector<240x768xf32>
    %cst_21 = arith.constant dense<0.000000e+00> : vector<768xf32>
    %113 = vector.multi_reduction <add>, %112, %cst_21 [0] : vector<240x768xf32> to vector<768xf32>
    %114 = vector.shape_cast %113 : vector<768xf32> to vector<1x768xf32>
    %115 = arith.addf %93, %114 : vector<1x768xf32>
    %c1200 = arith.constant 1200 : index
    %c0_22 = arith.constant 0 : index
    %116 = vector.load %arg0[%c1200, %c0_22] : memref<1440x3xf32, #tpu.memory_space<vmem>>, vector<240x3xf32>
    %117 = vector.extract_strided_slice %116 {offsets = [0, 0], sizes = [240, 1], strides = [1, 1]} : vector<240x3xf32> to vector<240x1xf32>
    %118 = vector.broadcast %117 : vector<240x1xf32> to vector<240x768xf32>
    %119 = vector.broadcast %1 : vector<1x768xf32> to vector<240x768xf32>
    %120 = arith.mulf %118, %119 : vector<240x768xf32>
    %121 = vector.extract_strided_slice %116 {offsets = [0, 1], sizes = [240, 1], strides = [1, 1]} : vector<240x3xf32> to vector<240x1xf32>
    %122 = vector.broadcast %121 : vector<240x1xf32> to vector<240x768xf32>
    %123 = vector.broadcast %2 : vector<1x768xf32> to vector<240x768xf32>
    %124 = arith.mulf %122, %123 : vector<240x768xf32>
    %125 = arith.addf %120, %124 : vector<240x768xf32>
    %126 = vector.extract_strided_slice %116 {offsets = [0, 2], sizes = [240, 1], strides = [1, 1]} : vector<240x3xf32> to vector<240x1xf32>
    %127 = vector.broadcast %126 : vector<240x1xf32> to vector<240x768xf32>
    %128 = vector.broadcast %3 : vector<1x768xf32> to vector<240x768xf32>
    %129 = arith.mulf %127, %128 : vector<240x768xf32>
    %130 = arith.addf %125, %129 : vector<240x768xf32>
    %131 = vector.broadcast %0 : vector<1x768xf32> to vector<240x768xf32>
    %132 = arith.addf %130, %131 : vector<240x768xf32>
    %cst_23 = arith.constant 0.000000e+00 : f32
    %133 = vector.broadcast %cst_23 : f32 to vector<240x768xf32>
    %134 = arith.maximumf %132, %133 : vector<240x768xf32>
    %cst_24 = arith.constant dense<0.000000e+00> : vector<768xf32>
    %135 = vector.multi_reduction <add>, %134, %cst_24 [0] : vector<240x768xf32> to vector<768xf32>
    %136 = vector.shape_cast %135 : vector<768xf32> to vector<1x768xf32>
    %137 = arith.addf %115, %136 : vector<1x768xf32>
    %138 = tpu.concatenate %70, %137 in 0 : vector<1x768xf32>, vector<1x768xf32> -> vector<2x768xf32>
    %cst_25 = arith.constant 0.00138888892 : f32
    %139 = vector.broadcast %cst_25 : f32 to vector<2x768xf32>
    %140 = arith.mulf %138, %139 : vector<2x768xf32>
    %141 = arith.truncf %140 : vector<2x768xf32> to vector<2x768xbf16>
    %c0_26 = arith.constant 0 : index
    %c0_27 = arith.constant 0 : index
    %142 = vector.load %arg3[%c0_26, %c0_27] : memref<768x128xbf16, #tpu.memory_space<vmem>>, vector<768x128xbf16>
    %cst_28 = arith.constant dense<0.000000e+00> : vector<2x128xf32>
    %143 = tpu.matmul %141, %142, %cst_28 {dimension_numbers = #tpu.dot_dimension_numbers<[1], [0], [0], [1], [0, 0, 1, 1], [], []>} : vector<2x768xbf16>, vector<768x128xbf16>, vector<2x128xf32> -> vector<2x128xf32>
    %c0_29 = arith.constant 0 : index
    %c0_30 = arith.constant 0 : index
    %144 = vector.load %arg4[%c0_29, %c0_30] : memref<1x128xf32, #tpu.memory_space<vmem>>, vector<1x128xf32>
    %145 = vector.broadcast %144 : vector<1x128xf32> to vector<2x128xf32>
    %146 = arith.addf %143, %145 : vector<2x128xf32>
    %c0_31 = arith.constant 0 : index
    %c0_32 = arith.constant 0 : index
    %147 = vector.load %arg5[%c0_31, %c0_32] : memref<2x128xf32, #tpu.memory_space<vmem>>, vector<2x128xf32>
    tpu.vector_store %arg5[%c0_31, %c0_32], %146 {strides = array<i32>} : memref<2x128xf32, #tpu.memory_space<vmem>>, vector<2x128xf32>,
    return
  }
}

</mosaic_0001>

<llo_original>
// kernel: in_frame_forward.1
$region0: #{in_frame_forward.1}
  #allocation0 [shape = 'u32[]', space=smem, size = 0x4, offset = 0x4, fixed_abs, tag = 'smem constant byte address 0x4 - core index']
  #allocation1 [shape = 'u32[144,128]{1,0:T(1,128)}', space=vmem, size = 0x12000, scoped, tag = 'internal scratch']
  %s0 = inlined_call_operand.vmem [shape: f32[1440,3], index: 0, kind: input, shape index: {}]
  %s1 = inlined_call_operand.vmem [shape: f32[3,768], index: 1, kind: input, shape index: {}]
  %s2 = inlined_call_operand.vmem [shape: f32[1,768], index: 2, kind: input, shape index: {}]
  %s3 = inlined_call_operand.vmem [shape: bf16[768,128], index: 3, kind: input, shape index: {}]
  %s4 = inlined_call_operand.vmem [shape: f32[1,128], index: 4, kind: input, shape index: {}]
  %s5 = inlined_call_operand.hbm [shape: f32[2,128], index: 5, kind: output, shape index: {}]
  %s6 = sld [smem:[#allocation0]]
  $region30: #{in_frame_forward.1} parent=0
    _
  %s8 = ssub.s32 1, %s6
  %s9 = scalar_select 0, %s8, %s6
  $region1: #{in_frame_forward.1} parent=0
    #allocation2 [shape = 'u8[1024]{0}', space=vmem, size = 0x400, scoped, tag = 'output window, operand 0, single buffered']
    #allocation3 [shape = 's32[1]{0}', space=sflag, size = 0x4, scoped, tag = 'scoped memory for in_frame_forward.1']
    %10 = vsyncpa [#allocation3], 0
    // Predicated region
    $region2: #{in_frame_forward.1} parent=1 // pred_check
      _
    $region3: #{in_frame_forward.1} parent=1 // pred_check_branch
      %12 = sbr.rel (0) target = $region5
    $region4: #{in_frame_forward.1} parent=1 // pred_region
      _
    $region5: #{in_frame_forward.1} parent=1 // pred_fallthru
      _
    // Predicated region
    $region6: #{in_frame_forward.1} parent=1 // pred_check
      _
    $region7: #{in_frame_forward.1} parent=1 // pred_check_branch
      %14 = sbr.rel (0) target = $region9
    $region8: #{in_frame_forward.1} parent=1 // pred_region
      _
    $region9: #{in_frame_forward.1} parent=1 // pred_fallthru
      _
    // Predicated region
    $region10: #{in_frame_forward.1} parent=1 // pred_check
      _
    $region11: #{in_frame_forward.1} parent=1 // pred_check_branch
      %16 = sbr.rel (0) target = $region13
    $region12: #{in_frame_forward.1} parent=1 // pred_region
      _
    $region13: #{in_frame_forward.1} parent=1 // pred_fallthru
      _
    // Predicated region
    $region14: #{in_frame_forward.1} parent=1 // pred_check
      _
    $region15: #{in_frame_forward.1} parent=1 // pred_check_branch
      %18 = sbr.rel (0) target = $region17
    $region16: #{in_frame_forward.1} parent=1 // pred_region
      _
    $region17: #{in_frame_forward.1} parent=1 // pred_fallthru
      _
    // Predicated region
    $region18: #{in_frame_forward.1} parent=1 // pred_check
      _
    $region19: #{in_frame_forward.1} parent=1 // pred_check_branch
      %20 = sbr.rel (0) target = $region21
    $region20: #{in_frame_forward.1} parent=1 // pred_region
      _
    $region21: #{in_frame_forward.1} parent=1 // pred_fallthru
      _
    %v22 = vld [vmem:[%s2] sm:$0x3f]
    %v23 = vld [vmem:[%s1] ss:$4 sm:$0x3f]
    %s24 = scalar_lea.vmem %s1, 1
    %v25 = vld [vmem:[%s24] ss:$4 sm:$0x3f]
    %s26 = scalar_lea.vmem %s1, 2
    %v27 = vld [vmem:[%s26] ss:$4 sm:$0x3f]
    %v28 = vld [vmem:[%s0] sm:$0xff]
    %v29 = vld [vmem:[%s0 + $0x8] sm:$0xff]
    %v30 = vld [vmem:[%s0 + $0x10] sm:$0xff]
    %v31 = vld [vmem:[%s0 + $0x18] sm:$0xff]
    %v32 = vld [vmem:[%s0 + $0x20] sm:$0xff]
    %v33 = vld [vmem:[%s0 + $0x28] sm:$0xff]
    %v34 = vld [vmem:[%s0 + $0x30] sm:$0xff]
    %v35 = vld [vmem:[%s0 + $0x38] sm:$0xff]
    %v36 = vld [vmem:[%s0 + $0x40] sm:$0xff]
    %v37 = vld [vmem:[%s0 + $0x48] sm:$0xff]
    %v38 = vld [vmem:[%s0 + $0x50] sm:$0xff]
    %v39 = vld [vmem:[%s0 + $0x58] sm:$0xff]
    %v40 = vld [vmem:[%s0 + $0x60] sm:$0xff]
    %v41 = vld [vmem:[%s0 + $0x68] sm:$0xff]
    %v42 = vld [vmem:[%s0 + $0x70] sm:$0xff]
    %v43 = vld [vmem:[%s0 + $0x78] sm:$0xff]
    %v44 = vld [vmem:[%s0 + $0x80] sm:$0xff]
    %v45 = vld [vmem:[%s0 + $0x88] sm:$0xff]
    %v46 = vld [vmem:[%s0 + $0x90] sm:$0xff]
    %v47 = vld [vmem:[%s0 + $0x98] sm:$0xff]
    %v48 = vld [vmem:[%s0 + $0xa0] sm:$0xff]
    %v49 = vld [vmem:[%s0 + $0xa8] sm:$0xff]
    %v50 = vld [vmem:[%s0 + $0xb0] sm:$0xff]
    %v51 = vld [vmem:[%s0 + $0xb8] sm:$0xff]
    %v52 = vld [vmem:[%s0 + $0xc0] sm:$0xff]
    %v53 = vld [vmem:[%s0 + $0xc8] sm:$0xff]
    %v54 = vld [vmem:[%s0 + $0xd0] sm:$0xff]
    %v55 = vld [vmem:[%s0 + $0xd8] sm:$0xff]
    %v56 = vld [vmem:[%s0 + $0xe0] sm:$0xff]
    %v57 = vld [vmem:[%s0 + $0xe8] sm:$0xff]
    %59 = vset.pattern.permute.xlu0 0
    %60 = vperm.xlu0 %59, %v28
    %v61 = vpop.permute.xlu0 %60
    %64 = vset.pattern.permute.xlu0 0
    %65 = vperm.xlu0 %64, %v29
    %v66 = vpop.permute.xlu0 %65
    %69 = vset.pattern.permute.xlu0 0
    %70 = vperm.xlu0 %69, %v30
    %v71 = vpop.permute.xlu0 %70
    %74 = vset.pattern.permute.xlu0 0
    %75 = vperm.xlu0 %74, %v31
    %v76 = vpop.permute.xlu0 %75
    %79 = vset.pattern.permute.xlu0 0
    %80 = vperm.xlu0 %79, %v32
    %v81 = vpop.permute.xlu0 %80
    %84 = vset.pattern.permute.xlu0 0
    %85 = vperm.xlu0 %84, %v33
    %v86 = vpop.permute.xlu0 %85
    %89 = vset.pattern.permute.xlu0 0
    %90 = vperm.xlu0 %89, %v34
    %v91 = vpop.permute.xlu0 %90
    %94 = vset.pattern.permute.xlu0 0
    %95 = vperm.xlu0 %94, %v35
    %v96 = vpop.permute.xlu0 %95
    %99 = vset.pattern.permute.xlu0 0
    %100 = vperm.xlu0 %99, %v36
    %v101 = vpop.permute.xlu0 %100
    %104 = vset.pattern.permute.xlu0 0
    %105 = vperm.xlu0 %104, %v37
    %v106 = vpop.permute.xlu0 %105
    %109 = vset.pattern.permute.xlu0 0
    %110 = vperm.xlu0 %109, %v38
    %v111 = vpop.permute.xlu0 %110
    %114 = vset.pattern.permute.xlu0 0
    %115 = vperm.xlu0 %114, %v39
    %v116 = vpop.permute.xlu0 %115
    %119 = vset.pattern.permute.xlu0 0
    %120 = vperm.xlu0 %119, %v40
    %v121 = vpop.permute.xlu0 %120
    %124 = vset.pattern.permute.xlu0 0
    %125 = vperm.xlu0 %124, %v41
    %v126 = vpop.permute.xlu0 %125
    %129 = vset.pattern.permute.xlu0 0
    %130 = vperm.xlu0 %129, %v42
    %v131 = vpop.permute.xlu0 %130
    %134 = vset.pattern.permute.xlu0 0
    %135 = vperm.xlu0 %134, %v43
    %v136 = vpop.permute.xlu0 %135
    %139 = vset.pattern.permute.xlu0 0
    %140 = vperm.xlu0 %139, %v44
    %v141 = vpop.permute.xlu0 %140
    %144 = vset.pattern.permute.xlu0 0
    %145 = vperm.xlu0 %144, %v45
    %v146 = vpop.permute.xlu0 %145
    %149 = vset.pattern.permute.xlu0 0
    %150 = vperm.xlu0 %149, %v46
    %v151 = vpop.permute.xlu0 %150
    %154 = vset.pattern.permute.xlu0 0
    %155 = vperm.xlu0 %154, %v47
    %v156 = vpop.permute.xlu0 %155
    %159 = vset.pattern.permute.xlu0 0
    %160 = vperm.xlu0 %159, %v48
    %v161 = vpop.permute.xlu0 %160
    %164 = vset.pattern.permute.xlu0 0
    %165 = vperm.xlu0 %164, %v49
    %v166 = vpop.permute.xlu0 %165
    %169 = vset.pattern.permute.xlu0 0
    %170 = vperm.xlu0 %169, %v50
    %v171 = vpop.permute.xlu0 %170
    %174 = vset.pattern.permute.xlu0 0
    %175 = vperm.xlu0 %174, %v51
    %v176 = vpop.permute.xlu0 %175
    %179 = vset.pattern.permute.xlu0 0
    %180 = vperm.xlu0 %179, %v52
    %v181 = vpop.permute.xlu0 %180
    %184 = vset.pattern.permute.xlu0 0
    %185 = vperm.xlu0 %184, %v53
    %v186 = vpop.permute.xlu0 %185
    %189 = vset.pattern.permute.xlu0 0
    %190 = vperm.xlu0 %189, %v54
    %v191 = vpop.permute.xlu0 %190
    %194 = vset.pattern.permute.xlu0 0
    %195 = vperm.xlu0 %194, %v55
    %v196 = vpop.permute.xlu0 %195
    %199 = vset.pattern.permute.xlu0 0
    %200 = vperm.xlu0 %199, %v56
    %v201 = vpop.permute.xlu0 %200
    %204 = vset.pattern.permute.xlu0 0
    %205 = vperm.xlu0 %204, %v57
    %v206 = vpop.permute.xlu0 %205
    %v209 = vlaneseq
    %v210 = vshrl.u32 %v209, 7
    %v211 = vsub.s32 0, %v210
    %v212 = vrot.slane %v23, %v211
    %v213 = vlaneseq
    %v214 = vshrl.u32 %v213, 7
    %v215 = vsub.s32 1, %v214
    %v216 = vrot.slane %v23, %v215
    %v217 = vlaneseq
    %v218 = vshrl.u32 %v217, 7
    %v219 = vsub.s32 2, %v218
    %v220 = vrot.slane %v23, %v219
    %v221 = vlaneseq
    %v222 = vshrl.u32 %v221, 7
    %v223 = vsub.s32 3, %v222
    %v224 = vrot.slane %v23, %v223
    %v225 = vlaneseq
    %v226 = vshrl.u32 %v225, 7
    %v227 = vsub.s32 4, %v226
    %v228 = vrot.slane %v23, %v227
    %v229 = vlaneseq
    %v230 = vshrl.u32 %v229, 7
    %v231 = vsub.s32 5, %v230
    %v232 = vrot.slane %v23, %v231
    %v239 = vmul.f32 %v61, %v212
    %v240 = vmul.f32 %v61, %v216
    %v241 = vmul.f32 %v61, %v220
    %v242 = vmul.f32 %v61, %v224
    %v243 = vmul.f32 %v61, %v228
    %v244 = vmul.f32 %v61, %v232
    %v245 = vmul.f32 %v66, %v212
    %v246 = vmul.f32 %v66, %v216
    %v247 = vmul.f32 %v66, %v220
    %v248 = vmul.f32 %v66, %v224
    %v249 = vmul.f32 %v66, %v228
    %v250 = vmul.f32 %v66, %v232
    %v251 = vmul.f32 %v71, %v212
    %v252 = vmul.f32 %v71, %v216
    %v253 = vmul.f32 %v71, %v220
    %v254 = vmul.f32 %v71, %v224
    %v255 = vmul.f32 %v71, %v228
    %v256 = vmul.f32 %v71, %v232
    %v257 = vmul.f32 %v76, %v212
    %v258 = vmul.f32 %v76, %v216
    %v259 = vmul.f32 %v76, %v220
    %v260 = vmul.f32 %v76, %v224
    %v261 = vmul.f32 %v76, %v228
    %v262 = vmul.f32 %v76, %v232
    %v263 = vmul.f32 %v81, %v212
    %v264 = vmul.f32 %v81, %v216
    %v265 = vmul.f32 %v81, %v220
    %v266 = vmul.f32 %v81, %v224
    %v267 = vmul.f32 %v81, %v228
    %v268 = vmul.f32 %v81, %v232
    %v269 = vmul.f32 %v86, %v212
    %v270 = vmul.f32 %v86, %v216
    %v271 = vmul.f32 %v86, %v220
    %v272 = vmul.f32 %v86, %v224
    %v273 = vmul.f32 %v86, %v228
    %v274 = vmul.f32 %v86, %v232
    %v275 = vmul.f32 %v91, %v212
    %v276 = vmul.f32 %v91, %v216
    %v277 = vmul.f32 %v91, %v220
    %v278 = vmul.f32 %v91, %v224
    %v279 = vmul.f32 %v91, %v228
    %v280 = vmul.f32 %v91, %v232
    %v281 = vmul.f32 %v96, %v212
    %v282 = vmul.f32 %v96, %v216
    %v283 = vmul.f32 %v96, %v220
    %v284 = vmul.f32 %v96, %v224
    %v285 = vmul.f32 %v96, %v228
    %v286 = vmul.f32 %v96, %v232
    %v287 = vmul.f32 %v101, %v212
    %v288 = vmul.f32 %v101, %v216
    %v289 = vmul.f32 %v101, %v220
    %v290 = vmul.f32 %v101, %v224
    %v291 = vmul.f32 %v101, %v228
    %v292 = vmul.f32 %v101, %v232
    %v293 = vmul.f32 %v106, %v212
    %v294 = vmul.f32 %v106, %v216
    %v295 = vmul.f32 %v106, %v220
    %v296 = vmul.f32 %v106, %v224
    %v297 = vmul.f32 %v106, %v228
    %v298 = vmul.f32 %v106, %v232
    %v299 = vmul.f32 %v111, %v212
    %v300 = vmul.f32 %v111, %v216
    %v301 = vmul.f32 %v111, %v220
    %v302 = vmul.f32 %v111, %v224
    %v303 = vmul.f32 %v111, %v228
    %v304 = vmul.f32 %v111, %v232
    %v305 = vmul.f32 %v116, %v212
    %v306 = vmul.f32 %v116, %v216
    %v307 = vmul.f32 %v116, %v220
    %v308 = vmul.f32 %v116, %v224
    %v309 = vmul.f32 %v116, %v228
    %v310 = vmul.f32 %v116, %v232
    %v311 = vmul.f32 %v121, %v212
    %v312 = vmul.f32 %v121, %v216
    %v313 = vmul.f32 %v121, %v220
    %v314 = vmul.f32 %v121, %v224
    %v315 = vmul.f32 %v121, %v228
    %v316 = vmul.f32 %v121, %v232
    %v317 = vmul.f32 %v126, %v212
    %v318 = vmul.f32 %v126, %v216
    %v319 = vmul.f32 %v126, %v220
    %v320 = vmul.f32 %v126, %v224
    %v321 = vmul.f32 %v126, %v228
    %v322 = vmul.f32 %v126, %v232
    %v323 = vmul.f32 %v131, %v212
    %v324 = vmul.f32 %v131, %v216
    %v325 = vmul.f32 %v131, %v220
    %v326 = vmul.f32 %v131, %v224
    %v327 = vmul.f32 %v131, %v228
    %v328 = vmul.f32 %v131, %v232
    %v329 = vmul.f32 %v136, %v212
    %v330 = vmul.f32 %v136, %v216
    %v331 = vmul.f32 %v136, %v220
    %v332 = vmul.f32 %v136, %v224
    %v333 = vmul.f32 %v136, %v228
    %v334 = vmul.f32 %v136, %v232
    %v335 = vmul.f32 %v141, %v212
    %v336 = vmul.f32 %v141, %v216
    %v337 = vmul.f32 %v141, %v220
    %v338 = vmul.f32 %v141, %v224
    %v339 = vmul.f32 %v141, %v228
    %v340 = vmul.f32 %v141, %v232
    %v341 = vmul.f32 %v146, %v212
    %v342 = vmul.f32 %v146, %v216
    %v343 = vmul.f32 %v146, %v220
    %v344 = vmul.f32 %v146, %v224
    %v345 = vmul.f32 %v146, %v228
    %v346 = vmul.f32 %v146, %v232
    %v347 = vmul.f32 %v151, %v212
    %v348 = vmul.f32 %v151, %v216
    %v349 = vmul.f32 %v151, %v220
    %v350 = vmul.f32 %v151, %v224
    %v351 = vmul.f32 %v151, %v228
    %v352 = vmul.f32 %v151, %v232
    %v353 = vmul.f32 %v156, %v212
    %v354 = vmul.f32 %v156, %v216
    %v355 = vmul.f32 %v156, %v220
    %v356 = vmul.f32 %v156, %v224
    %v357 = vmul.f32 %v156, %v228
    %v358 = vmul.f32 %v156, %v232
    %v359 = vmul.f32 %v161, %v212
    %v360 = vmul.f32 %v161, %v216
    %v361 = vmul.f32 %v161, %v220
    %v362 = vmul.f32 %v161, %v224
    %v363 = vmul.f32 %v161, %v228
    %v364 = vmul.f32 %v161, %v232
    %v365 = vmul.f32 %v166, %v212
    %v366 = vmul.f32 %v166, %v216
    %v367 = vmul.f32 %v166, %v220
    %v368 = vmul.f32 %v166, %v224
    %v369 = vmul.f32 %v166, %v228
    %v370 = vmul.f32 %v166, %v232
    %v371 = vmul.f32 %v171, %v212
    %v372 = vmul.f32 %v171, %v216
    %v373 = vmul.f32 %v171, %v220
    %v374 = vmul.f32 %v171, %v224
    %v375 = vmul.f32 %v171, %v228
    %v376 = vmul.f32 %v171, %v232
    %v377 = vmul.f32 %v176, %v212
    %v378 = vmul.f32 %v176, %v216
    %v379 = vmul.f32 %v176, %v220
    %v380 = vmul.f32 %v176, %v224
    %v381 = vmul.f32 %v176, %v228
    %v382 = vmul.f32 %v176, %v232
    %v383 = vmul.f32 %v181, %v212
    %v384 = vmul.f32 %v181, %v216
    %v385 = vmul.f32 %v181, %v220
    %v386 = vmul.f32 %v181, %v224
    %v387 = vmul.f32 %v181, %v228
    %v388 = vmul.f32 %v181, %v232
    %v389 = vmul.f32 %v186, %v212
    %v390 = vmul.f32 %v186, %v216
    %v391 = vmul.f32 %v186, %v220
    %v392 = vmul.f32 %v186, %v224
    %v393 = vmul.f32 %v186, %v228
    %v394 = vmul.f32 %v186, %v232
    %v395 = vmul.f32 %v191, %v212
    %v396 = vmul.f32 %v191, %v216
    %v397 = vmul.f32 %v191, %v220
    %v398 = vmul.f32 %v191, %v224
    %v399 = vmul.f32 %v191, %v228
    %v400 = vmul.f32 %v191, %v232
    %v401 = vmul.f32 %v196, %v212
    %v402 = vmul.f32 %v196, %v216
    %v403 = vmul.f32 %v196, %v220
    %v404 = vmul.f32 %v196, %v224
    %v405 = vmul.f32 %v196, %v228
    %v406 = vmul.f32 %v196, %v232
    %v407 = vmul.f32 %v201, %v212
    %v408 = vmul.f32 %v201, %v216
    %v409 = vmul.f32 %v201, %v220
    %v410 = vmul.f32 %v201, %v224
    %v411 = vmul.f32 %v201, %v228
    %v412 = vmul.f32 %v201, %v232
    %v413 = vmul.f32 %v206, %v212
    %v414 = vmul.f32 %v206, %v216
    %v415 = vmul.f32 %v206, %v220
    %v416 = vmul.f32 %v206, %v224
    %v417 = vmul.f32 %v206, %v228
    %v418 = vmul.f32 %v206, %v232
    %419 = vset.pattern.permute.xlu0 1
    %420 = vperm.xlu0 %419, %v28
    %v421 = vpop.permute.xlu0 %420
    %423 = vset.pattern.permute.xlu0 1
    %424 = vperm.xlu0 %423, %v29
    %v425 = vpop.permute.xlu0 %424
    %427 = vset.pattern.permute.xlu0 1
    %428 = vperm.xlu0 %427, %v30
    %v429 = vpop.permute.xlu0 %428
    %431 = vset.pattern.permute.xlu0 1
    %432 = vperm.xlu0 %431, %v31
    %v433 = vpop.permute.xlu0 %432
    %435 = vset.pattern.permute.xlu0 1
    %436 = vperm.xlu0 %435, %v32
    %v437 = vpop.permute.xlu0 %436
    %439 = vset.pattern.permute.xlu0 1
    %440 = vperm.xlu0 %439, %v33
    %v441 = vpop.permute.xlu0 %440
    %443 = vset.pattern.permute.xlu0 1
    %444 = vperm.xlu0 %443, %v34
    %v445 = vpop.permute.xlu0 %444
    %447 = vset.pattern.permute.xlu0 1
    %448 = vperm.xlu0 %447, %v35
    %v449 = vpop.permute.xlu0 %448
    %451 = vset.pattern.permute.xlu0 1
    %452 = vperm.xlu0 %451, %v36
    %v453 = vpop.permute.xlu0 %452
    %455 = vset.pattern.permute.xlu0 1
    %456 = vperm.xlu0 %455, %v37
    %v457 = vpop.permute.xlu0 %456
    %459 = vset.pattern.permute.xlu0 1
    %460 = vperm.xlu0 %459, %v38
    %v461 = vpop.permute.xlu0 %460
    %463 = vset.pattern.permute.xlu0 1
    %464 = vperm.xlu0 %463, %v39
    %v465 = vpop.permute.xlu0 %464
    %467 = vset.pattern.permute.xlu0 1
    %468 = vperm.xlu0 %467, %v40
    %v469 = vpop.permute.xlu0 %468
    %471 = vset.pattern.permute.xlu0 1
    %472 = vperm.xlu0 %471, %v41
    %v473 = vpop.permute.xlu0 %472
    %475 = vset.pattern.permute.xlu0 1
    %476 = vperm.xlu0 %475, %v42
    %v477 = vpop.permute.xlu0 %476
    %479 = vset.pattern.permute.xlu0 1
    %480 = vperm.xlu0 %479, %v43
    %v481 = vpop.permute.xlu0 %480
    %483 = vset.pattern.permute.xlu0 1
    %484 = vperm.xlu0 %483, %v44
    %v485 = vpop.permute.xlu0 %484
    %487 = vset.pattern.permute.xlu0 1
    %488 = vperm.xlu0 %487, %v45
    %v489 = vpop.permute.xlu0 %488
    %491 = vset.pattern.permute.xlu0 1
    %492 = vperm.xlu0 %491, %v46
    %v493 = vpop.permute.xlu0 %492
    %495 = vset.pattern.permute.xlu0 1
    %496 = vperm.xlu0 %495, %v47
    %v497 = vpop.permute.xlu0 %496
    %499 = vset.pattern.permute.xlu0 1
    %500 = vperm.xlu0 %499, %v48
    %v501 = vpop.permute.xlu0 %500
    %503 = vset.pattern.permute.xlu0 1
    %504 = vperm.xlu0 %503, %v49
    %v505 = vpop.permute.xlu0 %504
    %507 = vset.pattern.permute.xlu0 1
    %508 = vperm.xlu0 %507, %v50
    %v509 = vpop.permute.xlu0 %508
    %511 = vset.pattern.permute.xlu0 1
    %512 = vperm.xlu0 %511, %v51
    %v513 = vpop.permute.xlu0 %512
    %515 = vset.pattern.permute.xlu0 1
    %516 = vperm.xlu0 %515, %v52
    %v517 = vpop.permute.xlu0 %516
    %519 = vset.pattern.permute.xlu0 1
    %520 = vperm.xlu0 %519, %v53
    %v521 = vpop.permute.xlu0 %520
    %523 = vset.pattern.permute.xlu0 1
    %524 = vperm.xlu0 %523, %v54
    %v525 = vpop.permute.xlu0 %524
    %527 = vset.pattern.permute.xlu0 1
    %528 = vperm.xlu0 %527, %v55
    %v529 = vpop.permute.xlu0 %528
    %531 = vset.pattern.permute.xlu0 1
    %532 = vperm.xlu0 %531, %v56
    %v533 = vpop.permute.xlu0 %532
    %535 = vset.pattern.permute.xlu0 1
    %536 = vperm.xlu0 %535, %v57
    %v537 = vpop.permute.xlu0 %536
    %v540 = vlaneseq
    %v541 = vshrl.u32 %v540, 7
    %v542 = vsub.s32 0, %v541
    %v543 = vrot.slane %v25, %v542
    %v544 = vlaneseq
    %v545 = vshrl.u32 %v544, 7
    %v546 = vsub.s32 1, %v545
    %v547 = vrot.slane %v25, %v546
    %v548 = vlaneseq
    %v549 = vshrl.u32 %v548, 7
    %v550 = vsub.s32 2, %v549
    %v551 = vrot.slane %v25, %v550
    %v552 = vlaneseq
    %v553 = vshrl.u32 %v552, 7
    %v554 = vsub.s32 3, %v553
    %v555 = vrot.slane %v25, %v554
    %v556 = vlaneseq
    %v557 = vshrl.u32 %v556, 7
    %v558 = vsub.s32 4, %v557
    %v559 = vrot.slane %v25, %v558
    %v560 = vlaneseq
    %v561 = vshrl.u32 %v560, 7
    %v562 = vsub.s32 5, %v561
    %v563 = vrot.slane %v25, %v562
    %v570 = vmul.f32 %v421, %v543
    %v571 = vmul.f32 %v421, %v547
    %v572 = vmul.f32 %v421, %v551
    %v573 = vmul.f32 %v421, %v555
    %v574 = vmul.f32 %v421, %v559
    %v575 = vmul.f32 %v421, %v563
    %v576 = vmul.f32 %v425, %v543
    %v577 = vmul.f32 %v425, %v547
    %v578 = vmul.f32 %v425, %v551
    %v579 = vmul.f32 %v425, %v555
    %v580 = vmul.f32 %v425, %v559
    %v581 = vmul.f32 %v425, %v563
    %v582 = vmul.f32 %v429, %v543
    %v583 = vmul.f32 %v429, %v547
    %v584 = vmul.f32 %v429, %v551
    %v585 = vmul.f32 %v429, %v555
    %v586 = vmul.f32 %v429, %v559
    %v587 = vmul.f32 %v429, %v563
    %v588 = vmul.f32 %v433, %v543
    %v589 = vmul.f32 %v433, %v547
    %v590 = vmul.f32 %v433, %v551
    %v591 = vmul.f32 %v433, %v555
    %v592 = vmul.f32 %v433, %v559
    %v593 = vmul.f32 %v433, %v563
    %v594 = vmul.f32 %v437, %v543
    %v595 = vmul.f32 %v437, %v547
    %v596 = vmul.f32 %v437, %v551
    %v597 = vmul.f32 %v437, %v555
    %v598 = vmul.f32 %v437, %v559
    %v599 = vmul.f32 %v437, %v563
    %v600 = vmul.f32 %v441, %v543
    %v601 = vmul.f32 %v441, %v547
    %v602 = vmul.f32 %v441, %v551
    %v603 = vmul.f32 %v441, %v555
    %v604 = vmul.f32 %v441, %v559
    %v605 = vmul.f32 %v441, %v563
    %v606 = vmul.f32 %v445, %v543
    %v607 = vmul.f32 %v445, %v547
    %v608 = vmul.f32 %v445, %v551
    %v609 = vmul.f32 %v445, %v555
    %v610 = vmul.f32 %v445, %v559
    %v611 = vmul.f32 %v445, %v563
    %v612 = vmul.f32 %v449, %v543
    %v613 = vmul.f32 %v449, %v547
    %v614 = vmul.f32 %v449, %v551
    %v615 = vmul.f32 %v449, %v555
    %v616 = vmul.f32 %v449, %v559
    %v617 = vmul.f32 %v449, %v563
    %v618 = vmul.f32 %v453, %v543
    %v619 = vmul.f32 %v453, %v547
    %v620 = vmul.f32 %v453, %v551
    %v621 = vmul.f32 %v453, %v555
    %v622 = vmul.f32 %v453, %v559
    %v623 = vmul.f32 %v453, %v563
    %v624 = vmul.f32 %v457, %v543
    %v625 = vmul.f32 %v457, %v547
    %v626 = vmul.f32 %v457, %v551
    %v627 = vmul.f32 %v457, %v555
    %v628 = vmul.f32 %v457, %v559
    %v629 = vmul.f32 %v457, %v563
    %v630 = vmul.f32 %v461, %v543
    %v631 = vmul.f32 %v461, %v547
    %v632 = vmul.f32 %v461, %v551
    %v633 = vmul.f32 %v461, %v555
    %v634 = vmul.f32 %v461, %v559
    %v635 = vmul.f32 %v461, %v563
    %v636 = vmul.f32 %v465, %v543
    %v637 = vmul.f32 %v465, %v547
    %v638 = vmul.f32 %v465, %v551
    %v639 = vmul.f32 %v465, %v555
    %v640 = vmul.f32 %v465, %v559
    %v641 = vmul.f32 %v465, %v563
    %v642 = vmul.f32 %v469, %v543
    %v643 = vmul.f32 %v469, %v547
    %v644 = vmul.f32 %v469, %v551
    %v645 = vmul.f32 %v469, %v555
    %v646 = vmul.f32 %v469, %v559
    %v647 = vmul.f32 %v469, %v563
    %v648 = vmul.f32 %v473, %v543
    %v649 = vmul.f32 %v473, %v547
    %v650 = vmul.f32 %v473, %v551
    %v651 = vmul.f32 %v473, %v555
    %v652 = vmul.f32 %v473, %v559
    %v653 = vmul.f32 %v473, %v563
    %v654 = vmul.f32 %v477, %v543
    %v655 = vmul.f32 %v477, %v547
    %v656 = vmul.f32 %v477, %v551
    %v657 = vmul.f32 %v477, %v555
    %v658 = vmul.f32 %v477, %v559
    %v659 = vmul.f32 %v477, %v563
    %v660 = vmul.f32 %v481, %v543
    %v661 = vmul.f32 %v481, %v547
    %v662 = vmul.f32 %v481, %v551
    %v663 = vmul.f32 %v481, %v555
    %v664 = vmul.f32 %v481, %v559
    %v665 = vmul.f32 %v481, %v563
    %v666 = vmul.f32 %v485, %v543
    %v667 = vmul.f32 %v485, %v547
    %v668 = vmul.f32 %v485, %v551
    %v669 = vmul.f32 %v485, %v555
    %v670 = vmul.f32 %v485, %v559
    %v671 = vmul.f32 %v485, %v563
    %v672 = vmul.f32 %v489, %v543
    %v673 = vmul.f32 %v489, %v547
    %v674 = vmul.f32 %v489, %v551
    %v675 = vmul.f32 %v489, %v555
    %v676 = vmul.f32 %v489, %v559
    %v677 = vmul.f32 %v489, %v563
    %v678 = vmul.f32 %v493, %v543
    %v679 = vmul.f32 %v493, %v547
    %v680 = vmul.f32 %v493, %v551
    %v681 = vmul.f32 %v493, %v555
    %v682 = vmul.f32 %v493, %v559
    %v683 = vmul.f32 %v493, %v563
    %v684 = vmul.f32 %v497, %v543
    %v685 = vmul.f32 %v497, %v547
    %v686 = vmul.f32 %v497, %v551
    %v687 = vmul.f32 %v497, %v555
    %v688 = vmul.f32 %v497, %v559
    %v689 = vmul.f32 %v497, %v563
    %v690 = vmul.f32 %v501, %v543
    %v691 = vmul.f32 %v501, %v547
    %v692 = vmul.f32 %v501, %v551
    %v693 = vmul.f32 %v501, %v555
    %v694 = vmul.f32 %v501, %v559
    %v695 = vmul.f32 %v501, %v563
    %v696 = vmul.f32 %v505, %v543
    %v697 = vmul.f32 %v505, %v547
    %v698 = vmul.f32 %v505, %v551
    %v699 = vmul.f32 %v505, %v555
    %v700 = vmul.f32 %v505, %v559
    %v701 = vmul.f32 %v505, %v563
    %v702 = vmul.f32 %v509, %v543
    %v703 = vmul.f32 %v509, %v547
    %v704 = vmul.f32 %v509, %v551
    %v705 = vmul.f32 %v509, %v555
    %v706 = vmul.f32 %v509, %v559
    %v707 = vmul.f32 %v509, %v563
    %v708 = vmul.f32 %v513, %v543
    %v709 = vmul.f32 %v513, %v547
    %v710 = vmul.f32 %v513, %v551
    %v711 = vmul.f32 %v513, %v555
    %v712 = vmul.f32 %v513, %v559
    %v713 = vmul.f32 %v513, %v563
    %v714 = vmul.f32 %v517, %v543
    %v715 = vmul.f32 %v517, %v547
    %v716 = vmul.f32 %v517, %v551
    %v717 = vmul.f32 %v517, %v555
    %v718 = vmul.f32 %v517, %v559
    %v719 = vmul.f32 %v517, %v563
    %v720 = vmul.f32 %v521, %v543
    %v721 = vmul.f32 %v521, %v547
    %v722 = vmul.f32 %v521, %v551
    %v723 = vmul.f32 %v521, %v555
    %v724 = vmul.f32 %v521, %v559
    %v725 = vmul.f32 %v521, %v563
    %v726 = vmul.f32 %v525, %v543
    %v727 = vmul.f32 %v525, %v547
    %v728 = vmul.f32 %v525, %v551
    %v729 = vmul.f32 %v525, %v555
    %v730 = vmul.f32 %v525, %v559
    %v731 = vmul.f32 %v525, %v563
    %v732 = vmul.f32 %v529, %v543
    %v733 = vmul.f32 %v529, %v547
    %v734 = vmul.f32 %v529, %v551
    %v735 = vmul.f32 %v529, %v555
    %v736 = vmul.f32 %v529, %v559
    %v737 = vmul.f32 %v529, %v563
    %v738 = vmul.f32 %v533, %v543
    %v739 = vmul.f32 %v533, %v547
    %v740 = vmul.f32 %v533, %v551
    %v741 = vmul.f32 %v533, %v555
    %v742 = vmul.f32 %v533, %v559
    %v743 = vmul.f32 %v533, %v563
    %v744 = vmul.f32 %v537, %v543
    %v745 = vmul.f32 %v537, %v547
    %v746 = vmul.f32 %v537, %v551
    %v747 = vmul.f32 %v537, %v555
    %v748 = vmul.f32 %v537, %v559
    %v749 = vmul.f32 %v537, %v563
    %v750 = vadd.f32 %v239, %v570
    %v751 = vadd.f32 %v240, %v571
    %v752 = vadd.f32 %v241, %v572
    %v753 = vadd.f32 %v242, %v573
    %v754 = vadd.f32 %v243, %v574
    %v755 = vadd.f32 %v244, %v575
    %v756 = vadd.f32 %v245, %v576
    %v757 = vadd.f32 %v246, %v577
    %v758 = vadd.f32 %v247, %v578
    %v759 = vadd.f32 %v248, %v579
    %v760 = vadd.f32 %v249, %v580
    %v761 = vadd.f32 %v250, %v581
    %v762 = vadd.f32 %v251, %v582
    %v763 = vadd.f32 %v252, %v583
    %v764 = vadd.f32 %v253, %v584
    %v765 = vadd.f32 %v254, %v585
    %v766 = vadd.f32 %v255, %v586
    %v767 = vadd.f32 %v256, %v587
    %v768 = vadd.f32 %v257, %v588
    %v769 = vadd.f32 %v258, %v589
    %v770 = vadd.f32 %v259, %v590
    %v771 = vadd.f32 %v260, %v591
    %v772 = vadd.f32 %v261, %v592
    %v773 = vadd.f32 %v262, %v593
    %v774 = vadd.f32 %v263, %v594
    %v775 = vadd.f32 %v264, %v595
    %v776 = vadd.f32 %v265, %v596
    %v777 = vadd.f32 %v266, %v597
    %v778 = vadd.f32 %v267, %v598
    %v779 = vadd.f32 %v268, %v599
    %v780 = vadd.f32 %v269, %v600
    %v781 = vadd.f32 %v270, %v601
    %v782 = vadd.f32 %v271, %v602
    %v783 = vadd.f32 %v272, %v603
    %v784 = vadd.f32 %v273, %v604
    %v785 = vadd.f32 %v274, %v605
    %v786 = vadd.f32 %v275, %v606
    %v787 = vadd.f32 %v276, %v607
    %v788 = vadd.f32 %v277, %v608
    %v789 = vadd.f32 %v278, %v609
    %v790 = vadd.f32 %v279, %v610
    %v791 = vadd.f32 %v280, %v611
    %v792 = vadd.f32 %v281, %v612
    %v793 = vadd.f32 %v282, %v613
    %v794 = vadd.f32 %v283, %v614
    %v795 = vadd.f32 %v284, %v615
    %v796 = vadd.f32 %v285, %v616
    %v797 = vadd.f32 %v286, %v617
    %v798 = vadd.f32 %v287, %v618
    %v799 = vadd.f32 %v288, %v619
    %v800 = vadd.f32 %v289, %v620
    %v801 = vadd.f32 %v290, %v621
    %v802 = vadd.f32 %v291, %v622
    %v803 = vadd.f32 %v292, %v623
    %v804 = vadd.f32 %v293, %v624
    %v805 = vadd.f32 %v294, %v625
    %v806 = vadd.f32 %v295, %v626
    %v807 = vadd.f32 %v296, %v627
    %v808 = vadd.f32 %v297, %v628
    %v809 = vadd.f32 %v298, %v629
    %v810 = vadd.f32 %v299, %v630
    %v811 = vadd.f32 %v300, %v631
    %v812 = vadd.f32 %v301, %v632
    %v813 = vadd.f32 %v302, %v633
    %v814 = vadd.f32 %v303, %v634
    %v815 = vadd.f32 %v304, %v635
    %v816 = vadd.f32 %v305, %v636
    %v817 = vadd.f32 %v306, %v637
    %v818 = vadd.f32 %v307, %v638
    %v819 = vadd.f32 %v308, %v639
    %v820 = vadd.f32 %v309, %v640
    %v821 = vadd.f32 %v310, %v641
    %v822 = vadd.f32 %v311, %v642
    %v823 = vadd.f32 %v312, %v643
    %v824 = vadd.f32 %v313, %v644
    %v825 = vadd.f32 %v314, %v645
    %v826 = vadd.f32 %v315, %v646
    %v827 = vadd.f32 %v316, %v647
    %v828 = vadd.f32 %v317, %v648
    %v829 = vadd.f32 %v318, %v649
    %v830 = vadd.f32 %v319, %v650
    %v831 = vadd.f32 %v320, %v651
    %v832 = vadd.f32 %v321, %v652
    %v833 = vadd.f32 %v322, %v653
    %v834 = vadd.f32 %v323, %v654
    %v835 = vadd.f32 %v324, %v655
    %v836 = vadd.f32 %v325, %v656
    %v837 = vadd.f32 %v326, %v657
    %v838 = vadd.f32 %v327, %v658
    %v839 = vadd.f32 %v328, %v659
    %v840 = vadd.f32 %v329, %v660
    %v841 = vadd.f32 %v330, %v661
    %v842 = vadd.f32 %v331, %v662
    %v843 = vadd.f32 %v332, %v663
    %v844 = vadd.f32 %v333, %v664
    %v845 = vadd.f32 %v334, %v665
    %v846 = vadd.f32 %v335, %v666
    %v847 = vadd.f32 %v336, %v667
    %v848 = vadd.f32 %v337, %v668
    %v849 = vadd.f32 %v338, %v669
    %v850 = vadd.f32 %v339, %v670
    %v851 = vadd.f32 %v340, %v671
    %v852 = vadd.f32 %v341, %v672
    %v853 = vadd.f32 %v342, %v673
    %v854 = vadd.f32 %v343, %v674
    %v855 = vadd.f32 %v344, %v675
    %v856 = vadd.f32 %v345, %v676
    %v857 = vadd.f32 %v346, %v677
    %v858 = vadd.f32 %v347, %v678
    %v859 = vadd.f32 %v348, %v679
    %v860 = vadd.f32 %v349, %v680
    %v861 = vadd.f32 %v350, %v681
    %v862 = vadd.f32 %v351, %v682
    %v863 = vadd.f32 %v352, %v683
    %v864 = vadd.f32 %v353, %v684
    %v865 = vadd.f32 %v354, %v685
    %v866 = vadd.f32 %v355, %v686
    %v867 = vadd.f32 %v356, %v687
    %v868 = vadd.f32 %v357, %v688
    %v869 = vadd.f32 %v358, %v689
    %v870 = vadd.f32 %v359, %v690
    %v871 = vadd.f32 %v360, %v691
    %v872 = vadd.f32 %v361, %v692
    %v873 = vadd.f32 %v362, %v693
    %v874 = vadd.f32 %v363, %v694
    %v875 = vadd.f32 %v364, %v695
    %v876 = vadd.f32 %v365, %v696
    %v877 = vadd.f32 %v366, %v697
    %v878 = vadd.f32 %v367, %v698
    %v879 = vadd.f32 %v368, %v699
    %v880 = vadd.f32 %v369, %v700
    %v881 = vadd.f32 %v370, %v701
    %v882 = vadd.f32 %v371, %v702
    %v883 = vadd.f32 %v372, %v703
    %v884 = vadd.f32 %v373, %v704
    %v885 = vadd.f32 %v374, %v705
    %v886 = vadd.f32 %v375, %v706
    %v887 = vadd.f32 %v376, %v707
    %v888 = vadd.f32 %v377, %v708
    %v889 = vadd.f32 %v378, %v709
    %v890 = vadd.f32 %v379, %v710
    %v891 = vadd.f32 %v380, %v711
    %v892 = vadd.f32 %v381, %v712
    %v893 = vadd.f32 %v382, %v713
    %v894 = vadd.f32 %v383, %v714
    %v895 = vadd.f32 %v384, %v715
    %v896 = vadd.f32 %v385, %v716
    %v897 = vadd.f32 %v386, %v717
    %v898 = vadd.f32 %v387, %v718
    %v899 = vadd.f32 %v388, %v719
    %v900 = vadd.f32 %v389, %v720
    %v901 = vadd.f32 %v390, %v721
    %v902 = vadd.f32 %v391, %v722
    %v903 = vadd.f32 %v392, %v723
    %v904 = vadd.f32 %v393, %v724
    %v905 = vadd.f32 %v394, %v725
    %v906 = vadd.f32 %v395, %v726
    %v907 = vadd.f32 %v396, %v727
    %v908 = vadd.f32 %v397, %v728
    %v909 = vadd.f32 %v398, %v729
    %v910 = vadd.f32 %v399, %v730
    %v911 = vadd.f32 %v400, %v731
    %v912 = vadd.f32 %v401, %v732
    %v913 = vadd.f32 %v402, %v733
    %v914 = vadd.f32 %v403, %v734
    %v915 = vadd.f32 %v404, %v735
    %v916 = vadd.f32 %v405, %v736
    %v917 = vadd.f32 %v406, %v737
    %v918 = vadd.f32 %v407, %v738
    %v919 = vadd.f32 %v408, %v739
    %v920 = vadd.f32 %v409, %v740
    %v921 = vadd.f32 %v410, %v741
    %v922 = vadd.f32 %v411, %v742
    %v923 = vadd.f32 %v412, %v743
    %v924 = vadd.f32 %v413, %v744
    %v925 = vadd.f32 %v414, %v745
    %v926 = vadd.f32 %v415, %v746
    %v927 = vadd.f32 %v416, %v747
    %v928 = vadd.f32 %v417, %v748
    %v929 = vadd.f32 %v418, %v749
    %930 = vset.pattern.permute.xlu0 2
    %931 = vperm.xlu0 %930, %v28
    %v932 = vpop.permute.xlu0 %931
    %934 = vset.pattern.permute.xlu0 2
    %935 = vperm.xlu0 %934, %v29
    %v936 = vpop.permute.xlu0 %935
    %938 = vset.pattern.permute.xlu0 2
    %939 = vperm.xlu0 %938, %v30
    %v940 = vpop.permute.xlu0 %939
    %942 = vset.pattern.permute.xlu0 2
    %943 = vperm.xlu0 %942, %v31
    %v944 = vpop.permute.xlu0 %943
    %946 = vset.pattern.permute.xlu0 2
    %947 = vperm.xlu0 %946, %v32
    %v948 = vpop.permute.xlu0 %947
    %950 = vset.pattern.permute.xlu0 2
    %951 = vperm.xlu0 %950, %v33
    %v952 = vpop.permute.xlu0 %951
    %954 = vset.pattern.permute.xlu0 2
    %955 = vperm.xlu0 %954, %v34
    %v956 = vpop.permute.xlu0 %955
    %958 = vset.pattern.permute.xlu0 2
    %959 = vperm.xlu0 %958, %v35
    %v960 = vpop.permute.xlu0 %959
    %962 = vset.pattern.permute.xlu0 2
    %963 = vperm.xlu0 %962, %v36
    %v964 = vpop.permute.xlu0 %963
    %966 = vset.pattern.permute.xlu0 2
    %967 = vperm.xlu0 %966, %v37
    %v968 = vpop.permute.xlu0 %967
    %970 = vset.pattern.permute.xlu0 2
    %971 = vperm.xlu0 %970, %v38
    %v972 = vpop.permute.xlu0 %971
    %974 = vset.pattern.permute.xlu0 2
    %975 = vperm.xlu0 %974, %v39
    %v976 = vpop.permute.xlu0 %975
    %978 = vset.pattern.permute.xlu0 2
    %979 = vperm.xlu0 %978, %v40
    %v980 = vpop.permute.xlu0 %979
    %982 = vset.pattern.permute.xlu0 2
    %983 = vperm.xlu0 %982, %v41
    %v984 = vpop.permute.xlu0 %983
    %986 = vset.pattern.permute.xlu0 2
    %987 = vperm.xlu0 %986, %v42
    %v988 = vpop.permute.xlu0 %987
    %990 = vset.pattern.permute.xlu0 2
    %991 = vperm.xlu0 %990, %v43
    %v992 = vpop.permute.xlu0 %991
    %994 = vset.pattern.permute.xlu0 2
    %995 = vperm.xlu0 %994, %v44
    %v996 = vpop.permute.xlu0 %995
    %998 = vset.pattern.permute.xlu0 2
    %999 = vperm.xlu0 %998, %v45
    %v1000 = vpop.permute.xlu0 %999
    %1002 = vset.pattern.permute.xlu0 2
    %1003 = vperm.xlu0 %1002, %v46
    %v1004 = vpop.permute.xlu0 %1003
    %1006 = vset.pattern.permute.xlu0 2
    %1007 = vperm.xlu0 %1006, %v47
    %v1008 = vpop.permute.xlu0 %1007
    %1010 = vset.pattern.permute.xlu0 2
    %1011 = vperm.xlu0 %1010, %v48
    %v1012 = vpop.permute.xlu0 %1011
    %1014 = vset.pattern.permute.xlu0 2
    %1015 = vperm.xlu0 %1014, %v49
    %v1016 = vpop.permute.xlu0 %1015
    %1018 = vset.pattern.permute.xlu0 2
    %1019 = vperm.xlu0 %1018, %v50
    %v1020 = vpop.permute.xlu0 %1019
    %1022 = vset.pattern.permute.xlu0 2
    %1023 = vperm.xlu0 %1022, %v51
    %v1024 = vpop.permute.xlu0 %1023
    %1026 = vset.pattern.permute.xlu0 2
    %1027 = vperm.xlu0 %1026, %v52
    %v1028 = vpop.permute.xlu0 %1027
    %1030 = vset.pattern.permute.xlu0 2
    %1031 = vperm.xlu0 %1030, %v53
    %v1032 = vpop.permute.xlu0 %1031
    %1034 = vset.pattern.permute.xlu0 2
    %1035 = vperm.xlu0 %1034, %v54
    %v1036 = vpop.permute.xlu0 %1035
    %1038 = vset.pattern.permute.xlu0 2
    %1039 = vperm.xlu0 %1038, %v55
    %v1040 = vpop.permute.xlu0 %1039
    %1042 = vset.pattern.permute.xlu0 2
    %1043 = vperm.xlu0 %1042, %v56
    %v1044 = vpop.permute.xlu0 %1043
    %1046 = vset.pattern.permute.xlu0 2
    %1047 = vperm.xlu0 %1046, %v57
    %v1048 = vpop.permute.xlu0 %1047
    %v1051 = vlaneseq
    %v1052 = vshrl.u32 %v1051, 7
    %v1053 = vsub.s32 0, %v1052
    %v1054 = vrot.slane %v27, %v1053
    %v1055 = vlaneseq
    %v1056 = vshrl.u32 %v1055, 7
    %v1057 = vsub.s32 1, %v1056
    %v1058 = vrot.slane %v27, %v1057
    %v1059 = vlaneseq
    %v1060 = vshrl.u32 %v1059, 7
    %v1061 = vsub.s32 2, %v1060
    %v1062 = vrot.slane %v27, %v1061
    %v1063 = vlaneseq
    %v1064 = vshrl.u32 %v1063, 7
    %v1065 = vsub.s32 3, %v1064
    %v1066 = vrot.slane %v27, %v1065
    %v1067 = vlaneseq
    %v1068 = vshrl.u32 %v1067, 7
    %v1069 = vsub.s32 4, %v1068
    %v1070 = vrot.slane %v27, %v1069
    %v1071 = vlaneseq
    %v1072 = vshrl.u32 %v1071, 7
    %v1073 = vsub.s32 5, %v1072
    %v1074 = vrot.slane %v27, %v1073
    %v1081 = vmul.f32 %v932, %v1054
    %v1082 = vmul.f32 %v932, %v1058
    %v1083 = vmul.f32 %v932, %v1062
    %v1084 = vmul.f32 %v932, %v1066
    %v1085 = vmul.f32 %v932, %v1070
    %v1086 = vmul.f32 %v932, %v1074
    %v1087 = vmul.f32 %v936, %v1054
    %v1088 = vmul.f32 %v936, %v1058
    %v1089 = vmul.f32 %v936, %v1062
    %v1090 = vmul.f32 %v936, %v1066
    %v1091 = vmul.f32 %v936, %v1070
    %v1092 = vmul.f32 %v936, %v1074
    %v1093 = vmul.f32 %v940, %v1054
    %v1094 = vmul.f32 %v940, %v1058
    %v1095 = vmul.f32 %v940, %v1062
    %v1096 = vmul.f32 %v940, %v1066
    %v1097 = vmul.f32 %v940, %v1070
    %v1098 = vmul.f32 %v940, %v1074
    %v1099 = vmul.f32 %v944, %v1054
    %v1100 = vmul.f32 %v944, %v1058
    %v1101 = vmul.f32 %v944, %v1062
    %v1102 = vmul.f32 %v944, %v1066
    %v1103 = vmul.f32 %v944, %v1070
    %v1104 = vmul.f32 %v944, %v1074
    %v1105 = vmul.f32 %v948, %v1054
    %v1106 = vmul.f32 %v948, %v1058
    %v1107 = vmul.f32 %v948, %v1062
    %v1108 = vmul.f32 %v948, %v1066
    %v1109 = vmul.f32 %v948, %v1070
    %v1110 = vmul.f32 %v948, %v1074
    %v1111 = vmul.f32 %v952, %v1054
    %v1112 = vmul.f32 %v952, %v1058
    %v1113 = vmul.f32 %v952, %v1062
    %v1114 = vmul.f32 %v952, %v1066
    %v1115 = vmul.f32 %v952, %v1070
    %v1116 = vmul.f32 %v952, %v1074
    %v1117 = vmul.f32 %v956, %v1054
    %v1118 = vmul.f32 %v956, %v1058
    %v1119 = vmul.f32 %v956, %v1062
    %v1120 = vmul.f32 %v956, %v1066
    %v1121 = vmul.f32 %v956, %v1070
    %v1122 = vmul.f32 %v956, %v1074
    %v1123 = vmul.f32 %v960, %v1054
    %v1124 = vmul.f32 %v960, %v1058
    %v1125 = vmul.f32 %v960, %v1062
    %v1126 = vmul.f32 %v960, %v1066
    %v1127 = vmul.f32 %v960, %v1070
    %v1128 = vmul.f32 %v960, %v1074
    %v1129 = vmul.f32 %v964, %v1054
    %v1130 = vmul.f32 %v964, %v1058
    %v1131 = vmul.f32 %v964, %v1062
    %v1132 = vmul.f32 %v964, %v1066
    %v1133 = vmul.f32 %v964, %v1070
    %v1134 = vmul.f32 %v964, %v1074
    %v1135 = vmul.f32 %v968, %v1054
    %v1136 = vmul.f32 %v968, %v1058
    %v1137 = vmul.f32 %v968, %v1062
    %v1138 = vmul.f32 %v968, %v1066
    %v1139 = vmul.f32 %v968, %v1070
    %v1140 = vmul.f32 %v968, %v1074
    %v1141 = vmul.f32 %v972, %v1054
    %v1142 = vmul.f32 %v972, %v1058
    %v1143 = vmul.f32 %v972, %v1062
    %v1144 = vmul.f32 %v972, %v1066
    %v1145 = vmul.f32 %v972, %v1070
    %v1146 = vmul.f32 %v972, %v1074
    %v1147 = vmul.f32 %v976, %v1054
    %v1148 = vmul.f32 %v976, %v1058
    %v1149 = vmul.f32 %v976, %v1062
    %v1150 = vmul.f32 %v976, %v1066
    %v1151 = vmul.f32 %v976, %v1070
    %v1152 = vmul.f32 %v976, %v1074
    %v1153 = vmul.f32 %v980, %v1054
    %v1154 = vmul.f32 %v980, %v1058
    %v1155 = vmul.f32 %v980, %v1062
    %v1156 = vmul.f32 %v980, %v1066
    %v1157 = vmul.f32 %v980, %v1070
    %v1158 = vmul.f32 %v980, %v1074
    %v1159 = vmul.f32 %v984, %v1054
    %v1160 = vmul.f32 %v984, %v1058
    %v1161 = vmul.f32 %v984, %v1062
    %v1162 = vmul.f32 %v984, %v1066
    %v1163 = vmul.f32 %v984, %v1070
    %v1164 = vmul.f32 %v984, %v1074
    %v1165 = vmul.f32 %v988, %v1054
    %v1166 = vmul.f32 %v988, %v1058
    %v1167 = vmul.f32 %v988, %v1062
    %v1168 = vmul.f32 %v988, %v1066
    %v1169 = vmul.f32 %v988, %v1070
    %v1170 = vmul.f32 %v988, %v1074
    %v1171 = vmul.f32 %v992, %v1054
    %v1172 = vmul.f32 %v992, %v1058
    %v1173 = vmul.f32 %v992, %v1062
    %v1174 = vmul.f32 %v992, %v1066
    %v1175 = vmul.f32 %v992, %v1070
    %v1176 = vmul.f32 %v992, %v1074
    %v1177 = vmul.f32 %v996, %v1054
    %v1178 = vmul.f32 %v996, %v1058
    %v1179 = vmul.f32 %v996, %v1062
    %v1180 = vmul.f32 %v996, %v1066
    %v1181 = vmul.f32 %v996, %v1070
    %v1182 = vmul.f32 %v996, %v1074
    %v1183 = vmul.f32 %v1000, %v1054
    %v1184 = vmul.f32 %v1000, %v1058
    %v1185 = vmul.f32 %v1000, %v1062
    %v1186 = vmul.f32 %v1000, %v1066
    %v1187 = vmul.f32 %v1000, %v1070
    %v1188 = vmul.f32 %v1000, %v1074
    %v1189 = vmul.f32 %v1004, %v1054
    %v1190 = vmul.f32 %v1004, %v1058
    %v1191 = vmul.f32 %v1004, %v1062
    %v1192 = vmul.f32 %v1004, %v1066
    %v1193 = vmul.f32 %v1004, %v1070
    %v1194 = vmul.f32 %v1004, %v1074
    %v1195 = vmul.f32 %v1008, %v1054
    %v1196 = vmul.f32 %v1008, %v1058
    %v1197 = vmul.f32 %v1008, %v1062
    %v1198 = vmul.f32 %v1008, %v1066
    %v1199 = vmul.f32 %v1008, %v1070
    %v1200 = vmul.f32 %v1008, %v1074
    %v1201 = vmul.f32 %v1012, %v1054
    %v1202 = vmul.f32 %v1012, %v1058
    %v1203 = vmul.f32 %v1012, %v1062
    %v1204 = vmul.f32 %v1012, %v1066
    %v1205 = vmul.f32 %v1012, %v1070
    %v1206 = vmul.f32 %v1012, %v1074
    %v1207 = vmul.f32 %v1016, %v1054
    %v1208 = vmul.f32 %v1016, %v1058
    %v1209 = vmul.f32 %v1016, %v1062
    %v1210 = vmul.f32 %v1016, %v1066
    %v1211 = vmul.f32 %v1016, %v1070
    %v1212 = vmul.f32 %v1016, %v1074
    %v1213 = vmul.f32 %v1020, %v1054
    %v1214 = vmul.f32 %v1020, %v1058
    %v1215 = vmul.f32 %v1020, %v1062
    %v1216 = vmul.f32 %v1020, %v1066
    %v1217 = vmul.f32 %v1020, %v1070
    %v1218 = vmul.f32 %v1020, %v1074
    %v1219 = vmul.f32 %v1024, %v1054
    %v1220 = vmul.f32 %v1024, %v1058
    %v1221 = vmul.f32 %v1024, %v1062
    %v1222 = vmul.f32 %v1024, %v1066
    %v1223 = vmul.f32 %v1024, %v1070
    %v1224 = vmul.f32 %v1024, %v1074
    %v1225 = vmul.f32 %v1028, %v1054
    %v1226 = vmul.f32 %v1028, %v1058
    %v1227 = vmul.f32 %v1028, %v1062
    %v1228 = vmul.f32 %v1028, %v1066
    %v1229 = vmul.f32 %v1028, %v1070
    %v1230 = vmul.f32 %v1028, %v1074
    %v1231 = vmul.f32 %v1032, %v1054
    %v1232 = vmul.f32 %v1032, %v1058
    %v1233 = vmul.f32 %v1032, %v1062
    %v1234 = vmul.f32 %v1032, %v1066
    %v1235 = vmul.f32 %v1032, %v1070
    %v1236 = vmul.f32 %v1032, %v1074
    %v1237 = vmul.f32 %v1036, %v1054
    %v1238 = vmul.f32 %v1036, %v1058
    %v1239 = vmul.f32 %v1036, %v1062
    %v1240 = vmul.f32 %v1036, %v1066
    %v1241 = vmul.f32 %v1036, %v1070
    %v1242 = vmul.f32 %v1036, %v1074
    %v1243 = vmul.f32 %v1040, %v1054
    %v1244 = vmul.f32 %v1040, %v1058
    %v1245 = vmul.f32 %v1040, %v1062
    %v1246 = vmul.f32 %v1040, %v1066
    %v1247 = vmul.f32 %v1040, %v1070
    %v1248 = vmul.f32 %v1040, %v1074
    %v1249 = vmul.f32 %v1044, %v1054
    %v1250 = vmul.f32 %v1044, %v1058
    %v1251 = vmul.f32 %v1044, %v1062
    %v1252 = vmul.f32 %v1044, %v1066
    %v1253 = vmul.f32 %v1044, %v1070
    %v1254 = vmul.f32 %v1044, %v1074
    %v1255 = vmul.f32 %v1048, %v1054
    %v1256 = vmul.f32 %v1048, %v1058
    %v1257 = vmul.f32 %v1048, %v1062
    %v1258 = vmul.f32 %v1048, %v1066
    %v1259 = vmul.f32 %v1048, %v1070
    %v1260 = vmul.f32 %v1048, %v1074
    %v1261 = vadd.f32 %v750, %v1081
    %v1262 = vadd.f32 %v751, %v1082
    %v1263 = vadd.f32 %v752, %v1083
    %v1264 = vadd.f32 %v753, %v1084
    %v1265 = vadd.f32 %v754, %v1085
    %v1266 = vadd.f32 %v755, %v1086
    %v1267 = vadd.f32 %v756, %v1087
    %v1268 = vadd.f32 %v757, %v1088
    %v1269 = vadd.f32 %v758, %v1089
    %v1270 = vadd.f32 %v759, %v1090
    %v1271 = vadd.f32 %v760, %v1091
    %v1272 = vadd.f32 %v761, %v1092
    %v1273 = vadd.f32 %v762, %v1093
    %v1274 = vadd.f32 %v763, %v1094
    %v1275 = vadd.f32 %v764, %v1095
    %v1276 = vadd.f32 %v765, %v1096
    %v1277 = vadd.f32 %v766, %v1097
    %v1278 = vadd.f32 %v767, %v1098
    %v1279 = vadd.f32 %v768, %v1099
    %v1280 = vadd.f32 %v769, %v1100
    %v1281 = vadd.f32 %v770, %v1101
    %v1282 = vadd.f32 %v771, %v1102
    %v1283 = vadd.f32 %v772, %v1103
    %v1284 = vadd.f32 %v773, %v1104
    %v1285 = vadd.f32 %v774, %v1105
    %v1286 = vadd.f32 %v775, %v1106
    %v1287 = vadd.f32 %v776, %v1107
    %v1288 = vadd.f32 %v777, %v1108
    %v1289 = vadd.f32 %v778, %v1109
    %v1290 = vadd.f32 %v779, %v1110
    %v1291 = vadd.f32 %v780, %v1111
    %v1292 = vadd.f32 %v781, %v1112
    %v1293 = vadd.f32 %v782, %v1113
    %v1294 = vadd.f32 %v783, %v1114
    %v1295 = vadd.f32 %v784, %v1115
    %v1296 = vadd.f32 %v785, %v1116
    %v1297 = vadd.f32 %v786, %v1117
    %v1298 = vadd.f32 %v787, %v1118
    %v1299 = vadd.f32 %v788, %v1119
    %v1300 = vadd.f32 %v789, %v1120
    %v1301 = vadd.f32 %v790, %v1121
    %v1302 = vadd.f32 %v791, %v1122
    %v1303 = vadd.f32 %v792, %v1123
    %v1304 = vadd.f32 %v793, %v1124
    %v1305 = vadd.f32 %v794, %v1125
    %v1306 = vadd.f32 %v795, %v1126
    %v1307 = vadd.f32 %v796, %v1127
    %v1308 = vadd.f32 %v797, %v1128
    %v1309 = vadd.f32 %v798, %v1129
    %v1310 = vadd.f32 %v799, %v1130
    %v1311 = vadd.f32 %v800, %v1131
    %v1312 = vadd.f32 %v801, %v1132
    %v1313 = vadd.f32 %v802, %v1133
    %v1314 = vadd.f32 %v803, %v1134
    %v1315 = vadd.f32 %v804, %v1135
    %v1316 = vadd.f32 %v805, %v1136
    %v1317 = vadd.f32 %v806, %v1137
    %v1318 = vadd.f32 %v807, %v1138
    %v1319 = vadd.f32 %v808, %v1139
    %v1320 = vadd.f32 %v809, %v1140
    %v1321 = vadd.f32 %v810, %v1141
    %v1322 = vadd.f32 %v811, %v1142
    %v1323 = vadd.f32 %v812, %v1143
    %v1324 = vadd.f32 %v813, %v1144
    %v1325 = vadd.f32 %v814, %v1145
    %v1326 = vadd.f32 %v815, %v1146
    %v1327 = vadd.f32 %v816, %v1147
    %v1328 = vadd.f32 %v817, %v1148
    %v1329 = vadd.f32 %v818, %v1149
    %v1330 = vadd.f32 %v819, %v1150
    %v1331 = vadd.f32 %v820, %v1151
    %v1332 = vadd.f32 %v821, %v1152
    %v1333 = vadd.f32 %v822, %v1153
    %v1334 = vadd.f32 %v823, %v1154
    %v1335 = vadd.f32 %v824, %v1155
    %v1336 = vadd.f32 %v825, %v1156
    %v1337 = vadd.f32 %v826, %v1157
    %v1338 = vadd.f32 %v827, %v1158
    %v1339 = vadd.f32 %v828, %v1159
    %v1340 = vadd.f32 %v829, %v1160
    %v1341 = vadd.f32 %v830, %v1161
    %v1342 = vadd.f32 %v831, %v1162
    %v1343 = vadd.f32 %v832, %v1163
    %v1344 = vadd.f32 %v833, %v1164
    %v1345 = vadd.f32 %v834, %v1165
    %v1346 = vadd.f32 %v835, %v1166
    %v1347 = vadd.f32 %v836, %v1167
    %v1348 = vadd.f32 %v837, %v1168
    %v1349 = vadd.f32 %v838, %v1169
    %v1350 = vadd.f32 %v839, %v1170
    %v1351 = vadd.f32 %v840, %v1171
    %v1352 = vadd.f32 %v841, %v1172
    %v1353 = vadd.f32 %v842, %v1173
    %v1354 = vadd.f32 %v843, %v1174
    %v1355 = vadd.f32 %v844, %v1175
    %v1356 = vadd.f32 %v845, %v1176
    %v1357 = vadd.f32 %v846, %v1177
    %v1358 = vadd.f32 %v847, %v1178
    %v1359 = vadd.f32 %v848, %v1179
    %v1360 = vadd.f32 %v849, %v1180
    %v1361 = vadd.f32 %v850, %v1181
    %v1362 = vadd.f32 %v851, %v1182
    %v1363 = vadd.f32 %v852, %v1183
    %v1364 = vadd.f32 %v853, %v1184
    %v1365 = vadd.f32 %v854, %v1185
    %v1366 = vadd.f32 %v855, %v1186
    %v1367 = vadd.f32 %v856, %v1187
    %v1368 = vadd.f32 %v857, %v1188
    %v1369 = vadd.f32 %v858, %v1189
    %v1370 = vadd.f32 %v859, %v1190
    %v1371 = vadd.f32 %v860, %v1191
    %v1372 = vadd.f32 %v861, %v1192
    %v1373 = vadd.f32 %v862, %v1193
    %v1374 = vadd.f32 %v863, %v1194
    %v1375 = vadd.f32 %v864, %v1195
    %v1376 = vadd.f32 %v865, %v1196
    %v1377 = vadd.f32 %v866, %v1197
    %v1378 = vadd.f32 %v867, %v1198
    %v1379 = vadd.f32 %v868, %v1199
    %v1380 = vadd.f32 %v869, %v1200
    %v1381 = vadd.f32 %v870, %v1201
    %v1382 = vadd.f32 %v871, %v1202
    %v1383 = vadd.f32 %v872, %v1203
    %v1384 = vadd.f32 %v873, %v1204
    %v1385 = vadd.f32 %v874, %v1205
    %v1386 = vadd.f32 %v875, %v1206
    %v1387 = vadd.f32 %v876, %v1207
    %v1388 = vadd.f32 %v877, %v1208
    %v1389 = vadd.f32 %v878, %v1209
    %v1390 = vadd.f32 %v879, %v1210
    %v1391 = vadd.f32 %v880, %v1211
    %v1392 = vadd.f32 %v881, %v1212
    %v1393 = vadd.f32 %v882, %v1213
    %v1394 = vadd.f32 %v883, %v1214
    %v1395 = vadd.f32 %v884, %v1215
    %v1396 = vadd.f32 %v885, %v1216
    %v1397 = vadd.f32 %v886, %v1217
    %v1398 = vadd.f32 %v887, %v1218
    %v1399 = vadd.f32 %v888, %v1219
    %v1400 = vadd.f32 %v889, %v1220
    %v1401 = vadd.f32 %v890, %v1221
    %v1402 = vadd.f32 %v891, %v1222
    %v1403 = vadd.f32 %v892, %v1223
    %v1404 = vadd.f32 %v893, %v1224
    %v1405 = vadd.f32 %v894, %v1225
    %v1406 = vadd.f32 %v895, %v1226
    %v1407 = vadd.f32 %v896, %v1227
    %v1408 = vadd.f32 %v897, %v1228
    %v1409 = vadd.f32 %v898, %v1229
    %v1410 = vadd.f32 %v899, %v1230
    %v1411 = vadd.f32 %v900, %v1231
    %v1412 = vadd.f32 %v901, %v1232
    %v1413 = vadd.f32 %v902, %v1233
    %v1414 = vadd.f32 %v903, %v1234
    %v1415 = vadd.f32 %v904, %v1235
    %v1416 = vadd.f32 %v905, %v1236
    %v1417 = vadd.f32 %v906, %v1237
    %v1418 = vadd.f32 %v907, %v1238
    %v1419 = vadd.f32 %v908, %v1239
    %v1420 = vadd.f32 %v909, %v1240
    %v1421 = vadd.f32 %v910, %v1241
    %v1422 = vadd.f32 %v911, %v1242
    %v1423 = vadd.f32 %v912, %v1243
    %v1424 = vadd.f32 %v913, %v1244
    %v1425 = vadd.f32 %v914, %v1245
    %v1426 = vadd.f32 %v915, %v1246
    %v1427 = vadd.f32 %v916, %v1247
    %v1428 = vadd.f32 %v917, %v1248
    %v1429 = vadd.f32 %v918, %v1249
    %v1430 = vadd.f32 %v919, %v1250
    %v1431 = vadd.f32 %v920, %v1251
    %v1432 = vadd.f32 %v921, %v1252
    %v1433 = vadd.f32 %v922, %v1253
    %v1434 = vadd.f32 %v923, %v1254
    %v1435 = vadd.f32 %v924, %v1255
    %v1436 = vadd.f32 %v925, %v1256
    %v1437 = vadd.f32 %v926, %v1257
    %v1438 = vadd.f32 %v927, %v1258
    %v1439 = vadd.f32 %v928, %v1259
    %v1440 = vadd.f32 %v929, %v1260
    %v1442 = vlaneseq
    %v1443 = vshrl.u32 %v1442, 7
    %v1444 = vsub.s32 0, %v1443
    %v1445 = vrot.slane %v22, %v1444
    %v1446 = vlaneseq
    %v1447 = vshrl.u32 %v1446, 7
    %v1448 = vsub.s32 1, %v1447
    %v1449 = vrot.slane %v22, %v1448
    %v1450 = vlaneseq
    %v1451 = vshrl.u32 %v1450, 7
    %v1452 = vsub.s32 2, %v1451
    %v1453 = vrot.slane %v22, %v1452
    %v1454 = vlaneseq
    %v1455 = vshrl.u32 %v1454, 7
    %v1456 = vsub.s32 3, %v1455
    %v1457 = vrot.slane %v22, %v1456
    %v1458 = vlaneseq
    %v1459 = vshrl.u32 %v1458, 7
    %v1460 = vsub.s32 4, %v1459
    %v1461 = vrot.slane %v22, %v1460
    %v1462 = vlaneseq
    %v1463 = vshrl.u32 %v1462, 7
    %v1464 = vsub.s32 5, %v1463
    %v1465 = vrot.slane %v22, %v1464
    %v1472 = vadd.f32 %v1261, %v1445
    %v1473 = vadd.f32 %v1262, %v1449
    %v1474 = vadd.f32 %v1263, %v1453
    %v1475 = vadd.f32 %v1264, %v1457
    %v1476 = vadd.f32 %v1265, %v1461
    %v1477 = vadd.f32 %v1266, %v1465
    %v1478 = vadd.f32 %v1267, %v1445
    %v1479 = vadd.f32 %v1268, %v1449
    %v1480 = vadd.f32 %v1269, %v1453
    %v1481 = vadd.f32 %v1270, %v1457
    %v1482 = vadd.f32 %v1271, %v1461
    %v1483 = vadd.f32 %v1272, %v1465
    %v1484 = vadd.f32 %v1273, %v1445
    %v1485 = vadd.f32 %v1274, %v1449
    %v1486 = vadd.f32 %v1275, %v1453
    %v1487 = vadd.f32 %v1276, %v1457
    %v1488 = vadd.f32 %v1277, %v1461
    %v1489 = vadd.f32 %v1278, %v1465
    %v1490 = vadd.f32 %v1279, %v1445
    %v1491 = vadd.f32 %v1280, %v1449
    %v1492 = vadd.f32 %v1281, %v1453
    %v1493 = vadd.f32 %v1282, %v1457
    %v1494 = vadd.f32 %v1283, %v1461
    %v1495 = vadd.f32 %v1284, %v1465
    %v1496 = vadd.f32 %v1285, %v1445
    %v1497 = vadd.f32 %v1286, %v1449
    %v1498 = vadd.f32 %v1287, %v1453
    %v1499 = vadd.f32 %v1288, %v1457
    %v1500 = vadd.f32 %v1289, %v1461
    %v1501 = vadd.f32 %v1290, %v1465
    %v1502 = vadd.f32 %v1291, %v1445
    %v1503 = vadd.f32 %v1292, %v1449
    %v1504 = vadd.f32 %v1293, %v1453
    %v1505 = vadd.f32 %v1294, %v1457
    %v1506 = vadd.f32 %v1295, %v1461
    %v1507 = vadd.f32 %v1296, %v1465
    %v1508 = vadd.f32 %v1297, %v1445
    %v1509 = vadd.f32 %v1298, %v1449
    %v1510 = vadd.f32 %v1299, %v1453
    %v1511 = vadd.f32 %v1300, %v1457
    %v1512 = vadd.f32 %v1301, %v1461
    %v1513 = vadd.f32 %v1302, %v1465
    %v1514 = vadd.f32 %v1303, %v1445
    %v1515 = vadd.f32 %v1304, %v1449
    %v1516 = vadd.f32 %v1305, %v1453
    %v1517 = vadd.f32 %v1306, %v1457
    %v1518 = vadd.f32 %v1307, %v1461
    %v1519 = vadd.f32 %v1308, %v1465
    %v1520 = vadd.f32 %v1309, %v1445
    %v1521 = vadd.f32 %v1310, %v1449
    %v1522 = vadd.f32 %v1311, %v1453
    %v1523 = vadd.f32 %v1312, %v1457
    %v1524 = vadd.f32 %v1313, %v1461
    %v1525 = vadd.f32 %v1314, %v1465
    %v1526 = vadd.f32 %v1315, %v1445
    %v1527 = vadd.f32 %v1316, %v1449
    %v1528 = vadd.f32 %v1317, %v1453
    %v1529 = vadd.f32 %v1318, %v1457
    %v1530 = vadd.f32 %v1319, %v1461
    %v1531 = vadd.f32 %v1320, %v1465
    %v1532 = vadd.f32 %v1321, %v1445
    %v1533 = vadd.f32 %v1322, %v1449
    %v1534 = vadd.f32 %v1323, %v1453
    %v1535 = vadd.f32 %v1324, %v1457
    %v1536 = vadd.f32 %v1325, %v1461
    %v1537 = vadd.f32 %v1326, %v1465
    %v1538 = vadd.f32 %v1327, %v1445
    %v1539 = vadd.f32 %v1328, %v1449
    %v1540 = vadd.f32 %v1329, %v1453
    %v1541 = vadd.f32 %v1330, %v1457
    %v1542 = vadd.f32 %v1331, %v1461
    %v1543 = vadd.f32 %v1332, %v1465
    %v1544 = vadd.f32 %v1333, %v1445
    %v1545 = vadd.f32 %v1334, %v1449
    %v1546 = vadd.f32 %v1335, %v1453
    %v1547 = vadd.f32 %v1336, %v1457
    %v1548 = vadd.f32 %v1337, %v1461
    %v1549 = vadd.f32 %v1338, %v1465
    %v1550 = vadd.f32 %v1339, %v1445
    %v1551 = vadd.f32 %v1340, %v1449
    %v1552 = vadd.f32 %v1341, %v1453
    %v1553 = vadd.f32 %v1342, %v1457
    %v1554 = vadd.f32 %v1343, %v1461
    %v1555 = vadd.f32 %v1344, %v1465
    %v1556 = vadd.f32 %v1345, %v1445
    %v1557 = vadd.f32 %v1346, %v1449
    %v1558 = vadd.f32 %v1347, %v1453
    %v1559 = vadd.f32 %v1348, %v1457
    %v1560 = vadd.f32 %v1349, %v1461
    %v1561 = vadd.f32 %v1350, %v1465
    %v1562 = vadd.f32 %v1351, %v1445
    %v1563 = vadd.f32 %v1352, %v1449
    %v1564 = vadd.f32 %v1353, %v1453
    %v1565 = vadd.f32 %v1354, %v1457
    %v1566 = vadd.f32 %v1355, %v1461
    %v1567 = vadd.f32 %v1356, %v1465
    %v1568 = vadd.f32 %v1357, %v1445
    %v1569 = vadd.f32 %v1358, %v1449
    %v1570 = vadd.f32 %v1359, %v1453
    %v1571 = vadd.f32 %v1360, %v1457
    %v1572 = vadd.f32 %v1361, %v1461
    %v1573 = vadd.f32 %v1362, %v1465
    %v1574 = vadd.f32 %v1363, %v1445
    %v1575 = vadd.f32 %v1364, %v1449
    %v1576 = vadd.f32 %v1365, %v1453
    %v1577 = vadd.f32 %v1366, %v1457
    %v1578 = vadd.f32 %v1367, %v1461
    %v1579 = vadd.f32 %v1368, %v1465
    %v1580 = vadd.f32 %v1369, %v1445
    %v1581 = vadd.f32 %v1370, %v1449
    %v1582 = vadd.f32 %v1371, %v1453
    %v1583 = vadd.f32 %v1372, %v1457
    %v1584 = vadd.f32 %v1373, %v1461
    %v1585 = vadd.f32 %v1374, %v1465
    %v1586 = vadd.f32 %v1375, %v1445
    %v1587 = vadd.f32 %v1376, %v1449
    %v1588 = vadd.f32 %v1377, %v1453
    %v1589 = vadd.f32 %v1378, %v1457
    %v1590 = vadd.f32 %v1379, %v1461
    %v1591 = vadd.f32 %v1380, %v1465
    %v1592 = vadd.f32 %v1381, %v1445
    %v1593 = vadd.f32 %v1382, %v1449
    %v1594 = vadd.f32 %v1383, %v1453
    %v1595 = vadd.f32 %v1384, %v1457
    %v1596 = vadd.f32 %v1385, %v1461
    %v1597 = vadd.f32 %v1386, %v1465
    %v1598 = vadd.f32 %v1387, %v1445
    %v1599 = vadd.f32 %v1388, %v1449
    %v1600 = vadd.f32 %v1389, %v1453
    %v1601 = vadd.f32 %v1390, %v1457
    %v1602 = vadd.f32 %v1391, %v1461
    %v1603 = vadd.f32 %v1392, %v1465
    %v1604 = vadd.f32 %v1393, %v1445
    %v1605 = vadd.f32 %v1394, %v1449
    %v1606 = vadd.f32 %v1395, %v1453
    %v1607 = vadd.f32 %v1396, %v1457
    %v1608 = vadd.f32 %v1397, %v1461
    %v1609 = vadd.f32 %v1398, %v1465
    %v1610 = vadd.f32 %v1399, %v1445
    %v1611 = vadd.f32 %v1400, %v1449
    %v1612 = vadd.f32 %v1401, %v1453
    %v1613 = vadd.f32 %v1402, %v1457
    %v1614 = vadd.f32 %v1403, %v1461
    %v1615 = vadd.f32 %v1404, %v1465
    %v1616 = vadd.f32 %v1405, %v1445
    %v1617 = vadd.f32 %v1406, %v1449
    %v1618 = vadd.f32 %v1407, %v1453
    %v1619 = vadd.f32 %v1408, %v1457
    %v1620 = vadd.f32 %v1409, %v1461
    %v1621 = vadd.f32 %v1410, %v1465
    %v1622 = vadd.f32 %v1411, %v1445
    %v1623 = vadd.f32 %v1412, %v1449
    %v1624 = vadd.f32 %v1413, %v1453
    %v1625 = vadd.f32 %v1414, %v1457
    %v1626 = vadd.f32 %v1415, %v1461
    %v1627 = vadd.f32 %v1416, %v1465
    %v1628 = vadd.f32 %v1417, %v1445
    %v1629 = vadd.f32 %v1418, %v1449
    %v1630 = vadd.f32 %v1419, %v1453
    %v1631 = vadd.f32 %v1420, %v1457
    %v1632 = vadd.f32 %v1421, %v1461
    %v1633 = vadd.f32 %v1422, %v1465
    %v1634 = vadd.f32 %v1423, %v1445
    %v1635 = vadd.f32 %v1424, %v1449
    %v1636 = vadd.f32 %v1425, %v1453
    %v1637 = vadd.f32 %v1426, %v1457
    %v1638 = vadd.f32 %v1427, %v1461
    %v1639 = vadd.f32 %v1428, %v1465
    %v1640 = vadd.f32 %v1429, %v1445
    %v1641 = vadd.f32 %v1430, %v1449
    %v1642 = vadd.f32 %v1431, %v1453
    %v1643 = vadd.f32 %v1432, %v1457
    %v1644 = vadd.f32 %v1433, %v1461
    %v1645 = vadd.f32 %v1434, %v1465
    %v1646 = vadd.f32 %v1435, %v1445
    %v1647 = vadd.f32 %v1436, %v1449
    %v1648 = vadd.f32 %v1437, %v1453
    %v1649 = vadd.f32 %v1438, %v1457
    %v1650 = vadd.f32 %v1439, %v1461
    %v1651 = vadd.f32 %v1440, %v1465
    %v1652 = vmax.f32 %v1472, 0.0
    %v1653 = vmax.f32 %v1473, 0.0
    %v1654 = vmax.f32 %v1474, 0.0
    %v1655 = vmax.f32 %v1475, 0.0
    %v1656 = vmax.f32 %v1476, 0.0
    %v1657 = vmax.f32 %v1477, 0.0
    %v1658 = vmax.f32 %v1478, 0.0
    %v1659 = vmax.f32 %v1479, 0.0
    %v1660 = vmax.f32 %v1480, 0.0
    %v1661 = vmax.f32 %v1481, 0.0
    %v1662 = vmax.f32 %v1482, 0.0
    %v1663 = vmax.f32 %v1483, 0.0
    %v1664 = vmax.f32 %v1484, 0.0
    %v1665 = vmax.f32 %v1485, 0.0
    %v1666 = vmax.f32 %v1486, 0.0
    %v1667 = vmax.f32 %v1487, 0.0
    %v1668 = vmax.f32 %v1488, 0.0
    %v1669 = vmax.f32 %v1489, 0.0
    %v1670 = vmax.f32 %v1490, 0.0
    %v1671 = vmax.f32 %v1491, 0.0
    %v1672 = vmax.f32 %v1492, 0.0
    %v1673 = vmax.f32 %v1493, 0.0
    %v1674 = vmax.f32 %v1494, 0.0
    %v1675 = vmax.f32 %v1495, 0.0
    %v1676 = vmax.f32 %v1496, 0.0
    %v1677 = vmax.f32 %v1497, 0.0
    %v1678 = vmax.f32 %v1498, 0.0
    %v1679 = vmax.f32 %v1499, 0.0
    %v1680 = vmax.f32 %v1500, 0.0
    %v1681 = vmax.f32 %v1501, 0.0
    %v1682 = vmax.f32 %v1502, 0.0
    %v1683 = vmax.f32 %v1503, 0.0
    %v1684 = vmax.f32 %v1504, 0.0
    %v1685 = vmax.f32 %v1505, 0.0
    %v1686 = vmax.f32 %v1506, 0.0
    %v1687 = vmax.f32 %v1507, 0.0
    %v1688 = vmax.f32 %v1508, 0.0
    %v1689 = vmax.f32 %v1509, 0.0
    %v1690 = vmax.f32 %v1510, 0.0
    %v1691 = vmax.f32 %v1511, 0.0
    %v1692 = vmax.f32 %v1512, 0.0
    %v1693 = vmax.f32 %v1513, 0.0
    %v1694 = vmax.f32 %v1514, 0.0
    %v1695 = vmax.f32 %v1515, 0.0
    %v1696 = vmax.f32 %v1516, 0.0
    %v1697 = vmax.f32 %v1517, 0.0
    %v1698 = vmax.f32 %v1518, 0.0
    %v1699 = vmax.f32 %v1519, 0.0
    %v1700 = vmax.f32 %v1520, 0.0
    %v1701 = vmax.f32 %v1521, 0.0
    %v1702 = vmax.f32 %v1522, 0.0
    %v1703 = vmax.f32 %v1523, 0.0
    %v1704 = vmax.f32 %v1524, 0.0
    %v1705 = vmax.f32 %v1525, 0.0
    %v1706 = vmax.f32 %v1526, 0.0
    %v1707 = vmax.f32 %v1527, 0.0
    %v1708 = vmax.f32 %v1528, 0.0
    %v1709 = vmax.f32 %v1529, 0.0
    %v1710 = vmax.f32 %v1530, 0.0
    %v1711 = vmax.f32 %v1531, 0.0
    %v1712 = vmax.f32 %v1532, 0.0
    %v1713 = vmax.f32 %v1533, 0.0
    %v1714 = vmax.f32 %v1534, 0.0
    %v1715 = vmax.f32 %v1535, 0.0
    %v1716 = vmax.f32 %v1536, 0.0
    %v1717 = vmax.f32 %v1537, 0.0
    %v1718 = vmax.f32 %v1538, 0.0
    %v1719 = vmax.f32 %v1539, 0.0
    %v1720 = vmax.f32 %v1540, 0.0
    %v1721 = vmax.f32 %v1541, 0.0
    %v1722 = vmax.f32 %v1542, 0.0
    %v1723 = vmax.f32 %v1543, 0.0
    %v1724 = vmax.f32 %v1544, 0.0
    %v1725 = vmax.f32 %v1545, 0.0
    %v1726 = vmax.f32 %v1546, 0.0
    %v1727 = vmax.f32 %v1547, 0.0
    %v1728 = vmax.f32 %v1548, 0.0
    %v1729 = vmax.f32 %v1549, 0.0
    %v1730 = vmax.f32 %v1550, 0.0
    %v1731 = vmax.f32 %v1551, 0.0
    %v1732 = vmax.f32 %v1552, 0.0
    %v1733 = vmax.f32 %v1553, 0.0
    %v1734 = vmax.f32 %v1554, 0.0
    %v1735 = vmax.f32 %v1555, 0.0
    %v1736 = vmax.f32 %v1556, 0.0
    %v1737 = vmax.f32 %v1557, 0.0
    %v1738 = vmax.f32 %v1558, 0.0
    %v1739 = vmax.f32 %v1559, 0.0
    %v1740 = vmax.f32 %v1560, 0.0
    %v1741 = vmax.f32 %v1561, 0.0
    %v1742 = vmax.f32 %v1562, 0.0
    %v1743 = vmax.f32 %v1563, 0.0
    %v1744 = vmax.f32 %v1564, 0.0
    %v1745 = vmax.f32 %v1565, 0.0
    %v1746 = vmax.f32 %v1566, 0.0
    %v1747 = vmax.f32 %v1567, 0.0
    %v1748 = vmax.f32 %v1568, 0.0
    %v1749 = vmax.f32 %v1569, 0.0
    %v1750 = vmax.f32 %v1570, 0.0
    %v1751 = vmax.f32 %v1571, 0.0
    %v1752 = vmax.f32 %v1572, 0.0
    %v1753 = vmax.f32 %v1573, 0.0
    %v1754 = vmax.f32 %v1574, 0.0
    %v1755 = vmax.f32 %v1575, 0.0
    %v1756 = vmax.f32 %v1576, 0.0
    %v1757 = vmax.f32 %v1577, 0.0
    %v1758 = vmax.f32 %v1578, 0.0
    %v1759 = vmax.f32 %v1579, 0.0
    %v1760 = vmax.f32 %v1580, 0.0
    %v1761 = vmax.f32 %v1581, 0.0
    %v1762 = vmax.f32 %v1582, 0.0
    %v1763 = vmax.f32 %v1583, 0.0
    %v1764 = vmax.f32 %v1584, 0.0
    %v1765 = vmax.f32 %v1585, 0.0
    %v1766 = vmax.f32 %v1586, 0.0
    %v1767 = vmax.f32 %v1587, 0.0
    %v1768 = vmax.f32 %v1588, 0.0
    %v1769 = vmax.f32 %v1589, 0.0
    %v1770 = vmax.f32 %v1590, 0.0
    %v1771 = vmax.f32 %v1591, 0.0
    %v1772 = vmax.f32 %v1592, 0.0
    %v1773 = vmax.f32 %v1593, 0.0
    %v1774 = vmax.f32 %v1594, 0.0
    %v1775 = vmax.f32 %v1595, 0.0
    %v1776 = vmax.f32 %v1596, 0.0
    %v1777 = vmax.f32 %v1597, 0.0
    %v1778 = vmax.f32 %v1598, 0.0
    %v1779 = vmax.f32 %v1599, 0.0
    %v1780 = vmax.f32 %v1600, 0.0
    %v1781 = vmax.f32 %v1601, 0.0
    %v1782 = vmax.f32 %v1602, 0.0
    %v1783 = vmax.f32 %v1603, 0.0
    %v1784 = vmax.f32 %v1604, 0.0
    %v1785 = vmax.f32 %v1605, 0.0
    %v1786 = vmax.f32 %v1606, 0.0
    %v1787 = vmax.f32 %v1607, 0.0
    %v1788 = vmax.f32 %v1608, 0.0
    %v1789 = vmax.f32 %v1609, 0.0
    %v1790 = vmax.f32 %v1610, 0.0
    %v1791 = vmax.f32 %v1611, 0.0
    %v1792 = vmax.f32 %v1612, 0.0
    %v1793 = vmax.f32 %v1613, 0.0
    %v1794 = vmax.f32 %v1614, 0.0
    %v1795 = vmax.f32 %v1615, 0.0
    %v1796 = vmax.f32 %v1616, 0.0
    %v1797 = vmax.f32 %v1617, 0.0
    %v1798 = vmax.f32 %v1618, 0.0
    %v1799 = vmax.f32 %v1619, 0.0
    %v1800 = vmax.f32 %v1620, 0.0
    %v1801 = vmax.f32 %v1621, 0.0
    %v1802 = vmax.f32 %v1622, 0.0
    %v1803 = vmax.f32 %v1623, 0.0
    %v1804 = vmax.f32 %v1624, 0.0
    %v1805 = vmax.f32 %v1625, 0.0
    %v1806 = vmax.f32 %v1626, 0.0
    %v1807 = vmax.f32 %v1627, 0.0
    %v1808 = vmax.f32 %v1628, 0.0
    %v1809 = vmax.f32 %v1629, 0.0
    %v1810 = vmax.f32 %v1630, 0.0
    %v1811 = vmax.f32 %v1631, 0.0
    %v1812 = vmax.f32 %v1632, 0.0
    %v1813 = vmax.f32 %v1633, 0.0
    %v1814 = vmax.f32 %v1634, 0.0
    %v1815 = vmax.f32 %v1635, 0.0
    %v1816 = vmax.f32 %v1636, 0.0
    %v1817 = vmax.f32 %v1637, 0.0
    %v1818 = vmax.f32 %v1638, 0.0
    %v1819 = vmax.f32 %v1639, 0.0
    %v1820 = vmax.f32 %v1640, 0.0
    %v1821 = vmax.f32 %v1641, 0.0
    %v1822 = vmax.f32 %v1642, 0.0
    %v1823 = vmax.f32 %v1643, 0.0
    %v1824 = vmax.f32 %v1644, 0.0
    %v1825 = vmax.f32 %v1645, 0.0
    %v1826 = vmax.f32 %v1646, 0.0
    %v1827 = vmax.f32 %v1647, 0.0
    %v1828 = vmax.f32 %v1648, 0.0
    %v1829 = vmax.f32 %v1649, 0.0
    %v1830 = vmax.f32 %v1650, 0.0
    %v1831 = vmax.f32 %v1651, 0.0
    %v1832 = vadd.f32 %v1652, %v1658
    %v1833 = vadd.f32 %v1832, %v1664
    %v1834 = vadd.f32 %v1833, %v1670
    %v1835 = vadd.f32 %v1834, %v1676
    %v1836 = vadd.f32 %v1835, %v1682
    %v1837 = vadd.f32 %v1836, %v1688
    %v1838 = vadd.f32 %v1837, %v1694
    %v1839 = vadd.f32 %v1838, %v1700
    %v1840 = vadd.f32 %v1839, %v1706
    %v1841 = vadd.f32 %v1840, %v1712
    %v1842 = vadd.f32 %v1841, %v1718
    %v1843 = vadd.f32 %v1842, %v1724
    %v1844 = vadd.f32 %v1843, %v1730
    %v1845 = vadd.f32 %v1844, %v1736
    %v1846 = vadd.f32 %v1845, %v1742
    %v1847 = vadd.f32 %v1846, %v1748
    %v1848 = vadd.f32 %v1847, %v1754
    %v1849 = vadd.f32 %v1848, %v1760
    %v1850 = vadd.f32 %v1849, %v1766
    %v1851 = vadd.f32 %v1850, %v1772
    %v1852 = vadd.f32 %v1851, %v1778
    %v1853 = vadd.f32 %v1852, %v1784
    %v1854 = vadd.f32 %v1853, %v1790
    %v1855 = vadd.f32 %v1854, %v1796
    %v1856 = vadd.f32 %v1855, %v1802
    %v1857 = vadd.f32 %v1856, %v1808
    %v1858 = vadd.f32 %v1857, %v1814
    %v1859 = vadd.f32 %v1858, %v1820
    %v1860 = vadd.f32 %v1859, %v1826
    %v1861 = vrot.slane %v1860, 4
    %v1862 = vadd.f32 %v1860, %v1861
    %v1863 = vrot.slane %v1862, 2
    %v1864 = vadd.f32 %v1862, %v1863
    %v1865 = vrot.slane %v1864, 1
    %v1866 = vadd.f32 %v1864, %v1865
    %v1867 = vadd.f32 %v1653, %v1659
    %v1868 = vadd.f32 %v1867, %v1665
    %v1869 = vadd.f32 %v1868, %v1671
    %v1870 = vadd.f32 %v1869, %v1677
    %v1871 = vadd.f32 %v1870, %v1683
    %v1872 = vadd.f32 %v1871, %v1689
    %v1873 = vadd.f32 %v1872, %v1695
    %v1874 = vadd.f32 %v1873, %v1701
    %v1875 = vadd.f32 %v1874, %v1707
    %v1876 = vadd.f32 %v1875, %v1713
    %v1877 = vadd.f32 %v1876, %v1719
    %v1878 = vadd.f32 %v1877, %v1725
    %v1879 = vadd.f32 %v1878, %v1731
    %v1880 = vadd.f32 %v1879, %v1737
    %v1881 = vadd.f32 %v1880, %v1743
    %v1882 = vadd.f32 %v1881, %v1749
    %v1883 = vadd.f32 %v1882, %v1755
    %v1884 = vadd.f32 %v1883, %v1761
    %v1885 = vadd.f32 %v1884, %v1767
    %v1886 = vadd.f32 %v1885, %v1773
    %v1887 = vadd.f32 %v1886, %v1779
    %v1888 = vadd.f32 %v1887, %v1785
    %v1889 = vadd.f32 %v1888, %v1791
    %v1890 = vadd.f32 %v1889, %v1797
    %v1891 = vadd.f32 %v1890, %v1803
    %v1892 = vadd.f32 %v1891, %v1809
    %v1893 = vadd.f32 %v1892, %v1815
    %v1894 = vadd.f32 %v1893, %v1821
    %v1895 = vadd.f32 %v1894, %v1827
    %v1896 = vrot.slane %v1895, 4
    %v1897 = vadd.f32 %v1895, %v1896
    %v1898 = vrot.slane %v1897, 2
    %v1899 = vadd.f32 %v1897, %v1898
    %v1900 = vrot.slane %v1899, 1
    %v1901 = vadd.f32 %v1899, %v1900
    %v1902 = vadd.f32 %v1654, %v1660
    %v1903 = vadd.f32 %v1902, %v1666
    %v1904 = vadd.f32 %v1903, %v1672
    %v1905 = vadd.f32 %v1904, %v1678
    %v1906 = vadd.f32 %v1905, %v1684
    %v1907 = vadd.f32 %v1906, %v1690
    %v1908 = vadd.f32 %v1907, %v1696
    %v1909 = vadd.f32 %v1908, %v1702
    %v1910 = vadd.f32 %v1909, %v1708
    %v1911 = vadd.f32 %v1910, %v1714
    %v1912 = vadd.f32 %v1911, %v1720
    %v1913 = vadd.f32 %v1912, %v1726
    %v1914 = vadd.f32 %v1913, %v1732
    %v1915 = vadd.f32 %v1914, %v1738
    %v1916 = vadd.f32 %v1915, %v1744
    %v1917 = vadd.f32 %v1916, %v1750
    %v1918 = vadd.f32 %v1917, %v1756
    %v1919 = vadd.f32 %v1918, %v1762
    %v1920 = vadd.f32 %v1919, %v1768
    %v1921 = vadd.f32 %v1920, %v1774
    %v1922 = vadd.f32 %v1921, %v1780
    %v1923 = vadd.f32 %v1922, %v1786
    %v1924 = vadd.f32 %v1923, %v1792
    %v1925 = vadd.f32 %v1924, %v1798
    %v1926 = vadd.f32 %v1925, %v1804
    %v1927 = vadd.f32 %v1926, %v1810
    %v1928 = vadd.f32 %v1927, %v1816
    %v1929 = vadd.f32 %v1928, %v1822
    %v1930 = vadd.f32 %v1929, %v1828
    %v1931 = vrot.slane %v1930, 4
    %v1932 = vadd.f32 %v1930, %v1931
    %v1933 = vrot.slane %v1932, 2
    %v1934 = vadd.f32 %v1932, %v1933
    %v1935 = vrot.slane %v1934, 1
    %v1936 = vadd.f32 %v1934, %v1935
    %v1937 = vadd.f32 %v1655, %v1661
    %v1938 = vadd.f32 %v1937, %v1667
    %v1939 = vadd.f32 %v1938, %v1673
    %v1940 = vadd.f32 %v1939, %v1679
    %v1941 = vadd.f32 %v1940, %v1685
    %v1942 = vadd.f32 %v1941, %v1691
    %v1943 = vadd.f32 %v1942, %v1697
    %v1944 = vadd.f32 %v1943, %v1703
    %v1945 = vadd.f32 %v1944, %v1709
    %v1946 = vadd.f32 %v1945, %v1715
    %v1947 = vadd.f32 %v1946, %v1721
    %v1948 = vadd.f32 %v1947, %v1727
    %v1949 = vadd.f32 %v1948, %v1733
    %v1950 = vadd.f32 %v1949, %v1739
    %v1951 = vadd.f32 %v1950, %v1745
    %v1952 = vadd.f32 %v1951, %v1751
    %v1953 = vadd.f32 %v1952, %v1757
    %v1954 = vadd.f32 %v1953, %v1763
    %v1955 = vadd.f32 %v1954, %v1769
    %v1956 = vadd.f32 %v1955, %v1775
    %v1957 = vadd.f32 %v1956, %v1781
    %v1958 = vadd.f32 %v1957, %v1787
    %v1959 = vadd.f32 %v1958, %v1793
    %v1960 = vadd.f32 %v1959, %v1799
    %v1961 = vadd.f32 %v1960, %v1805
    %v1962 = vadd.f32 %v1961, %v1811
    %v1963 = vadd.f32 %v1962, %v1817
    %v1964 = vadd.f32 %v1963, %v1823
    %v1965 = vadd.f32 %v1964, %v1829
    %v1966 = vrot.slane %v1965, 4
    %v1967 = vadd.f32 %v1965, %v1966
    %v1968 = vrot.slane %v1967, 2
    %v1969 = vadd.f32 %v1967, %v1968
    %v1970 = vrot.slane %v1969, 1
    %v1971 = vadd.f32 %v1969, %v1970
    %v1972 = vadd.f32 %v1656, %v1662
    %v1973 = vadd.f32 %v1972, %v1668
    %v1974 = vadd.f32 %v1973, %v1674
    %v1975 = vadd.f32 %v1974, %v1680
    %v1976 = vadd.f32 %v1975, %v1686
    %v1977 = vadd.f32 %v1976, %v1692
    %v1978 = vadd.f32 %v1977, %v1698
    %v1979 = vadd.f32 %v1978, %v1704
    %v1980 = vadd.f32 %v1979, %v1710
    %v1981 = vadd.f32 %v1980, %v1716
    %v1982 = vadd.f32 %v1981, %v1722
    %v1983 = vadd.f32 %v1982, %v1728
    %v1984 = vadd.f32 %v1983, %v1734
    %v1985 = vadd.f32 %v1984, %v1740
    %v1986 = vadd.f32 %v1985, %v1746
    %v1987 = vadd.f32 %v1986, %v1752
    %v1988 = vadd.f32 %v1987, %v1758
    %v1989 = vadd.f32 %v1988, %v1764
    %v1990 = vadd.f32 %v1989, %v1770
    %v1991 = vadd.f32 %v1990, %v1776
    %v1992 = vadd.f32 %v1991, %v1782
    %v1993 = vadd.f32 %v1992, %v1788
    %v1994 = vadd.f32 %v1993, %v1794
    %v1995 = vadd.f32 %v1994, %v1800
    %v1996 = vadd.f32 %v1995, %v1806
    %v1997 = vadd.f32 %v1996, %v1812
    %v1998 = vadd.f32 %v1997, %v1818
    %v1999 = vadd.f32 %v1998, %v1824
    %v2000 = vadd.f32 %v1999, %v1830
    %v2001 = vrot.slane %v2000, 4
    %v2002 = vadd.f32 %v2000, %v2001
    %v2003 = vrot.slane %v2002, 2
    %v2004 = vadd.f32 %v2002, %v2003
    %v2005 = vrot.slane %v2004, 1
    %v2006 = vadd.f32 %v2004, %v2005
    %v2007 = vadd.f32 %v1657, %v1663
    %v2008 = vadd.f32 %v2007, %v1669
    %v2009 = vadd.f32 %v2008, %v1675
    %v2010 = vadd.f32 %v2009, %v1681
    %v2011 = vadd.f32 %v2010, %v1687
    %v2012 = vadd.f32 %v2011, %v1693
    %v2013 = vadd.f32 %v2012, %v1699
    %v2014 = vadd.f32 %v2013, %v1705
    %v2015 = vadd.f32 %v2014, %v1711
    %v2016 = vadd.f32 %v2015, %v1717
    %v2017 = vadd.f32 %v2016, %v1723
    %v2018 = vadd.f32 %v2017, %v1729
    %v2019 = vadd.f32 %v2018, %v1735
    %v2020 = vadd.f32 %v2019, %v1741
    %v2021 = vadd.f32 %v2020, %v1747
    %v2022 = vadd.f32 %v2021, %v1753
    %v2023 = vadd.f32 %v2022, %v1759
    %v2024 = vadd.f32 %v2023, %v1765
    %v2025 = vadd.f32 %v2024, %v1771
    %v2026 = vadd.f32 %v2025, %v1777
    %v2027 = vadd.f32 %v2026, %v1783
    %v2028 = vadd.f32 %v2027, %v1789
    %v2029 = vadd.f32 %v2028, %v1795
    %v2030 = vadd.f32 %v2029, %v1801
    %v2031 = vadd.f32 %v2030, %v1807
    %v2032 = vadd.f32 %v2031, %v1813
    %v2033 = vadd.f32 %v2032, %v1819
    %v2034 = vadd.f32 %v2033, %v1825
    %v2035 = vadd.f32 %v2034, %v1831
    %v2036 = vrot.slane %v2035, 4
    %v2037 = vadd.f32 %v2035, %v2036
    %v2038 = vrot.slane %v2037, 2
    %v2039 = vadd.f32 %v2037, %v2038
    %v2040 = vrot.slane %v2039, 1
    %v2041 = vadd.f32 %v2039, %v2040
    %v2042 = vadd.f32 %v1866, 0.0
    %v2043 = vadd.f32 %v1901, 0.0
    %v2044 = vadd.f32 %v1936, 0.0
    %v2045 = vadd.f32 %v1971, 0.0
    %v2046 = vadd.f32 %v2006, 0.0
    %v2047 = vadd.f32 %v2041, 0.0
    %v2048 = vld [vmem:[%s0 + $0xf0] sm:$0xff]
    %v2049 = vld [vmem:[%s0 + $0xf8] sm:$0xff]
    %v2050 = vld [vmem:[%s0 + $0x100] sm:$0xff]
    %v2051 = vld [vmem:[%s0 + $0x108] sm:$0xff]
    %v2052 = vld [vmem:[%s0 + $0x110] sm:$0xff]
    %v2053 = vld [vmem:[%s0 + $0x118] sm:$0xff]
    %v2054 = vld [vmem:[%s0 + $0x120] sm:$0xff]
    %v2055 = vld [vmem:[%s0 + $0x128] sm:$0xff]
    %v2056 = vld [vmem:[%s0 + $0x130] sm:$0xff]
    %v2057 = vld [vmem:[%s0 + $0x138] sm:$0xff]
    %v2058 = vld [vmem:[%s0 + $0x140] sm:$0xff]
    %v2059 = vld [vmem:[%s0 + $0x148] sm:$0xff]
    %v2060 = vld [vmem:[%s0 + $0x150] sm:$0xff]
    %v2061 = vld [vmem:[%s0 + $0x158] sm:$0xff]
    %v2062 = vld [vmem:[%s0 + $0x160] sm:$0xff]
    %v2063 = vld [vmem:[%s0 + $0x168] sm:$0xff]
    %v2064 = vld [vmem:[%s0 + $0x170] sm:$0xff]
    %v2065 = vld [vmem:[%s0 + $0x178] sm:$0xff]
    %v2066 = vld [vmem:[%s0 + $0x180] sm:$0xff]
    %v2067 = vld [vmem:[%s0 + $0x188] sm:$0xff]
    %v2068 = vld [vmem:[%s0 + $0x190] sm:$0xff]
    %v2069 = vld [vmem:[%s0 + $0x198] sm:$0xff]
    %v2070 = vld [vmem:[%s0 + $0x1a0] sm:$0xff]
    %v2071 = vld [vmem:[%s0 + $0x1a8] sm:$0xff]
    %v2072 = vld [vmem:[%s0 + $0x1b0] sm:$0xff]
    %v2073 = vld [vmem:[%s0 + $0x1b8] sm:$0xff]
    %v2074 = vld [vmem:[%s0 + $0x1c0] sm:$0xff]
    %v2075 = vld [vmem:[%s0 + $0x1c8] sm:$0xff]
    %v2076 = vld [vmem:[%s0 + $0x1d0] sm:$0xff]
    %v2077 = vld [vmem:[%s0 + $0x1d8] sm:$0xff]
    %2079 = vset.pattern.permute.xlu0 0
    %2080 = vperm.xlu0 %2079, %v2048
    %v2081 = vpop.permute.xlu0 %2080
    %2084 = vset.pattern.permute.xlu0 0
    %2085 = vperm.xlu0 %2084, %v2049
    %v2086 = vpop.permute.xlu0 %2085
    %2089 = vset.pattern.permute.xlu0 0
    %2090 = vperm.xlu0 %2089, %v2050
    %v2091 = vpop.permute.xlu0 %2090
    %2094 = vset.pattern.permute.xlu0 0
    %2095 = vperm.xlu0 %2094, %v2051
    %v2096 = vpop.permute.xlu0 %2095
    %2099 = vset.pattern.permute.xlu0 0
    %2100 = vperm.xlu0 %2099, %v2052
    %v2101 = vpop.permute.xlu0 %2100
    %2104 = vset.pattern.permute.xlu0 0
    %2105 = vperm.xlu0 %2104, %v2053
    %v2106 = vpop.permute.xlu0 %2105
    %2109 = vset.pattern.permute.xlu0 0
    %2110 = vperm.xlu0 %2109, %v2054
    %v2111 = vpop.permute.xlu0 %2110
    %2114 = vset.pattern.permute.xlu0 0
    %2115 = vperm.xlu0 %2114, %v2055
    %v2116 = vpop.permute.xlu0 %2115
    %2119 = vset.pattern.permute.xlu0 0
    %2120 = vperm.xlu0 %2119, %v2056
    %v2121 = vpop.permute.xlu0 %2120
    %2124 = vset.pattern.permute.xlu0 0
    %2125 = vperm.xlu0 %2124, %v2057
    %v2126 = vpop.permute.xlu0 %2125
    %2129 = vset.pattern.permute.xlu0 0
    %2130 = vperm.xlu0 %2129, %v2058
    %v2131 = vpop.permute.xlu0 %2130
    %2134 = vset.pattern.permute.xlu0 0
    %2135 = vperm.xlu0 %2134, %v2059
    %v2136 = vpop.permute.xlu0 %2135
    %2139 = vset.pattern.permute.xlu0 0
    %2140 = vperm.xlu0 %2139, %v2060
    %v2141 = vpop.permute.xlu0 %2140
    %2144 = vset.pattern.permute.xlu0 0
    %2145 = vperm.xlu0 %2144, %v2061
    %v2146 = vpop.permute.xlu0 %2145
    %2149 = vset.pattern.permute.xlu0 0
    %2150 = vperm.xlu0 %2149, %v2062
    %v2151 = vpop.permute.xlu0 %2150
    %2154 = vset.pattern.permute.xlu0 0
    %2155 = vperm.xlu0 %2154, %v2063
    %v2156 = vpop.permute.xlu0 %2155
    %2159 = vset.pattern.permute.xlu0 0
    %2160 = vperm.xlu0 %2159, %v2064
    %v2161 = vpop.permute.xlu0 %2160
    %2164 = vset.pattern.permute.xlu0 0
    %2165 = vperm.xlu0 %2164, %v2065
    %v2166 = vpop.permute.xlu0 %2165
    %2169 = vset.pattern.permute.xlu0 0
    %2170 = vperm.xlu0 %2169, %v2066
    %v2171 = vpop.permute.xlu0 %2170
    %2174 = vset.pattern.permute.xlu0 0
    %2175 = vperm.xlu0 %2174, %v2067
    %v2176 = vpop.permute.xlu0 %2175
    %2179 = vset.pattern.permute.xlu0 0
    %2180 = vperm.xlu0 %2179, %v2068
    %v2181 = vpop.permute.xlu0 %2180
    %2184 = vset.pattern.permute.xlu0 0
    %2185 = vperm.xlu0 %2184, %v2069
    %v2186 = vpop.permute.xlu0 %2185
    %2189 = vset.pattern.permute.xlu0 0
    %2190 = vperm.xlu0 %2189, %v2070
    %v2191 = vpop.permute.xlu0 %2190
    %2194 = vset.pattern.permute.xlu0 0
    %2195 = vperm.xlu0 %2194, %v2071
    %v2196 = vpop.permute.xlu0 %2195
    %2199 = vset.pattern.permute.xlu0 0
    %2200 = vperm.xlu0 %2199, %v2072
    %v2201 = vpop.permute.xlu0 %2200
    %2204 = vset.pattern.permute.xlu0 0
    %2205 = vperm.xlu0 %2204, %v2073
    %v2206 = vpop.permute.xlu0 %2205
    %2209 = vset.pattern.permute.xlu0 0
    %2210 = vperm.xlu0 %2209, %v2074
    %v2211 = vpop.permute.xlu0 %2210
    %2214 = vset.pattern.permute.xlu0 0
    %2215 = vperm.xlu0 %2214, %v2075
    %v2216 = vpop.permute.xlu0 %2215
    %2219 = vset.pattern.permute.xlu0 0
    %2220 = vperm.xlu0 %2219, %v2076
    %v2221 = vpop.permute.xlu0 %2220
    %2224 = vset.pattern.permute.xlu0 0
    %2225 = vperm.xlu0 %2224, %v2077
    %v2226 = vpop.permute.xlu0 %2225
    %v2228 = vmul.f32 %v2081, %v212
    %v2229 = vmul.f32 %v2081, %v216
    %v2230 = vmul.f32 %v2081, %v220
    %v2231 = vmul.f32 %v2081, %v224
    %v2232 = vmul.f32 %v2081, %v228
    %v2233 = vmul.f32 %v2081, %v232
    %v2234 = vmul.f32 %v2086, %v212
    %v2235 = vmul.f32 %v2086, %v216
    %v2236 = vmul.f32 %v2086, %v220
    %v2237 = vmul.f32 %v2086, %v224
    %v2238 = vmul.f32 %v2086, %v228
    %v2239 = vmul.f32 %v2086, %v232
    %v2240 = vmul.f32 %v2091, %v212
    %v2241 = vmul.f32 %v2091, %v216
    %v2242 = vmul.f32 %v2091, %v220
    %v2243 = vmul.f32 %v2091, %v224
    %v2244 = vmul.f32 %v2091, %v228
    %v2245 = vmul.f32 %v2091, %v232
    %v2246 = vmul.f32 %v2096, %v212
    %v2247 = vmul.f32 %v2096, %v216
    %v2248 = vmul.f32 %v2096, %v220
    %v2249 = vmul.f32 %v2096, %v224
    %v2250 = vmul.f32 %v2096, %v228
    %v2251 = vmul.f32 %v2096, %v232
    %v2252 = vmul.f32 %v2101, %v212
    %v2253 = vmul.f32 %v2101, %v216
    %v2254 = vmul.f32 %v2101, %v220
    %v2255 = vmul.f32 %v2101, %v224
    %v2256 = vmul.f32 %v2101, %v228
    %v2257 = vmul.f32 %v2101, %v232
    %v2258 = vmul.f32 %v2106, %v212
    %v2259 = vmul.f32 %v2106, %v216
    %v2260 = vmul.f32 %v2106, %v220
    %v2261 = vmul.f32 %v2106, %v224
    %v2262 = vmul.f32 %v2106, %v228
    %v2263 = vmul.f32 %v2106, %v232
    %v2264 = vmul.f32 %v2111, %v212
    %v2265 = vmul.f32 %v2111, %v216
    %v2266 = vmul.f32 %v2111, %v220
    %v2267 = vmul.f32 %v2111, %v224
    %v2268 = vmul.f32 %v2111, %v228
    %v2269 = vmul.f32 %v2111, %v232
    %v2270 = vmul.f32 %v2116, %v212
    %v2271 = vmul.f32 %v2116, %v216
    %v2272 = vmul.f32 %v2116, %v220
    %v2273 = vmul.f32 %v2116, %v224
    %v2274 = vmul.f32 %v2116, %v228
    %v2275 = vmul.f32 %v2116, %v232
    %v2276 = vmul.f32 %v2121, %v212
    %v2277 = vmul.f32 %v2121, %v216
    %v2278 = vmul.f32 %v2121, %v220
    %v2279 = vmul.f32 %v2121, %v224
    %v2280 = vmul.f32 %v2121, %v228
    %v2281 = vmul.f32 %v2121, %v232
    %v2282 = vmul.f32 %v2126, %v212
    %v2283 = vmul.f32 %v2126, %v216
    %v2284 = vmul.f32 %v2126, %v220
    %v2285 = vmul.f32 %v2126, %v224
    %v2286 = vmul.f32 %v2126, %v228
    %v2287 = vmul.f32 %v2126, %v232
    %v2288 = vmul.f32 %v2131, %v212
    %v2289 = vmul.f32 %v2131, %v216
    %v2290 = vmul.f32 %v2131, %v220
    %v2291 = vmul.f32 %v2131, %v224
    %v2292 = vmul.f32 %v2131, %v228
    %v2293 = vmul.f32 %v2131, %v232
    %v2294 = vmul.f32 %v2136, %v212
    %v2295 = vmul.f32 %v2136, %v216
    %v2296 = vmul.f32 %v2136, %v220
    %v2297 = vmul.f32 %v2136, %v224
    %v2298 = vmul.f32 %v2136, %v228
    %v2299 = vmul.f32 %v2136, %v232
    %v2300 = vmul.f32 %v2141, %v212
    %v2301 = vmul.f32 %v2141, %v216
    %v2302 = vmul.f32 %v2141, %v220
    %v2303 = vmul.f32 %v2141, %v224
    %v2304 = vmul.f32 %v2141, %v228
    %v2305 = vmul.f32 %v2141, %v232
    %v2306 = vmul.f32 %v2146, %v212
    %v2307 = vmul.f32 %v2146, %v216
    %v2308 = vmul.f32 %v2146, %v220
    %v2309 = vmul.f32 %v2146, %v224
    %v2310 = vmul.f32 %v2146, %v228
    %v2311 = vmul.f32 %v2146, %v232
    %v2312 = vmul.f32 %v2151, %v212
    %v2313 = vmul.f32 %v2151, %v216
    %v2314 = vmul.f32 %v2151, %v220
    %v2315 = vmul.f32 %v2151, %v224
    %v2316 = vmul.f32 %v2151, %v228
    %v2317 = vmul.f32 %v2151, %v232
    %v2318 = vmul.f32 %v2156, %v212
    %v2319 = vmul.f32 %v2156, %v216
    %v2320 = vmul.f32 %v2156, %v220
    %v2321 = vmul.f32 %v2156, %v224
    %v2322 = vmul.f32 %v2156, %v228
    %v2323 = vmul.f32 %v2156, %v232
    %v2324 = vmul.f32 %v2161, %v212
    %v2325 = vmul.f32 %v2161, %v216
    %v2326 = vmul.f32 %v2161, %v220
    %v2327 = vmul.f32 %v2161, %v224
    %v2328 = vmul.f32 %v2161, %v228
    %v2329 = vmul.f32 %v2161, %v232
    %v2330 = vmul.f32 %v2166, %v212
    %v2331 = vmul.f32 %v2166, %v216
    %v2332 = vmul.f32 %v2166, %v220
    %v2333 = vmul.f32 %v2166, %v224
    %v2334 = vmul.f32 %v2166, %v228
    %v2335 = vmul.f32 %v2166, %v232
    %v2336 = vmul.f32 %v2171, %v212
    %v2337 = vmul.f32 %v2171, %v216
    %v2338 = vmul.f32 %v2171, %v220
    %v2339 = vmul.f32 %v2171, %v224
    %v2340 = vmul.f32 %v2171, %v228
    %v2341 = vmul.f32 %v2171, %v232
    %v2342 = vmul.f32 %v2176, %v212
    %v2343 = vmul.f32 %v2176, %v216
    %v2344 = vmul.f32 %v2176, %v220
    %v2345 = vmul.f32 %v2176, %v224
    %v2346 = vmul.f32 %v2176, %v228
    %v2347 = vmul.f32 %v2176, %v232
    %v2348 = vmul.f32 %v2181, %v212
    %v2349 = vmul.f32 %v2181, %v216
    %v2350 = vmul.f32 %v2181, %v220
    %v2351 = vmul.f32 %v2181, %v224
    %v2352 = vmul.f32 %v2181, %v228
    %v2353 = vmul.f32 %v2181, %v232
    %v2354 = vmul.f32 %v2186, %v212
    %v2355 = vmul.f32 %v2186, %v216
    %v2356 = vmul.f32 %v2186, %v220
    %v2357 = vmul.f32 %v2186, %v224
    %v2358 = vmul.f32 %v2186, %v228
    %v2359 = vmul.f32 %v2186, %v232
    %v2360 = vmul.f32 %v2191, %v212
    %v2361 = vmul.f32 %v2191, %v216
    %v2362 = vmul.f32 %v2191, %v220
    %v2363 = vmul.f32 %v2191, %v224
    %v2364 = vmul.f32 %v2191, %v228
    %v2365 = vmul.f32 %v2191, %v232
    %v2366 = vmul.f32 %v2196, %v212
    %v2367 = vmul.f32 %v2196, %v216
    %v2368 = vmul.f32 %v2196, %v220
    %v2369 = vmul.f32 %v2196, %v224
    %v2370 = vmul.f32 %v2196, %v228
    %v2371 = vmul.f32 %v2196, %v232
    %v2372 = vmul.f32 %v2201, %v212
    %v2373 = vmul.f32 %v2201, %v216
    %v2374 = vmul.f32 %v2201, %v220
    %v2375 = vmul.f32 %v2201, %v224
    %v2376 = vmul.f32 %v2201, %v228
    %v2377 = vmul.f32 %v2201, %v232
    %v2378 = vmul.f32 %v2206, %v212
    %v2379 = vmul.f32 %v2206, %v216
    %v2380 = vmul.f32 %v2206, %v220
    %v2381 = vmul.f32 %v2206, %v224
    %v2382 = vmul.f32 %v2206, %v228
    %v2383 = vmul.f32 %v2206, %v232
    %v2384 = vmul.f32 %v2211, %v212
    %v2385 = vmul.f32 %v2211, %v216
    %v2386 = vmul.f32 %v2211, %v220
    %v2387 = vmul.f32 %v2211, %v224
    %v2388 = vmul.f32 %v2211, %v228
    %v2389 = vmul.f32 %v2211, %v232
    %v2390 = vmul.f32 %v2216, %v212
    %v2391 = vmul.f32 %v2216, %v216
    %v2392 = vmul.f32 %v2216, %v220
    %v2393 = vmul.f32 %v2216, %v224
    %v2394 = vmul.f32 %v2216, %v228
    %v2395 = vmul.f32 %v2216, %v232
    %v2396 = vmul.f32 %v2221, %v212
    %v2397 = vmul.f32 %v2221, %v216
    %v2398 = vmul.f32 %v2221, %v220
    %v2399 = vmul.f32 %v2221, %v224
    %v2400 = vmul.f32 %v2221, %v228
    %v2401 = vmul.f32 %v2221, %v232
    %v2402 = vmul.f32 %v2226, %v212
    %v2403 = vmul.f32 %v2226, %v216
    %v2404 = vmul.f32 %v2226, %v220
    %v2405 = vmul.f32 %v2226, %v224
    %v2406 = vmul.f32 %v2226, %v228
    %v2407 = vmul.f32 %v2226, %v232
    %2408 = vset.pattern.permute.xlu0 1
    %2409 = vperm.xlu0 %2408, %v2048
    %v2410 = vpop.permute.xlu0 %2409
    %2412 = vset.pattern.permute.xlu0 1
    %2413 = vperm.xlu0 %2412, %v2049
    %v2414 = vpop.permute.xlu0 %2413
    %2416 = vset.pattern.permute.xlu0 1
    %2417 = vperm.xlu0 %2416, %v2050
    %v2418 = vpop.permute.xlu0 %2417
    %2420 = vset.pattern.permute.xlu0 1
    %2421 = vperm.xlu0 %2420, %v2051
    %v2422 = vpop.permute.xlu0 %2421
    %2424 = vset.pattern.permute.xlu0 1
    %2425 = vperm.xlu0 %2424, %v2052
    %v2426 = vpop.permute.xlu0 %2425
    %2428 = vset.pattern.permute.xlu0 1
    %2429 = vperm.xlu0 %2428, %v2053
    %v2430 = vpop.permute.xlu0 %2429
    %2432 = vset.pattern.permute.xlu0 1
    %2433 = vperm.xlu0 %2432, %v2054
    %v2434 = vpop.permute.xlu0 %2433
    %2436 = vset.pattern.permute.xlu0 1
    %2437 = vperm.xlu0 %2436, %v2055
    %v2438 = vpop.permute.xlu0 %2437
    %2440 = vset.pattern.permute.xlu0 1
    %2441 = vperm.xlu0 %2440, %v2056
    %v2442 = vpop.permute.xlu0 %2441
    %2444 = vset.pattern.permute.xlu0 1
    %2445 = vperm.xlu0 %2444, %v2057
    %v2446 = vpop.permute.xlu0 %2445
    %2448 = vset.pattern.permute.xlu0 1
    %2449 = vperm.xlu0 %2448, %v2058
    %v2450 = vpop.permute.xlu0 %2449
    %2452 = vset.pattern.permute.xlu0 1
    %2453 = vperm.xlu0 %2452, %v2059
    %v2454 = vpop.permute.xlu0 %2453
    %2456 = vset.pattern.permute.xlu0 1
    %2457 = vperm.xlu0 %2456, %v2060
    %v2458 = vpop.permute.xlu0 %2457
    %2460 = vset.pattern.permute.xlu0 1
    %2461 = vperm.xlu0 %2460, %v2061
    %v2462 = vpop.permute.xlu0 %2461
    %2464 = vset.pattern.permute.xlu0 1
    %2465 = vperm.xlu0 %2464, %v2062
    %v2466 = vpop.permute.xlu0 %2465
    %2468 = vset.pattern.permute.xlu0 1
    %2469 = vperm.xlu0 %2468, %v2063
    %v2470 = vpop.permute.xlu0 %2469
    %2472 = vset.pattern.permute.xlu0 1
    %2473 = vperm.xlu0 %2472, %v2064
    %v2474 = vpop.permute.xlu0 %2473
    %2476 = vset.pattern.permute.xlu0 1
    %2477 = vperm.xlu0 %2476, %v2065
    %v2478 = vpop.permute.xlu0 %2477
    %2480 = vset.pattern.permute.xlu0 1
    %2481 = vperm.xlu0 %2480, %v2066
    %v2482 = vpop.permute.xlu0 %2481
    %2484 = vset.pattern.permute.xlu0 1
    %2485 = vperm.xlu0 %2484, %v2067
    %v2486 = vpop.permute.xlu0 %2485
    %2488 = vset.pattern.permute.xlu0 1
    %2489 = vperm.xlu0 %2488, %v2068
    %v2490 = vpop.permute.xlu0 %2489
    %2492 = vset.pattern.permute.xlu0 1
    %2493 = vperm.xlu0 %2492, %v2069
    %v2494 = vpop.permute.xlu0 %2493
    %2496 = vset.pattern.permute.xlu0 1
    %2497 = vperm.xlu0 %2496, %v2070
    %v2498 = vpop.permute.xlu0 %2497
    %2500 = vset.pattern.permute.xlu0 1
    %2501 = vperm.xlu0 %2500, %v2071
    %v2502 = vpop.permute.xlu0 %2501
    %2504 = vset.pattern.permute.xlu0 1
    %2505 = vperm.xlu0 %2504, %v2072
    %v2506 = vpop.permute.xlu0 %2505
    %2508 = vset.pattern.permute.xlu0 1
    %2509 = vperm.xlu0 %2508, %v2073
    %v2510 = vpop.permute.xlu0 %2509
    %2512 = vset.pattern.permute.xlu0 1
    %2513 = vperm.xlu0 %2512, %v2074
    %v2514 = vpop.permute.xlu0 %2513
    %2516 = vset.pattern.permute.xlu0 1
    %2517 = vperm.xlu0 %2516, %v2075
    %v2518 = vpop.permute.xlu0 %2517
    %2520 = vset.pattern.permute.xlu0 1
    %2521 = vperm.xlu0 %2520, %v2076
    %v2522 = vpop.permute.xlu0 %2521
    %2524 = vset.pattern.permute.xlu0 1
    %2525 = vperm.xlu0 %2524, %v2077
    %v2526 = vpop.permute.xlu0 %2525
    %v2528 = vmul.f32 %v2410, %v543
    %v2529 = vmul.f32 %v2410, %v547
    %v2530 = vmul.f32 %v2410, %v551
    %v2531 = vmul.f32 %v2410, %v555
    %v2532 = vmul.f32 %v2410, %v559
    %v2533 = vmul.f32 %v2410, %v563
    %v2534 = vmul.f32 %v2414, %v543
    %v2535 = vmul.f32 %v2414, %v547
    %v2536 = vmul.f32 %v2414, %v551
    %v2537 = vmul.f32 %v2414, %v555
    %v2538 = vmul.f32 %v2414, %v559
    %v2539 = vmul.f32 %v2414, %v563
    %v2540 = vmul.f32 %v2418, %v543
    %v2541 = vmul.f32 %v2418, %v547
    %v2542 = vmul.f32 %v2418, %v551
    %v2543 = vmul.f32 %v2418, %v555
    %v2544 = vmul.f32 %v2418, %v559
    %v2545 = vmul.f32 %v2418, %v563
    %v2546 = vmul.f32 %v2422, %v543
    %v2547 = vmul.f32 %v2422, %v547
    %v2548 = vmul.f32 %v2422, %v551
    %v2549 = vmul.f32 %v2422, %v555
    %v2550 = vmul.f32 %v2422, %v559
    %v2551 = vmul.f32 %v2422, %v563
    %v2552 = vmul.f32 %v2426, %v543
    %v2553 = vmul.f32 %v2426, %v547
    %v2554 = vmul.f32 %v2426, %v551
    %v2555 = vmul.f32 %v2426, %v555
    %v2556 = vmul.f32 %v2426, %v559
    %v2557 = vmul.f32 %v2426, %v563
    %v2558 = vmul.f32 %v2430, %v543
    %v2559 = vmul.f32 %v2430, %v547
    %v2560 = vmul.f32 %v2430, %v551
    %v2561 = vmul.f32 %v2430, %v555
    %v2562 = vmul.f32 %v2430, %v559
    %v2563 = vmul.f32 %v2430, %v563
    %v2564 = vmul.f32 %v2434, %v543
    %v2565 = vmul.f32 %v2434, %v547
    %v2566 = vmul.f32 %v2434, %v551
    %v2567 = vmul.f32 %v2434, %v555
    %v2568 = vmul.f32 %v2434, %v559
    %v2569 = vmul.f32 %v2434, %v563
    %v2570 = vmul.f32 %v2438, %v543
    %v2571 = vmul.f32 %v2438, %v547
    %v2572 = vmul.f32 %v2438, %v551
    %v2573 = vmul.f32 %v2438, %v555
    %v2574 = vmul.f32 %v2438, %v559
    %v2575 = vmul.f32 %v2438, %v563
    %v2576 = vmul.f32 %v2442, %v543
    %v2577 = vmul.f32 %v2442, %v547
    %v2578 = vmul.f32 %v2442, %v551
    %v2579 = vmul.f32 %v2442, %v555
    %v2580 = vmul.f32 %v2442, %v559
    %v2581 = vmul.f32 %v2442, %v563
    %v2582 = vmul.f32 %v2446, %v543
    %v2583 = vmul.f32 %v2446, %v547
    %v2584 = vmul.f32 %v2446, %v551
    %v2585 = vmul.f32 %v2446, %v555
    %v2586 = vmul.f32 %v2446, %v559
    %v2587 = vmul.f32 %v2446, %v563
    %v2588 = vmul.f32 %v2450, %v543
    %v2589 = vmul.f32 %v2450, %v547
    %v2590 = vmul.f32 %v2450, %v551
    %v2591 = vmul.f32 %v2450, %v555
    %v2592 = vmul.f32 %v2450, %v559
    %v2593 = vmul.f32 %v2450, %v563
    %v2594 = vmul.f32 %v2454, %v543
    %v2595 = vmul.f32 %v2454, %v547
    %v2596 = vmul.f32 %v2454, %v551
    %v2597 = vmul.f32 %v2454, %v555
    %v2598 = vmul.f32 %v2454, %v559
    %v2599 = vmul.f32 %v2454, %v563
    %v2600 = vmul.f32 %v2458, %v543
    %v2601 = vmul.f32 %v2458, %v547
    %v2602 = vmul.f32 %v2458, %v551
    %v2603 = vmul.f32 %v2458, %v555
    %v2604 = vmul.f32 %v2458, %v559
    %v2605 = vmul.f32 %v2458, %v563
    %v2606 = vmul.f32 %v2462, %v543
    %v2607 = vmul.f32 %v2462, %v547
    %v2608 = vmul.f32 %v2462, %v551
    %v2609 = vmul.f32 %v2462, %v555
    %v2610 = vmul.f32 %v2462, %v559
    %v2611 = vmul.f32 %v2462, %v563
    %v2612 = vmul.f32 %v2466, %v543
    %v2613 = vmul.f32 %v2466, %v547
    %v2614 = vmul.f32 %v2466, %v551
    %v2615 = vmul.f32 %v2466, %v555
    %v2616 = vmul.f32 %v2466, %v559
    %v2617 = vmul.f32 %v2466, %v563
    %v2618 = vmul.f32 %v2470, %v543
    %v2619 = vmul.f32 %v2470, %v547
    %v2620 = vmul.f32 %v2470, %v551
    %v2621 = vmul.f32 %v2470, %v555
    %v2622 = vmul.f32 %v2470, %v559
    %v2623 = vmul.f32 %v2470, %v563
    %v2624 = vmul.f32 %v2474, %v543
    %v2625 = vmul.f32 %v2474, %v547
    %v2626 = vmul.f32 %v2474, %v551
    %v2627 = vmul.f32 %v2474, %v555
    %v2628 = vmul.f32 %v2474, %v559
    %v2629 = vmul.f32 %v2474, %v563
    %v2630 = vmul.f32 %v2478, %v543
    %v2631 = vmul.f32 %v2478, %v547
    %v2632 = vmul.f32 %v2478, %v551
    %v2633 = vmul.f32 %v2478, %v555
    %v2634 = vmul.f32 %v2478, %v559
    %v2635 = vmul.f32 %v2478, %v563
    %v2636 = vmul.f32 %v2482, %v543
    %v2637 = vmul.f32 %v2482, %v547
    %v2638 = vmul.f32 %v2482, %v551
    %v2639 = vmul.f32 %v2482, %v555
    %v2640 = vmul.f32 %v2482, %v559
    %v2641 = vmul.f32 %v2482, %v563
    %v2642 = vmul.f32 %v2486, %v543
    %v2643 = vmul.f32 %v2486, %v547
    %v2644 = vmul.f32 %v2486, %v551
    %v2645 = vmul.f32 %v2486, %v555
    %v2646 = vmul.f32 %v2486, %v559
    %v2647 = vmul.f32 %v2486, %v563
    %v2648 = vmul.f32 %v2490, %v543
    %v2649 = vmul.f32 %v2490, %v547
    %v2650 = vmul.f32 %v2490, %v551
    %v2651 = vmul.f32 %v2490, %v555
    %v2652 = vmul.f32 %v2490, %v559
    %v2653 = vmul.f32 %v2490, %v563
    %v2654 = vmul.f32 %v2494, %v543
    %v2655 = vmul.f32 %v2494, %v547
    %v2656 = vmul.f32 %v2494, %v551
    %v2657 = vmul.f32 %v2494, %v555
    %v2658 = vmul.f32 %v2494, %v559
    %v2659 = vmul.f32 %v2494, %v563
    %v2660 = vmul.f32 %v2498, %v543
    %v2661 = vmul.f32 %v2498, %v547
    %v2662 = vmul.f32 %v2498, %v551
    %v2663 = vmul.f32 %v2498, %v555
    %v2664 = vmul.f32 %v2498, %v559
    %v2665 = vmul.f32 %v2498, %v563
    %v2666 = vmul.f32 %v2502, %v543
    %v2667 = vmul.f32 %v2502, %v547
    %v2668 = vmul.f32 %v2502, %v551
    %v2669 = vmul.f32 %v2502, %v555
    %v2670 = vmul.f32 %v2502, %v559
    %v2671 = vmul.f32 %v2502, %v563
    %v2672 = vmul.f32 %v2506, %v543
    %v2673 = vmul.f32 %v2506, %v547
    %v2674 = vmul.f32 %v2506, %v551
    %v2675 = vmul.f32 %v2506, %v555
    %v2676 = vmul.f32 %v2506, %v559
    %v2677 = vmul.f32 %v2506, %v563
    %v2678 = vmul.f32 %v2510, %v543
    %v2679 = vmul.f32 %v2510, %v547
    %v2680 = vmul.f32 %v2510, %v551
    %v2681 = vmul.f32 %v2510, %v555
    %v2682 = vmul.f32 %v2510, %v559
    %v2683 = vmul.f32 %v2510, %v563
    %v2684 = vmul.f32 %v2514, %v543
    %v2685 = vmul.f32 %v2514, %v547
    %v2686 = vmul.f32 %v2514, %v551
    %v2687 = vmul.f32 %v2514, %v555
    %v2688 = vmul.f32 %v2514, %v559
    %v2689 = vmul.f32 %v2514, %v563
    %v2690 = vmul.f32 %v2518, %v543
    %v2691 = vmul.f32 %v2518, %v547
    %v2692 = vmul.f32 %v2518, %v551
    %v2693 = vmul.f32 %v2518, %v555
    %v2694 = vmul.f32 %v2518, %v559
    %v2695 = vmul.f32 %v2518, %v563
    %v2696 = vmul.f32 %v2522, %v543
    %v2697 = vmul.f32 %v2522, %v547
    %v2698 = vmul.f32 %v2522, %v551
    %v2699 = vmul.f32 %v2522, %v555
    %v2700 = vmul.f32 %v2522, %v559
    %v2701 = vmul.f32 %v2522, %v563
    %v2702 = vmul.f32 %v2526, %v543
    %v2703 = vmul.f32 %v2526, %v547
    %v2704 = vmul.f32 %v2526, %v551
    %v2705 = vmul.f32 %v2526, %v555
    %v2706 = vmul.f32 %v2526, %v559
    %v2707 = vmul.f32 %v2526, %v563
    %v2708 = vadd.f32 %v2228, %v2528
    %v2709 = vadd.f32 %v2229, %v2529
    %v2710 = vadd.f32 %v2230, %v2530
    %v2711 = vadd.f32 %v2231, %v2531
    %v2712 = vadd.f32 %v2232, %v2532
    %v2713 = vadd.f32 %v2233, %v2533
    %v2714 = vadd.f32 %v2234, %v2534
    %v2715 = vadd.f32 %v2235, %v2535
    %v2716 = vadd.f32 %v2236, %v2536
    %v2717 = vadd.f32 %v2237, %v2537
    %v2718 = vadd.f32 %v2238, %v2538
    %v2719 = vadd.f32 %v2239, %v2539
    %v2720 = vadd.f32 %v2240, %v2540
    %v2721 = vadd.f32 %v2241, %v2541
    %v2722 = vadd.f32 %v2242, %v2542
    %v2723 = vadd.f32 %v2243, %v2543
    %v2724 = vadd.f32 %v2244, %v2544
    %v2725 = vadd.f32 %v2245, %v2545
    %v2726 = vadd.f32 %v2246, %v2546
    %v2727 = vadd.f32 %v2247, %v2547
    %v2728 = vadd.f32 %v2248, %v2548
    %v2729 = vadd.f32 %v2249, %v2549
    %v2730 = vadd.f32 %v2250, %v2550
    %v2731 = vadd.f32 %v2251, %v2551
    %v2732 = vadd.f32 %v2252, %v2552
    %v2733 = vadd.f32 %v2253, %v2553
    %v2734 = vadd.f32 %v2254, %v2554
    %v2735 = vadd.f32 %v2255, %v2555
    %v2736 = vadd.f32 %v2256, %v2556
    %v2737 = vadd.f32 %v2257, %v2557
    %v2738 = vadd.f32 %v2258, %v2558
    %v2739 = vadd.f32 %v2259, %v2559
    %v2740 = vadd.f32 %v2260, %v2560
    %v2741 = vadd.f32 %v2261, %v2561
    %v2742 = vadd.f32 %v2262, %v2562
    %v2743 = vadd.f32 %v2263, %v2563
    %v2744 = vadd.f32 %v2264, %v2564
    %v2745 = vadd.f32 %v2265, %v2565
    %v2746 = vadd.f32 %v2266, %v2566
    %v2747 = vadd.f32 %v2267, %v2567
    %v2748 = vadd.f32 %v2268, %v2568
    %v2749 = vadd.f32 %v2269, %v2569
    %v2750 = vadd.f32 %v2270, %v2570
    %v2751 = vadd.f32 %v2271, %v2571
    %v2752 = vadd.f32 %v2272, %v2572
    %v2753 = vadd.f32 %v2273, %v2573
    %v2754 = vadd.f32 %v2274, %v2574
    %v2755 = vadd.f32 %v2275, %v2575
    %v2756 = vadd.f32 %v2276, %v2576
    %v2757 = vadd.f32 %v2277, %v2577
    %v2758 = vadd.f32 %v2278, %v2578
    %v2759 = vadd.f32 %v2279, %v2579
    %v2760 = vadd.f32 %v2280, %v2580
    %v2761 = vadd.f32 %v2281, %v2581
    %v2762 = vadd.f32 %v2282, %v2582
    %v2763 = vadd.f32 %v2283, %v2583
    %v2764 = vadd.f32 %v2284, %v2584
    %v2765 = vadd.f32 %v2285, %v2585
    %v2766 = vadd.f32 %v2286, %v2586
    %v2767 = vadd.f32 %v2287, %v2587
    %v2768 = vadd.f32 %v2288, %v2588
    %v2769 = vadd.f32 %v2289, %v2589
    %v2770 = vadd.f32 %v2290, %v2590
    %v2771 = vadd.f32 %v2291, %v2591
    %v2772 = vadd.f32 %v2292, %v2592
    %v2773 = vadd.f32 %v2293, %v2593
    %v2774 = vadd.f32 %v2294, %v2594
    %v2775 = vadd.f32 %v2295, %v2595
    %v2776 = vadd.f32 %v2296, %v2596
    %v2777 = vadd.f32 %v2297, %v2597
    %v2778 = vadd.f32 %v2298, %v2598
    %v2779 = vadd.f32 %v2299, %v2599
    %v2780 = vadd.f32 %v2300, %v2600
    %v2781 = vadd.f32 %v2301, %v2601
    %v2782 = vadd.f32 %v2302, %v2602
    %v2783 = vadd.f32 %v2303, %v2603
    %v2784 = vadd.f32 %v2304, %v2604
    %v2785 = vadd.f32 %v2305, %v2605
    %v2786 = vadd.f32 %v2306, %v2606
    %v2787 = vadd.f32 %v2307, %v2607
    %v2788 = vadd.f32 %v2308, %v2608
    %v2789 = vadd.f32 %v2309, %v2609
    %v2790 = vadd.f32 %v2310, %v2610
    %v2791 = vadd.f32 %v2311, %v2611
    %v2792 = vadd.f32 %v2312, %v2612
    %v2793 = vadd.f32 %v2313, %v2613
    %v2794 = vadd.f32 %v2314, %v2614
    %v2795 = vadd.f32 %v2315, %v2615
    %v2796 = vadd.f32 %v2316, %v2616
    %v2797 = vadd.f32 %v2317, %v2617
    %v2798 = vadd.f32 %v2318, %v2618
    %v2799 = vadd.f32 %v2319, %v2619
    %v2800 = vadd.f32 %v2320, %v2620
    %v2801 = vadd.f32 %v2321, %v2621
    %v2802 = vadd.f32 %v2322, %v2622
    %v2803 = vadd.f32 %v2323, %v2623
    %v2804 = vadd.f32 %v2324, %v2624
    %v2805 = vadd.f32 %v2325, %v2625
    %v2806 = vadd.f32 %v2326, %v2626
    %v2807 = vadd.f32 %v2327, %v2627
    %v2808 = vadd.f32 %v2328, %v2628
    %v2809 = vadd.f32 %v2329, %v2629
    %v2810 = vadd.f32 %v2330, %v2630
    %v2811 = vadd.f32 %v2331, %v2631
    %v2812 = vadd.f32 %v2332, %v2632
    %v2813 = vadd.f32 %v2333, %v2633
    %v2814 = vadd.f32 %v2334, %v2634
    %v2815 = vadd.f32 %v2335, %v2635
    %v2816 = vadd.f32 %v2336, %v2636
    %v2817 = vadd.f32 %v2337, %v2637
    %v2818 = vadd.f32 %v2338, %v2638
    %v2819 = vadd.f32 %v2339, %v2639
    %v2820 = vadd.f32 %v2340, %v2640
    %v2821 = vadd.f32 %v2341, %v2641
    %v2822 = vadd.f32 %v2342, %v2642
    %v2823 = vadd.f32 %v2343, %v2643
    %v2824 = vadd.f32 %v2344, %v2644
    %v2825 = vadd.f32 %v2345, %v2645
    %v2826 = vadd.f32 %v2346, %v2646
    %v2827 = vadd.f32 %v2347, %v2647
    %v2828 = vadd.f32 %v2348, %v2648
    %v2829 = vadd.f32 %v2349, %v2649
    %v2830 = vadd.f32 %v2350, %v2650
    %v2831 = vadd.f32 %v2351, %v2651
    %v2832 = vadd.f32 %v2352, %v2652
    %v2833 = vadd.f32 %v2353, %v2653
    %v2834 = vadd.f32 %v2354, %v2654
    %v2835 = vadd.f32 %v2355, %v2655
    %v2836 = vadd.f32 %v2356, %v2656
    %v2837 = vadd.f32 %v2357, %v2657
    %v2838 = vadd.f32 %v2358, %v2658
    %v2839 = vadd.f32 %v2359, %v2659
    %v2840 = vadd.f32 %v2360, %v2660
    %v2841 = vadd.f32 %v2361, %v2661
    %v2842 = vadd.f32 %v2362, %v2662
    %v2843 = vadd.f32 %v2363, %v2663
    %v2844 = vadd.f32 %v2364, %v2664
    %v2845 = vadd.f32 %v2365, %v2665
    %v2846 = vadd.f32 %v2366, %v2666
    %v2847 = vadd.f32 %v2367, %v2667
    %v2848 = vadd.f32 %v2368, %v2668
    %v2849 = vadd.f32 %v2369, %v2669
    %v2850 = vadd.f32 %v2370, %v2670
    %v2851 = vadd.f32 %v2371, %v2671
    %v2852 = vadd.f32 %v2372, %v2672
    %v2853 = vadd.f32 %v2373, %v2673
    %v2854 = vadd.f32 %v2374, %v2674
    %v2855 = vadd.f32 %v2375, %v2675
    %v2856 = vadd.f32 %v2376, %v2676
    %v2857 = vadd.f32 %v2377, %v2677
    %v2858 = vadd.f32 %v2378, %v2678
    %v2859 = vadd.f32 %v2379, %v2679
    %v2860 = vadd.f32 %v2380, %v2680
    %v2861 = vadd.f32 %v2381, %v2681
    %v2862 = vadd.f32 %v2382, %v2682
    %v2863 = vadd.f32 %v2383, %v2683
    %v2864 = vadd.f32 %v2384, %v2684
    %v2865 = vadd.f32 %v2385, %v2685
    %v2866 = vadd.f32 %v2386, %v2686
    %v2867 = vadd.f32 %v2387, %v2687
    %v2868 = vadd.f32 %v2388, %v2688
    %v2869 = vadd.f32 %v2389, %v2689
    %v2870 = vadd.f32 %v2390, %v2690
    %v2871 = vadd.f32 %v2391, %v2691
    %v2872 = vadd.f32 %v2392, %v2692
    %v2873 = vadd.f32 %v2393, %v2693
    %v2874 = vadd.f32 %v2394, %v2694
    %v2875 = vadd.f32 %v2395, %v2695
    %v2876 = vadd.f32 %v2396, %v2696
    %v2877 = vadd.f32 %v2397, %v2697
    %v2878 = vadd.f32 %v2398, %v2698
    %v2879 = vadd.f32 %v2399, %v2699
    %v2880 = vadd.f32 %v2400, %v2700
    %v2881 = vadd.f32 %v2401, %v2701
    %v2882 = vadd.f32 %v2402, %v2702
    %v2883 = vadd.f32 %v2403, %v2703
    %v2884 = vadd.f32 %v2404, %v2704
    %v2885 = vadd.f32 %v2405, %v2705
    %v2886 = vadd.f32 %v2406, %v2706
    %v2887 = vadd.f32 %v2407, %v2707
    %2888 = vset.pattern.permute.xlu0 2
    %2889 = vperm.xlu0 %2888, %v2048
    %v2890 = vpop.permute.xlu0 %2889
    %2892 = vset.pattern.permute.xlu0 2
    %2893 = vperm.xlu0 %2892, %v2049
    %v2894 = vpop.permute.xlu0 %2893
    %2896 = vset.pattern.permute.xlu0 2
    %2897 = vperm.xlu0 %2896, %v2050
    %v2898 = vpop.permute.xlu0 %2897
    %2900 = vset.pattern.permute.xlu0 2
    %2901 = vperm.xlu0 %2900, %v2051
    %v2902 = vpop.permute.xlu0 %2901
    %2904 = vset.pattern.permute.xlu0 2
    %2905 = vperm.xlu0 %2904, %v2052
    %v2906 = vpop.permute.xlu0 %2905
    %2908 = vset.pattern.permute.xlu0 2
    %2909 = vperm.xlu0 %2908, %v2053
    %v2910 = vpop.permute.xlu0 %2909
    %2912 = vset.pattern.permute.xlu0 2
    %2913 = vperm.xlu0 %2912, %v2054
    %v2914 = vpop.permute.xlu0 %2913
    %2916 = vset.pattern.permute.xlu0 2
    %2917 = vperm.xlu0 %2916, %v2055
    %v2918 = vpop.permute.xlu0 %2917
    %2920 = vset.pattern.permute.xlu0 2
    %2921 = vperm.xlu0 %2920, %v2056
    %v2922 = vpop.permute.xlu0 %2921
    %2924 = vset.pattern.permute.xlu0 2
    %2925 = vperm.xlu0 %2924, %v2057
    %v2926 = vpop.permute.xlu0 %2925
    %2928 = vset.pattern.permute.xlu0 2
    %2929 = vperm.xlu0 %2928, %v2058
    %v2930 = vpop.permute.xlu0 %2929
    %2932 = vset.pattern.permute.xlu0 2
    %2933 = vperm.xlu0 %2932, %v2059
    %v2934 = vpop.permute.xlu0 %2933
    %2936 = vset.pattern.permute.xlu0 2
    %2937 = vperm.xlu0 %2936, %v2060
    %v2938 = vpop.permute.xlu0 %2937
    %2940 = vset.pattern.permute.xlu0 2
    %2941 = vperm.xlu0 %2940, %v2061
    %v2942 = vpop.permute.xlu0 %2941
    %2944 = vset.pattern.permute.xlu0 2
    %2945 = vperm.xlu0 %2944, %v2062
    %v2946 = vpop.permute.xlu0 %2945
    %2948 = vset.pattern.permute.xlu0 2
    %2949 = vperm.xlu0 %2948, %v2063
    %v2950 = vpop.permute.xlu0 %2949
    %2952 = vset.pattern.permute.xlu0 2
    %2953 = vperm.xlu0 %2952, %v2064
    %v2954 = vpop.permute.xlu0 %2953
    %2956 = vset.pattern.permute.xlu0 2
    %2957 = vperm.xlu0 %2956, %v2065
    %v2958 = vpop.permute.xlu0 %2957
    %2960 = vset.pattern.permute.xlu0 2
    %2961 = vperm.xlu0 %2960, %v2066
    %v2962 = vpop.permute.xlu0 %2961
    %2964 = vset.pattern.permute.xlu0 2
    %2965 = vperm.xlu0 %2964, %v2067
    %v2966 = vpop.permute.xlu0 %2965
    %2968 = vset.pattern.permute.xlu0 2
    %2969 = vperm.xlu0 %2968, %v2068
    %v2970 = vpop.permute.xlu0 %2969
    %2972 = vset.pattern.permute.xlu0 2
    %2973 = vperm.xlu0 %2972, %v2069
    %v2974 = vpop.permute.xlu0 %2973
    %2976 = vset.pattern.permute.xlu0 2
    %2977 = vperm.xlu0 %2976, %v2070
    %v2978 = vpop.permute.xlu0 %2977
    %2980 = vset.pattern.permute.xlu0 2
    %2981 = vperm.xlu0 %2980, %v2071
    %v2982 = vpop.permute.xlu0 %2981
    %2984 = vset.pattern.permute.xlu0 2
    %2985 = vperm.xlu0 %2984, %v2072
    %v2986 = vpop.permute.xlu0 %2985
    %2988 = vset.pattern.permute.xlu0 2
    %2989 = vperm.xlu0 %2988, %v2073
    %v2990 = vpop.permute.xlu0 %2989
    %2992 = vset.pattern.permute.xlu0 2
    %2993 = vperm.xlu0 %2992, %v2074
    %v2994 = vpop.permute.xlu0 %2993
    %2996 = vset.pattern.permute.xlu0 2
    %2997 = vperm.xlu0 %2996, %v2075
    %v2998 = vpop.permute.xlu0 %2997
    %3000 = vset.pattern.permute.xlu0 2
    %3001 = vperm.xlu0 %3000, %v2076
    %v3002 = vpop.permute.xlu0 %3001
    %3004 = vset.pattern.permute.xlu0 2
    %3005 = vperm.xlu0 %3004, %v2077
    %v3006 = vpop.permute.xlu0 %3005
    %v3008 = vmul.f32 %v2890, %v1054
    %v3009 = vmul.f32 %v2890, %v1058
    %v3010 = vmul.f32 %v2890, %v1062
    %v3011 = vmul.f32 %v2890, %v1066
    %v3012 = vmul.f32 %v2890, %v1070
    %v3013 = vmul.f32 %v2890, %v1074
    %v3014 = vmul.f32 %v2894, %v1054
    %v3015 = vmul.f32 %v2894, %v1058
    %v3016 = vmul.f32 %v2894, %v1062
    %v3017 = vmul.f32 %v2894, %v1066
    %v3018 = vmul.f32 %v2894, %v1070
    %v3019 = vmul.f32 %v2894, %v1074
    %v3020 = vmul.f32 %v2898, %v1054
    %v3021 = vmul.f32 %v2898, %v1058
    %v3022 = vmul.f32 %v2898, %v1062
    %v3023 = vmul.f32 %v2898, %v1066
    %v3024 = vmul.f32 %v2898, %v1070
    %v3025 = vmul.f32 %v2898, %v1074
    %v3026 = vmul.f32 %v2902, %v1054
    %v3027 = vmul.f32 %v2902, %v1058
    %v3028 = vmul.f32 %v2902, %v1062
    %v3029 = vmul.f32 %v2902, %v1066
    %v3030 = vmul.f32 %v2902, %v1070
    %v3031 = vmul.f32 %v2902, %v1074
    %v3032 = vmul.f32 %v2906, %v1054
    %v3033 = vmul.f32 %v2906, %v1058
    %v3034 = vmul.f32 %v2906, %v1062
    %v3035 = vmul.f32 %v2906, %v1066
    %v3036 = vmul.f32 %v2906, %v1070
    %v3037 = vmul.f32 %v2906, %v1074
    %v3038 = vmul.f32 %v2910, %v1054
    %v3039 = vmul.f32 %v2910, %v1058
    %v3040 = vmul.f32 %v2910, %v1062
    %v3041 = vmul.f32 %v2910, %v1066
    %v3042 = vmul.f32 %v2910, %v1070
    %v3043 = vmul.f32 %v2910, %v1074
    %v3044 = vmul.f32 %v2914, %v1054
    %v3045 = vmul.f32 %v2914, %v1058
    %v3046 = vmul.f32 %v2914, %v1062
    %v3047 = vmul.f32 %v2914, %v1066
    %v3048 = vmul.f32 %v2914, %v1070
    %v3049 = vmul.f32 %v2914, %v1074
    %v3050 = vmul.f32 %v2918, %v1054
    %v3051 = vmul.f32 %v2918, %v1058
    %v3052 = vmul.f32 %v2918, %v1062
    %v3053 = vmul.f32 %v2918, %v1066
    %v3054 = vmul.f32 %v2918, %v1070
    %v3055 = vmul.f32 %v2918, %v1074
    %v3056 = vmul.f32 %v2922, %v1054
    %v3057 = vmul.f32 %v2922, %v1058
    %v3058 = vmul.f32 %v2922, %v1062
    %v3059 = vmul.f32 %v2922, %v1066
    %v3060 = vmul.f32 %v2922, %v1070
    %v3061 = vmul.f32 %v2922, %v1074
    %v3062 = vmul.f32 %v2926, %v1054
    %v3063 = vmul.f32 %v2926, %v1058
    %v3064 = vmul.f32 %v2926, %v1062
    %v3065 = vmul.f32 %v2926, %v1066
    %v3066 = vmul.f32 %v2926, %v1070
    %v3067 = vmul.f32 %v2926, %v1074
    %v3068 = vmul.f32 %v2930, %v1054
    %v3069 = vmul.f32 %v2930, %v1058
    %v3070 = vmul.f32 %v2930, %v1062
    %v3071 = vmul.f32 %v2930, %v1066
    %v3072 = vmul.f32 %v2930, %v1070
    %v3073 = vmul.f32 %v2930, %v1074
    %v3074 = vmul.f32 %v2934, %v1054
    %v3075 = vmul.f32 %v2934, %v1058
    %v3076 = vmul.f32 %v2934, %v1062
    %v3077 = vmul.f32 %v2934, %v1066
    %v3078 = vmul.f32 %v2934, %v1070
    %v3079 = vmul.f32 %v2934, %v1074
    %v3080 = vmul.f32 %v2938, %v1054
    %v3081 = vmul.f32 %v2938, %v1058
    %v3082 = vmul.f32 %v2938, %v1062
    %v3083 = vmul.f32 %v2938, %v1066
    %v3084 = vmul.f32 %v2938, %v1070
    %v3085 = vmul.f32 %v2938, %v1074
    %v3086 = vmul.f32 %v2942, %v1054
    %v3087 = vmul.f32 %v2942, %v1058
    %v3088 = vmul.f32 %v2942, %v1062
    %v3089 = vmul.f32 %v2942, %v1066
    %v3090 = vmul.f32 %v2942, %v1070
    %v3091 = vmul.f32 %v2942, %v1074
    %v3092 = vmul.f32 %v2946, %v1054
    %v3093 = vmul.f32 %v2946, %v1058
    %v3094 = vmul.f32 %v2946, %v1062
    %v3095 = vmul.f32 %v2946, %v1066
    %v3096 = vmul.f32 %v2946, %v1070
    %v3097 = vmul.f32 %v2946, %v1074
    %v3098 = vmul.f32 %v2950, %v1054
    %v3099 = vmul.f32 %v2950, %v1058
    %v3100 = vmul.f32 %v2950, %v1062
    %v3101 = vmul.f32 %v2950, %v1066
    %v3102 = vmul.f32 %v2950, %v1070
    %v3103 = vmul.f32 %v2950, %v1074
    %v3104 = vmul.f32 %v2954, %v1054
    %v3105 = vmul.f32 %v2954, %v1058
    %v3106 = vmul.f32 %v2954, %v1062
    %v3107 = vmul.f32 %v2954, %v1066
    %v3108 = vmul.f32 %v2954, %v1070
    %v3109 = vmul.f32 %v2954, %v1074
    %v3110 = vmul.f32 %v2958, %v1054
    %v3111 = vmul.f32 %v2958, %v1058
    %v3112 = vmul.f32 %v2958, %v1062
    %v3113 = vmul.f32 %v2958, %v1066
    %v3114 = vmul.f32 %v2958, %v1070
    %v3115 = vmul.f32 %v2958, %v1074
    %v3116 = vmul.f32 %v2962, %v1054
    %v3117 = vmul.f32 %v2962, %v1058
    %v3118 = vmul.f32 %v2962, %v1062
    %v3119 = vmul.f32 %v2962, %v1066
    %v3120 = vmul.f32 %v2962, %v1070
    %v3121 = vmul.f32 %v2962, %v1074
    %v3122 = vmul.f32 %v2966, %v1054
    %v3123 = vmul.f32 %v2966, %v1058
    %v3124 = vmul.f32 %v2966, %v1062
    %v3125 = vmul.f32 %v2966, %v1066
    %v3126 = vmul.f32 %v2966, %v1070
    %v3127 = vmul.f32 %v2966, %v1074
    %v3128 = vmul.f32 %v2970, %v1054
    %v3129 = vmul.f32 %v2970, %v1058
    %v3130 = vmul.f32 %v2970, %v1062
    %v3131 = vmul.f32 %v2970, %v1066
    %v3132 = vmul.f32 %v2970, %v1070
    %v3133 = vmul.f32 %v2970, %v1074
    %v3134 = vmul.f32 %v2974, %v1054
    %v3135 = vmul.f32 %v2974, %v1058
    %v3136 = vmul.f32 %v2974, %v1062
    %v3137 = vmul.f32 %v2974, %v1066
    %v3138 = vmul.f32 %v2974, %v1070
    %v3139 = vmul.f32 %v2974, %v1074
    %v3140 = vmul.f32 %v2978, %v1054
    %v3141 = vmul.f32 %v2978, %v1058
    %v3142 = vmul.f32 %v2978, %v1062
    %v3143 = vmul.f32 %v2978, %v1066
    %v3144 = vmul.f32 %v2978, %v1070
    %v3145 = vmul.f32 %v2978, %v1074
    %v3146 = vmul.f32 %v2982, %v1054
    %v3147 = vmul.f32 %v2982, %v1058
    %v3148 = vmul.f32 %v2982, %v1062
    %v3149 = vmul.f32 %v2982, %v1066
    %v3150 = vmul.f32 %v2982, %v1070
    %v3151 = vmul.f32 %v2982, %v1074
    %v3152 = vmul.f32 %v2986, %v1054
    %v3153 = vmul.f32 %v2986, %v1058
    %v3154 = vmul.f32 %v2986, %v1062
    %v3155 = vmul.f32 %v2986, %v1066
    %v3156 = vmul.f32 %v2986, %v1070
    %v3157 = vmul.f32 %v2986, %v1074
    %v3158 = vmul.f32 %v2990, %v1054
    %v3159 = vmul.f32 %v2990, %v1058
    %v3160 = vmul.f32 %v2990, %v1062
    %v3161 = vmul.f32 %v2990, %v1066
    %v3162 = vmul.f32 %v2990, %v1070
    %v3163 = vmul.f32 %v2990, %v1074
    %v3164 = vmul.f32 %v2994, %v1054
    %v3165 = vmul.f32 %v2994, %v1058
    %v3166 = vmul.f32 %v2994, %v1062
    %v3167 = vmul.f32 %v2994, %v1066
    %v3168 = vmul.f32 %v2994, %v1070
    %v3169 = vmul.f32 %v2994, %v1074
    %v3170 = vmul.f32 %v2998, %v1054
    %v3171 = vmul.f32 %v2998, %v1058
    %v3172 = vmul.f32 %v2998, %v1062
    %v3173 = vmul.f32 %v2998, %v1066
    %v3174 = vmul.f32 %v2998, %v1070
    %v3175 = vmul.f32 %v2998, %v1074
    %v3176 = vmul.f32 %v3002, %v1054
    %v3177 = vmul.f32 %v3002, %v1058
    %v3178 = vmul.f32 %v3002, %v1062
    %v3179 = vmul.f32 %v3002, %v1066
    %v3180 = vmul.f32 %v3002, %v1070
    %v3181 = vmul.f32 %v3002, %v1074
    %v3182 = vmul.f32 %v3006, %v1054
    %v3183 = vmul.f32 %v3006, %v1058
    %v3184 = vmul.f32 %v3006, %v1062
    %v3185 = vmul.f32 %v3006, %v1066
    %v3186 = vmul.f32 %v3006, %v1070
    %v3187 = vmul.f32 %v3006, %v1074
    %v3188 = vadd.f32 %v2708, %v3008
    %v3189 = vadd.f32 %v2709, %v3009
    %v3190 = vadd.f32 %v2710, %v3010
    %v3191 = vadd.f32 %v2711, %v3011
    %v3192 = vadd.f32 %v2712, %v3012
    %v3193 = vadd.f32 %v2713, %v3013
    %v3194 = vadd.f32 %v2714, %v3014
    %v3195 = vadd.f32 %v2715, %v3015
    %v3196 = vadd.f32 %v2716, %v3016
    %v3197 = vadd.f32 %v2717, %v3017
    %v3198 = vadd.f32 %v2718, %v3018
    %v3199 = vadd.f32 %v2719, %v3019
    %v3200 = vadd.f32 %v2720, %v3020
    %v3201 = vadd.f32 %v2721, %v3021
    %v3202 = vadd.f32 %v2722, %v3022
    %v3203 = vadd.f32 %v2723, %v3023
    %v3204 = vadd.f32 %v2724, %v3024
    %v3205 = vadd.f32 %v2725, %v3025
    %v3206 = vadd.f32 %v2726, %v3026
    %v3207 = vadd.f32 %v2727, %v3027
    %v3208 = vadd.f32 %v2728, %v3028
    %v3209 = vadd.f32 %v2729, %v3029
    %v3210 = vadd.f32 %v2730, %v3030
    %v3211 = vadd.f32 %v2731, %v3031
    %v3212 = vadd.f32 %v2732, %v3032
    %v3213 = vadd.f32 %v2733, %v3033
    %v3214 = vadd.f32 %v2734, %v3034
    %v3215 = vadd.f32 %v2735, %v3035
    %v3216 = vadd.f32 %v2736, %v3036
    %v3217 = vadd.f32 %v2737, %v3037
    %v3218 = vadd.f32 %v2738, %v3038
    %v3219 = vadd.f32 %v2739, %v3039
    %v3220 = vadd.f32 %v2740, %v3040
    %v3221 = vadd.f32 %v2741, %v3041
    %v3222 = vadd.f32 %v2742, %v3042
    %v3223 = vadd.f32 %v2743, %v3043
    %v3224 = vadd.f32 %v2744, %v3044
    %v3225 = vadd.f32 %v2745, %v3045
    %v3226 = vadd.f32 %v2746, %v3046
    %v3227 = vadd.f32 %v2747, %v3047
    %v3228 = vadd.f32 %v2748, %v3048
    %v3229 = vadd.f32 %v2749, %v3049
    %v3230 = vadd.f32 %v2750, %v3050
    %v3231 = vadd.f32 %v2751, %v3051
    %v3232 = vadd.f32 %v2752, %v3052
    %v3233 = vadd.f32 %v2753, %v3053
    %v3234 = vadd.f32 %v2754, %v3054
    %v3235 = vadd.f32 %v2755, %v3055
    %v3236 = vadd.f32 %v2756, %v3056
    %v3237 = vadd.f32 %v2757, %v3057
    %v3238 = vadd.f32 %v2758, %v3058
    %v3239 = vadd.f32 %v2759, %v3059
    %v3240 = vadd.f32 %v2760, %v3060
    %v3241 = vadd.f32 %v2761, %v3061
    %v3242 = vadd.f32 %v2762, %v3062
    %v3243 = vadd.f32 %v2763, %v3063
    %v3244 = vadd.f32 %v2764, %v3064
    %v3245 = vadd.f32 %v2765, %v3065
    %v3246 = vadd.f32 %v2766, %v3066
    %v3247 = vadd.f32 %v2767, %v3067
    %v3248 = vadd.f32 %v2768, %v3068
    %v3249 = vadd.f32 %v2769, %v3069
    %v3250 = vadd.f32 %v2770, %v3070
    %v3251 = vadd.f32 %v2771, %v3071
    %v3252 = vadd.f32 %v2772, %v3072
    %v3253 = vadd.f32 %v2773, %v3073
    %v3254 = vadd.f32 %v2774, %v3074
    %v3255 = vadd.f32 %v2775, %v3075
    %v3256 = vadd.f32 %v2776, %v3076
    %v3257 = vadd.f32 %v2777, %v3077
    %v3258 = vadd.f32 %v2778, %v3078
    %v3259 = vadd.f32 %v2779, %v3079
    %v3260 = vadd.f32 %v2780, %v3080
    %v3261 = vadd.f32 %v2781, %v3081
    %v3262 = vadd.f32 %v2782, %v3082
    %v3263 = vadd.f32 %v2783, %v3083
    %v3264 = vadd.f32 %v2784, %v3084
    %v3265 = vadd.f32 %v2785, %v3085
    %v3266 = vadd.f32 %v2786, %v3086
    %v3267 = vadd.f32 %v2787, %v3087
    %v3268 = vadd.f32 %v2788, %v3088
    %v3269 = vadd.f32 %v2789, %v3089
    %v3270 = vadd.f32 %v2790, %v3090
    %v3271 = vadd.f32 %v2791, %v3091
    %v3272 = vadd.f32 %v2792, %v3092
    %v3273 = vadd.f32 %v2793, %v3093
    %v3274 = vadd.f32 %v2794, %v3094
    %v3275 = vadd.f32 %v2795, %v3095
    %v3276 = vadd.f32 %v2796, %v3096
    %v3277 = vadd.f32 %v2797, %v3097
    %v3278 = vadd.f32 %v2798, %v3098
    %v3279 = vadd.f32 %v2799, %v3099
    %v3280 = vadd.f32 %v2800, %v3100
    %v3281 = vadd.f32 %v2801, %v3101
    %v3282 = vadd.f32 %v2802, %v3102
    %v3283 = vadd.f32 %v2803, %v3103
    %v3284 = vadd.f32 %v2804, %v3104
    %v3285 = vadd.f32 %v2805, %v3105
    %v3286 = vadd.f32 %v2806, %v3106
    %v3287 = vadd.f32 %v2807, %v3107
    %v3288 = vadd.f32 %v2808, %v3108
    %v3289 = vadd.f32 %v2809, %v3109
    %v3290 = vadd.f32 %v2810, %v3110
    %v3291 = vadd.f32 %v2811, %v3111
    %v3292 = vadd.f32 %v2812, %v3112
    %v3293 = vadd.f32 %v2813, %v3113
    %v3294 = vadd.f32 %v2814, %v3114
    %v3295 = vadd.f32 %v2815, %v3115
    %v3296 = vadd.f32 %v2816, %v3116
    %v3297 = vadd.f32 %v2817, %v3117
    %v3298 = vadd.f32 %v2818, %v3118
    %v3299 = vadd.f32 %v2819, %v3119
    %v3300 = vadd.f32 %v2820, %v3120
    %v3301 = vadd.f32 %v2821, %v3121
    %v3302 = vadd.f32 %v2822, %v3122
    %v3303 = vadd.f32 %v2823, %v3123
    %v3304 = vadd.f32 %v2824, %v3124
    %v3305 = vadd.f32 %v2825, %v3125
    %v3306 = vadd.f32 %v2826, %v3126
    %v3307 = vadd.f32 %v2827, %v3127
    %v3308 = vadd.f32 %v2828, %v3128
    %v3309 = vadd.f32 %v2829, %v3129
    %v3310 = vadd.f32 %v2830, %v3130
    %v3311 = vadd.f32 %v2831, %v3131
    %v3312 = vadd.f32 %v2832, %v3132
    %v3313 = vadd.f32 %v2833, %v3133
    %v3314 = vadd.f32 %v2834, %v3134
    %v3315 = vadd.f32 %v2835, %v3135
    %v3316 = vadd.f32 %v2836, %v3136
    %v3317 = vadd.f32 %v2837, %v3137
    %v3318 = vadd.f32 %v2838, %v3138
    %v3319 = vadd.f32 %v2839, %v3139
    %v3320 = vadd.f32 %v2840, %v3140
    %v3321 = vadd.f32 %v2841, %v3141
    %v3322 = vadd.f32 %v2842, %v3142
    %v3323 = vadd.f32 %v2843, %v3143
    %v3324 = vadd.f32 %v2844, %v3144
    %v3325 = vadd.f32 %v2845, %v3145
    %v3326 = vadd.f32 %v2846, %v3146
    %v3327 = vadd.f32 %v2847, %v3147
    %v3328 = vadd.f32 %v2848, %v3148
    %v3329 = vadd.f32 %v2849, %v3149
    %v3330 = vadd.f32 %v2850, %v3150
    %v3331 = vadd.f32 %v2851, %v3151
    %v3332 = vadd.f32 %v2852, %v3152
    %v3333 = vadd.f32 %v2853, %v3153
    %v3334 = vadd.f32 %v2854, %v3154
    %v3335 = vadd.f32 %v2855, %v3155
    %v3336 = vadd.f32 %v2856, %v3156
    %v3337 = vadd.f32 %v2857, %v3157
    %v3338 = vadd.f32 %v2858, %v3158
    %v3339 = vadd.f32 %v2859, %v3159
    %v3340 = vadd.f32 %v2860, %v3160
    %v3341 = vadd.f32 %v2861, %v3161
    %v3342 = vadd.f32 %v2862, %v3162
    %v3343 = vadd.f32 %v2863, %v3163
    %v3344 = vadd.f32 %v2864, %v3164
    %v3345 = vadd.f32 %v2865, %v3165
    %v3346 = vadd.f32 %v2866, %v3166
    %v3347 = vadd.f32 %v2867, %v3167
    %v3348 = vadd.f32 %v2868, %v3168
    %v3349 = vadd.f32 %v2869, %v3169
    %v3350 = vadd.f32 %v2870, %v3170
    %v3351 = vadd.f32 %v2871, %v3171
    %v3352 = vadd.f32 %v2872, %v3172
    %v3353 = vadd.f32 %v2873, %v3173
    %v3354 = vadd.f32 %v2874, %v3174
    %v3355 = vadd.f32 %v2875, %v3175
    %v3356 = vadd.f32 %v2876, %v3176
    %v3357 = vadd.f32 %v2877, %v3177
    %v3358 = vadd.f32 %v2878, %v3178
    %v3359 = vadd.f32 %v2879, %v3179
    %v3360 = vadd.f32 %v2880, %v3180
    %v3361 = vadd.f32 %v2881, %v3181
    %v3362 = vadd.f32 %v2882, %v3182
    %v3363 = vadd.f32 %v2883, %v3183
    %v3364 = vadd.f32 %v2884, %v3184
    %v3365 = vadd.f32 %v2885, %v3185
    %v3366 = vadd.f32 %v2886, %v3186
    %v3367 = vadd.f32 %v2887, %v3187
    %v3368 = vadd.f32 %v3188, %v1445
    %v3369 = vadd.f32 %v3189, %v1449
    %v3370 = vadd.f32 %v3190, %v1453
    %v3371 = vadd.f32 %v3191, %v1457
    %v3372 = vadd.f32 %v3192, %v1461
    %v3373 = vadd.f32 %v3193, %v1465
    %v3374 = vadd.f32 %v3194, %v1445
    %v3375 = vadd.f32 %v3195, %v1449
    %v3376 = vadd.f32 %v3196, %v1453
    %v3377 = vadd.f32 %v3197, %v1457
    %v3378 = vadd.f32 %v3198, %v1461
    %v3379 = vadd.f32 %v3199, %v1465
    %v3380 = vadd.f32 %v3200, %v1445
    %v3381 = vadd.f32 %v3201, %v1449
    %v3382 = vadd.f32 %v3202, %v1453
    %v3383 = vadd.f32 %v3203, %v1457
    %v3384 = vadd.f32 %v3204, %v1461
    %v3385 = vadd.f32 %v3205, %v1465
    %v3386 = vadd.f32 %v3206, %v1445
    %v3387 = vadd.f32 %v3207, %v1449
    %v3388 = vadd.f32 %v3208, %v1453
    %v3389 = vadd.f32 %v3209, %v1457
    %v3390 = vadd.f32 %v3210, %v1461
    %v3391 = vadd.f32 %v3211, %v1465
    %v3392 = vadd.f32 %v3212, %v1445
    %v3393 = vadd.f32 %v3213, %v1449
    %v3394 = vadd.f32 %v3214, %v1453
    %v3395 = vadd.f32 %v3215, %v1457
    %v3396 = vadd.f32 %v3216, %v1461
    %v3397 = vadd.f32 %v3217, %v1465
    %v3398 = vadd.f32 %v3218, %v1445
    %v3399 = vadd.f32 %v3219, %v1449
    %v3400 = vadd.f32 %v3220, %v1453
    %v3401 = vadd.f32 %v3221, %v1457
    %v3402 = vadd.f32 %v3222, %v1461
    %v3403 = vadd.f32 %v3223, %v1465
    %v3404 = vadd.f32 %v3224, %v1445
    %v3405 = vadd.f32 %v3225, %v1449
    %v3406 = vadd.f32 %v3226, %v1453
    %v3407 = vadd.f32 %v3227, %v1457
    %v3408 = vadd.f32 %v3228, %v1461
    %v3409 = vadd.f32 %v3229, %v1465
    %v3410 = vadd.f32 %v3230, %v1445
    %v3411 = vadd.f32 %v3231, %v1449
    %v3412 = vadd.f32 %v3232, %v1453
    %v3413 = vadd.f32 %v3233, %v1457
    %v3414 = vadd.f32 %v3234, %v1461
    %v3415 = vadd.f32 %v3235, %v1465
    %v3416 = vadd.f32 %v3236, %v1445
    %v3417 = vadd.f32 %v3237, %v1449
    %v3418 = vadd.f32 %v3238, %v1453
    %v3419 = vadd.f32 %v3239, %v1457
    %v3420 = vadd.f32 %v3240, %v1461
    %v3421 = vadd.f32 %v3241, %v1465
    %v3422 = vadd.f32 %v3242, %v1445
    %v3423 = vadd.f32 %v3243, %v1449
    %v3424 = vadd.f32 %v3244, %v1453
    %v3425 = vadd.f32 %v3245, %v1457
    %v3426 = vadd.f32 %v3246, %v1461
    %v3427 = vadd.f32 %v3247, %v1465
    %v3428 = vadd.f32 %v3248, %v1445
    %v3429 = vadd.f32 %v3249, %v1449
    %v3430 = vadd.f32 %v3250, %v1453
    %v3431 = vadd.f32 %v3251, %v1457
    %v3432 = vadd.f32 %v3252, %v1461
    %v3433 = vadd.f32 %v3253, %v1465
    %v3434 = vadd.f32 %v3254, %v1445
    %v3435 = vadd.f32 %v3255, %v1449
    %v3436 = vadd.f32 %v3256, %v1453
    %v3437 = vadd.f32 %v3257, %v1457
    %v3438 = vadd.f32 %v3258, %v1461
    %v3439 = vadd.f32 %v3259, %v1465
    %v3440 = vadd.f32 %v3260, %v1445
    %v3441 = vadd.f32 %v3261, %v1449
    %v3442 = vadd.f32 %v3262, %v1453
    %v3443 = vadd.f32 %v3263, %v1457
    %v3444 = vadd.f32 %v3264, %v1461
    %v3445 = vadd.f32 %v3265, %v1465
    %v3446 = vadd.f32 %v3266, %v1445
    %v3447 = vadd.f32 %v3267, %v1449
    %v3448 = vadd.f32 %v3268, %v1453
    %v3449 = vadd.f32 %v3269, %v1457
    %v3450 = vadd.f32 %v3270, %v1461
    %v3451 = vadd.f32 %v3271, %v1465
    %v3452 = vadd.f32 %v3272, %v1445
    %v3453 = vadd.f32 %v3273, %v1449
    %v3454 = vadd.f32 %v3274, %v1453
    %v3455 = vadd.f32 %v3275, %v1457
    %v3456 = vadd.f32 %v3276, %v1461
    %v3457 = vadd.f32 %v3277, %v1465
    %v3458 = vadd.f32 %v3278, %v1445
    %v3459 = vadd.f32 %v3279, %v1449
    %v3460 = vadd.f32 %v3280, %v1453
    %v3461 = vadd.f32 %v3281, %v1457
    %v3462 = vadd.f32 %v3282, %v1461
    %v3463 = vadd.f32 %v3283, %v1465
    %v3464 = vadd.f32 %v3284, %v1445
    %v3465 = vadd.f32 %v3285, %v1449
    %v3466 = vadd.f32 %v3286, %v1453
    %v3467 = vadd.f32 %v3287, %v1457
    %v3468 = vadd.f32 %v3288, %v1461
    %v3469 = vadd.f32 %v3289, %v1465
    %v3470 = vadd.f32 %v3290, %v1445
    %v3471 = vadd.f32 %v3291, %v1449
    %v3472 = vadd.f32 %v3292, %v1453
    %v3473 = vadd.f32 %v3293, %v1457
    %v3474 = vadd.f32 %v3294, %v1461
    %v3475 = vadd.f32 %v3295, %v1465
    %v3476 = vadd.f32 %v3296, %v1445
    %v3477 = vadd.f32 %v3297, %v1449
    %v3478 = vadd.f32 %v3298, %v1453
    %v3479 = vadd.f32 %v3299, %v1457
    %v3480 = vadd.f32 %v3300, %v1461
    %v3481 = vadd.f32 %v3301, %v1465
    %v3482 = vadd.f32 %v3302, %v1445
    %v3483 = vadd.f32 %v3303, %v1449
    %v3484 = vadd.f32 %v3304, %v1453
    %v3485 = vadd.f32 %v3305, %v1457
    %v3486 = vadd.f32 %v3306, %v1461
    %v3487 = vadd.f32 %v3307, %v1465
    %v3488 = vadd.f32 %v3308, %v1445
    %v3489 = vadd.f32 %v3309, %v1449
    %v3490 = vadd.f32 %v3310, %v1453
    %v3491 = vadd.f32 %v3311, %v1457
    %v3492 = vadd.f32 %v3312, %v1461
    %v3493 = vadd.f32 %v3313, %v1465
    %v3494 = vadd.f32 %v3314, %v1445
    %v3495 = vadd.f32 %v3315, %v1449
    %v3496 = vadd.f32 %v3316, %v1453
    %v3497 = vadd.f32 %v3317, %v1457
    %v3498 = vadd.f32 %v3318, %v1461
    %v3499 = vadd.f32 %v3319, %v1465
    %v3500 = vadd.f32 %v3320, %v1445
    %v3501 = vadd.f32 %v3321, %v1449
    %v3502 = vadd.f32 %v3322, %v1453
    %v3503 = vadd.f32 %v3323, %v1457
    %v3504 = vadd.f32 %v3324, %v1461
    %v3505 = vadd.f32 %v3325, %v1465
    %v3506 = vadd.f32 %v3326, %v1445
    %v3507 = vadd.f32 %v3327, %v1449
    %v3508 = vadd.f32 %v3328, %v1453
    %v3509 = vadd.f32 %v3329, %v1457
    %v3510 = vadd.f32 %v3330, %v1461
    %v3511 = vadd.f32 %v3331, %v1465
    %v3512 = vadd.f32 %v3332, %v1445
    %v3513 = vadd.f32 %v3333, %v1449
    %v3514 = vadd.f32 %v3334, %v1453
    %v3515 = vadd.f32 %v3335, %v1457
    %v3516 = vadd.f32 %v3336, %v1461
    %v3517 = vadd.f32 %v3337, %v1465
    %v3518 = vadd.f32 %v3338, %v1445
    %v3519 = vadd.f32 %v3339, %v1449
    %v3520 = vadd.f32 %v3340, %v1453
    %v3521 = vadd.f32 %v3341, %v1457
    %v3522 = vadd.f32 %v3342, %v1461
    %v3523 = vadd.f32 %v3343, %v1465
    %v3524 = vadd.f32 %v3344, %v1445
    %v3525 = vadd.f32 %v3345, %v1449
    %v3526 = vadd.f32 %v3346, %v1453
    %v3527 = vadd.f32 %v3347, %v1457
    %v3528 = vadd.f32 %v3348, %v1461
    %v3529 = vadd.f32 %v3349, %v1465
    %v3530 = vadd.f32 %v3350, %v1445
    %v3531 = vadd.f32 %v3351, %v1449
    %v3532 = vadd.f32 %v3352, %v1453
    %v3533 = vadd.f32 %v3353, %v1457
    %v3534 = vadd.f32 %v3354, %v1461
    %v3535 = vadd.f32 %v3355, %v1465
    %v3536 = vadd.f32 %v3356, %v1445
    %v3537 = vadd.f32 %v3357, %v1449
    %v3538 = vadd.f32 %v3358, %v1453
    %v3539 = vadd.f32 %v3359, %v1457
    %v3540 = vadd.f32 %v3360, %v1461
    %v3541 = vadd.f32 %v3361, %v1465
    %v3542 = vadd.f32 %v3362, %v1445
    %v3543 = vadd.f32 %v3363, %v1449
    %v3544 = vadd.f32 %v3364, %v1453
    %v3545 = vadd.f32 %v3365, %v1457
    %v3546 = vadd.f32 %v3366, %v1461
    %v3547 = vadd.f32 %v3367, %v1465
    %v3548 = vmax.f32 %v3368, 0.0
    %v3549 = vmax.f32 %v3369, 0.0
    %v3550 = vmax.f32 %v3370, 0.0
    %v3551 = vmax.f32 %v3371, 0.0
    %v3552 = vmax.f32 %v3372, 0.0
    %v3553 = vmax.f32 %v3373, 0.0
    %v3554 = vmax.f32 %v3374, 0.0
    %v3555 = vmax.f32 %v3375, 0.0
    %v3556 = vmax.f32 %v3376, 0.0
    %v3557 = vmax.f32 %v3377, 0.0
    %v3558 = vmax.f32 %v3378, 0.0
    %v3559 = vmax.f32 %v3379, 0.0
    %v3560 = vmax.f32 %v3380, 0.0
    %v3561 = vmax.f32 %v3381, 0.0
    %v3562 = vmax.f32 %v3382, 0.0
    %v3563 = vmax.f32 %v3383, 0.0
    %v3564 = vmax.f32 %v3384, 0.0
    %v3565 = vmax.f32 %v3385, 0.0
    %v3566 = vmax.f32 %v3386, 0.0
    %v3567 = vmax.f32 %v3387, 0.0
    %v3568 = vmax.f32 %v3388, 0.0
    %v3569 = vmax.f32 %v3389, 0.0
    %v3570 = vmax.f32 %v3390, 0.0
    %v3571 = vmax.f32 %v3391, 0.0
    %v3572 = vmax.f32 %v3392, 0.0
    %v3573 = vmax.f32 %v3393, 0.0
    %v3574 = vmax.f32 %v3394, 0.0
    %v3575 = vmax.f32 %v3395, 0.0
    %v3576 = vmax.f32 %v3396, 0.0
    %v3577 = vmax.f32 %v3397, 0.0
    %v3578 = vmax.f32 %v3398, 0.0
    %v3579 = vmax.f32 %v3399, 0.0
    %v3580 = vmax.f32 %v3400, 0.0
    %v3581 = vmax.f32 %v3401, 0.0
    %v3582 = vmax.f32 %v3402, 0.0
    %v3583 = vmax.f32 %v3403, 0.0
    %v3584 = vmax.f32 %v3404, 0.0
    %v3585 = vmax.f32 %v3405, 0.0
    %v3586 = vmax.f32 %v3406, 0.0
    %v3587 = vmax.f32 %v3407, 0.0
    %v3588 = vmax.f32 %v3408, 0.0
    %v3589 = vmax.f32 %v3409, 0.0
    %v3590 = vmax.f32 %v3410, 0.0
    %v3591 = vmax.f32 %v3411, 0.0
    %v3592 = vmax.f32 %v3412, 0.0
    %v3593 = vmax.f32 %v3413, 0.0
    %v3594 = vmax.f32 %v3414, 0.0
    %v3595 = vmax.f32 %v3415, 0.0
    %v3596 = vmax.f32 %v3416, 0.0
    %v3597 = vmax.f32 %v3417, 0.0
    %v3598 = vmax.f32 %v3418, 0.0
    %v3599 = vmax.f32 %v3419, 0.0
    %v3600 = vmax.f32 %v3420, 0.0
    %v3601 = vmax.f32 %v3421, 0.0
    %v3602 = vmax.f32 %v3422, 0.0
    %v3603 = vmax.f32 %v3423, 0.0
    %v3604 = vmax.f32 %v3424, 0.0
    %v3605 = vmax.f32 %v3425, 0.0
    %v3606 = vmax.f32 %v3426, 0.0
    %v3607 = vmax.f32 %v3427, 0.0
    %v3608 = vmax.f32 %v3428, 0.0
    %v3609 = vmax.f32 %v3429, 0.0
    %v3610 = vmax.f32 %v3430, 0.0
    %v3611 = vmax.f32 %v3431, 0.0
    %v3612 = vmax.f32 %v3432, 0.0
    %v3613 = vmax.f32 %v3433, 0.0
    %v3614 = vmax.f32 %v3434, 0.0
    %v3615 = vmax.f32 %v3435, 0.0
    %v3616 = vmax.f32 %v3436, 0.0
    %v3617 = vmax.f32 %v3437, 0.0
    %v3618 = vmax.f32 %v3438, 0.0
    %v3619 = vmax.f32 %v3439, 0.0
    %v3620 = vmax.f32 %v3440, 0.0
    %v3621 = vmax.f32 %v3441, 0.0
    %v3622 = vmax.f32 %v3442, 0.0
    %v3623 = vmax.f32 %v3443, 0.0
    %v3624 = vmax.f32 %v3444, 0.0
    %v3625 = vmax.f32 %v3445, 0.0
    %v3626 = vmax.f32 %v3446, 0.0
    %v3627 = vmax.f32 %v3447, 0.0
    %v3628 = vmax.f32 %v3448, 0.0
    %v3629 = vmax.f32 %v3449, 0.0
    %v3630 = vmax.f32 %v3450, 0.0
    %v3631 = vmax.f32 %v3451, 0.0
    %v3632 = vmax.f32 %v3452, 0.0
    %v3633 = vmax.f32 %v3453, 0.0
    %v3634 = vmax.f32 %v3454, 0.0
    %v3635 = vmax.f32 %v3455, 0.0
    %v3636 = vmax.f32 %v3456, 0.0
    %v3637 = vmax.f32 %v3457, 0.0
    %v3638 = vmax.f32 %v3458, 0.0
    %v3639 = vmax.f32 %v3459, 0.0
    %v3640 = vmax.f32 %v3460, 0.0
    %v3641 = vmax.f32 %v3461, 0.0
    %v3642 = vmax.f32 %v3462, 0.0
    %v3643 = vmax.f32 %v3463, 0.0
    %v3644 = vmax.f32 %v3464, 0.0
    %v3645 = vmax.f32 %v3465, 0.0
    %v3646 = vmax.f32 %v3466, 0.0
    %v3647 = vmax.f32 %v3467, 0.0
    %v3648 = vmax.f32 %v3468, 0.0
    %v3649 = vmax.f32 %v3469, 0.0
    %v3650 = vmax.f32 %v3470, 0.0
    %v3651 = vmax.f32 %v3471, 0.0
    %v3652 = vmax.f32 %v3472, 0.0
    %v3653 = vmax.f32 %v3473, 0.0
    %v3654 = vmax.f32 %v3474, 0.0
    %v3655 = vmax.f32 %v3475, 0.0
    %v3656 = vmax.f32 %v3476, 0.0
    %v3657 = vmax.f32 %v3477, 0.0
    %v3658 = vmax.f32 %v3478, 0.0
    %v3659 = vmax.f32 %v3479, 0.0
    %v3660 = vmax.f32 %v3480, 0.0
    %v3661 = vmax.f32 %v3481, 0.0
    %v3662 = vmax.f32 %v3482, 0.0
    %v3663 = vmax.f32 %v3483, 0.0
    %v3664 = vmax.f32 %v3484, 0.0
    %v3665 = vmax.f32 %v3485, 0.0
    %v3666 = vmax.f32 %v3486, 0.0
    %v3667 = vmax.f32 %v3487, 0.0
    %v3668 = vmax.f32 %v3488, 0.0
    %v3669 = vmax.f32 %v3489, 0.0
    %v3670 = vmax.f32 %v3490, 0.0
    %v3671 = vmax.f32 %v3491, 0.0
    %v3672 = vmax.f32 %v3492, 0.0
    %v3673 = vmax.f32 %v3493, 0.0
    %v3674 = vmax.f32 %v3494, 0.0
    %v3675 = vmax.f32 %v3495, 0.0
    %v3676 = vmax.f32 %v3496, 0.0
    %v3677 = vmax.f32 %v3497, 0.0
    %v3678 = vmax.f32 %v3498, 0.0
    %v3679 = vmax.f32 %v3499, 0.0
    %v3680 = vmax.f32 %v3500, 0.0
    %v3681 = vmax.f32 %v3501, 0.0
    %v3682 = vmax.f32 %v3502, 0.0
    %v3683 = vmax.f32 %v3503, 0.0
    %v3684 = vmax.f32 %v3504, 0.0
    %v3685 = vmax.f32 %v3505, 0.0
    %v3686 = vmax.f32 %v3506, 0.0
    %v3687 = vmax.f32 %v3507, 0.0
    %v3688 = vmax.f32 %v3508, 0.0
    %v3689 = vmax.f32 %v3509, 0.0
    %v3690 = vmax.f32 %v3510, 0.0
    %v3691 = vmax.f32 %v3511, 0.0
    %v3692 = vmax.f32 %v3512, 0.0
    %v3693 = vmax.f32 %v3513, 0.0
    %v3694 = vmax.f32 %v3514, 0.0
    %v3695 = vmax.f32 %v3515, 0.0
    %v3696 = vmax.f32 %v3516, 0.0
    %v3697 = vmax.f32 %v3517, 0.0
    %v3698 = vmax.f32 %v3518, 0.0
    %v3699 = vmax.f32 %v3519, 0.0
    %v3700 = vmax.f32 %v3520, 0.0
    %v3701 = vmax.f32 %v3521, 0.0
    %v3702 = vmax.f32 %v3522, 0.0
    %v3703 = vmax.f32 %v3523, 0.0
    %v3704 = vmax.f32 %v3524, 0.0
    %v3705 = vmax.f32 %v3525, 0.0
    %v3706 = vmax.f32 %v3526, 0.0
    %v3707 = vmax.f32 %v3527, 0.0
    %v3708 = vmax.f32 %v3528, 0.0
    %v3709 = vmax.f32 %v3529, 0.0
    %v3710 = vmax.f32 %v3530, 0.0
    %v3711 = vmax.f32 %v3531, 0.0
    %v3712 = vmax.f32 %v3532, 0.0
    %v3713 = vmax.f32 %v3533, 0.0
    %v3714 = vmax.f32 %v3534, 0.0
    %v3715 = vmax.f32 %v3535, 0.0
    %v3716 = vmax.f32 %v3536, 0.0
    %v3717 = vmax.f32 %v3537, 0.0
    %v3718 = vmax.f32 %v3538, 0.0
    %v3719 = vmax.f32 %v3539, 0.0
    %v3720 = vmax.f32 %v3540, 0.0
    %v3721 = vmax.f32 %v3541, 0.0
    %v3722 = vmax.f32 %v3542, 0.0
    %v3723 = vmax.f32 %v3543, 0.0
    %v3724 = vmax.f32 %v3544, 0.0
    %v3725 = vmax.f32 %v3545, 0.0
    %v3726 = vmax.f32 %v3546, 0.0
    %v3727 = vmax.f32 %v3547, 0.0
    %v3728 = vadd.f32 %v3548, %v3554
    %v3729 = vadd.f32 %v3728, %v3560
    %v3730 = vadd.f32 %v3729, %v3566
    %v3731 = vadd.f32 %v3730, %v3572
    %v3732 = vadd.f32 %v3731, %v3578
    %v3733 = vadd.f32 %v3732, %v3584
    %v3734 = vadd.f32 %v3733, %v3590
    %v3735 = vadd.f32 %v3734, %v3596
    %v3736 = vadd.f32 %v3735, %v3602
    %v3737 = vadd.f32 %v3736, %v3608
    %v3738 = vadd.f32 %v3737, %v3614
    %v3739 = vadd.f32 %v3738, %v3620
    %v3740 = vadd.f32 %v3739, %v3626
    %v3741 = vadd.f32 %v3740, %v3632
    %v3742 = vadd.f32 %v3741, %v3638
    %v3743 = vadd.f32 %v3742, %v3644
    %v3744 = vadd.f32 %v3743, %v3650
    %v3745 = vadd.f32 %v3744, %v3656
    %v3746 = vadd.f32 %v3745, %v3662
    %v3747 = vadd.f32 %v3746, %v3668
    %v3748 = vadd.f32 %v3747, %v3674
    %v3749 = vadd.f32 %v3748, %v3680
    %v3750 = vadd.f32 %v3749, %v3686
    %v3751 = vadd.f32 %v3750, %v3692
    %v3752 = vadd.f32 %v3751, %v3698
    %v3753 = vadd.f32 %v3752, %v3704
    %v3754 = vadd.f32 %v3753, %v3710
    %v3755 = vadd.f32 %v3754, %v3716
    %v3756 = vadd.f32 %v3755, %v3722
    %v3757 = vrot.slane %v3756, 4
    %v3758 = vadd.f32 %v3756, %v3757
    %v3759 = vrot.slane %v3758, 2
    %v3760 = vadd.f32 %v3758, %v3759
    %v3761 = vrot.slane %v3760, 1
    %v3762 = vadd.f32 %v3760, %v3761
    %v3763 = vadd.f32 %v3549, %v3555
    %v3764 = vadd.f32 %v3763, %v3561
    %v3765 = vadd.f32 %v3764, %v3567
    %v3766 = vadd.f32 %v3765, %v3573
    %v3767 = vadd.f32 %v3766, %v3579
    %v3768 = vadd.f32 %v3767, %v3585
    %v3769 = vadd.f32 %v3768, %v3591
    %v3770 = vadd.f32 %v3769, %v3597
    %v3771 = vadd.f32 %v3770, %v3603
    %v3772 = vadd.f32 %v3771, %v3609
    %v3773 = vadd.f32 %v3772, %v3615
    %v3774 = vadd.f32 %v3773, %v3621
    %v3775 = vadd.f32 %v3774, %v3627
    %v3776 = vadd.f32 %v3775, %v3633
    %v3777 = vadd.f32 %v3776, %v3639
    %v3778 = vadd.f32 %v3777, %v3645
    %v3779 = vadd.f32 %v3778, %v3651
    %v3780 = vadd.f32 %v3779, %v3657
    %v3781 = vadd.f32 %v3780, %v3663
    %v3782 = vadd.f32 %v3781, %v3669
    %v3783 = vadd.f32 %v3782, %v3675
    %v3784 = vadd.f32 %v3783, %v3681
    %v3785 = vadd.f32 %v3784, %v3687
    %v3786 = vadd.f32 %v3785, %v3693
    %v3787 = vadd.f32 %v3786, %v3699
    %v3788 = vadd.f32 %v3787, %v3705
    %v3789 = vadd.f32 %v3788, %v3711
    %v3790 = vadd.f32 %v3789, %v3717
    %v3791 = vadd.f32 %v3790, %v3723
    %v3792 = vrot.slane %v3791, 4
    %v3793 = vadd.f32 %v3791, %v3792
    %v3794 = vrot.slane %v3793, 2
    %v3795 = vadd.f32 %v3793, %v3794
    %v3796 = vrot.slane %v3795, 1
    %v3797 = vadd.f32 %v3795, %v3796
    %v3798 = vadd.f32 %v3550, %v3556
    %v3799 = vadd.f32 %v3798, %v3562
    %v3800 = vadd.f32 %v3799, %v3568
    %v3801 = vadd.f32 %v3800, %v3574
    %v3802 = vadd.f32 %v3801, %v3580
    %v3803 = vadd.f32 %v3802, %v3586
    %v3804 = vadd.f32 %v3803, %v3592
    %v3805 = vadd.f32 %v3804, %v3598
    %v3806 = vadd.f32 %v3805, %v3604
    %v3807 = vadd.f32 %v3806, %v3610
    %v3808 = vadd.f32 %v3807, %v3616
    %v3809 = vadd.f32 %v3808, %v3622
    %v3810 = vadd.f32 %v3809, %v3628
    %v3811 = vadd.f32 %v3810, %v3634
    %v3812 = vadd.f32 %v3811, %v3640
    %v3813 = vadd.f32 %v3812, %v3646
    %v3814 = vadd.f32 %v3813, %v3652
    %v3815 = vadd.f32 %v3814, %v3658
    %v3816 = vadd.f32 %v3815, %v3664
    %v3817 = vadd.f32 %v3816, %v3670
    %v3818 = vadd.f32 %v3817, %v3676
    %v3819 = vadd.f32 %v3818, %v3682
    %v3820 = vadd.f32 %v3819, %v3688
    %v3821 = vadd.f32 %v3820, %v3694
    %v3822 = vadd.f32 %v3821, %v3700
    %v3823 = vadd.f32 %v3822, %v3706
    %v3824 = vadd.f32 %v3823, %v3712
    %v3825 = vadd.f32 %v3824, %v3718
    %v3826 = vadd.f32 %v3825, %v3724
    %v3827 = vrot.slane %v3826, 4
    %v3828 = vadd.f32 %v3826, %v3827
    %v3829 = vrot.slane %v3828, 2
    %v3830 = vadd.f32 %v3828, %v3829
    %v3831 = vrot.slane %v3830, 1
    %v3832 = vadd.f32 %v3830, %v3831
    %v3833 = vadd.f32 %v3551, %v3557
    %v3834 = vadd.f32 %v3833, %v3563
    %v3835 = vadd.f32 %v3834, %v3569
    %v3836 = vadd.f32 %v3835, %v3575
    %v3837 = vadd.f32 %v3836, %v3581
    %v3838 = vadd.f32 %v3837, %v3587
    %v3839 = vadd.f32 %v3838, %v3593
    %v3840 = vadd.f32 %v3839, %v3599
    %v3841 = vadd.f32 %v3840, %v3605
    %v3842 = vadd.f32 %v3841, %v3611
    %v3843 = vadd.f32 %v3842, %v3617
    %v3844 = vadd.f32 %v3843, %v3623
    %v3845 = vadd.f32 %v3844, %v3629
    %v3846 = vadd.f32 %v3845, %v3635
    %v3847 = vadd.f32 %v3846, %v3641
    %v3848 = vadd.f32 %v3847, %v3647
    %v3849 = vadd.f32 %v3848, %v3653
    %v3850 = vadd.f32 %v3849, %v3659
    %v3851 = vadd.f32 %v3850, %v3665
    %v3852 = vadd.f32 %v3851, %v3671
    %v3853 = vadd.f32 %v3852, %v3677
    %v3854 = vadd.f32 %v3853, %v3683
    %v3855 = vadd.f32 %v3854, %v3689
    %v3856 = vadd.f32 %v3855, %v3695
    %v3857 = vadd.f32 %v3856, %v3701
    %v3858 = vadd.f32 %v3857, %v3707
    %v3859 = vadd.f32 %v3858, %v3713
    %v3860 = vadd.f32 %v3859, %v3719
    %v3861 = vadd.f32 %v3860, %v3725
    %v3862 = vrot.slane %v3861, 4
    %v3863 = vadd.f32 %v3861, %v3862
    %v3864 = vrot.slane %v3863, 2
    %v3865 = vadd.f32 %v3863, %v3864
    %v3866 = vrot.slane %v3865, 1
    %v3867 = vadd.f32 %v3865, %v3866
    %v3868 = vadd.f32 %v3552, %v3558
    %v3869 = vadd.f32 %v3868, %v3564
    %v3870 = vadd.f32 %v3869, %v3570
    %v3871 = vadd.f32 %v3870, %v3576
    %v3872 = vadd.f32 %v3871, %v3582
    %v3873 = vadd.f32 %v3872, %v3588
    %v3874 = vadd.f32 %v3873, %v3594
    %v3875 = vadd.f32 %v3874, %v3600
    %v3876 = vadd.f32 %v3875, %v3606
    %v3877 = vadd.f32 %v3876, %v3612
    %v3878 = vadd.f32 %v3877, %v3618
    %v3879 = vadd.f32 %v3878, %v3624
    %v3880 = vadd.f32 %v3879, %v3630
    %v3881 = vadd.f32 %v3880, %v3636
    %v3882 = vadd.f32 %v3881, %v3642
    %v3883 = vadd.f32 %v3882, %v3648
    %v3884 = vadd.f32 %v3883, %v3654
    %v3885 = vadd.f32 %v3884, %v3660
    %v3886 = vadd.f32 %v3885, %v3666
    %v3887 = vadd.f32 %v3886, %v3672
    %v3888 = vadd.f32 %v3887, %v3678
    %v3889 = vadd.f32 %v3888, %v3684
    %v3890 = vadd.f32 %v3889, %v3690
    %v3891 = vadd.f32 %v3890, %v3696
    %v3892 = vadd.f32 %v3891, %v3702
    %v3893 = vadd.f32 %v3892, %v3708
    %v3894 = vadd.f32 %v3893, %v3714
    %v3895 = vadd.f32 %v3894, %v3720
    %v3896 = vadd.f32 %v3895, %v3726
    %v3897 = vrot.slane %v3896, 4
    %v3898 = vadd.f32 %v3896, %v3897
    %v3899 = vrot.slane %v3898, 2
    %v3900 = vadd.f32 %v3898, %v3899
    %v3901 = vrot.slane %v3900, 1
    %v3902 = vadd.f32 %v3900, %v3901
    %v3903 = vadd.f32 %v3553, %v3559
    %v3904 = vadd.f32 %v3903, %v3565
    %v3905 = vadd.f32 %v3904, %v3571
    %v3906 = vadd.f32 %v3905, %v3577
    %v3907 = vadd.f32 %v3906, %v3583
    %v3908 = vadd.f32 %v3907, %v3589
    %v3909 = vadd.f32 %v3908, %v3595
    %v3910 = vadd.f32 %v3909, %v3601
    %v3911 = vadd.f32 %v3910, %v3607
    %v3912 = vadd.f32 %v3911, %v3613
    %v3913 = vadd.f32 %v3912, %v3619
    %v3914 = vadd.f32 %v3913, %v3625
    %v3915 = vadd.f32 %v3914, %v3631
    %v3916 = vadd.f32 %v3915, %v3637
    %v3917 = vadd.f32 %v3916, %v3643
    %v3918 = vadd.f32 %v3917, %v3649
    %v3919 = vadd.f32 %v3918, %v3655
    %v3920 = vadd.f32 %v3919, %v3661
    %v3921 = vadd.f32 %v3920, %v3667
    %v3922 = vadd.f32 %v3921, %v3673
    %v3923 = vadd.f32 %v3922, %v3679
    %v3924 = vadd.f32 %v3923, %v3685
    %v3925 = vadd.f32 %v3924, %v3691
    %v3926 = vadd.f32 %v3925, %v3697
    %v3927 = vadd.f32 %v3926, %v3703
    %v3928 = vadd.f32 %v3927, %v3709
    %v3929 = vadd.f32 %v3928, %v3715
    %v3930 = vadd.f32 %v3929, %v3721
    %v3931 = vadd.f32 %v3930, %v3727
    %v3932 = vrot.slane %v3931, 4
    %v3933 = vadd.f32 %v3931, %v3932
    %v3934 = vrot.slane %v3933, 2
    %v3935 = vadd.f32 %v3933, %v3934
    %v3936 = vrot.slane %v3935, 1
    %v3937 = vadd.f32 %v3935, %v3936
    %v3938 = vadd.f32 %v2042, %v3762
    %v3939 = vadd.f32 %v2043, %v3797
    %v3940 = vadd.f32 %v2044, %v3832
    %v3941 = vadd.f32 %v2045, %v3867
    %v3942 = vadd.f32 %v2046, %v3902
    %v3943 = vadd.f32 %v2047, %v3937
    %v3944 = vld [vmem:[%s0 + $0x1e0] sm:$0xff]
    %v3945 = vld [vmem:[%s0 + $0x1e8] sm:$0xff]
    %v3946 = vld [vmem:[%s0 + $0x1f0] sm:$0xff]
    %v3947 = vld [vmem:[%s0 + $0x1f8] sm:$0xff]
    %v3948 = vld [vmem:[%s0 + $0x200] sm:$0xff]
    %v3949 = vld [vmem:[%s0 + $0x208] sm:$0xff]
    %v3950 = vld [vmem:[%s0 + $0x210] sm:$0xff]
    %v3951 = vld [vmem:[%s0 + $0x218] sm:$0xff]
    %v3952 = vld [vmem:[%s0 + $0x220] sm:$0xff]
    %v3953 = vld [vmem:[%s0 + $0x228] sm:$0xff]
    %v3954 = vld [vmem:[%s0 + $0x230] sm:$0xff]
    %v3955 = vld [vmem:[%s0 + $0x238] sm:$0xff]
    %v3956 = vld [vmem:[%s0 + $0x240] sm:$0xff]
    %v3957 = vld [vmem:[%s0 + $0x248] sm:$0xff]
    %v3958 = vld [vmem:[%s0 + $0x250] sm:$0xff]
    %v3959 = vld [vmem:[%s0 + $0x258] sm:$0xff]
    %v3960 = vld [vmem:[%s0 + $0x260] sm:$0xff]
    %v3961 = vld [vmem:[%s0 + $0x268] sm:$0xff]
    %v3962 = vld [vmem:[%s0 + $0x270] sm:$0xff]
    %v3963 = vld [vmem:[%s0 + $0x278] sm:$0xff]
    %v3964 = vld [vmem:[%s0 + $0x280] sm:$0xff]
    %v3965 = vld [vmem:[%s0 + $0x288] sm:$0xff]
    %v3966 = vld [vmem:[%s0 + $0x290] sm:$0xff]
    %v3967 = vld [vmem:[%s0 + $0x298] sm:$0xff]
    %v3968 = vld [vmem:[%s0 + $0x2a0] sm:$0xff]
    %v3969 = vld [vmem:[%s0 + $0x2a8] sm:$0xff]
    %v3970 = vld [vmem:[%s0 + $0x2b0] sm:$0xff]
    %v3971 = vld [vmem:[%s0 + $0x2b8] sm:$0xff]
    %v3972 = vld [vmem:[%s0 + $0x2c0] sm:$0xff]
    %v3973 = vld [vmem:[%s0 + $0x2c8] sm:$0xff]
    %3975 = vset.pattern.permute.xlu0 0
    %3976 = vperm.xlu0 %3975, %v3944
    %v3977 = vpop.permute.xlu0 %3976
    %3980 = vset.pattern.permute.xlu0 0
    %3981 = vperm.xlu0 %3980, %v3945
    %v3982 = vpop.permute.xlu0 %3981
    %3985 = vset.pattern.permute.xlu0 0
    %3986 = vperm.xlu0 %3985, %v3946
    %v3987 = vpop.permute.xlu0 %3986
    %3990 = vset.pattern.permute.xlu0 0
    %3991 = vperm.xlu0 %3990, %v3947
    %v3992 = vpop.permute.xlu0 %3991
    %3995 = vset.pattern.permute.xlu0 0
    %3996 = vperm.xlu0 %3995, %v3948
    %v3997 = vpop.permute.xlu0 %3996
    %4000 = vset.pattern.permute.xlu0 0
    %4001 = vperm.xlu0 %4000, %v3949
    %v4002 = vpop.permute.xlu0 %4001
    %4005 = vset.pattern.permute.xlu0 0
    %4006 = vperm.xlu0 %4005, %v3950
    %v4007 = vpop.permute.xlu0 %4006
    %4010 = vset.pattern.permute.xlu0 0
    %4011 = vperm.xlu0 %4010, %v3951
    %v4012 = vpop.permute.xlu0 %4011
    %4015 = vset.pattern.permute.xlu0 0
    %4016 = vperm.xlu0 %4015, %v3952
    %v4017 = vpop.permute.xlu0 %4016
    %4020 = vset.pattern.permute.xlu0 0
    %4021 = vperm.xlu0 %4020, %v3953
    %v4022 = vpop.permute.xlu0 %4021
    %4025 = vset.pattern.permute.xlu0 0
    %4026 = vperm.xlu0 %4025, %v3954
    %v4027 = vpop.permute.xlu0 %4026
    %4030 = vset.pattern.permute.xlu0 0
    %4031 = vperm.xlu0 %4030, %v3955
    %v4032 = vpop.permute.xlu0 %4031
    %4035 = vset.pattern.permute.xlu0 0
    %4036 = vperm.xlu0 %4035, %v3956
    %v4037 = vpop.permute.xlu0 %4036
    %4040 = vset.pattern.permute.xlu0 0
    %4041 = vperm.xlu0 %4040, %v3957
    %v4042 = vpop.permute.xlu0 %4041
    %4045 = vset.pattern.permute.xlu0 0
    %4046 = vperm.xlu0 %4045, %v3958
    %v4047 = vpop.permute.xlu0 %4046
    %4050 = vset.pattern.permute.xlu0 0
    %4051 = vperm.xlu0 %4050, %v3959
    %v4052 = vpop.permute.xlu0 %4051
    %4055 = vset.pattern.permute.xlu0 0
    %4056 = vperm.xlu0 %4055, %v3960
    %v4057 = vpop.permute.xlu0 %4056
    %4060 = vset.pattern.permute.xlu0 0
    %4061 = vperm.xlu0 %4060, %v3961
    %v4062 = vpop.permute.xlu0 %4061
    %4065 = vset.pattern.permute.xlu0 0
    %4066 = vperm.xlu0 %4065, %v3962
    %v4067 = vpop.permute.xlu0 %4066
    %4070 = vset.pattern.permute.xlu0 0
    %4071 = vperm.xlu0 %4070, %v3963
    %v4072 = vpop.permute.xlu0 %4071
    %4075 = vset.pattern.permute.xlu0 0
    %4076 = vperm.xlu0 %4075, %v3964
    %v4077 = vpop.permute.xlu0 %4076
    %4080 = vset.pattern.permute.xlu0 0
    %4081 = vperm.xlu0 %4080, %v3965
    %v4082 = vpop.permute.xlu0 %4081
    %4085 = vset.pattern.permute.xlu0 0
    %4086 = vperm.xlu0 %4085, %v3966
    %v4087 = vpop.permute.xlu0 %4086
    %4090 = vset.pattern.permute.xlu0 0
    %4091 = vperm.xlu0 %4090, %v3967
    %v4092 = vpop.permute.xlu0 %4091
    %4095 = vset.pattern.permute.xlu0 0
    %4096 = vperm.xlu0 %4095, %v3968
    %v4097 = vpop.permute.xlu0 %4096
    %4100 = vset.pattern.permute.xlu0 0
    %4101 = vperm.xlu0 %4100, %v3969
    %v4102 = vpop.permute.xlu0 %4101
    %4105 = vset.pattern.permute.xlu0 0
    %4106 = vperm.xlu0 %4105, %v3970
    %v4107 = vpop.permute.xlu0 %4106
    %4110 = vset.pattern.permute.xlu0 0
    %4111 = vperm.xlu0 %4110, %v3971
    %v4112 = vpop.permute.xlu0 %4111
    %4115 = vset.pattern.permute.xlu0 0
    %4116 = vperm.xlu0 %4115, %v3972
    %v4117 = vpop.permute.xlu0 %4116
    %4120 = vset.pattern.permute.xlu0 0
    %4121 = vperm.xlu0 %4120, %v3973
    %v4122 = vpop.permute.xlu0 %4121
    %v4124 = vmul.f32 %v3977, %v212
    %v4125 = vmul.f32 %v3977, %v216
    %v4126 = vmul.f32 %v3977, %v220
    %v4127 = vmul.f32 %v3977, %v224
    %v4128 = vmul.f32 %v3977, %v228
    %v4129 = vmul.f32 %v3977, %v232
    %v4130 = vmul.f32 %v3982, %v212
    %v4131 = vmul.f32 %v3982, %v216
    %v4132 = vmul.f32 %v3982, %v220
    %v4133 = vmul.f32 %v3982, %v224
    %v4134 = vmul.f32 %v3982, %v228
    %v4135 = vmul.f32 %v3982, %v232
    %v4136 = vmul.f32 %v3987, %v212
    %v4137 = vmul.f32 %v3987, %v216
    %v4138 = vmul.f32 %v3987, %v220
    %v4139 = vmul.f32 %v3987, %v224
    %v4140 = vmul.f32 %v3987, %v228
    %v4141 = vmul.f32 %v3987, %v232
    %v4142 = vmul.f32 %v3992, %v212
    %v4143 = vmul.f32 %v3992, %v216
    %v4144 = vmul.f32 %v3992, %v220
    %v4145 = vmul.f32 %v3992, %v224
    %v4146 = vmul.f32 %v3992, %v228
    %v4147 = vmul.f32 %v3992, %v232
    %v4148 = vmul.f32 %v3997, %v212
    %v4149 = vmul.f32 %v3997, %v216
    %v4150 = vmul.f32 %v3997, %v220
    %v4151 = vmul.f32 %v3997, %v224
    %v4152 = vmul.f32 %v3997, %v228
    %v4153 = vmul.f32 %v3997, %v232
    %v4154 = vmul.f32 %v4002, %v212
    %v4155 = vmul.f32 %v4002, %v216
    %v4156 = vmul.f32 %v4002, %v220
    %v4157 = vmul.f32 %v4002, %v224
    %v4158 = vmul.f32 %v4002, %v228
    %v4159 = vmul.f32 %v4002, %v232
    %v4160 = vmul.f32 %v4007, %v212
    %v4161 = vmul.f32 %v4007, %v216
    %v4162 = vmul.f32 %v4007, %v220
    %v4163 = vmul.f32 %v4007, %v224
    %v4164 = vmul.f32 %v4007, %v228
    %v4165 = vmul.f32 %v4007, %v232
    %v4166 = vmul.f32 %v4012, %v212
    %v4167 = vmul.f32 %v4012, %v216
    %v4168 = vmul.f32 %v4012, %v220
    %v4169 = vmul.f32 %v4012, %v224
    %v4170 = vmul.f32 %v4012, %v228
    %v4171 = vmul.f32 %v4012, %v232
    %v4172 = vmul.f32 %v4017, %v212
    %v4173 = vmul.f32 %v4017, %v216
    %v4174 = vmul.f32 %v4017, %v220
    %v4175 = vmul.f32 %v4017, %v224
    %v4176 = vmul.f32 %v4017, %v228
    %v4177 = vmul.f32 %v4017, %v232
    %v4178 = vmul.f32 %v4022, %v212
    %v4179 = vmul.f32 %v4022, %v216
    %v4180 = vmul.f32 %v4022, %v220
    %v4181 = vmul.f32 %v4022, %v224
    %v4182 = vmul.f32 %v4022, %v228
    %v4183 = vmul.f32 %v4022, %v232
    %v4184 = vmul.f32 %v4027, %v212
    %v4185 = vmul.f32 %v4027, %v216
    %v4186 = vmul.f32 %v4027, %v220
    %v4187 = vmul.f32 %v4027, %v224
    %v4188 = vmul.f32 %v4027, %v228
    %v4189 = vmul.f32 %v4027, %v232
    %v4190 = vmul.f32 %v4032, %v212
    %v4191 = vmul.f32 %v4032, %v216
    %v4192 = vmul.f32 %v4032, %v220
    %v4193 = vmul.f32 %v4032, %v224
    %v4194 = vmul.f32 %v4032, %v228
    %v4195 = vmul.f32 %v4032, %v232
    %v4196 = vmul.f32 %v4037, %v212
    %v4197 = vmul.f32 %v4037, %v216
    %v4198 = vmul.f32 %v4037, %v220
    %v4199 = vmul.f32 %v4037, %v224
    %v4200 = vmul.f32 %v4037, %v228
    %v4201 = vmul.f32 %v4037, %v232
    %v4202 = vmul.f32 %v4042, %v212
    %v4203 = vmul.f32 %v4042, %v216
    %v4204 = vmul.f32 %v4042, %v220
    %v4205 = vmul.f32 %v4042, %v224
    %v4206 = vmul.f32 %v4042, %v228
    %v4207 = vmul.f32 %v4042, %v232
    %v4208 = vmul.f32 %v4047, %v212
    %v4209 = vmul.f32 %v4047, %v216
    %v4210 = vmul.f32 %v4047, %v220
    %v4211 = vmul.f32 %v4047, %v224
    %v4212 = vmul.f32 %v4047, %v228
    %v4213 = vmul.f32 %v4047, %v232
    %v4214 = vmul.f32 %v4052, %v212
    %v4215 = vmul.f32 %v4052, %v216
    %v4216 = vmul.f32 %v4052, %v220
    %v4217 = vmul.f32 %v4052, %v224
    %v4218 = vmul.f32 %v4052, %v228
    %v4219 = vmul.f32 %v4052, %v232
    %v4220 = vmul.f32 %v4057, %v212
    %v4221 = vmul.f32 %v4057, %v216
    %v4222 = vmul.f32 %v4057, %v220
    %v4223 = vmul.f32 %v4057, %v224
    %v4224 = vmul.f32 %v4057, %v228
    %v4225 = vmul.f32 %v4057, %v232
    %v4226 = vmul.f32 %v4062, %v212
    %v4227 = vmul.f32 %v4062, %v216
    %v4228 = vmul.f32 %v4062, %v220
    %v4229 = vmul.f32 %v4062, %v224
    %v4230 = vmul.f32 %v4062, %v228
    %v4231 = vmul.f32 %v4062, %v232
    %v4232 = vmul.f32 %v4067, %v212
    %v4233 = vmul.f32 %v4067, %v216
    %v4234 = vmul.f32 %v4067, %v220
    %v4235 = vmul.f32 %v4067, %v224
    %v4236 = vmul.f32 %v4067, %v228
    %v4237 = vmul.f32 %v4067, %v232
    %v4238 = vmul.f32 %v4072, %v212
    %v4239 = vmul.f32 %v4072, %v216
    %v4240 = vmul.f32 %v4072, %v220
    %v4241 = vmul.f32 %v4072, %v224
    %v4242 = vmul.f32 %v4072, %v228
    %v4243 = vmul.f32 %v4072, %v232
    %v4244 = vmul.f32 %v4077, %v212
    %v4245 = vmul.f32 %v4077, %v216
    %v4246 = vmul.f32 %v4077, %v220
    %v4247 = vmul.f32 %v4077, %v224
    %v4248 = vmul.f32 %v4077, %v228
    %v4249 = vmul.f32 %v4077, %v232
    %v4250 = vmul.f32 %v4082, %v212
    %v4251 = vmul.f32 %v4082, %v216
    %v4252 = vmul.f32 %v4082, %v220
    %v4253 = vmul.f32 %v4082, %v224
    %v4254 = vmul.f32 %v4082, %v228
    %v4255 = vmul.f32 %v4082, %v232
    %v4256 = vmul.f32 %v4087, %v212
    %v4257 = vmul.f32 %v4087, %v216
    %v4258 = vmul.f32 %v4087, %v220
    %v4259 = vmul.f32 %v4087, %v224
    %v4260 = vmul.f32 %v4087, %v228
    %v4261 = vmul.f32 %v4087, %v232
    %v4262 = vmul.f32 %v4092, %v212
    %v4263 = vmul.f32 %v4092, %v216
    %v4264 = vmul.f32 %v4092, %v220
    %v4265 = vmul.f32 %v4092, %v224
    %v4266 = vmul.f32 %v4092, %v228
    %v4267 = vmul.f32 %v4092, %v232
    %v4268 = vmul.f32 %v4097, %v212
    %v4269 = vmul.f32 %v4097, %v216
    %v4270 = vmul.f32 %v4097, %v220
    %v4271 = vmul.f32 %v4097, %v224
    %v4272 = vmul.f32 %v4097, %v228
    %v4273 = vmul.f32 %v4097, %v232
    %v4274 = vmul.f32 %v4102, %v212
    %v4275 = vmul.f32 %v4102, %v216
    %v4276 = vmul.f32 %v4102, %v220
    %v4277 = vmul.f32 %v4102, %v224
    %v4278 = vmul.f32 %v4102, %v228
    %v4279 = vmul.f32 %v4102, %v232
    %v4280 = vmul.f32 %v4107, %v212
    %v4281 = vmul.f32 %v4107, %v216
    %v4282 = vmul.f32 %v4107, %v220
    %v4283 = vmul.f32 %v4107, %v224
    %v4284 = vmul.f32 %v4107, %v228
    %v4285 = vmul.f32 %v4107, %v232
    %v4286 = vmul.f32 %v4112, %v212
    %v4287 = vmul.f32 %v4112, %v216
    %v4288 = vmul.f32 %v4112, %v220
    %v4289 = vmul.f32 %v4112, %v224
    %v4290 = vmul.f32 %v4112, %v228
    %v4291 = vmul.f32 %v4112, %v232
    %v4292 = vmul.f32 %v4117, %v212
    %v4293 = vmul.f32 %v4117, %v216
    %v4294 = vmul.f32 %v4117, %v220
    %v4295 = vmul.f32 %v4117, %v224
    %v4296 = vmul.f32 %v4117, %v228
    %v4297 = vmul.f32 %v4117, %v232
    %v4298 = vmul.f32 %v4122, %v212
    %v4299 = vmul.f32 %v4122, %v216
    %v4300 = vmul.f32 %v4122, %v220
    %v4301 = vmul.f32 %v4122, %v224
    %v4302 = vmul.f32 %v4122, %v228
    %v4303 = vmul.f32 %v4122, %v232
    %4304 = vset.pattern.permute.xlu0 1
    %4305 = vperm.xlu0 %4304, %v3944
    %v4306 = vpop.permute.xlu0 %4305
    %4308 = vset.pattern.permute.xlu0 1
    %4309 = vperm.xlu0 %4308, %v3945
    %v4310 = vpop.permute.xlu0 %4309
    %4312 = vset.pattern.permute.xlu0 1
    %4313 = vperm.xlu0 %4312, %v3946
    %v4314 = vpop.permute.xlu0 %4313
    %4316 = vset.pattern.permute.xlu0 1
    %4317 = vperm.xlu0 %4316, %v3947
    %v4318 = vpop.permute.xlu0 %4317
    %4320 = vset.pattern.permute.xlu0 1
    %4321 = vperm.xlu0 %4320, %v3948
    %v4322 = vpop.permute.xlu0 %4321
    %4324 = vset.pattern.permute.xlu0 1
    %4325 = vperm.xlu0 %4324, %v3949
    %v4326 = vpop.permute.xlu0 %4325
    %4328 = vset.pattern.permute.xlu0 1
    %4329 = vperm.xlu0 %4328, %v3950
    %v4330 = vpop.permute.xlu0 %4329
    %4332 = vset.pattern.permute.xlu0 1
    %4333 = vperm.xlu0 %4332, %v3951
    %v4334 = vpop.permute.xlu0 %4333
    %4336 = vset.pattern.permute.xlu0 1
    %4337 = vperm.xlu0 %4336, %v3952
    %v4338 = vpop.permute.xlu0 %4337
    %4340 = vset.pattern.permute.xlu0 1
    %4341 = vperm.xlu0 %4340, %v3953
    %v4342 = vpop.permute.xlu0 %4341
    %4344 = vset.pattern.permute.xlu0 1
    %4345 = vperm.xlu0 %4344, %v3954
    %v4346 = vpop.permute.xlu0 %4345
    %4348 = vset.pattern.permute.xlu0 1
    %4349 = vperm.xlu0 %4348, %v3955
    %v4350 = vpop.permute.xlu0 %4349
    %4352 = vset.pattern.permute.xlu0 1
    %4353 = vperm.xlu0 %4352, %v3956
    %v4354 = vpop.permute.xlu0 %4353
    %4356 = vset.pattern.permute.xlu0 1
    %4357 = vperm.xlu0 %4356, %v3957
    %v4358 = vpop.permute.xlu0 %4357
    %4360 = vset.pattern.permute.xlu0 1
    %4361 = vperm.xlu0 %4360, %v3958
    %v4362 = vpop.permute.xlu0 %4361
    %4364 = vset.pattern.permute.xlu0 1
    %4365 = vperm.xlu0 %4364, %v3959
    %v4366 = vpop.permute.xlu0 %4365
    %4368 = vset.pattern.permute.xlu0 1
    %4369 = vperm.xlu0 %4368, %v3960
    %v4370 = vpop.permute.xlu0 %4369
    %4372 = vset.pattern.permute.xlu0 1
    %4373 = vperm.xlu0 %4372, %v3961
    %v4374 = vpop.permute.xlu0 %4373
    %4376 = vset.pattern.permute.xlu0 1
    %4377 = vperm.xlu0 %4376, %v3962
    %v4378 = vpop.permute.xlu0 %4377
    %4380 = vset.pattern.permute.xlu0 1
    %4381 = vperm.xlu0 %4380, %v3963
    %v4382 = vpop.permute.xlu0 %4381
    %4384 = vset.pattern.permute.xlu0 1
    %4385 = vperm.xlu0 %4384, %v3964
    %v4386 = vpop.permute.xlu0 %4385
    %4388 = vset.pattern.permute.xlu0 1
    %4389 = vperm.xlu0 %4388, %v3965
    %v4390 = vpop.permute.xlu0 %4389
    %4392 = vset.pattern.permute.xlu0 1
    %4393 = vperm.xlu0 %4392, %v3966
    %v4394 = vpop.permute.xlu0 %4393
    %4396 = vset.pattern.permute.xlu0 1
    %4397 = vperm.xlu0 %4396, %v3967
    %v4398 = vpop.permute.xlu0 %4397
    %4400 = vset.pattern.permute.xlu0 1
    %4401 = vperm.xlu0 %4400, %v3968
    %v4402 = vpop.permute.xlu0 %4401
    %4404 = vset.pattern.permute.xlu0 1
    %4405 = vperm.xlu0 %4404, %v3969
    %v4406 = vpop.permute.xlu0 %4405
    %4408 = vset.pattern.permute.xlu0 1
    %4409 = vperm.xlu0 %4408, %v3970
    %v4410 = vpop.permute.xlu0 %4409
    %4412 = vset.pattern.permute.xlu0 1
    %4413 = vperm.xlu0 %4412, %v3971
    %v4414 = vpop.permute.xlu0 %4413
    %4416 = vset.pattern.permute.xlu0 1
    %4417 = vperm.xlu0 %4416, %v3972
    %v4418 = vpop.permute.xlu0 %4417
    %4420 = vset.pattern.permute.xlu0 1
    %4421 = vperm.xlu0 %4420, %v3973
    %v4422 = vpop.permute.xlu0 %4421
    %v4424 = vmul.f32 %v4306, %v543
    %v4425 = vmul.f32 %v4306, %v547
    %v4426 = vmul.f32 %v4306, %v551
    %v4427 = vmul.f32 %v4306, %v555
    %v4428 = vmul.f32 %v4306, %v559
    %v4429 = vmul.f32 %v4306, %v563
    %v4430 = vmul.f32 %v4310, %v543
    %v4431 = vmul.f32 %v4310, %v547
    %v4432 = vmul.f32 %v4310, %v551
    %v4433 = vmul.f32 %v4310, %v555
    %v4434 = vmul.f32 %v4310, %v559
    %v4435 = vmul.f32 %v4310, %v563
    %v4436 = vmul.f32 %v4314, %v543
    %v4437 = vmul.f32 %v4314, %v547
    %v4438 = vmul.f32 %v4314, %v551
    %v4439 = vmul.f32 %v4314, %v555
    %v4440 = vmul.f32 %v4314, %v559
    %v4441 = vmul.f32 %v4314, %v563
    %v4442 = vmul.f32 %v4318, %v543
    %v4443 = vmul.f32 %v4318, %v547
    %v4444 = vmul.f32 %v4318, %v551
    %v4445 = vmul.f32 %v4318, %v555
    %v4446 = vmul.f32 %v4318, %v559
    %v4447 = vmul.f32 %v4318, %v563
    %v4448 = vmul.f32 %v4322, %v543
    %v4449 = vmul.f32 %v4322, %v547
    %v4450 = vmul.f32 %v4322, %v551
    %v4451 = vmul.f32 %v4322, %v555
    %v4452 = vmul.f32 %v4322, %v559
    %v4453 = vmul.f32 %v4322, %v563
    %v4454 = vmul.f32 %v4326, %v543
    %v4455 = vmul.f32 %v4326, %v547
    %v4456 = vmul.f32 %v4326, %v551
    %v4457 = vmul.f32 %v4326, %v555
    %v4458 = vmul.f32 %v4326, %v559
    %v4459 = vmul.f32 %v4326, %v563
    %v4460 = vmul.f32 %v4330, %v543
    %v4461 = vmul.f32 %v4330, %v547
    %v4462 = vmul.f32 %v4330, %v551
    %v4463 = vmul.f32 %v4330, %v555
    %v4464 = vmul.f32 %v4330, %v559
    %v4465 = vmul.f32 %v4330, %v563
    %v4466 = vmul.f32 %v4334, %v543
    %v4467 = vmul.f32 %v4334, %v547
    %v4468 = vmul.f32 %v4334, %v551
    %v4469 = vmul.f32 %v4334, %v555
    %v4470 = vmul.f32 %v4334, %v559
    %v4471 = vmul.f32 %v4334, %v563
    %v4472 = vmul.f32 %v4338, %v543
    %v4473 = vmul.f32 %v4338, %v547
    %v4474 = vmul.f32 %v4338, %v551
    %v4475 = vmul.f32 %v4338, %v555
    %v4476 = vmul.f32 %v4338, %v559
    %v4477 = vmul.f32 %v4338, %v563
    %v4478 = vmul.f32 %v4342, %v543
    %v4479 = vmul.f32 %v4342, %v547
    %v4480 = vmul.f32 %v4342, %v551
    %v4481 = vmul.f32 %v4342, %v555
    %v4482 = vmul.f32 %v4342, %v559
    %v4483 = vmul.f32 %v4342, %v563
    %v4484 = vmul.f32 %v4346, %v543
    %v4485 = vmul.f32 %v4346, %v547
    %v4486 = vmul.f32 %v4346, %v551
    %v4487 = vmul.f32 %v4346, %v555
    %v4488 = vmul.f32 %v4346, %v559
    %v4489 = vmul.f32 %v4346, %v563
    %v4490 = vmul.f32 %v4350, %v543
    %v4491 = vmul.f32 %v4350, %v547
    %v4492 = vmul.f32 %v4350, %v551
    %v4493 = vmul.f32 %v4350, %v555
    %v4494 = vmul.f32 %v4350, %v559
    %v4495 = vmul.f32 %v4350, %v563
    %v4496 = vmul.f32 %v4354, %v543
    %v4497 = vmul.f32 %v4354, %v547
    %v4498 = vmul.f32 %v4354, %v551
    %v4499 = vmul.f32 %v4354, %v555
    %v4500 = vmul.f32 %v4354, %v559
    %v4501 = vmul.f32 %v4354, %v563
    %v4502 = vmul.f32 %v4358, %v543
    %v4503 = vmul.f32 %v4358, %v547
    %v4504 = vmul.f32 %v4358, %v551
    %v4505 = vmul.f32 %v4358, %v555
    %v4506 = vmul.f32 %v4358, %v559
    %v4507 = vmul.f32 %v4358, %v563
    %v4508 = vmul.f32 %v4362, %v543
    %v4509 = vmul.f32 %v4362, %v547
    %v4510 = vmul.f32 %v4362, %v551
    %v4511 = vmul.f32 %v4362, %v555
    %v4512 = vmul.f32 %v4362, %v559
    %v4513 = vmul.f32 %v4362, %v563
    %v4514 = vmul.f32 %v4366, %v543
    %v4515 = vmul.f32 %v4366, %v547
    %v4516 = vmul.f32 %v4366, %v551
    %v4517 = vmul.f32 %v4366, %v555
    %v4518 = vmul.f32 %v4366, %v559
    %v4519 = vmul.f32 %v4366, %v563
    %v4520 = vmul.f32 %v4370, %v543
    %v4521 = vmul.f32 %v4370, %v547
    %v4522 = vmul.f32 %v4370, %v551
    %v4523 = vmul.f32 %v4370, %v555
    %v4524 = vmul.f32 %v4370, %v559
    %v4525 = vmul.f32 %v4370, %v563
    %v4526 = vmul.f32 %v4374, %v543
    %v4527 = vmul.f32 %v4374, %v547
    %v4528 = vmul.f32 %v4374, %v551
    %v4529 = vmul.f32 %v4374, %v555
    %v4530 = vmul.f32 %v4374, %v559
    %v4531 = vmul.f32 %v4374, %v563
    %v4532 = vmul.f32 %v4378, %v543
    %v4533 = vmul.f32 %v4378, %v547
    %v4534 = vmul.f32 %v4378, %v551
    %v4535 = vmul.f32 %v4378, %v555
    %v4536 = vmul.f32 %v4378, %v559
    %v4537 = vmul.f32 %v4378, %v563
    %v4538 = vmul.f32 %v4382, %v543
    %v4539 = vmul.f32 %v4382, %v547
    %v4540 = vmul.f32 %v4382, %v551
    %v4541 = vmul.f32 %v4382, %v555
    %v4542 = vmul.f32 %v4382, %v559
    %v4543 = vmul.f32 %v4382, %v563
    %v4544 = vmul.f32 %v4386, %v543
    %v4545 = vmul.f32 %v4386, %v547
    %v4546 = vmul.f32 %v4386, %v551
    %v4547 = vmul.f32 %v4386, %v555
    %v4548 = vmul.f32 %v4386, %v559
    %v4549 = vmul.f32 %v4386, %v563
    %v4550 = vmul.f32 %v4390, %v543
    %v4551 = vmul.f32 %v4390, %v547
    %v4552 = vmul.f32 %v4390, %v551
    %v4553 = vmul.f32 %v4390, %v555
    %v4554 = vmul.f32 %v4390, %v559
    %v4555 = vmul.f32 %v4390, %v563
    %v4556 = vmul.f32 %v4394, %v543
    %v4557 = vmul.f32 %v4394, %v547
    %v4558 = vmul.f32 %v4394, %v551
    %v4559 = vmul.f32 %v4394, %v555
    %v4560 = vmul.f32 %v4394, %v559
    %v4561 = vmul.f32 %v4394, %v563
    %v4562 = vmul.f32 %v4398, %v543
    %v4563 = vmul.f32 %v4398, %v547
    %v4564 = vmul.f32 %v4398, %v551
    %v4565 = vmul.f32 %v4398, %v555
    %v4566 = vmul.f32 %v4398, %v559
    %v4567 = vmul.f32 %v4398, %v563
    %v4568 = vmul.f32 %v4402, %v543
    %v4569 = vmul.f32 %v4402, %v547
    %v4570 = vmul.f32 %v4402, %v551
    %v4571 = vmul.f32 %v4402, %v555
    %v4572 = vmul.f32 %v4402, %v559
    %v4573 = vmul.f32 %v4402, %v563
    %v4574 = vmul.f32 %v4406, %v543
    %v4575 = vmul.f32 %v4406, %v547
    %v4576 = vmul.f32 %v4406, %v551
    %v4577 = vmul.f32 %v4406, %v555
    %v4578 = vmul.f32 %v4406, %v559
    %v4579 = vmul.f32 %v4406, %v563
    %v4580 = vmul.f32 %v4410, %v543
    %v4581 = vmul.f32 %v4410, %v547
    %v4582 = vmul.f32 %v4410, %v551
    %v4583 = vmul.f32 %v4410, %v555
    %v4584 = vmul.f32 %v4410, %v559
    %v4585 = vmul.f32 %v4410, %v563
    %v4586 = vmul.f32 %v4414, %v543
    %v4587 = vmul.f32 %v4414, %v547
    %v4588 = vmul.f32 %v4414, %v551
    %v4589 = vmul.f32 %v4414, %v555
    %v4590 = vmul.f32 %v4414, %v559
    %v4591 = vmul.f32 %v4414, %v563
    %v4592 = vmul.f32 %v4418, %v543
    %v4593 = vmul.f32 %v4418, %v547
    %v4594 = vmul.f32 %v4418, %v551
    %v4595 = vmul.f32 %v4418, %v555
    %v4596 = vmul.f32 %v4418, %v559
    %v4597 = vmul.f32 %v4418, %v563
    %v4598 = vmul.f32 %v4422, %v543
    %v4599 = vmul.f32 %v4422, %v547
    %v4600 = vmul.f32 %v4422, %v551
    %v4601 = vmul.f32 %v4422, %v555
    %v4602 = vmul.f32 %v4422, %v559
    %v4603 = vmul.f32 %v4422, %v563
    %v4604 = vadd.f32 %v4124, %v4424
    %v4605 = vadd.f32 %v4125, %v4425
    %v4606 = vadd.f32 %v4126, %v4426
    %v4607 = vadd.f32 %v4127, %v4427
    %v4608 = vadd.f32 %v4128, %v4428
    %v4609 = vadd.f32 %v4129, %v4429
    %v4610 = vadd.f32 %v4130, %v4430
    %v4611 = vadd.f32 %v4131, %v4431
    %v4612 = vadd.f32 %v4132, %v4432
    %v4613 = vadd.f32 %v4133, %v4433
    %v4614 = vadd.f32 %v4134, %v4434
    %v4615 = vadd.f32 %v4135, %v4435
    %v4616 = vadd.f32 %v4136, %v4436
    %v4617 = vadd.f32 %v4137, %v4437
    %v4618 = vadd.f32 %v4138, %v4438
    %v4619 = vadd.f32 %v4139, %v4439
    %v4620 = vadd.f32 %v4140, %v4440
    %v4621 = vadd.f32 %v4141, %v4441
    %v4622 = vadd.f32 %v4142, %v4442
    %v4623 = vadd.f32 %v4143, %v4443
    %v4624 = vadd.f32 %v4144, %v4444
    %v4625 = vadd.f32 %v4145, %v4445
    %v4626 = vadd.f32 %v4146, %v4446
    %v4627 = vadd.f32 %v4147, %v4447
    %v4628 = vadd.f32 %v4148, %v4448
    %v4629 = vadd.f32 %v4149, %v4449
    %v4630 = vadd.f32 %v4150, %v4450
    %v4631 = vadd.f32 %v4151, %v4451
    %v4632 = vadd.f32 %v4152, %v4452
    %v4633 = vadd.f32 %v4153, %v4453
    %v4634 = vadd.f32 %v4154, %v4454
    %v4635 = vadd.f32 %v4155, %v4455
    %v4636 = vadd.f32 %v4156, %v4456
    %v4637 = vadd.f32 %v4157, %v4457
    %v4638 = vadd.f32 %v4158, %v4458
    %v4639 = vadd.f32 %v4159, %v4459
    %v4640 = vadd.f32 %v4160, %v4460
    %v4641 = vadd.f32 %v4161, %v4461
    %v4642 = vadd.f32 %v4162, %v4462
    %v4643 = vadd.f32 %v4163, %v4463
    %v4644 = vadd.f32 %v4164, %v4464
    %v4645 = vadd.f32 %v4165, %v4465
    %v4646 = vadd.f32 %v4166, %v4466
    %v4647 = vadd.f32 %v4167, %v4467
    %v4648 = vadd.f32 %v4168, %v4468
    %v4649 = vadd.f32 %v4169, %v4469
    %v4650 = vadd.f32 %v4170, %v4470
    %v4651 = vadd.f32 %v4171, %v4471
    %v4652 = vadd.f32 %v4172, %v4472
    %v4653 = vadd.f32 %v4173, %v4473
    %v4654 = vadd.f32 %v4174, %v4474
    %v4655 = vadd.f32 %v4175, %v4475
    %v4656 = vadd.f32 %v4176, %v4476
    %v4657 = vadd.f32 %v4177, %v4477
    %v4658 = vadd.f32 %v4178, %v4478
    %v4659 = vadd.f32 %v4179, %v4479
    %v4660 = vadd.f32 %v4180, %v4480
    %v4661 = vadd.f32 %v4181, %v4481
    %v4662 = vadd.f32 %v4182, %v4482
    %v4663 = vadd.f32 %v4183, %v4483
    %v4664 = vadd.f32 %v4184, %v4484
    %v4665 = vadd.f32 %v4185, %v4485
    %v4666 = vadd.f32 %v4186, %v4486
    %v4667 = vadd.f32 %v4187, %v4487
    %v4668 = vadd.f32 %v4188, %v4488
    %v4669 = vadd.f32 %v4189, %v4489
    %v4670 = vadd.f32 %v4190, %v4490
    %v4671 = vadd.f32 %v4191, %v4491
    %v4672 = vadd.f32 %v4192, %v4492
    %v4673 = vadd.f32 %v4193, %v4493
    %v4674 = vadd.f32 %v4194, %v4494
    %v4675 = vadd.f32 %v4195, %v4495
    %v4676 = vadd.f32 %v4196, %v4496
    %v4677 = vadd.f32 %v4197, %v4497
    %v4678 = vadd.f32 %v4198, %v4498
    %v4679 = vadd.f32 %v4199, %v4499
    %v4680 = vadd.f32 %v4200, %v4500
    %v4681 = vadd.f32 %v4201, %v4501
    %v4682 = vadd.f32 %v4202, %v4502
    %v4683 = vadd.f32 %v4203, %v4503
    %v4684 = vadd.f32 %v4204, %v4504
    %v4685 = vadd.f32 %v4205, %v4505
    %v4686 = vadd.f32 %v4206, %v4506
    %v4687 = vadd.f32 %v4207, %v4507
    %v4688 = vadd.f32 %v4208, %v4508
    %v4689 = vadd.f32 %v4209, %v4509
    %v4690 = vadd.f32 %v4210, %v4510
    %v4691 = vadd.f32 %v4211, %v4511
    %v4692 = vadd.f32 %v4212, %v4512
    %v4693 = vadd.f32 %v4213, %v4513
    %v4694 = vadd.f32 %v4214, %v4514
    %v4695 = vadd.f32 %v4215, %v4515
    %v4696 = vadd.f32 %v4216, %v4516
    %v4697 = vadd.f32 %v4217, %v4517
    %v4698 = vadd.f32 %v4218, %v4518
    %v4699 = vadd.f32 %v4219, %v4519
    %v4700 = vadd.f32 %v4220, %v4520
    %v4701 = vadd.f32 %v4221, %v4521
    %v4702 = vadd.f32 %v4222, %v4522
    %v4703 = vadd.f32 %v4223, %v4523
    %v4704 = vadd.f32 %v4224, %v4524
    %v4705 = vadd.f32 %v4225, %v4525
    %v4706 = vadd.f32 %v4226, %v4526
    %v4707 = vadd.f32 %v4227, %v4527
    %v4708 = vadd.f32 %v4228, %v4528
    %v4709 = vadd.f32 %v4229, %v4529
    %v4710 = vadd.f32 %v4230, %v4530
    %v4711 = vadd.f32 %v4231, %v4531
    %v4712 = vadd.f32 %v4232, %v4532
    %v4713 = vadd.f32 %v4233, %v4533
    %v4714 = vadd.f32 %v4234, %v4534
    %v4715 = vadd.f32 %v4235, %v4535
    %v4716 = vadd.f32 %v4236, %v4536
    %v4717 = vadd.f32 %v4237, %v4537
    %v4718 = vadd.f32 %v4238, %v4538
    %v4719 = vadd.f32 %v4239, %v4539
    %v4720 = vadd.f32 %v4240, %v4540
    %v4721 = vadd.f32 %v4241, %v4541
    %v4722 = vadd.f32 %v4242, %v4542
    %v4723 = vadd.f32 %v4243, %v4543
    %v4724 = vadd.f32 %v4244, %v4544
    %v4725 = vadd.f32 %v4245, %v4545
    %v4726 = vadd.f32 %v4246, %v4546
    %v4727 = vadd.f32 %v4247, %v4547
    %v4728 = vadd.f32 %v4248, %v4548
    %v4729 = vadd.f32 %v4249, %v4549
    %v4730 = vadd.f32 %v4250, %v4550
    %v4731 = vadd.f32 %v4251, %v4551
    %v4732 = vadd.f32 %v4252, %v4552
    %v4733 = vadd.f32 %v4253, %v4553
    %v4734 = vadd.f32 %v4254, %v4554
    %v4735 = vadd.f32 %v4255, %v4555
    %v4736 = vadd.f32 %v4256, %v4556
    %v4737 = vadd.f32 %v4257, %v4557
    %v4738 = vadd.f32 %v4258, %v4558
    %v4739 = vadd.f32 %v4259, %v4559
    %v4740 = vadd.f32 %v4260, %v4560
    %v4741 = vadd.f32 %v4261, %v4561
    %v4742 = vadd.f32 %v4262, %v4562
    %v4743 = vadd.f32 %v4263, %v4563
    %v4744 = vadd.f32 %v4264, %v4564
    %v4745 = vadd.f32 %v4265, %v4565
    %v4746 = vadd.f32 %v4266, %v4566
    %v4747 = vadd.f32 %v4267, %v4567
    %v4748 = vadd.f32 %v4268, %v4568
    %v4749 = vadd.f32 %v4269, %v4569
    %v4750 = vadd.f32 %v4270, %v4570
    %v4751 = vadd.f32 %v4271, %v4571
    %v4752 = vadd.f32 %v4272, %v4572
    %v4753 = vadd.f32 %v4273, %v4573
    %v4754 = vadd.f32 %v4274, %v4574
    %v4755 = vadd.f32 %v4275, %v4575
    %v4756 = vadd.f32 %v4276, %v4576
    %v4757 = vadd.f32 %v4277, %v4577
    %v4758 = vadd.f32 %v4278, %v4578
    %v4759 = vadd.f32 %v4279, %v4579
    %v4760 = vadd.f32 %v4280, %v4580
    %v4761 = vadd.f32 %v4281, %v4581
    %v4762 = vadd.f32 %v4282, %v4582
    %v4763 = vadd.f32 %v4283, %v4583
    %v4764 = vadd.f32 %v4284, %v4584
    %v4765 = vadd.f32 %v4285, %v4585
    %v4766 = vadd.f32 %v4286, %v4586
    %v4767 = vadd.f32 %v4287, %v4587
    %v4768 = vadd.f32 %v4288, %v4588
    %v4769 = vadd.f32 %v4289, %v4589
    %v4770 = vadd.f32 %v4290, %v4590
    %v4771 = vadd.f32 %v4291, %v4591
    %v4772 = vadd.f32 %v4292, %v4592
    %v4773 = vadd.f32 %v4293, %v4593
    %v4774 = vadd.f32 %v4294, %v4594
    %v4775 = vadd.f32 %v4295, %v4595
    %v4776 = vadd.f32 %v4296, %v4596
    %v4777 = vadd.f32 %v4297, %v4597
    %v4778 = vadd.f32 %v4298, %v4598
    %v4779 = vadd.f32 %v4299, %v4599
    %v4780 = vadd.f32 %v4300, %v4600
    %v4781 = vadd.f32 %v4301, %v4601
    %v4782 = vadd.f32 %v4302, %v4602
    %v4783 = vadd.f32 %v4303, %v4603
    %4784 = vset.pattern.permute.xlu0 2
    %4785 = vperm.xlu0 %4784, %v3944
    %v4786 = vpop.permute.xlu0 %4785
    %4788 = vset.pattern.permute.xlu0 2
    %4789 = vperm.xlu0 %4788, %v3945
    %v4790 = vpop.permute.xlu0 %4789
    %4792 = vset.pattern.permute.xlu0 2
    %4793 = vperm.xlu0 %4792, %v3946
    %v4794 = vpop.permute.xlu0 %4793
    %4796 = vset.pattern.permute.xlu0 2
    %4797 = vperm.xlu0 %4796, %v3947
    %v4798 = vpop.permute.xlu0 %4797
    %4800 = vset.pattern.permute.xlu0 2
    %4801 = vperm.xlu0 %4800, %v3948
    %v4802 = vpop.permute.xlu0 %4801
    %4804 = vset.pattern.permute.xlu0 2
    %4805 = vperm.xlu0 %4804, %v3949
    %v4806 = vpop.permute.xlu0 %4805
    %4808 = vset.pattern.permute.xlu0 2
    %4809 = vperm.xlu0 %4808, %v3950
    %v4810 = vpop.permute.xlu0 %4809
    %4812 = vset.pattern.permute.xlu0 2
    %4813 = vperm.xlu0 %4812, %v3951
    %v4814 = vpop.permute.xlu0 %4813
    %4816 = vset.pattern.permute.xlu0 2
    %4817 = vperm.xlu0 %4816, %v3952
    %v4818 = vpop.permute.xlu0 %4817
    %4820 = vset.pattern.permute.xlu0 2
    %4821 = vperm.xlu0 %4820, %v3953
    %v4822 = vpop.permute.xlu0 %4821
    %4824 = vset.pattern.permute.xlu0 2
    %4825 = vperm.xlu0 %4824, %v3954
    %v4826 = vpop.permute.xlu0 %4825
    %4828 = vset.pattern.permute.xlu0 2
    %4829 = vperm.xlu0 %4828, %v3955
    %v4830 = vpop.permute.xlu0 %4829
    %4832 = vset.pattern.permute.xlu0 2
    %4833 = vperm.xlu0 %4832, %v3956
    %v4834 = vpop.permute.xlu0 %4833
    %4836 = vset.pattern.permute.xlu0 2
    %4837 = vperm.xlu0 %4836, %v3957
    %v4838 = vpop.permute.xlu0 %4837
    %4840 = vset.pattern.permute.xlu0 2
    %4841 = vperm.xlu0 %4840, %v3958
    %v4842 = vpop.permute.xlu0 %4841
    %4844 = vset.pattern.permute.xlu0 2
    %4845 = vperm.xlu0 %4844, %v3959
    %v4846 = vpop.permute.xlu0 %4845
    %4848 = vset.pattern.permute.xlu0 2
    %4849 = vperm.xlu0 %4848, %v3960
    %v4850 = vpop.permute.xlu0 %4849
    %4852 = vset.pattern.permute.xlu0 2
    %4853 = vperm.xlu0 %4852, %v3961
    %v4854 = vpop.permute.xlu0 %4853
    %4856 = vset.pattern.permute.xlu0 2
    %4857 = vperm.xlu0 %4856, %v3962
    %v4858 = vpop.permute.xlu0 %4857
    %4860 = vset.pattern.permute.xlu0 2
    %4861 = vperm.xlu0 %4860, %v3963
    %v4862 = vpop.permute.xlu0 %4861
    %4864 = vset.pattern.permute.xlu0 2
    %4865 = vperm.xlu0 %4864, %v3964
    %v4866 = vpop.permute.xlu0 %4865
    %4868 = vset.pattern.permute.xlu0 2
    %4869 = vperm.xlu0 %4868, %v3965
    %v4870 = vpop.permute.xlu0 %4869
    %4872 = vset.pattern.permute.xlu0 2
    %4873 = vperm.xlu0 %4872, %v3966
    %v4874 = vpop.permute.xlu0 %4873
    %4876 = vset.pattern.permute.xlu0 2
    %4877 = vperm.xlu0 %4876, %v3967
    %v4878 = vpop.permute.xlu0 %4877
    %4880 = vset.pattern.permute.xlu0 2
    %4881 = vperm.xlu0 %4880, %v3968
    %v4882 = vpop.permute.xlu0 %4881
    %4884 = vset.pattern.permute.xlu0 2
    %4885 = vperm.xlu0 %4884, %v3969
    %v4886 = vpop.permute.xlu0 %4885
    %4888 = vset.pattern.permute.xlu0 2
    %4889 = vperm.xlu0 %4888, %v3970
    %v4890 = vpop.permute.xlu0 %4889
    %4892 = vset.pattern.permute.xlu0 2
    %4893 = vperm.xlu0 %4892, %v3971
    %v4894 = vpop.permute.xlu0 %4893
    %4896 = vset.pattern.permute.xlu0 2
    %4897 = vperm.xlu0 %4896, %v3972
    %v4898 = vpop.permute.xlu0 %4897
    %4900 = vset.pattern.permute.xlu0 2
    %4901 = vperm.xlu0 %4900, %v3973
    %v4902 = vpop.permute.xlu0 %4901
    %v4904 = vmul.f32 %v4786, %v1054
    %v4905 = vmul.f32 %v4786, %v1058
    %v4906 = vmul.f32 %v4786, %v1062
    %v4907 = vmul.f32 %v4786, %v1066
    %v4908 = vmul.f32 %v4786, %v1070
    %v4909 = vmul.f32 %v4786, %v1074
    %v4910 = vmul.f32 %v4790, %v1054
    %v4911 = vmul.f32 %v4790, %v1058
    %v4912 = vmul.f32 %v4790, %v1062
    %v4913 = vmul.f32 %v4790, %v1066
    %v4914 = vmul.f32 %v4790, %v1070
    %v4915 = vmul.f32 %v4790, %v1074
    %v4916 = vmul.f32 %v4794, %v1054
    %v4917 = vmul.f32 %v4794, %v1058
    %v4918 = vmul.f32 %v4794, %v1062
    %v4919 = vmul.f32 %v4794, %v1066
    %v4920 = vmul.f32 %v4794, %v1070
    %v4921 = vmul.f32 %v4794, %v1074
    %v4922 = vmul.f32 %v4798, %v1054
    %v4923 = vmul.f32 %v4798, %v1058
    %v4924 = vmul.f32 %v4798, %v1062
    %v4925 = vmul.f32 %v4798, %v1066
    %v4926 = vmul.f32 %v4798, %v1070
    %v4927 = vmul.f32 %v4798, %v1074
    %v4928 = vmul.f32 %v4802, %v1054
    %v4929 = vmul.f32 %v4802, %v1058
    %v4930 = vmul.f32 %v4802, %v1062
    %v4931 = vmul.f32 %v4802, %v1066
    %v4932 = vmul.f32 %v4802, %v1070
    %v4933 = vmul.f32 %v4802, %v1074
    %v4934 = vmul.f32 %v4806, %v1054
    %v4935 = vmul.f32 %v4806, %v1058
    %v4936 = vmul.f32 %v4806, %v1062
    %v4937 = vmul.f32 %v4806, %v1066
    %v4938 = vmul.f32 %v4806, %v1070
    %v4939 = vmul.f32 %v4806, %v1074
    %v4940 = vmul.f32 %v4810, %v1054
    %v4941 = vmul.f32 %v4810, %v1058
    %v4942 = vmul.f32 %v4810, %v1062
    %v4943 = vmul.f32 %v4810, %v1066
    %v4944 = vmul.f32 %v4810, %v1070
    %v4945 = vmul.f32 %v4810, %v1074
    %v4946 = vmul.f32 %v4814, %v1054
    %v4947 = vmul.f32 %v4814, %v1058
    %v4948 = vmul.f32 %v4814, %v1062
    %v4949 = vmul.f32 %v4814, %v1066
    %v4950 = vmul.f32 %v4814, %v1070
    %v4951 = vmul.f32 %v4814, %v1074
    %v4952 = vmul.f32 %v4818, %v1054
    %v4953 = vmul.f32 %v4818, %v1058
    %v4954 = vmul.f32 %v4818, %v1062
    %v4955 = vmul.f32 %v4818, %v1066
    %v4956 = vmul.f32 %v4818, %v1070
    %v4957 = vmul.f32 %v4818, %v1074
    %v4958 = vmul.f32 %v4822, %v1054
    %v4959 = vmul.f32 %v4822, %v1058
    %v4960 = vmul.f32 %v4822, %v1062
    %v4961 = vmul.f32 %v4822, %v1066
    %v4962 = vmul.f32 %v4822, %v1070
    %v4963 = vmul.f32 %v4822, %v1074
    %v4964 = vmul.f32 %v4826, %v1054
    %v4965 = vmul.f32 %v4826, %v1058
    %v4966 = vmul.f32 %v4826, %v1062
    %v4967 = vmul.f32 %v4826, %v1066
    %v4968 = vmul.f32 %v4826, %v1070
    %v4969 = vmul.f32 %v4826, %v1074
    %v4970 = vmul.f32 %v4830, %v1054
    %v4971 = vmul.f32 %v4830, %v1058
    %v4972 = vmul.f32 %v4830, %v1062
    %v4973 = vmul.f32 %v4830, %v1066
    %v4974 = vmul.f32 %v4830, %v1070
    %v4975 = vmul.f32 %v4830, %v1074
    %v4976 = vmul.f32 %v4834, %v1054
    %v4977 = vmul.f32 %v4834, %v1058
    %v4978 = vmul.f32 %v4834, %v1062
    %v4979 = vmul.f32 %v4834, %v1066
    %v4980 = vmul.f32 %v4834, %v1070
    %v4981 = vmul.f32 %v4834, %v1074
    %v4982 = vmul.f32 %v4838, %v1054
    %v4983 = vmul.f32 %v4838, %v1058
    %v4984 = vmul.f32 %v4838, %v1062
    %v4985 = vmul.f32 %v4838, %v1066
    %v4986 = vmul.f32 %v4838, %v1070
    %v4987 = vmul.f32 %v4838, %v1074
    %v4988 = vmul.f32 %v4842, %v1054
    %v4989 = vmul.f32 %v4842, %v1058
    %v4990 = vmul.f32 %v4842, %v1062
    %v4991 = vmul.f32 %v4842, %v1066
    %v4992 = vmul.f32 %v4842, %v1070
    %v4993 = vmul.f32 %v4842, %v1074
    %v4994 = vmul.f32 %v4846, %v1054
    %v4995 = vmul.f32 %v4846, %v1058
    %v4996 = vmul.f32 %v4846, %v1062
    %v4997 = vmul.f32 %v4846, %v1066
    %v4998 = vmul.f32 %v4846, %v1070
    %v4999 = vmul.f32 %v4846, %v1074
    %v5000 = vmul.f32 %v4850, %v1054
    %v5001 = vmul.f32 %v4850, %v1058
    %v5002 = vmul.f32 %v4850, %v1062
    %v5003 = vmul.f32 %v4850, %v1066
    %v5004 = vmul.f32 %v4850, %v1070
    %v5005 = vmul.f32 %v4850, %v1074
    %v5006 = vmul.f32 %v4854, %v1054
    %v5007 = vmul.f32 %v4854, %v1058
    %v5008 = vmul.f32 %v4854, %v1062
    %v5009 = vmul.f32 %v4854, %v1066
    %v5010 = vmul.f32 %v4854, %v1070
    %v5011 = vmul.f32 %v4854, %v1074
    %v5012 = vmul.f32 %v4858, %v1054
    %v5013 = vmul.f32 %v4858, %v1058
    %v5014 = vmul.f32 %v4858, %v1062
    %v5015 = vmul.f32 %v4858, %v1066
    %v5016 = vmul.f32 %v4858, %v1070
    %v5017 = vmul.f32 %v4858, %v1074
    %v5018 = vmul.f32 %v4862, %v1054
    %v5019 = vmul.f32 %v4862, %v1058
    %v5020 = vmul.f32 %v4862, %v1062
    %v5021 = vmul.f32 %v4862, %v1066
    %v5022 = vmul.f32 %v4862, %v1070
    %v5023 = vmul.f32 %v4862, %v1074
    %v5024 = vmul.f32 %v4866, %v1054
    %v5025 = vmul.f32 %v4866, %v1058
    %v5026 = vmul.f32 %v4866, %v1062
    %v5027 = vmul.f32 %v4866, %v1066
    %v5028 = vmul.f32 %v4866, %v1070
    %v5029 = vmul.f32 %v4866, %v1074
    %v5030 = vmul.f32 %v4870, %v1054
    %v5031 = vmul.f32 %v4870, %v1058
    %v5032 = vmul.f32 %v4870, %v1062
    %v5033 = vmul.f32 %v4870, %v1066
    %v5034 = vmul.f32 %v4870, %v1070
    %v5035 = vmul.f32 %v4870, %v1074
    %v5036 = vmul.f32 %v4874, %v1054
    %v5037 = vmul.f32 %v4874, %v1058
    %v5038 = vmul.f32 %v4874, %v1062
    %v5039 = vmul.f32 %v4874, %v1066
    %v5040 = vmul.f32 %v4874, %v1070
    %v5041 = vmul.f32 %v4874, %v1074
    %v5042 = vmul.f32 %v4878, %v1054
    %v5043 = vmul.f32 %v4878, %v1058
    %v5044 = vmul.f32 %v4878, %v1062
    %v5045 = vmul.f32 %v4878, %v1066
    %v5046 = vmul.f32 %v4878, %v1070
    %v5047 = vmul.f32 %v4878, %v1074
    %v5048 = vmul.f32 %v4882, %v1054
    %v5049 = vmul.f32 %v4882, %v1058
    %v5050 = vmul.f32 %v4882, %v1062
    %v5051 = vmul.f32 %v4882, %v1066
    %v5052 = vmul.f32 %v4882, %v1070
    %v5053 = vmul.f32 %v4882, %v1074
    %v5054 = vmul.f32 %v4886, %v1054
    %v5055 = vmul.f32 %v4886, %v1058
    %v5056 = vmul.f32 %v4886, %v1062
    %v5057 = vmul.f32 %v4886, %v1066
    %v5058 = vmul.f32 %v4886, %v1070
    %v5059 = vmul.f32 %v4886, %v1074
    %v5060 = vmul.f32 %v4890, %v1054
    %v5061 = vmul.f32 %v4890, %v1058
    %v5062 = vmul.f32 %v4890, %v1062
    %v5063 = vmul.f32 %v4890, %v1066
    %v5064 = vmul.f32 %v4890, %v1070
    %v5065 = vmul.f32 %v4890, %v1074
    %v5066 = vmul.f32 %v4894, %v1054
    %v5067 = vmul.f32 %v4894, %v1058
    %v5068 = vmul.f32 %v4894, %v1062
    %v5069 = vmul.f32 %v4894, %v1066
    %v5070 = vmul.f32 %v4894, %v1070
    %v5071 = vmul.f32 %v4894, %v1074
    %v5072 = vmul.f32 %v4898, %v1054
    %v5073 = vmul.f32 %v4898, %v1058
    %v5074 = vmul.f32 %v4898, %v1062
    %v5075 = vmul.f32 %v4898, %v1066
    %v5076 = vmul.f32 %v4898, %v1070
    %v5077 = vmul.f32 %v4898, %v1074
    %v5078 = vmul.f32 %v4902, %v1054
    %v5079 = vmul.f32 %v4902, %v1058
    %v5080 = vmul.f32 %v4902, %v1062
    %v5081 = vmul.f32 %v4902, %v1066
    %v5082 = vmul.f32 %v4902, %v1070
    %v5083 = vmul.f32 %v4902, %v1074
    %v5084 = vadd.f32 %v4604, %v4904
    %v5085 = vadd.f32 %v4605, %v4905
    %v5086 = vadd.f32 %v4606, %v4906
    %v5087 = vadd.f32 %v4607, %v4907
    %v5088 = vadd.f32 %v4608, %v4908
    %v5089 = vadd.f32 %v4609, %v4909
    %v5090 = vadd.f32 %v4610, %v4910
    %v5091 = vadd.f32 %v4611, %v4911
    %v5092 = vadd.f32 %v4612, %v4912
    %v5093 = vadd.f32 %v4613, %v4913
    %v5094 = vadd.f32 %v4614, %v4914
    %v5095 = vadd.f32 %v4615, %v4915
    %v5096 = vadd.f32 %v4616, %v4916
    %v5097 = vadd.f32 %v4617, %v4917
    %v5098 = vadd.f32 %v4618, %v4918
    %v5099 = vadd.f32 %v4619, %v4919
    %v5100 = vadd.f32 %v4620, %v4920
    %v5101 = vadd.f32 %v4621, %v4921
    %v5102 = vadd.f32 %v4622, %v4922
    %v5103 = vadd.f32 %v4623, %v4923
    %v5104 = vadd.f32 %v4624, %v4924
    %v5105 = vadd.f32 %v4625, %v4925
    %v5106 = vadd.f32 %v4626, %v4926
    %v5107 = vadd.f32 %v4627, %v4927
    %v5108 = vadd.f32 %v4628, %v4928
    %v5109 = vadd.f32 %v4629, %v4929
    %v5110 = vadd.f32 %v4630, %v4930
    %v5111 = vadd.f32 %v4631, %v4931
    %v5112 = vadd.f32 %v4632, %v4932
    %v5113 = vadd.f32 %v4633, %v4933
    %v5114 = vadd.f32 %v4634, %v4934
    %v5115 = vadd.f32 %v4635, %v4935
    %v5116 = vadd.f32 %v4636, %v4936
    %v5117 = vadd.f32 %v4637, %v4937
    %v5118 = vadd.f32 %v4638, %v4938
    %v5119 = vadd.f32 %v4639, %v4939
    %v5120 = vadd.f32 %v4640, %v4940
    %v5121 = vadd.f32 %v4641, %v4941
    %v5122 = vadd.f32 %v4642, %v4942
    %v5123 = vadd.f32 %v4643, %v4943
    %v5124 = vadd.f32 %v4644, %v4944
    %v5125 = vadd.f32 %v4645, %v4945
    %v5126 = vadd.f32 %v4646, %v4946
    %v5127 = vadd.f32 %v4647, %v4947
    %v5128 = vadd.f32 %v4648, %v4948
    %v5129 = vadd.f32 %v4649, %v4949
    %v5130 = vadd.f32 %v4650, %v4950
    %v5131 = vadd.f32 %v4651, %v4951
    %v5132 = vadd.f32 %v4652, %v4952
    %v5133 = vadd.f32 %v4653, %v4953
    %v5134 = vadd.f32 %v4654, %v4954
    %v5135 = vadd.f32 %v4655, %v4955
    %v5136 = vadd.f32 %v4656, %v4956
    %v5137 = vadd.f32 %v4657, %v4957
    %v5138 = vadd.f32 %v4658, %v4958
    %v5139 = vadd.f32 %v4659, %v4959
    %v5140 = vadd.f32 %v4660, %v4960
    %v5141 = vadd.f32 %v4661, %v4961
    %v5142 = vadd.f32 %v4662, %v4962
    %v5143 = vadd.f32 %v4663, %v4963
    %v5144 = vadd.f32 %v4664, %v4964
    %v5145 = vadd.f32 %v4665, %v4965
    %v5146 = vadd.f32 %v4666, %v4966
    %v5147 = vadd.f32 %v4667, %v4967
    %v5148 = vadd.f32 %v4668, %v4968
    %v5149 = vadd.f32 %v4669, %v4969
    %v5150 = vadd.f32 %v4670, %v4970
    %v5151 = vadd.f32 %v4671, %v4971
    %v5152 = vadd.f32 %v4672, %v4972
    %v5153 = vadd.f32 %v4673, %v4973
    %v5154 = vadd.f32 %v4674, %v4974
    %v5155 = vadd.f32 %v4675, %v4975
    %v5156 = vadd.f32 %v4676, %v4976
    %v5157 = vadd.f32 %v4677, %v4977
    %v5158 = vadd.f32 %v4678, %v4978
    %v5159 = vadd.f32 %v4679, %v4979
    %v5160 = vadd.f32 %v4680, %v4980
    %v5161 = vadd.f32 %v4681, %v4981
    %v5162 = vadd.f32 %v4682, %v4982
    %v5163 = vadd.f32 %v4683, %v4983
    %v5164 = vadd.f32 %v4684, %v4984
    %v5165 = vadd.f32 %v4685, %v4985
    %v5166 = vadd.f32 %v4686, %v4986
    %v5167 = vadd.f32 %v4687, %v4987
    %v5168 = vadd.f32 %v4688, %v4988
    %v5169 = vadd.f32 %v4689, %v4989
    %v5170 = vadd.f32 %v4690, %v4990
    %v5171 = vadd.f32 %v4691, %v4991
    %v5172 = vadd.f32 %v4692, %v4992
    %v5173 = vadd.f32 %v4693, %v4993
    %v5174 = vadd.f32 %v4694, %v4994
    %v5175 = vadd.f32 %v4695, %v4995
    %v5176 = vadd.f32 %v4696, %v4996
    %v5177 = vadd.f32 %v4697, %v4997
    %v5178 = vadd.f32 %v4698, %v4998
    %v5179 = vadd.f32 %v4699, %v4999
    %v5180 = vadd.f32 %v4700, %v5000
    %v5181 = vadd.f32 %v4701, %v5001
    %v5182 = vadd.f32 %v4702, %v5002
    %v5183 = vadd.f32 %v4703, %v5003
    %v5184 = vadd.f32 %v4704, %v5004
    %v5185 = vadd.f32 %v4705, %v5005
    %v5186 = vadd.f32 %v4706, %v5006
    %v5187 = vadd.f32 %v4707, %v5007
    %v5188 = vadd.f32 %v4708, %v5008
    %v5189 = vadd.f32 %v4709, %v5009
    %v5190 = vadd.f32 %v4710, %v5010
    %v5191 = vadd.f32 %v4711, %v5011
    %v5192 = vadd.f32 %v4712, %v5012
    %v5193 = vadd.f32 %v4713, %v5013
    %v5194 = vadd.f32 %v4714, %v5014
    %v5195 = vadd.f32 %v4715, %v5015
    %v5196 = vadd.f32 %v4716, %v5016
    %v5197 = vadd.f32 %v4717, %v5017
    %v5198 = vadd.f32 %v4718, %v5018
    %v5199 = vadd.f32 %v4719, %v5019
    %v5200 = vadd.f32 %v4720, %v5020
    %v5201 = vadd.f32 %v4721, %v5021
    %v5202 = vadd.f32 %v4722, %v5022
    %v5203 = vadd.f32 %v4723, %v5023
    %v5204 = vadd.f32 %v4724, %v5024
    %v5205 = vadd.f32 %v4725, %v5025
    %v5206 = vadd.f32 %v4726, %v5026
    %v5207 = vadd.f32 %v4727, %v5027
    %v5208 = vadd.f32 %v4728, %v5028
    %v5209 = vadd.f32 %v4729, %v5029
    %v5210 = vadd.f32 %v4730, %v5030
    %v5211 = vadd.f32 %v4731, %v5031
    %v5212 = vadd.f32 %v4732, %v5032
    %v5213 = vadd.f32 %v4733, %v5033
    %v5214 = vadd.f32 %v4734, %v5034
    %v5215 = vadd.f32 %v4735, %v5035
    %v5216 = vadd.f32 %v4736, %v5036
    %v5217 = vadd.f32 %v4737, %v5037
    %v5218 = vadd.f32 %v4738, %v5038
    %v5219 = vadd.f32 %v4739, %v5039
    %v5220 = vadd.f32 %v4740, %v5040
    %v5221 = vadd.f32 %v4741, %v5041
    %v5222 = vadd.f32 %v4742, %v5042
    %v5223 = vadd.f32 %v4743, %v5043
    %v5224 = vadd.f32 %v4744, %v5044
    %v5225 = vadd.f32 %v4745, %v5045
    %v5226 = vadd.f32 %v4746, %v5046
    %v5227 = vadd.f32 %v4747, %v5047
    %v5228 = vadd.f32 %v4748, %v5048
    %v5229 = vadd.f32 %v4749, %v5049
    %v5230 = vadd.f32 %v4750, %v5050
    %v5231 = vadd.f32 %v4751, %v5051
    %v5232 = vadd.f32 %v4752, %v5052
    %v5233 = vadd.f32 %v4753, %v5053
    %v5234 = vadd.f32 %v4754, %v5054
    %v5235 = vadd.f32 %v4755, %v5055
    %v5236 = vadd.f32 %v4756, %v5056
    %v5237 = vadd.f32 %v4757, %v5057
    %v5238 = vadd.f32 %v4758, %v5058
    %v5239 = vadd.f32 %v4759, %v5059
    %v5240 = vadd.f32 %v4760, %v5060
    %v5241 = vadd.f32 %v4761, %v5061
    %v5242 = vadd.f32 %v4762, %v5062
    %v5243 = vadd.f32 %v4763, %v5063
    %v5244 = vadd.f32 %v4764, %v5064
    %v5245 = vadd.f32 %v4765, %v5065
    %v5246 = vadd.f32 %v4766, %v5066
    %v5247 = vadd.f32 %v4767, %v5067
    %v5248 = vadd.f32 %v4768, %v5068
    %v5249 = vadd.f32 %v4769, %v5069
    %v5250 = vadd.f32 %v4770, %v5070
    %v5251 = vadd.f32 %v4771, %v5071
    %v5252 = vadd.f32 %v4772, %v5072
    %v5253 = vadd.f32 %v4773, %v5073
    %v5254 = vadd.f32 %v4774, %v5074
    %v5255 = vadd.f32 %v4775, %v5075
    %v5256 = vadd.f32 %v4776, %v5076
    %v5257 = vadd.f32 %v4777, %v5077
    %v5258 = vadd.f32 %v4778, %v5078
    %v5259 = vadd.f32 %v4779, %v5079
    %v5260 = vadd.f32 %v4780, %v5080
    %v5261 = vadd.f32 %v4781, %v5081
    %v5262 = vadd.f32 %v4782, %v5082
    %v5263 = vadd.f32 %v4783, %v5083
    %v5264 = vadd.f32 %v5084, %v1445
    %v5265 = vadd.f32 %v5085, %v1449
    %v5266 = vadd.f32 %v5086, %v1453
    %v5267 = vadd.f32 %v5087, %v1457
    %v5268 = vadd.f32 %v5088, %v1461
    %v5269 = vadd.f32 %v5089, %v1465
    %v5270 = vadd.f32 %v5090, %v1445
    %v5271 = vadd.f32 %v5091, %v1449
    %v5272 = vadd.f32 %v5092, %v1453
    %v5273 = vadd.f32 %v5093, %v1457
    %v5274 = vadd.f32 %v5094, %v1461
    %v5275 = vadd.f32 %v5095, %v1465
    %v5276 = vadd.f32 %v5096, %v1445
    %v5277 = vadd.f32 %v5097, %v1449
    %v5278 = vadd.f32 %v5098, %v1453
    %v5279 = vadd.f32 %v5099, %v1457
    %v5280 = vadd.f32 %v5100, %v1461
    %v5281 = vadd.f32 %v5101, %v1465
    %v5282 = vadd.f32 %v5102, %v1445
    %v5283 = vadd.f32 %v5103, %v1449
    %v5284 = vadd.f32 %v5104, %v1453
    %v5285 = vadd.f32 %v5105, %v1457
    %v5286 = vadd.f32 %v5106, %v1461
    %v5287 = vadd.f32 %v5107, %v1465
    %v5288 = vadd.f32 %v5108, %v1445
    %v5289 = vadd.f32 %v5109, %v1449
    %v5290 = vadd.f32 %v5110, %v1453
    %v5291 = vadd.f32 %v5111, %v1457
    %v5292 = vadd.f32 %v5112, %v1461
    %v5293 = vadd.f32 %v5113, %v1465
    %v5294 = vadd.f32 %v5114, %v1445
    %v5295 = vadd.f32 %v5115, %v1449
    %v5296 = vadd.f32 %v5116, %v1453
    %v5297 = vadd.f32 %v5117, %v1457
    %v5298 = vadd.f32 %v5118, %v1461
    %v5299 = vadd.f32 %v5119, %v1465
    %v5300 = vadd.f32 %v5120, %v1445
    %v5301 = vadd.f32 %v5121, %v1449
    %v5302 = vadd.f32 %v5122, %v1453
    %v5303 = vadd.f32 %v5123, %v1457
    %v5304 = vadd.f32 %v5124, %v1461
    %v5305 = vadd.f32 %v5125, %v1465
    %v5306 = vadd.f32 %v5126, %v1445
    %v5307 = vadd.f32 %v5127, %v1449
    %v5308 = vadd.f32 %v5128, %v1453
    %v5309 = vadd.f32 %v5129, %v1457
    %v5310 = vadd.f32 %v5130, %v1461
    %v5311 = vadd.f32 %v5131, %v1465
    %v5312 = vadd.f32 %v5132, %v1445
    %v5313 = vadd.f32 %v5133, %v1449
    %v5314 = vadd.f32 %v5134, %v1453
    %v5315 = vadd.f32 %v5135, %v1457
    %v5316 = vadd.f32 %v5136, %v1461
    %v5317 = vadd.f32 %v5137, %v1465
    %v5318 = vadd.f32 %v5138, %v1445
    %v5319 = vadd.f32 %v5139, %v1449
    %v5320 = vadd.f32 %v5140, %v1453
    %v5321 = vadd.f32 %v5141, %v1457
    %v5322 = vadd.f32 %v5142, %v1461
    %v5323 = vadd.f32 %v5143, %v1465
    %v5324 = vadd.f32 %v5144, %v1445
    %v5325 = vadd.f32 %v5145, %v1449
    %v5326 = vadd.f32 %v5146, %v1453
    %v5327 = vadd.f32 %v5147, %v1457
    %v5328 = vadd.f32 %v5148, %v1461
    %v5329 = vadd.f32 %v5149, %v1465
    %v5330 = vadd.f32 %v5150, %v1445
    %v5331 = vadd.f32 %v5151, %v1449
    %v5332 = vadd.f32 %v5152, %v1453
    %v5333 = vadd.f32 %v5153, %v1457
    %v5334 = vadd.f32 %v5154, %v1461
    %v5335 = vadd.f32 %v5155, %v1465
    %v5336 = vadd.f32 %v5156, %v1445
    %v5337 = vadd.f32 %v5157, %v1449
    %v5338 = vadd.f32 %v5158, %v1453
    %v5339 = vadd.f32 %v5159, %v1457
    %v5340 = vadd.f32 %v5160, %v1461
    %v5341 = vadd.f32 %v5161, %v1465
    %v5342 = vadd.f32 %v5162, %v1445
    %v5343 = vadd.f32 %v5163, %v1449
    %v5344 = vadd.f32 %v5164, %v1453
    %v5345 = vadd.f32 %v5165, %v1457
    %v5346 = vadd.f32 %v5166, %v1461
    %v5347 = vadd.f32 %v5167, %v1465
    %v5348 = vadd.f32 %v5168, %v1445
    %v5349 = vadd.f32 %v5169, %v1449
    %v5350 = vadd.f32 %v5170, %v1453
    %v5351 = vadd.f32 %v5171, %v1457
    %v5352 = vadd.f32 %v5172, %v1461
    %v5353 = vadd.f32 %v5173, %v1465
    %v5354 = vadd.f32 %v5174, %v1445
    %v5355 = vadd.f32 %v5175, %v1449
    %v5356 = vadd.f32 %v5176, %v1453
    %v5357 = vadd.f32 %v5177, %v1457
    %v5358 = vadd.f32 %v5178, %v1461
    %v5359 = vadd.f32 %v5179, %v1465
    %v5360 = vadd.f32 %v5180, %v1445
    %v5361 = vadd.f32 %v5181, %v1449
    %v5362 = vadd.f32 %v5182, %v1453
    %v5363 = vadd.f32 %v5183, %v1457
    %v5364 = vadd.f32 %v5184, %v1461
    %v5365 = vadd.f32 %v5185, %v1465
    %v5366 = vadd.f32 %v5186, %v1445
    %v5367 = vadd.f32 %v5187, %v1449
    %v5368 = vadd.f32 %v5188, %v1453
    %v5369 = vadd.f32 %v5189, %v1457
    %v5370 = vadd.f32 %v5190, %v1461
    %v5371 = vadd.f32 %v5191, %v1465
    %v5372 = vadd.f32 %v5192, %v1445
    %v5373 = vadd.f32 %v5193, %v1449
    %v5374 = vadd.f32 %v5194, %v1453
    %v5375 = vadd.f32 %v5195, %v1457
    %v5376 = vadd.f32 %v5196, %v1461
    %v5377 = vadd.f32 %v5197, %v1465
    %v5378 = vadd.f32 %v5198, %v1445
    %v5379 = vadd.f32 %v5199, %v1449
    %v5380 = vadd.f32 %v5200, %v1453
    %v5381 = vadd.f32 %v5201, %v1457
    %v5382 = vadd.f32 %v5202, %v1461
    %v5383 = vadd.f32 %v5203, %v1465
    %v5384 = vadd.f32 %v5204, %v1445
    %v5385 = vadd.f32 %v5205, %v1449
    %v5386 = vadd.f32 %v5206, %v1453
    %v5387 = vadd.f32 %v5207, %v1457
    %v5388 = vadd.f32 %v5208, %v1461
    %v5389 = vadd.f32 %v5209, %v1465
    %v5390 = vadd.f32 %v5210, %v1445
    %v5391 = vadd.f32 %v5211, %v1449
    %v5392 = vadd.f32 %v5212, %v1453
    %v5393 = vadd.f32 %v5213, %v1457
    %v5394 = vadd.f32 %v5214, %v1461
    %v5395 = vadd.f32 %v5215, %v1465
    %v5396 = vadd.f32 %v5216, %v1445
    %v5397 = vadd.f32 %v5217, %v1449
    %v5398 = vadd.f32 %v5218, %v1453
    %v5399 = vadd.f32 %v5219, %v1457
    %v5400 = vadd.f32 %v5220, %v1461
    %v5401 = vadd.f32 %v5221, %v1465
    %v5402 = vadd.f32 %v5222, %v1445
    %v5403 = vadd.f32 %v5223, %v1449
    %v5404 = vadd.f32 %v5224, %v1453
    %v5405 = vadd.f32 %v5225, %v1457
    %v5406 = vadd.f32 %v5226, %v1461
    %v5407 = vadd.f32 %v5227, %v1465
    %v5408 = vadd.f32 %v5228, %v1445
    %v5409 = vadd.f32 %v5229, %v1449
    %v5410 = vadd.f32 %v5230, %v1453
    %v5411 = vadd.f32 %v5231, %v1457
    %v5412 = vadd.f32 %v5232, %v1461
    %v5413 = vadd.f32 %v5233, %v1465
    %v5414 = vadd.f32 %v5234, %v1445
    %v5415 = vadd.f32 %v5235, %v1449
    %v5416 = vadd.f32 %v5236, %v1453
    %v5417 = vadd.f32 %v5237, %v1457
    %v5418 = vadd.f32 %v5238, %v1461
    %v5419 = vadd.f32 %v5239, %v1465
    %v5420 = vadd.f32 %v5240, %v1445
    %v5421 = vadd.f32 %v5241, %v1449
    %v5422 = vadd.f32 %v5242, %v1453
    %v5423 = vadd.f32 %v5243, %v1457
    %v5424 = vadd.f32 %v5244, %v1461
    %v5425 = vadd.f32 %v5245, %v1465
    %v5426 = vadd.f32 %v5246, %v1445
    %v5427 = vadd.f32 %v5247, %v1449
    %v5428 = vadd.f32 %v5248, %v1453
    %v5429 = vadd.f32 %v5249, %v1457
    %v5430 = vadd.f32 %v5250, %v1461
    %v5431 = vadd.f32 %v5251, %v1465
    %v5432 = vadd.f32 %v5252, %v1445
    %v5433 = vadd.f32 %v5253, %v1449
    %v5434 = vadd.f32 %v5254, %v1453
    %v5435 = vadd.f32 %v5255, %v1457
    %v5436 = vadd.f32 %v5256, %v1461
    %v5437 = vadd.f32 %v5257, %v1465
    %v5438 = vadd.f32 %v5258, %v1445
    %v5439 = vadd.f32 %v5259, %v1449
    %v5440 = vadd.f32 %v5260, %v1453
    %v5441 = vadd.f32 %v5261, %v1457
    %v5442 = vadd.f32 %v5262, %v1461
    %v5443 = vadd.f32 %v5263, %v1465
    %v5444 = vmax.f32 %v5264, 0.0
    %v5445 = vmax.f32 %v5265, 0.0
    %v5446 = vmax.f32 %v5266, 0.0
    %v5447 = vmax.f32 %v5267, 0.0
    %v5448 = vmax.f32 %v5268, 0.0
    %v5449 = vmax.f32 %v5269, 0.0
    %v5450 = vmax.f32 %v5270, 0.0
    %v5451 = vmax.f32 %v5271, 0.0
    %v5452 = vmax.f32 %v5272, 0.0
    %v5453 = vmax.f32 %v5273, 0.0
    %v5454 = vmax.f32 %v5274, 0.0
    %v5455 = vmax.f32 %v5275, 0.0
    %v5456 = vmax.f32 %v5276, 0.0
    %v5457 = vmax.f32 %v5277, 0.0
    %v5458 = vmax.f32 %v5278, 0.0
    %v5459 = vmax.f32 %v5279, 0.0
    %v5460 = vmax.f32 %v5280, 0.0
    %v5461 = vmax.f32 %v5281, 0.0
    %v5462 = vmax.f32 %v5282, 0.0
    %v5463 = vmax.f32 %v5283, 0.0
    %v5464 = vmax.f32 %v5284, 0.0
    %v5465 = vmax.f32 %v5285, 0.0
    %v5466 = vmax.f32 %v5286, 0.0
    %v5467 = vmax.f32 %v5287, 0.0
    %v5468 = vmax.f32 %v5288, 0.0
    %v5469 = vmax.f32 %v5289, 0.0
    %v5470 = vmax.f32 %v5290, 0.0
    %v5471 = vmax.f32 %v5291, 0.0
    %v5472 = vmax.f32 %v5292, 0.0
    %v5473 = vmax.f32 %v5293, 0.0
    %v5474 = vmax.f32 %v5294, 0.0
    %v5475 = vmax.f32 %v5295, 0.0
    %v5476 = vmax.f32 %v5296, 0.0
    %v5477 = vmax.f32 %v5297, 0.0
    %v5478 = vmax.f32 %v5298, 0.0
    %v5479 = vmax.f32 %v5299, 0.0
    %v5480 = vmax.f32 %v5300, 0.0
    %v5481 = vmax.f32 %v5301, 0.0
    %v5482 = vmax.f32 %v5302, 0.0
    %v5483 = vmax.f32 %v5303, 0.0
    %v5484 = vmax.f32 %v5304, 0.0
    %v5485 = vmax.f32 %v5305, 0.0
    %v5486 = vmax.f32 %v5306, 0.0
    %v5487 = vmax.f32 %v5307, 0.0
    %v5488 = vmax.f32 %v5308, 0.0
    %v5489 = vmax.f32 %v5309, 0.0
    %v5490 = vmax.f32 %v5310, 0.0
    %v5491 = vmax.f32 %v5311, 0.0
    %v5492 = vmax.f32 %v5312, 0.0
    %v5493 = vmax.f32 %v5313, 0.0
    %v5494 = vmax.f32 %v5314, 0.0
    %v5495 = vmax.f32 %v5315, 0.0
    %v5496 = vmax.f32 %v5316, 0.0
    %v5497 = vmax.f32 %v5317, 0.0
    %v5498 = vmax.f32 %v5318, 0.0
    %v5499 = vmax.f32 %v5319, 0.0
    %v5500 = vmax.f32 %v5320, 0.0
    %v5501 = vmax.f32 %v5321, 0.0
    %v5502 = vmax.f32 %v5322, 0.0
    %v5503 = vmax.f32 %v5323, 0.0
    %v5504 = vmax.f32 %v5324, 0.0
    %v5505 = vmax.f32 %v5325, 0.0
    %v5506 = vmax.f32 %v5326, 0.0
    %v5507 = vmax.f32 %v5327, 0.0
    %v5508 = vmax.f32 %v5328, 0.0
    %v5509 = vmax.f32 %v5329, 0.0
    %v5510 = vmax.f32 %v5330, 0.0
    %v5511 = vmax.f32 %v5331, 0.0
    %v5512 = vmax.f32 %v5332, 0.0
    %v5513 = vmax.f32 %v5333, 0.0
    %v5514 = vmax.f32 %v5334, 0.0
    %v5515 = vmax.f32 %v5335, 0.0
    %v5516 = vmax.f32 %v5336, 0.0
    %v5517 = vmax.f32 %v5337, 0.0
    %v5518 = vmax.f32 %v5338, 0.0
    %v5519 = vmax.f32 %v5339, 0.0
    %v5520 = vmax.f32 %v5340, 0.0
    %v5521 = vmax.f32 %v5341, 0.0
    %v5522 = vmax.f32 %v5342, 0.0
    %v5523 = vmax.f32 %v5343, 0.0
    %v5524 = vmax.f32 %v5344, 0.0
    %v5525 = vmax.f32 %v5345, 0.0
    %v5526 = vmax.f32 %v5346, 0.0
    %v5527 = vmax.f32 %v5347, 0.0
    %v5528 = vmax.f32 %v5348, 0.0
    %v5529 = vmax.f32 %v5349, 0.0
    %v5530 = vmax.f32 %v5350, 0.0
    %v5531 = vmax.f32 %v5351, 0.0
    %v5532 = vmax.f32 %v5352, 0.0
    %v5533 = vmax.f32 %v5353, 0.0
    %v5534 = vmax.f32 %v5354, 0.0
    %v5535 = vmax.f32 %v5355, 0.0
    %v5536 = vmax.f32 %v5356, 0.0
    %v5537 = vmax.f32 %v5357, 0.0
    %v5538 = vmax.f32 %v5358, 0.0
    %v5539 = vmax.f32 %v5359, 0.0
    %v5540 = vmax.f32 %v5360, 0.0
    %v5541 = vmax.f32 %v5361, 0.0
    %v5542 = vmax.f32 %v5362, 0.0
    %v5543 = vmax.f32 %v5363, 0.0
    %v5544 = vmax.f32 %v5364, 0.0
    %v5545 = vmax.f32 %v5365, 0.0
    %v5546 = vmax.f32 %v5366, 0.0
    %v5547 = vmax.f32 %v5367, 0.0
    %v5548 = vmax.f32 %v5368, 0.0
    %v5549 = vmax.f32 %v5369, 0.0
    %v5550 = vmax.f32 %v5370, 0.0
    %v5551 = vmax.f32 %v5371, 0.0
    %v5552 = vmax.f32 %v5372, 0.0
    %v5553 = vmax.f32 %v5373, 0.0
    %v5554 = vmax.f32 %v5374, 0.0
    %v5555 = vmax.f32 %v5375, 0.0
    %v5556 = vmax.f32 %v5376, 0.0
    %v5557 = vmax.f32 %v5377, 0.0
    %v5558 = vmax.f32 %v5378, 0.0
    %v5559 = vmax.f32 %v5379, 0.0
    %v5560 = vmax.f32 %v5380, 0.0
    %v5561 = vmax.f32 %v5381, 0.0
    %v5562 = vmax.f32 %v5382, 0.0
    %v5563 = vmax.f32 %v5383, 0.0
    %v5564 = vmax.f32 %v5384, 0.0
    %v5565 = vmax.f32 %v5385, 0.0
    %v5566 = vmax.f32 %v5386, 0.0
    %v5567 = vmax.f32 %v5387, 0.0
    %v5568 = vmax.f32 %v5388, 0.0
    %v5569 = vmax.f32 %v5389, 0.0
    %v5570 = vmax.f32 %v5390, 0.0
    %v5571 = vmax.f32 %v5391, 0.0
    %v5572 = vmax.f32 %v5392, 0.0
    %v5573 = vmax.f32 %v5393, 0.0
    %v5574 = vmax.f32 %v5394, 0.0
    %v5575 = vmax.f32 %v5395, 0.0
    %v5576 = vmax.f32 %v5396, 0.0
    %v5577 = vmax.f32 %v5397, 0.0
    %v5578 = vmax.f32 %v5398, 0.0
    %v5579 = vmax.f32 %v5399, 0.0
    %v5580 = vmax.f32 %v5400, 0.0
    %v5581 = vmax.f32 %v5401, 0.0
    %v5582 = vmax.f32 %v5402, 0.0
    %v5583 = vmax.f32 %v5403, 0.0
    %v5584 = vmax.f32 %v5404, 0.0
    %v5585 = vmax.f32 %v5405, 0.0
    %v5586 = vmax.f32 %v5406, 0.0
    %v5587 = vmax.f32 %v5407, 0.0
    %v5588 = vmax.f32 %v5408, 0.0
    %v5589 = vmax.f32 %v5409, 0.0
    %v5590 = vmax.f32 %v5410, 0.0
    %v5591 = vmax.f32 %v5411, 0.0
    %v5592 = vmax.f32 %v5412, 0.0
    %v5593 = vmax.f32 %v5413, 0.0
    %v5594 = vmax.f32 %v5414, 0.0
    %v5595 = vmax.f32 %v5415, 0.0
    %v5596 = vmax.f32 %v5416, 0.0
    %v5597 = vmax.f32 %v5417, 0.0
    %v5598 = vmax.f32 %v5418, 0.0
    %v5599 = vmax.f32 %v5419, 0.0
    %v5600 = vmax.f32 %v5420, 0.0
    %v5601 = vmax.f32 %v5421, 0.0
    %v5602 = vmax.f32 %v5422, 0.0
    %v5603 = vmax.f32 %v5423, 0.0
    %v5604 = vmax.f32 %v5424, 0.0
    %v5605 = vmax.f32 %v5425, 0.0
    %v5606 = vmax.f32 %v5426, 0.0
    %v5607 = vmax.f32 %v5427, 0.0
    %v5608 = vmax.f32 %v5428, 0.0
    %v5609 = vmax.f32 %v5429, 0.0
    %v5610 = vmax.f32 %v5430, 0.0
    %v5611 = vmax.f32 %v5431, 0.0
    %v5612 = vmax.f32 %v5432, 0.0
    %v5613 = vmax.f32 %v5433, 0.0
    %v5614 = vmax.f32 %v5434, 0.0
    %v5615 = vmax.f32 %v5435, 0.0
    %v5616 = vmax.f32 %v5436, 0.0
    %v5617 = vmax.f32 %v5437, 0.0
    %v5618 = vmax.f32 %v5438, 0.0
    %v5619 = vmax.f32 %v5439, 0.0
    %v5620 = vmax.f32 %v5440, 0.0
    %v5621 = vmax.f32 %v5441, 0.0
    %v5622 = vmax.f32 %v5442, 0.0
    %v5623 = vmax.f32 %v5443, 0.0
    %v5624 = vadd.f32 %v5444, %v5450
    %v5625 = vadd.f32 %v5624, %v5456
    %v5626 = vadd.f32 %v5625, %v5462
    %v5627 = vadd.f32 %v5626, %v5468
    %v5628 = vadd.f32 %v5627, %v5474
    %v5629 = vadd.f32 %v5628, %v5480
    %v5630 = vadd.f32 %v5629, %v5486
    %v5631 = vadd.f32 %v5630, %v5492
    %v5632 = vadd.f32 %v5631, %v5498
    %v5633 = vadd.f32 %v5632, %v5504
    %v5634 = vadd.f32 %v5633, %v5510
    %v5635 = vadd.f32 %v5634, %v5516
    %v5636 = vadd.f32 %v5635, %v5522
    %v5637 = vadd.f32 %v5636, %v5528
    %v5638 = vadd.f32 %v5637, %v5534
    %v5639 = vadd.f32 %v5638, %v5540
    %v5640 = vadd.f32 %v5639, %v5546
    %v5641 = vadd.f32 %v5640, %v5552
    %v5642 = vadd.f32 %v5641, %v5558
    %v5643 = vadd.f32 %v5642, %v5564
    %v5644 = vadd.f32 %v5643, %v5570
    %v5645 = vadd.f32 %v5644, %v5576
    %v5646 = vadd.f32 %v5645, %v5582
    %v5647 = vadd.f32 %v5646, %v5588
    %v5648 = vadd.f32 %v5647, %v5594
    %v5649 = vadd.f32 %v5648, %v5600
    %v5650 = vadd.f32 %v5649, %v5606
    %v5651 = vadd.f32 %v5650, %v5612
    %v5652 = vadd.f32 %v5651, %v5618
    %v5653 = vrot.slane %v5652, 4
    %v5654 = vadd.f32 %v5652, %v5653
    %v5655 = vrot.slane %v5654, 2
    %v5656 = vadd.f32 %v5654, %v5655
    %v5657 = vrot.slane %v5656, 1
    %v5658 = vadd.f32 %v5656, %v5657
    %v5659 = vadd.f32 %v5445, %v5451
    %v5660 = vadd.f32 %v5659, %v5457
    %v5661 = vadd.f32 %v5660, %v5463
    %v5662 = vadd.f32 %v5661, %v5469
    %v5663 = vadd.f32 %v5662, %v5475
    %v5664 = vadd.f32 %v5663, %v5481
    %v5665 = vadd.f32 %v5664, %v5487
    %v5666 = vadd.f32 %v5665, %v5493
    %v5667 = vadd.f32 %v5666, %v5499
    %v5668 = vadd.f32 %v5667, %v5505
    %v5669 = vadd.f32 %v5668, %v5511
    %v5670 = vadd.f32 %v5669, %v5517
    %v5671 = vadd.f32 %v5670, %v5523
    %v5672 = vadd.f32 %v5671, %v5529
    %v5673 = vadd.f32 %v5672, %v5535
    %v5674 = vadd.f32 %v5673, %v5541
    %v5675 = vadd.f32 %v5674, %v5547
    %v5676 = vadd.f32 %v5675, %v5553
    %v5677 = vadd.f32 %v5676, %v5559
    %v5678 = vadd.f32 %v5677, %v5565
    %v5679 = vadd.f32 %v5678, %v5571
    %v5680 = vadd.f32 %v5679, %v5577
    %v5681 = vadd.f32 %v5680, %v5583
    %v5682 = vadd.f32 %v5681, %v5589
    %v5683 = vadd.f32 %v5682, %v5595
    %v5684 = vadd.f32 %v5683, %v5601
    %v5685 = vadd.f32 %v5684, %v5607
    %v5686 = vadd.f32 %v5685, %v5613
    %v5687 = vadd.f32 %v5686, %v5619
    %v5688 = vrot.slane %v5687, 4
    %v5689 = vadd.f32 %v5687, %v5688
    %v5690 = vrot.slane %v5689, 2
    %v5691 = vadd.f32 %v5689, %v5690
    %v5692 = vrot.slane %v5691, 1
    %v5693 = vadd.f32 %v5691, %v5692
    %v5694 = vadd.f32 %v5446, %v5452
    %v5695 = vadd.f32 %v5694, %v5458
    %v5696 = vadd.f32 %v5695, %v5464
    %v5697 = vadd.f32 %v5696, %v5470
    %v5698 = vadd.f32 %v5697, %v5476
    %v5699 = vadd.f32 %v5698, %v5482
    %v5700 = vadd.f32 %v5699, %v5488
    %v5701 = vadd.f32 %v5700, %v5494
    %v5702 = vadd.f32 %v5701, %v5500
    %v5703 = vadd.f32 %v5702, %v5506
    %v5704 = vadd.f32 %v5703, %v5512
    %v5705 = vadd.f32 %v5704, %v5518
    %v5706 = vadd.f32 %v5705, %v5524
    %v5707 = vadd.f32 %v5706, %v5530
    %v5708 = vadd.f32 %v5707, %v5536
    %v5709 = vadd.f32 %v5708, %v5542
    %v5710 = vadd.f32 %v5709, %v5548
    %v5711 = vadd.f32 %v5710, %v5554
    %v5712 = vadd.f32 %v5711, %v5560
    %v5713 = vadd.f32 %v5712, %v5566
    %v5714 = vadd.f32 %v5713, %v5572
    %v5715 = vadd.f32 %v5714, %v5578
    %v5716 = vadd.f32 %v5715, %v5584
    %v5717 = vadd.f32 %v5716, %v5590
    %v5718 = vadd.f32 %v5717, %v5596
    %v5719 = vadd.f32 %v5718, %v5602
    %v5720 = vadd.f32 %v5719, %v5608
    %v5721 = vadd.f32 %v5720, %v5614
    %v5722 = vadd.f32 %v5721, %v5620
    %v5723 = vrot.slane %v5722, 4
    %v5724 = vadd.f32 %v5722, %v5723
    %v5725 = vrot.slane %v5724, 2
    %v5726 = vadd.f32 %v5724, %v5725
    %v5727 = vrot.slane %v5726, 1
    %v5728 = vadd.f32 %v5726, %v5727
    %v5729 = vadd.f32 %v5447, %v5453
    %v5730 = vadd.f32 %v5729, %v5459
    %v5731 = vadd.f32 %v5730, %v5465
    %v5732 = vadd.f32 %v5731, %v5471
    %v5733 = vadd.f32 %v5732, %v5477
    %v5734 = vadd.f32 %v5733, %v5483
    %v5735 = vadd.f32 %v5734, %v5489
    %v5736 = vadd.f32 %v5735, %v5495
    %v5737 = vadd.f32 %v5736, %v5501
    %v5738 = vadd.f32 %v5737, %v5507
    %v5739 = vadd.f32 %v5738, %v5513
    %v5740 = vadd.f32 %v5739, %v5519
    %v5741 = vadd.f32 %v5740, %v5525
    %v5742 = vadd.f32 %v5741, %v5531
    %v5743 = vadd.f32 %v5742, %v5537
    %v5744 = vadd.f32 %v5743, %v5543
    %v5745 = vadd.f32 %v5744, %v5549
    %v5746 = vadd.f32 %v5745, %v5555
    %v5747 = vadd.f32 %v5746, %v5561
    %v5748 = vadd.f32 %v5747, %v5567
    %v5749 = vadd.f32 %v5748, %v5573
    %v5750 = vadd.f32 %v5749, %v5579
    %v5751 = vadd.f32 %v5750, %v5585
    %v5752 = vadd.f32 %v5751, %v5591
    %v5753 = vadd.f32 %v5752, %v5597
    %v5754 = vadd.f32 %v5753, %v5603
    %v5755 = vadd.f32 %v5754, %v5609
    %v5756 = vadd.f32 %v5755, %v5615
    %v5757 = vadd.f32 %v5756, %v5621
    %v5758 = vrot.slane %v5757, 4
    %v5759 = vadd.f32 %v5757, %v5758
    %v5760 = vrot.slane %v5759, 2
    %v5761 = vadd.f32 %v5759, %v5760
    %v5762 = vrot.slane %v5761, 1
    %v5763 = vadd.f32 %v5761, %v5762
    %v5764 = vadd.f32 %v5448, %v5454
    %v5765 = vadd.f32 %v5764, %v5460
    %v5766 = vadd.f32 %v5765, %v5466
    %v5767 = vadd.f32 %v5766, %v5472
    %v5768 = vadd.f32 %v5767, %v5478
    %v5769 = vadd.f32 %v5768, %v5484
    %v5770 = vadd.f32 %v5769, %v5490
    %v5771 = vadd.f32 %v5770, %v5496
    %v5772 = vadd.f32 %v5771, %v5502
    %v5773 = vadd.f32 %v5772, %v5508
    %v5774 = vadd.f32 %v5773, %v5514
    %v5775 = vadd.f32 %v5774, %v5520
    %v5776 = vadd.f32 %v5775, %v5526
    %v5777 = vadd.f32 %v5776, %v5532
    %v5778 = vadd.f32 %v5777, %v5538
    %v5779 = vadd.f32 %v5778, %v5544
    %v5780 = vadd.f32 %v5779, %v5550
    %v5781 = vadd.f32 %v5780, %v5556
    %v5782 = vadd.f32 %v5781, %v5562
    %v5783 = vadd.f32 %v5782, %v5568
    %v5784 = vadd.f32 %v5783, %v5574
    %v5785 = vadd.f32 %v5784, %v5580
    %v5786 = vadd.f32 %v5785, %v5586
    %v5787 = vadd.f32 %v5786, %v5592
    %v5788 = vadd.f32 %v5787, %v5598
    %v5789 = vadd.f32 %v5788, %v5604
    %v5790 = vadd.f32 %v5789, %v5610
    %v5791 = vadd.f32 %v5790, %v5616
    %v5792 = vadd.f32 %v5791, %v5622
    %v5793 = vrot.slane %v5792, 4
    %v5794 = vadd.f32 %v5792, %v5793
    %v5795 = vrot.slane %v5794, 2
    %v5796 = vadd.f32 %v5794, %v5795
    %v5797 = vrot.slane %v5796, 1
    %v5798 = vadd.f32 %v5796, %v5797
    %v5799 = vadd.f32 %v5449, %v5455
    %v5800 = vadd.f32 %v5799, %v5461
    %v5801 = vadd.f32 %v5800, %v5467
    %v5802 = vadd.f32 %v5801, %v5473
    %v5803 = vadd.f32 %v5802, %v5479
    %v5804 = vadd.f32 %v5803, %v5485
    %v5805 = vadd.f32 %v5804, %v5491
    %v5806 = vadd.f32 %v5805, %v5497
    %v5807 = vadd.f32 %v5806, %v5503
    %v5808 = vadd.f32 %v5807, %v5509
    %v5809 = vadd.f32 %v5808, %v5515
    %v5810 = vadd.f32 %v5809, %v5521
    %v5811 = vadd.f32 %v5810, %v5527
    %v5812 = vadd.f32 %v5811, %v5533
    %v5813 = vadd.f32 %v5812, %v5539
    %v5814 = vadd.f32 %v5813, %v5545
    %v5815 = vadd.f32 %v5814, %v5551
    %v5816 = vadd.f32 %v5815, %v5557
    %v5817 = vadd.f32 %v5816, %v5563
    %v5818 = vadd.f32 %v5817, %v5569
    %v5819 = vadd.f32 %v5818, %v5575
    %v5820 = vadd.f32 %v5819, %v5581
    %v5821 = vadd.f32 %v5820, %v5587
    %v5822 = vadd.f32 %v5821, %v5593
    %v5823 = vadd.f32 %v5822, %v5599
    %v5824 = vadd.f32 %v5823, %v5605
    %v5825 = vadd.f32 %v5824, %v5611
    %v5826 = vadd.f32 %v5825, %v5617
    %v5827 = vadd.f32 %v5826, %v5623
    %v5828 = vrot.slane %v5827, 4
    %v5829 = vadd.f32 %v5827, %v5828
    %v5830 = vrot.slane %v5829, 2
    %v5831 = vadd.f32 %v5829, %v5830
    %v5832 = vrot.slane %v5831, 1
    %v5833 = vadd.f32 %v5831, %v5832
    %v5834 = vadd.f32 %v3938, %v5658
    %v5835 = vadd.f32 %v3939, %v5693
    %v5836 = vadd.f32 %v3940, %v5728
    %v5837 = vadd.f32 %v3941, %v5763
    %v5838 = vadd.f32 %v3942, %v5798
    %v5839 = vadd.f32 %v3943, %v5833
    %v5840 = vld [vmem:[%s0 + $0x2d0] sm:$0xff]
    %v5841 = vld [vmem:[%s0 + $0x2d8] sm:$0xff]
    %v5842 = vld [vmem:[%s0 + $0x2e0] sm:$0xff]
    %v5843 = vld [vmem:[%s0 + $0x2e8] sm:$0xff]
    %v5844 = vld [vmem:[%s0 + $0x2f0] sm:$0xff]
    %v5845 = vld [vmem:[%s0 + $0x2f8] sm:$0xff]
    %v5846 = vld [vmem:[%s0 + $0x300] sm:$0xff]
    %v5847 = vld [vmem:[%s0 + $0x308] sm:$0xff]
    %v5848 = vld [vmem:[%s0 + $0x310] sm:$0xff]
    %v5849 = vld [vmem:[%s0 + $0x318] sm:$0xff]
    %v5850 = vld [vmem:[%s0 + $0x320] sm:$0xff]
    %v5851 = vld [vmem:[%s0 + $0x328] sm:$0xff]
    %v5852 = vld [vmem:[%s0 + $0x330] sm:$0xff]
    %v5853 = vld [vmem:[%s0 + $0x338] sm:$0xff]
    %v5854 = vld [vmem:[%s0 + $0x340] sm:$0xff]
    %v5855 = vld [vmem:[%s0 + $0x348] sm:$0xff]
    %v5856 = vld [vmem:[%s0 + $0x350] sm:$0xff]
    %v5857 = vld [vmem:[%s0 + $0x358] sm:$0xff]
    %v5858 = vld [vmem:[%s0 + $0x360] sm:$0xff]
    %v5859 = vld [vmem:[%s0 + $0x368] sm:$0xff]
    %v5860 = vld [vmem:[%s0 + $0x370] sm:$0xff]
    %v5861 = vld [vmem:[%s0 + $0x378] sm:$0xff]
    %v5862 = vld [vmem:[%s0 + $0x380] sm:$0xff]
    %v5863 = vld [vmem:[%s0 + $0x388] sm:$0xff]
    %v5864 = vld [vmem:[%s0 + $0x390] sm:$0xff]
    %v5865 = vld [vmem:[%s0 + $0x398] sm:$0xff]
    %v5866 = vld [vmem:[%s0 + $0x3a0] sm:$0xff]
    %v5867 = vld [vmem:[%s0 + $0x3a8] sm:$0xff]
    %v5868 = vld [vmem:[%s0 + $0x3b0] sm:$0xff]
    %v5869 = vld [vmem:[%s0 + $0x3b8] sm:$0xff]
    %5871 = vset.pattern.permute.xlu0 0
    %5872 = vperm.xlu0 %5871, %v5840
    %v5873 = vpop.permute.xlu0 %5872
    %5876 = vset.pattern.permute.xlu0 0
    %5877 = vperm.xlu0 %5876, %v5841
    %v5878 = vpop.permute.xlu0 %5877
    %5881 = vset.pattern.permute.xlu0 0
    %5882 = vperm.xlu0 %5881, %v5842
    %v5883 = vpop.permute.xlu0 %5882
    %5886 = vset.pattern.permute.xlu0 0
    %5887 = vperm.xlu0 %5886, %v5843
    %v5888 = vpop.permute.xlu0 %5887
    %5891 = vset.pattern.permute.xlu0 0
    %5892 = vperm.xlu0 %5891, %v5844
    %v5893 = vpop.permute.xlu0 %5892
    %5896 = vset.pattern.permute.xlu0 0
    %5897 = vperm.xlu0 %5896, %v5845
    %v5898 = vpop.permute.xlu0 %5897
    %5901 = vset.pattern.permute.xlu0 0
    %5902 = vperm.xlu0 %5901, %v5846
    %v5903 = vpop.permute.xlu0 %5902
    %5906 = vset.pattern.permute.xlu0 0
    %5907 = vperm.xlu0 %5906, %v5847
    %v5908 = vpop.permute.xlu0 %5907
    %5911 = vset.pattern.permute.xlu0 0
    %5912 = vperm.xlu0 %5911, %v5848
    %v5913 = vpop.permute.xlu0 %5912
    %5916 = vset.pattern.permute.xlu0 0
    %5917 = vperm.xlu0 %5916, %v5849
    %v5918 = vpop.permute.xlu0 %5917
    %5921 = vset.pattern.permute.xlu0 0
    %5922 = vperm.xlu0 %5921, %v5850
    %v5923 = vpop.permute.xlu0 %5922
    %5926 = vset.pattern.permute.xlu0 0
    %5927 = vperm.xlu0 %5926, %v5851
    %v5928 = vpop.permute.xlu0 %5927
    %5931 = vset.pattern.permute.xlu0 0
    %5932 = vperm.xlu0 %5931, %v5852
    %v5933 = vpop.permute.xlu0 %5932
    %5936 = vset.pattern.permute.xlu0 0
    %5937 = vperm.xlu0 %5936, %v5853
    %v5938 = vpop.permute.xlu0 %5937
    %5941 = vset.pattern.permute.xlu0 0
    %5942 = vperm.xlu0 %5941, %v5854
    %v5943 = vpop.permute.xlu0 %5942
    %5946 = vset.pattern.permute.xlu0 0
    %5947 = vperm.xlu0 %5946, %v5855
    %v5948 = vpop.permute.xlu0 %5947
    %5951 = vset.pattern.permute.xlu0 0
    %5952 = vperm.xlu0 %5951, %v5856
    %v5953 = vpop.permute.xlu0 %5952
    %5956 = vset.pattern.permute.xlu0 0
    %5957 = vperm.xlu0 %5956, %v5857
    %v5958 = vpop.permute.xlu0 %5957
    %5961 = vset.pattern.permute.xlu0 0
    %5962 = vperm.xlu0 %5961, %v5858
    %v5963 = vpop.permute.xlu0 %5962
    %5966 = vset.pattern.permute.xlu0 0
    %5967 = vperm.xlu0 %5966, %v5859
    %v5968 = vpop.permute.xlu0 %5967
    %5971 = vset.pattern.permute.xlu0 0
    %5972 = vperm.xlu0 %5971, %v5860
    %v5973 = vpop.permute.xlu0 %5972
    %5976 = vset.pattern.permute.xlu0 0
    %5977 = vperm.xlu0 %5976, %v5861
    %v5978 = vpop.permute.xlu0 %5977
    %5981 = vset.pattern.permute.xlu0 0
    %5982 = vperm.xlu0 %5981, %v5862
    %v5983 = vpop.permute.xlu0 %5982
    %5986 = vset.pattern.permute.xlu0 0
    %5987 = vperm.xlu0 %5986, %v5863
    %v5988 = vpop.permute.xlu0 %5987
    %5991 = vset.pattern.permute.xlu0 0
    %5992 = vperm.xlu0 %5991, %v5864
    %v5993 = vpop.permute.xlu0 %5992
    %5996 = vset.pattern.permute.xlu0 0
    %5997 = vperm.xlu0 %5996, %v5865
    %v5998 = vpop.permute.xlu0 %5997
    %6001 = vset.pattern.permute.xlu0 0
    %6002 = vperm.xlu0 %6001, %v5866
    %v6003 = vpop.permute.xlu0 %6002
    %6006 = vset.pattern.permute.xlu0 0
    %6007 = vperm.xlu0 %6006, %v5867
    %v6008 = vpop.permute.xlu0 %6007
    %6011 = vset.pattern.permute.xlu0 0
    %6012 = vperm.xlu0 %6011, %v5868
    %v6013 = vpop.permute.xlu0 %6012
    %6016 = vset.pattern.permute.xlu0 0
    %6017 = vperm.xlu0 %6016, %v5869
    %v6018 = vpop.permute.xlu0 %6017
    %v6020 = vmul.f32 %v5873, %v212
    %v6021 = vmul.f32 %v5873, %v216
    %v6022 = vmul.f32 %v5873, %v220
    %v6023 = vmul.f32 %v5873, %v224
    %v6024 = vmul.f32 %v5873, %v228
    %v6025 = vmul.f32 %v5873, %v232
    %v6026 = vmul.f32 %v5878, %v212
    %v6027 = vmul.f32 %v5878, %v216
    %v6028 = vmul.f32 %v5878, %v220
    %v6029 = vmul.f32 %v5878, %v224
    %v6030 = vmul.f32 %v5878, %v228
    %v6031 = vmul.f32 %v5878, %v232
    %v6032 = vmul.f32 %v5883, %v212
    %v6033 = vmul.f32 %v5883, %v216
    %v6034 = vmul.f32 %v5883, %v220
    %v6035 = vmul.f32 %v5883, %v224
    %v6036 = vmul.f32 %v5883, %v228
    %v6037 = vmul.f32 %v5883, %v232
    %v6038 = vmul.f32 %v5888, %v212
    %v6039 = vmul.f32 %v5888, %v216
    %v6040 = vmul.f32 %v5888, %v220
    %v6041 = vmul.f32 %v5888, %v224
    %v6042 = vmul.f32 %v5888, %v228
    %v6043 = vmul.f32 %v5888, %v232
    %v6044 = vmul.f32 %v5893, %v212
    %v6045 = vmul.f32 %v5893, %v216
    %v6046 = vmul.f32 %v5893, %v220
    %v6047 = vmul.f32 %v5893, %v224
    %v6048 = vmul.f32 %v5893, %v228
    %v6049 = vmul.f32 %v5893, %v232
    %v6050 = vmul.f32 %v5898, %v212
    %v6051 = vmul.f32 %v5898, %v216
    %v6052 = vmul.f32 %v5898, %v220
    %v6053 = vmul.f32 %v5898, %v224
    %v6054 = vmul.f32 %v5898, %v228
    %v6055 = vmul.f32 %v5898, %v232
    %v6056 = vmul.f32 %v5903, %v212
    %v6057 = vmul.f32 %v5903, %v216
    %v6058 = vmul.f32 %v5903, %v220
    %v6059 = vmul.f32 %v5903, %v224
    %v6060 = vmul.f32 %v5903, %v228
    %v6061 = vmul.f32 %v5903, %v232
    %v6062 = vmul.f32 %v5908, %v212
    %v6063 = vmul.f32 %v5908, %v216
    %v6064 = vmul.f32 %v5908, %v220
    %v6065 = vmul.f32 %v5908, %v224
    %v6066 = vmul.f32 %v5908, %v228
    %v6067 = vmul.f32 %v5908, %v232
    %v6068 = vmul.f32 %v5913, %v212
    %v6069 = vmul.f32 %v5913, %v216
    %v6070 = vmul.f32 %v5913, %v220
    %v6071 = vmul.f32 %v5913, %v224
    %v6072 = vmul.f32 %v5913, %v228
    %v6073 = vmul.f32 %v5913, %v232
    %v6074 = vmul.f32 %v5918, %v212
    %v6075 = vmul.f32 %v5918, %v216
    %v6076 = vmul.f32 %v5918, %v220
    %v6077 = vmul.f32 %v5918, %v224
    %v6078 = vmul.f32 %v5918, %v228
    %v6079 = vmul.f32 %v5918, %v232
    %v6080 = vmul.f32 %v5923, %v212
    %v6081 = vmul.f32 %v5923, %v216
    %v6082 = vmul.f32 %v5923, %v220
    %v6083 = vmul.f32 %v5923, %v224
    %v6084 = vmul.f32 %v5923, %v228
    %v6085 = vmul.f32 %v5923, %v232
    %v6086 = vmul.f32 %v5928, %v212
    %v6087 = vmul.f32 %v5928, %v216
    %v6088 = vmul.f32 %v5928, %v220
    %v6089 = vmul.f32 %v5928, %v224
    %v6090 = vmul.f32 %v5928, %v228
    %v6091 = vmul.f32 %v5928, %v232
    %v6092 = vmul.f32 %v5933, %v212
    %v6093 = vmul.f32 %v5933, %v216
    %v6094 = vmul.f32 %v5933, %v220
    %v6095 = vmul.f32 %v5933, %v224
    %v6096 = vmul.f32 %v5933, %v228
    %v6097 = vmul.f32 %v5933, %v232
    %v6098 = vmul.f32 %v5938, %v212
    %v6099 = vmul.f32 %v5938, %v216
    %v6100 = vmul.f32 %v5938, %v220
    %v6101 = vmul.f32 %v5938, %v224
    %v6102 = vmul.f32 %v5938, %v228
    %v6103 = vmul.f32 %v5938, %v232
    %v6104 = vmul.f32 %v5943, %v212
    %v6105 = vmul.f32 %v5943, %v216
    %v6106 = vmul.f32 %v5943, %v220
    %v6107 = vmul.f32 %v5943, %v224
    %v6108 = vmul.f32 %v5943, %v228
    %v6109 = vmul.f32 %v5943, %v232
    %v6110 = vmul.f32 %v5948, %v212
    %v6111 = vmul.f32 %v5948, %v216
    %v6112 = vmul.f32 %v5948, %v220
    %v6113 = vmul.f32 %v5948, %v224
    %v6114 = vmul.f32 %v5948, %v228
    %v6115 = vmul.f32 %v5948, %v232
    %v6116 = vmul.f32 %v5953, %v212
    %v6117 = vmul.f32 %v5953, %v216
    %v6118 = vmul.f32 %v5953, %v220
    %v6119 = vmul.f32 %v5953, %v224
    %v6120 = vmul.f32 %v5953, %v228
    %v6121 = vmul.f32 %v5953, %v232
    %v6122 = vmul.f32 %v5958, %v212
    %v6123 = vmul.f32 %v5958, %v216
    %v6124 = vmul.f32 %v5958, %v220
    %v6125 = vmul.f32 %v5958, %v224
    %v6126 = vmul.f32 %v5958, %v228
    %v6127 = vmul.f32 %v5958, %v232
    %v6128 = vmul.f32 %v5963, %v212
    %v6129 = vmul.f32 %v5963, %v216
    %v6130 = vmul.f32 %v5963, %v220
    %v6131 = vmul.f32 %v5963, %v224
    %v6132 = vmul.f32 %v5963, %v228
    %v6133 = vmul.f32 %v5963, %v232
    %v6134 = vmul.f32 %v5968, %v212
    %v6135 = vmul.f32 %v5968, %v216
    %v6136 = vmul.f32 %v5968, %v220
    %v6137 = vmul.f32 %v5968, %v224
    %v6138 = vmul.f32 %v5968, %v228
    %v6139 = vmul.f32 %v5968, %v232
    %v6140 = vmul.f32 %v5973, %v212
    %v6141 = vmul.f32 %v5973, %v216
    %v6142 = vmul.f32 %v5973, %v220
    %v6143 = vmul.f32 %v5973, %v224
    %v6144 = vmul.f32 %v5973, %v228
    %v6145 = vmul.f32 %v5973, %v232
    %v6146 = vmul.f32 %v5978, %v212
    %v6147 = vmul.f32 %v5978, %v216
    %v6148 = vmul.f32 %v5978, %v220
    %v6149 = vmul.f32 %v5978, %v224
    %v6150 = vmul.f32 %v5978, %v228
    %v6151 = vmul.f32 %v5978, %v232
    %v6152 = vmul.f32 %v5983, %v212
    %v6153 = vmul.f32 %v5983, %v216
    %v6154 = vmul.f32 %v5983, %v220
    %v6155 = vmul.f32 %v5983, %v224
    %v6156 = vmul.f32 %v5983, %v228
    %v6157 = vmul.f32 %v5983, %v232
    %v6158 = vmul.f32 %v5988, %v212
    %v6159 = vmul.f32 %v5988, %v216
    %v6160 = vmul.f32 %v5988, %v220
    %v6161 = vmul.f32 %v5988, %v224
    %v6162 = vmul.f32 %v5988, %v228
    %v6163 = vmul.f32 %v5988, %v232
    %v6164 = vmul.f32 %v5993, %v212
    %v6165 = vmul.f32 %v5993, %v216
    %v6166 = vmul.f32 %v5993, %v220
    %v6167 = vmul.f32 %v5993, %v224
    %v6168 = vmul.f32 %v5993, %v228
    %v6169 = vmul.f32 %v5993, %v232
    %v6170 = vmul.f32 %v5998, %v212
    %v6171 = vmul.f32 %v5998, %v216
    %v6172 = vmul.f32 %v5998, %v220
    %v6173 = vmul.f32 %v5998, %v224
    %v6174 = vmul.f32 %v5998, %v228
    %v6175 = vmul.f32 %v5998, %v232
    %v6176 = vmul.f32 %v6003, %v212
    %v6177 = vmul.f32 %v6003, %v216
    %v6178 = vmul.f32 %v6003, %v220
    %v6179 = vmul.f32 %v6003, %v224
    %v6180 = vmul.f32 %v6003, %v228
    %v6181 = vmul.f32 %v6003, %v232
    %v6182 = vmul.f32 %v6008, %v212
    %v6183 = vmul.f32 %v6008, %v216
    %v6184 = vmul.f32 %v6008, %v220
    %v6185 = vmul.f32 %v6008, %v224
    %v6186 = vmul.f32 %v6008, %v228
    %v6187 = vmul.f32 %v6008, %v232
    %v6188 = vmul.f32 %v6013, %v212
    %v6189 = vmul.f32 %v6013, %v216
    %v6190 = vmul.f32 %v6013, %v220
    %v6191 = vmul.f32 %v6013, %v224
    %v6192 = vmul.f32 %v6013, %v228
    %v6193 = vmul.f32 %v6013, %v232
    %v6194 = vmul.f32 %v6018, %v212
    %v6195 = vmul.f32 %v6018, %v216
    %v6196 = vmul.f32 %v6018, %v220
    %v6197 = vmul.f32 %v6018, %v224
    %v6198 = vmul.f32 %v6018, %v228
    %v6199 = vmul.f32 %v6018, %v232
    %6200 = vset.pattern.permute.xlu0 1
    %6201 = vperm.xlu0 %6200, %v5840
    %v6202 = vpop.permute.xlu0 %6201
    %6204 = vset.pattern.permute.xlu0 1
    %6205 = vperm.xlu0 %6204, %v5841
    %v6206 = vpop.permute.xlu0 %6205
    %6208 = vset.pattern.permute.xlu0 1
    %6209 = vperm.xlu0 %6208, %v5842
    %v6210 = vpop.permute.xlu0 %6209
    %6212 = vset.pattern.permute.xlu0 1
    %6213 = vperm.xlu0 %6212, %v5843
    %v6214 = vpop.permute.xlu0 %6213
    %6216 = vset.pattern.permute.xlu0 1
    %6217 = vperm.xlu0 %6216, %v5844
    %v6218 = vpop.permute.xlu0 %6217
    %6220 = vset.pattern.permute.xlu0 1
    %6221 = vperm.xlu0 %6220, %v5845
    %v6222 = vpop.permute.xlu0 %6221
    %6224 = vset.pattern.permute.xlu0 1
    %6225 = vperm.xlu0 %6224, %v5846
    %v6226 = vpop.permute.xlu0 %6225
    %6228 = vset.pattern.permute.xlu0 1
    %6229 = vperm.xlu0 %6228, %v5847
    %v6230 = vpop.permute.xlu0 %6229
    %6232 = vset.pattern.permute.xlu0 1
    %6233 = vperm.xlu0 %6232, %v5848
    %v6234 = vpop.permute.xlu0 %6233
    %6236 = vset.pattern.permute.xlu0 1
    %6237 = vperm.xlu0 %6236, %v5849
    %v6238 = vpop.permute.xlu0 %6237
    %6240 = vset.pattern.permute.xlu0 1
    %6241 = vperm.xlu0 %6240, %v5850
    %v6242 = vpop.permute.xlu0 %6241
    %6244 = vset.pattern.permute.xlu0 1
    %6245 = vperm.xlu0 %6244, %v5851
    %v6246 = vpop.permute.xlu0 %6245
    %6248 = vset.pattern.permute.xlu0 1
    %6249 = vperm.xlu0 %6248, %v5852
    %v6250 = vpop.permute.xlu0 %6249
    %6252 = vset.pattern.permute.xlu0 1
    %6253 = vperm.xlu0 %6252, %v5853
    %v6254 = vpop.permute.xlu0 %6253
    %6256 = vset.pattern.permute.xlu0 1
    %6257 = vperm.xlu0 %6256, %v5854
    %v6258 = vpop.permute.xlu0 %6257
    %6260 = vset.pattern.permute.xlu0 1
    %6261 = vperm.xlu0 %6260, %v5855
    %v6262 = vpop.permute.xlu0 %6261
    %6264 = vset.pattern.permute.xlu0 1
    %6265 = vperm.xlu0 %6264, %v5856
    %v6266 = vpop.permute.xlu0 %6265
    %6268 = vset.pattern.permute.xlu0 1
    %6269 = vperm.xlu0 %6268, %v5857
    %v6270 = vpop.permute.xlu0 %6269
    %6272 = vset.pattern.permute.xlu0 1
    %6273 = vperm.xlu0 %6272, %v5858
    %v6274 = vpop.permute.xlu0 %6273
    %6276 = vset.pattern.permute.xlu0 1
    %6277 = vperm.xlu0 %6276, %v5859
    %v6278 = vpop.permute.xlu0 %6277
    %6280 = vset.pattern.permute.xlu0 1
    %6281 = vperm.xlu0 %6280, %v5860
    %v6282 = vpop.permute.xlu0 %6281
    %6284 = vset.pattern.permute.xlu0 1
    %6285 = vperm.xlu0 %6284, %v5861
    %v6286 = vpop.permute.xlu0 %6285
    %6288 = vset.pattern.permute.xlu0 1
    %6289 = vperm.xlu0 %6288, %v5862
    %v6290 = vpop.permute.xlu0 %6289
    %6292 = vset.pattern.permute.xlu0 1
    %6293 = vperm.xlu0 %6292, %v5863
    %v6294 = vpop.permute.xlu0 %6293
    %6296 = vset.pattern.permute.xlu0 1
    %6297 = vperm.xlu0 %6296, %v5864
    %v6298 = vpop.permute.xlu0 %6297
    %6300 = vset.pattern.permute.xlu0 1
    %6301 = vperm.xlu0 %6300, %v5865
    %v6302 = vpop.permute.xlu0 %6301
    %6304 = vset.pattern.permute.xlu0 1
    %6305 = vperm.xlu0 %6304, %v5866
    %v6306 = vpop.permute.xlu0 %6305
    %6308 = vset.pattern.permute.xlu0 1
    %6309 = vperm.xlu0 %6308, %v5867
    %v6310 = vpop.permute.xlu0 %6309
    %6312 = vset.pattern.permute.xlu0 1
    %6313 = vperm.xlu0 %6312, %v5868
    %v6314 = vpop.permute.xlu0 %6313
    %6316 = vset.pattern.permute.xlu0 1
    %6317 = vperm.xlu0 %6316, %v5869
    %v6318 = vpop.permute.xlu0 %6317
    %v6320 = vmul.f32 %v6202, %v543
    %v6321 = vmul.f32 %v6202, %v547
    %v6322 = vmul.f32 %v6202, %v551
    %v6323 = vmul.f32 %v6202, %v555
    %v6324 = vmul.f32 %v6202, %v559
    %v6325 = vmul.f32 %v6202, %v563
    %v6326 = vmul.f32 %v6206, %v543
    %v6327 = vmul.f32 %v6206, %v547
    %v6328 = vmul.f32 %v6206, %v551
    %v6329 = vmul.f32 %v6206, %v555
    %v6330 = vmul.f32 %v6206, %v559
    %v6331 = vmul.f32 %v6206, %v563
    %v6332 = vmul.f32 %v6210, %v543
    %v6333 = vmul.f32 %v6210, %v547
    %v6334 = vmul.f32 %v6210, %v551
    %v6335 = vmul.f32 %v6210, %v555
    %v6336 = vmul.f32 %v6210, %v559
    %v6337 = vmul.f32 %v6210, %v563
    %v6338 = vmul.f32 %v6214, %v543
    %v6339 = vmul.f32 %v6214, %v547
    %v6340 = vmul.f32 %v6214, %v551
    %v6341 = vmul.f32 %v6214, %v555
    %v6342 = vmul.f32 %v6214, %v559
    %v6343 = vmul.f32 %v6214, %v563
    %v6344 = vmul.f32 %v6218, %v543
    %v6345 = vmul.f32 %v6218, %v547
    %v6346 = vmul.f32 %v6218, %v551
    %v6347 = vmul.f32 %v6218, %v555
    %v6348 = vmul.f32 %v6218, %v559
    %v6349 = vmul.f32 %v6218, %v563
    %v6350 = vmul.f32 %v6222, %v543
    %v6351 = vmul.f32 %v6222, %v547
    %v6352 = vmul.f32 %v6222, %v551
    %v6353 = vmul.f32 %v6222, %v555
    %v6354 = vmul.f32 %v6222, %v559
    %v6355 = vmul.f32 %v6222, %v563
    %v6356 = vmul.f32 %v6226, %v543
    %v6357 = vmul.f32 %v6226, %v547
    %v6358 = vmul.f32 %v6226, %v551
    %v6359 = vmul.f32 %v6226, %v555
    %v6360 = vmul.f32 %v6226, %v559
    %v6361 = vmul.f32 %v6226, %v563
    %v6362 = vmul.f32 %v6230, %v543
    %v6363 = vmul.f32 %v6230, %v547
    %v6364 = vmul.f32 %v6230, %v551
    %v6365 = vmul.f32 %v6230, %v555
    %v6366 = vmul.f32 %v6230, %v559
    %v6367 = vmul.f32 %v6230, %v563
    %v6368 = vmul.f32 %v6234, %v543
    %v6369 = vmul.f32 %v6234, %v547
    %v6370 = vmul.f32 %v6234, %v551
    %v6371 = vmul.f32 %v6234, %v555
    %v6372 = vmul.f32 %v6234, %v559
    %v6373 = vmul.f32 %v6234, %v563
    %v6374 = vmul.f32 %v6238, %v543
    %v6375 = vmul.f32 %v6238, %v547
    %v6376 = vmul.f32 %v6238, %v551
    %v6377 = vmul.f32 %v6238, %v555
    %v6378 = vmul.f32 %v6238, %v559
    %v6379 = vmul.f32 %v6238, %v563
    %v6380 = vmul.f32 %v6242, %v543
    %v6381 = vmul.f32 %v6242, %v547
    %v6382 = vmul.f32 %v6242, %v551
    %v6383 = vmul.f32 %v6242, %v555
    %v6384 = vmul.f32 %v6242, %v559
    %v6385 = vmul.f32 %v6242, %v563
    %v6386 = vmul.f32 %v6246, %v543
    %v6387 = vmul.f32 %v6246, %v547
    %v6388 = vmul.f32 %v6246, %v551
    %v6389 = vmul.f32 %v6246, %v555
    %v6390 = vmul.f32 %v6246, %v559
    %v6391 = vmul.f32 %v6246, %v563
    %v6392 = vmul.f32 %v6250, %v543
    %v6393 = vmul.f32 %v6250, %v547
    %v6394 = vmul.f32 %v6250, %v551
    %v6395 = vmul.f32 %v6250, %v555
    %v6396 = vmul.f32 %v6250, %v559
    %v6397 = vmul.f32 %v6250, %v563
    %v6398 = vmul.f32 %v6254, %v543
    %v6399 = vmul.f32 %v6254, %v547
    %v6400 = vmul.f32 %v6254, %v551
    %v6401 = vmul.f32 %v6254, %v555
    %v6402 = vmul.f32 %v6254, %v559
    %v6403 = vmul.f32 %v6254, %v563
    %v6404 = vmul.f32 %v6258, %v543
    %v6405 = vmul.f32 %v6258, %v547
    %v6406 = vmul.f32 %v6258, %v551
    %v6407 = vmul.f32 %v6258, %v555
    %v6408 = vmul.f32 %v6258, %v559
    %v6409 = vmul.f32 %v6258, %v563
    %v6410 = vmul.f32 %v6262, %v543
    %v6411 = vmul.f32 %v6262, %v547
    %v6412 = vmul.f32 %v6262, %v551
    %v6413 = vmul.f32 %v6262, %v555
    %v6414 = vmul.f32 %v6262, %v559
    %v6415 = vmul.f32 %v6262, %v563
    %v6416 = vmul.f32 %v6266, %v543
    %v6417 = vmul.f32 %v6266, %v547
    %v6418 = vmul.f32 %v6266, %v551
    %v6419 = vmul.f32 %v6266, %v555
    %v6420 = vmul.f32 %v6266, %v559
    %v6421 = vmul.f32 %v6266, %v563
    %v6422 = vmul.f32 %v6270, %v543
    %v6423 = vmul.f32 %v6270, %v547
    %v6424 = vmul.f32 %v6270, %v551
    %v6425 = vmul.f32 %v6270, %v555
    %v6426 = vmul.f32 %v6270, %v559
    %v6427 = vmul.f32 %v6270, %v563
    %v6428 = vmul.f32 %v6274, %v543
    %v6429 = vmul.f32 %v6274, %v547
    %v6430 = vmul.f32 %v6274, %v551
    %v6431 = vmul.f32 %v6274, %v555
    %v6432 = vmul.f32 %v6274, %v559
    %v6433 = vmul.f32 %v6274, %v563
    %v6434 = vmul.f32 %v6278, %v543
    %v6435 = vmul.f32 %v6278, %v547
    %v6436 = vmul.f32 %v6278, %v551
    %v6437 = vmul.f32 %v6278, %v555
    %v6438 = vmul.f32 %v6278, %v559
    %v6439 = vmul.f32 %v6278, %v563
    %v6440 = vmul.f32 %v6282, %v543
    %v6441 = vmul.f32 %v6282, %v547
    %v6442 = vmul.f32 %v6282, %v551
    %v6443 = vmul.f32 %v6282, %v555
    %v6444 = vmul.f32 %v6282, %v559
    %v6445 = vmul.f32 %v6282, %v563
    %v6446 = vmul.f32 %v6286, %v543
    %v6447 = vmul.f32 %v6286, %v547
    %v6448 = vmul.f32 %v6286, %v551
    %v6449 = vmul.f32 %v6286, %v555
    %v6450 = vmul.f32 %v6286, %v559
    %v6451 = vmul.f32 %v6286, %v563
    %v6452 = vmul.f32 %v6290, %v543
    %v6453 = vmul.f32 %v6290, %v547
    %v6454 = vmul.f32 %v6290, %v551
    %v6455 = vmul.f32 %v6290, %v555
    %v6456 = vmul.f32 %v6290, %v559
    %v6457 = vmul.f32 %v6290, %v563
    %v6458 = vmul.f32 %v6294, %v543
    %v6459 = vmul.f32 %v6294, %v547
    %v6460 = vmul.f32 %v6294, %v551
    %v6461 = vmul.f32 %v6294, %v555
    %v6462 = vmul.f32 %v6294, %v559
    %v6463 = vmul.f32 %v6294, %v563
    %v6464 = vmul.f32 %v6298, %v543
    %v6465 = vmul.f32 %v6298, %v547
    %v6466 = vmul.f32 %v6298, %v551
    %v6467 = vmul.f32 %v6298, %v555
    %v6468 = vmul.f32 %v6298, %v559
    %v6469 = vmul.f32 %v6298, %v563
    %v6470 = vmul.f32 %v6302, %v543
    %v6471 = vmul.f32 %v6302, %v547
    %v6472 = vmul.f32 %v6302, %v551
    %v6473 = vmul.f32 %v6302, %v555
    %v6474 = vmul.f32 %v6302, %v559
    %v6475 = vmul.f32 %v6302, %v563
    %v6476 = vmul.f32 %v6306, %v543
    %v6477 = vmul.f32 %v6306, %v547
    %v6478 = vmul.f32 %v6306, %v551
    %v6479 = vmul.f32 %v6306, %v555
    %v6480 = vmul.f32 %v6306, %v559
    %v6481 = vmul.f32 %v6306, %v563
    %v6482 = vmul.f32 %v6310, %v543
    %v6483 = vmul.f32 %v6310, %v547
    %v6484 = vmul.f32 %v6310, %v551
    %v6485 = vmul.f32 %v6310, %v555
    %v6486 = vmul.f32 %v6310, %v559
    %v6487 = vmul.f32 %v6310, %v563
    %v6488 = vmul.f32 %v6314, %v543
    %v6489 = vmul.f32 %v6314, %v547
    %v6490 = vmul.f32 %v6314, %v551
    %v6491 = vmul.f32 %v6314, %v555
    %v6492 = vmul.f32 %v6314, %v559
    %v6493 = vmul.f32 %v6314, %v563
    %v6494 = vmul.f32 %v6318, %v543
    %v6495 = vmul.f32 %v6318, %v547
    %v6496 = vmul.f32 %v6318, %v551
    %v6497 = vmul.f32 %v6318, %v555
    %v6498 = vmul.f32 %v6318, %v559
    %v6499 = vmul.f32 %v6318, %v563
    %v6500 = vadd.f32 %v6020, %v6320
    %v6501 = vadd.f32 %v6021, %v6321
    %v6502 = vadd.f32 %v6022, %v6322
    %v6503 = vadd.f32 %v6023, %v6323
    %v6504 = vadd.f32 %v6024, %v6324
    %v6505 = vadd.f32 %v6025, %v6325
    %v6506 = vadd.f32 %v6026, %v6326
    %v6507 = vadd.f32 %v6027, %v6327
    %v6508 = vadd.f32 %v6028, %v6328
    %v6509 = vadd.f32 %v6029, %v6329
    %v6510 = vadd.f32 %v6030, %v6330
    %v6511 = vadd.f32 %v6031, %v6331
    %v6512 = vadd.f32 %v6032, %v6332
    %v6513 = vadd.f32 %v6033, %v6333
    %v6514 = vadd.f32 %v6034, %v6334
    %v6515 = vadd.f32 %v6035, %v6335
    %v6516 = vadd.f32 %v6036, %v6336
    %v6517 = vadd.f32 %v6037, %v6337
    %v6518 = vadd.f32 %v6038, %v6338
    %v6519 = vadd.f32 %v6039, %v6339
    %v6520 = vadd.f32 %v6040, %v6340
    %v6521 = vadd.f32 %v6041, %v6341
    %v6522 = vadd.f32 %v6042, %v6342
    %v6523 = vadd.f32 %v6043, %v6343
    %v6524 = vadd.f32 %v6044, %v6344
    %v6525 = vadd.f32 %v6045, %v6345
    %v6526 = vadd.f32 %v6046, %v6346
    %v6527 = vadd.f32 %v6047, %v6347
    %v6528 = vadd.f32 %v6048, %v6348
    %v6529 = vadd.f32 %v6049, %v6349
    %v6530 = vadd.f32 %v6050, %v6350
    %v6531 = vadd.f32 %v6051, %v6351
    %v6532 = vadd.f32 %v6052, %v6352
    %v6533 = vadd.f32 %v6053, %v6353
    %v6534 = vadd.f32 %v6054, %v6354
    %v6535 = vadd.f32 %v6055, %v6355
    %v6536 = vadd.f32 %v6056, %v6356
    %v6537 = vadd.f32 %v6057, %v6357
    %v6538 = vadd.f32 %v6058, %v6358
    %v6539 = vadd.f32 %v6059, %v6359
    %v6540 = vadd.f32 %v6060, %v6360
    %v6541 = vadd.f32 %v6061, %v6361
    %v6542 = vadd.f32 %v6062, %v6362
    %v6543 = vadd.f32 %v6063, %v6363
    %v6544 = vadd.f32 %v6064, %v6364
    %v6545 = vadd.f32 %v6065, %v6365
    %v6546 = vadd.f32 %v6066, %v6366
    %v6547 = vadd.f32 %v6067, %v6367
    %v6548 = vadd.f32 %v6068, %v6368
    %v6549 = vadd.f32 %v6069, %v6369
    %v6550 = vadd.f32 %v6070, %v6370
    %v6551 = vadd.f32 %v6071, %v6371
    %v6552 = vadd.f32 %v6072, %v6372
    %v6553 = vadd.f32 %v6073, %v6373
    %v6554 = vadd.f32 %v6074, %v6374
    %v6555 = vadd.f32 %v6075, %v6375
    %v6556 = vadd.f32 %v6076, %v6376
    %v6557 = vadd.f32 %v6077, %v6377
    %v6558 = vadd.f32 %v6078, %v6378
    %v6559 = vadd.f32 %v6079, %v6379
    %v6560 = vadd.f32 %v6080, %v6380
    %v6561 = vadd.f32 %v6081, %v6381
    %v6562 = vadd.f32 %v6082, %v6382
    %v6563 = vadd.f32 %v6083, %v6383
    %v6564 = vadd.f32 %v6084, %v6384
    %v6565 = vadd.f32 %v6085, %v6385
    %v6566 = vadd.f32 %v6086, %v6386
    %v6567 = vadd.f32 %v6087, %v6387
    %v6568 = vadd.f32 %v6088, %v6388
    %v6569 = vadd.f32 %v6089, %v6389
    %v6570 = vadd.f32 %v6090, %v6390
    %v6571 = vadd.f32 %v6091, %v6391
    %v6572 = vadd.f32 %v6092, %v6392
    %v6573 = vadd.f32 %v6093, %v6393
    %v6574 = vadd.f32 %v6094, %v6394
    %v6575 = vadd.f32 %v6095, %v6395
    %v6576 = vadd.f32 %v6096, %v6396
    %v6577 = vadd.f32 %v6097, %v6397
    %v6578 = vadd.f32 %v6098, %v6398
    %v6579 = vadd.f32 %v6099, %v6399
    %v6580 = vadd.f32 %v6100, %v6400
    %v6581 = vadd.f32 %v6101, %v6401
    %v6582 = vadd.f32 %v6102, %v6402
    %v6583 = vadd.f32 %v6103, %v6403
    %v6584 = vadd.f32 %v6104, %v6404
    %v6585 = vadd.f32 %v6105, %v6405
    %v6586 = vadd.f32 %v6106, %v6406
    %v6587 = vadd.f32 %v6107, %v6407
    %v6588 = vadd.f32 %v6108, %v6408
    %v6589 = vadd.f32 %v6109, %v6409
    %v6590 = vadd.f32 %v6110, %v6410
    %v6591 = vadd.f32 %v6111, %v6411
    %v6592 = vadd.f32 %v6112, %v6412
    %v6593 = vadd.f32 %v6113, %v6413
    %v6594 = vadd.f32 %v6114, %v6414
    %v6595 = vadd.f32 %v6115, %v6415
    %v6596 = vadd.f32 %v6116, %v6416
    %v6597 = vadd.f32 %v6117, %v6417
    %v6598 = vadd.f32 %v6118, %v6418
    %v6599 = vadd.f32 %v6119, %v6419
    %v6600 = vadd.f32 %v6120, %v6420
    %v6601 = vadd.f32 %v6121, %v6421
    %v6602 = vadd.f32 %v6122, %v6422
    %v6603 = vadd.f32 %v6123, %v6423
    %v6604 = vadd.f32 %v6124, %v6424
    %v6605 = vadd.f32 %v6125, %v6425
    %v6606 = vadd.f32 %v6126, %v6426
    %v6607 = vadd.f32 %v6127, %v6427
    %v6608 = vadd.f32 %v6128, %v6428
    %v6609 = vadd.f32 %v6129, %v6429
    %v6610 = vadd.f32 %v6130, %v6430
    %v6611 = vadd.f32 %v6131, %v6431
    %v6612 = vadd.f32 %v6132, %v6432
    %v6613 = vadd.f32 %v6133, %v6433
    %v6614 = vadd.f32 %v6134, %v6434
    %v6615 = vadd.f32 %v6135, %v6435
    %v6616 = vadd.f32 %v6136, %v6436
    %v6617 = vadd.f32 %v6137, %v6437
    %v6618 = vadd.f32 %v6138, %v6438
    %v6619 = vadd.f32 %v6139, %v6439
    %v6620 = vadd.f32 %v6140, %v6440
    %v6621 = vadd.f32 %v6141, %v6441
    %v6622 = vadd.f32 %v6142, %v6442
    %v6623 = vadd.f32 %v6143, %v6443
    %v6624 = vadd.f32 %v6144, %v6444
    %v6625 = vadd.f32 %v6145, %v6445
    %v6626 = vadd.f32 %v6146, %v6446
    %v6627 = vadd.f32 %v6147, %v6447
    %v6628 = vadd.f32 %v6148, %v6448
    %v6629 = vadd.f32 %v6149, %v6449
    %v6630 = vadd.f32 %v6150, %v6450
    %v6631 = vadd.f32 %v6151, %v6451
    %v6632 = vadd.f32 %v6152, %v6452
    %v6633 = vadd.f32 %v6153, %v6453
    %v6634 = vadd.f32 %v6154, %v6454
    %v6635 = vadd.f32 %v6155, %v6455
    %v6636 = vadd.f32 %v6156, %v6456
    %v6637 = vadd.f32 %v6157, %v6457
    %v6638 = vadd.f32 %v6158, %v6458
    %v6639 = vadd.f32 %v6159, %v6459
    %v6640 = vadd.f32 %v6160, %v6460
    %v6641 = vadd.f32 %v6161, %v6461
    %v6642 = vadd.f32 %v6162, %v6462
    %v6643 = vadd.f32 %v6163, %v6463
    %v6644 = vadd.f32 %v6164, %v6464
    %v6645 = vadd.f32 %v6165, %v6465
    %v6646 = vadd.f32 %v6166, %v6466
    %v6647 = vadd.f32 %v6167, %v6467
    %v6648 = vadd.f32 %v6168, %v6468
    %v6649 = vadd.f32 %v6169, %v6469
    %v6650 = vadd.f32 %v6170, %v6470
    %v6651 = vadd.f32 %v6171, %v6471
    %v6652 = vadd.f32 %v6172, %v6472
    %v6653 = vadd.f32 %v6173, %v6473
    %v6654 = vadd.f32 %v6174, %v6474
    %v6655 = vadd.f32 %v6175, %v6475
    %v6656 = vadd.f32 %v6176, %v6476
    %v6657 = vadd.f32 %v6177, %v6477
    %v6658 = vadd.f32 %v6178, %v6478
    %v6659 = vadd.f32 %v6179, %v6479
    %v6660 = vadd.f32 %v6180, %v6480
    %v6661 = vadd.f32 %v6181, %v6481
    %v6662 = vadd.f32 %v6182, %v6482
    %v6663 = vadd.f32 %v6183, %v6483
    %v6664 = vadd.f32 %v6184, %v6484
    %v6665 = vadd.f32 %v6185, %v6485
    %v6666 = vadd.f32 %v6186, %v6486
    %v6667 = vadd.f32 %v6187, %v6487
    %v6668 = vadd.f32 %v6188, %v6488
    %v6669 = vadd.f32 %v6189, %v6489
    %v6670 = vadd.f32 %v6190, %v6490
    %v6671 = vadd.f32 %v6191, %v6491
    %v6672 = vadd.f32 %v6192, %v6492
    %v6673 = vadd.f32 %v6193, %v6493
    %v6674 = vadd.f32 %v6194, %v6494
    %v6675 = vadd.f32 %v6195, %v6495
    %v6676 = vadd.f32 %v6196, %v6496
    %v6677 = vadd.f32 %v6197, %v6497
    %v6678 = vadd.f32 %v6198, %v6498
    %v6679 = vadd.f32 %v6199, %v6499
    %6680 = vset.pattern.permute.xlu0 2
    %6681 = vperm.xlu0 %6680, %v5840
    %v6682 = vpop.permute.xlu0 %6681
    %6684 = vset.pattern.permute.xlu0 2
    %6685 = vperm.xlu0 %6684, %v5841
    %v6686 = vpop.permute.xlu0 %6685
    %6688 = vset.pattern.permute.xlu0 2
    %6689 = vperm.xlu0 %6688, %v5842
    %v6690 = vpop.permute.xlu0 %6689
    %6692 = vset.pattern.permute.xlu0 2
    %6693 = vperm.xlu0 %6692, %v5843
    %v6694 = vpop.permute.xlu0 %6693
    %6696 = vset.pattern.permute.xlu0 2
    %6697 = vperm.xlu0 %6696, %v5844
    %v6698 = vpop.permute.xlu0 %6697
    %6700 = vset.pattern.permute.xlu0 2
    %6701 = vperm.xlu0 %6700, %v5845
    %v6702 = vpop.permute.xlu0 %6701
    %6704 = vset.pattern.permute.xlu0 2
    %6705 = vperm.xlu0 %6704, %v5846
    %v6706 = vpop.permute.xlu0 %6705
    %6708 = vset.pattern.permute.xlu0 2
    %6709 = vperm.xlu0 %6708, %v5847
    %v6710 = vpop.permute.xlu0 %6709
    %6712 = vset.pattern.permute.xlu0 2
    %6713 = vperm.xlu0 %6712, %v5848
    %v6714 = vpop.permute.xlu0 %6713
    %6716 = vset.pattern.permute.xlu0 2
    %6717 = vperm.xlu0 %6716, %v5849
    %v6718 = vpop.permute.xlu0 %6717
    %6720 = vset.pattern.permute.xlu0 2
    %6721 = vperm.xlu0 %6720, %v5850
    %v6722 = vpop.permute.xlu0 %6721
    %6724 = vset.pattern.permute.xlu0 2
    %6725 = vperm.xlu0 %6724, %v5851
    %v6726 = vpop.permute.xlu0 %6725
    %6728 = vset.pattern.permute.xlu0 2
    %6729 = vperm.xlu0 %6728, %v5852
    %v6730 = vpop.permute.xlu0 %6729
    %6732 = vset.pattern.permute.xlu0 2
    %6733 = vperm.xlu0 %6732, %v5853
    %v6734 = vpop.permute.xlu0 %6733
    %6736 = vset.pattern.permute.xlu0 2
    %6737 = vperm.xlu0 %6736, %v5854
    %v6738 = vpop.permute.xlu0 %6737
    %6740 = vset.pattern.permute.xlu0 2
    %6741 = vperm.xlu0 %6740, %v5855
    %v6742 = vpop.permute.xlu0 %6741
    %6744 = vset.pattern.permute.xlu0 2
    %6745 = vperm.xlu0 %6744, %v5856
    %v6746 = vpop.permute.xlu0 %6745
    %6748 = vset.pattern.permute.xlu0 2
    %6749 = vperm.xlu0 %6748, %v5857
    %v6750 = vpop.permute.xlu0 %6749
    %6752 = vset.pattern.permute.xlu0 2
    %6753 = vperm.xlu0 %6752, %v5858
    %v6754 = vpop.permute.xlu0 %6753
    %6756 = vset.pattern.permute.xlu0 2
    %6757 = vperm.xlu0 %6756, %v5859
    %v6758 = vpop.permute.xlu0 %6757
    %6760 = vset.pattern.permute.xlu0 2
    %6761 = vperm.xlu0 %6760, %v5860
    %v6762 = vpop.permute.xlu0 %6761
    %6764 = vset.pattern.permute.xlu0 2
    %6765 = vperm.xlu0 %6764, %v5861
    %v6766 = vpop.permute.xlu0 %6765
    %6768 = vset.pattern.permute.xlu0 2
    %6769 = vperm.xlu0 %6768, %v5862
    %v6770 = vpop.permute.xlu0 %6769
    %6772 = vset.pattern.permute.xlu0 2
    %6773 = vperm.xlu0 %6772, %v5863
    %v6774 = vpop.permute.xlu0 %6773
    %6776 = vset.pattern.permute.xlu0 2
    %6777 = vperm.xlu0 %6776, %v5864
    %v6778 = vpop.permute.xlu0 %6777
    %6780 = vset.pattern.permute.xlu0 2
    %6781 = vperm.xlu0 %6780, %v5865
    %v6782 = vpop.permute.xlu0 %6781
    %6784 = vset.pattern.permute.xlu0 2
    %6785 = vperm.xlu0 %6784, %v5866
    %v6786 = vpop.permute.xlu0 %6785
    %6788 = vset.pattern.permute.xlu0 2
    %6789 = vperm.xlu0 %6788, %v5867
    %v6790 = vpop.permute.xlu0 %6789
    %6792 = vset.pattern.permute.xlu0 2
    %6793 = vperm.xlu0 %6792, %v5868
    %v6794 = vpop.permute.xlu0 %6793
    %6796 = vset.pattern.permute.xlu0 2
    %6797 = vperm.xlu0 %6796, %v5869
    %v6798 = vpop.permute.xlu0 %6797
    %v6800 = vmul.f32 %v6682, %v1054
    %v6801 = vmul.f32 %v6682, %v1058
    %v6802 = vmul.f32 %v6682, %v1062
    %v6803 = vmul.f32 %v6682, %v1066
    %v6804 = vmul.f32 %v6682, %v1070
    %v6805 = vmul.f32 %v6682, %v1074
    %v6806 = vmul.f32 %v6686, %v1054
    %v6807 = vmul.f32 %v6686, %v1058
    %v6808 = vmul.f32 %v6686, %v1062
    %v6809 = vmul.f32 %v6686, %v1066
    %v6810 = vmul.f32 %v6686, %v1070
    %v6811 = vmul.f32 %v6686, %v1074
    %v6812 = vmul.f32 %v6690, %v1054
    %v6813 = vmul.f32 %v6690, %v1058
    %v6814 = vmul.f32 %v6690, %v1062
    %v6815 = vmul.f32 %v6690, %v1066
    %v6816 = vmul.f32 %v6690, %v1070
    %v6817 = vmul.f32 %v6690, %v1074
    %v6818 = vmul.f32 %v6694, %v1054
    %v6819 = vmul.f32 %v6694, %v1058
    %v6820 = vmul.f32 %v6694, %v1062
    %v6821 = vmul.f32 %v6694, %v1066
    %v6822 = vmul.f32 %v6694, %v1070
    %v6823 = vmul.f32 %v6694, %v1074
    %v6824 = vmul.f32 %v6698, %v1054
    %v6825 = vmul.f32 %v6698, %v1058
    %v6826 = vmul.f32 %v6698, %v1062
    %v6827 = vmul.f32 %v6698, %v1066
    %v6828 = vmul.f32 %v6698, %v1070
    %v6829 = vmul.f32 %v6698, %v1074
    %v6830 = vmul.f32 %v6702, %v1054
    %v6831 = vmul.f32 %v6702, %v1058
    %v6832 = vmul.f32 %v6702, %v1062
    %v6833 = vmul.f32 %v6702, %v1066
    %v6834 = vmul.f32 %v6702, %v1070
    %v6835 = vmul.f32 %v6702, %v1074
    %v6836 = vmul.f32 %v6706, %v1054
    %v6837 = vmul.f32 %v6706, %v1058
    %v6838 = vmul.f32 %v6706, %v1062
    %v6839 = vmul.f32 %v6706, %v1066
    %v6840 = vmul.f32 %v6706, %v1070
    %v6841 = vmul.f32 %v6706, %v1074
    %v6842 = vmul.f32 %v6710, %v1054
    %v6843 = vmul.f32 %v6710, %v1058
    %v6844 = vmul.f32 %v6710, %v1062
    %v6845 = vmul.f32 %v6710, %v1066
    %v6846 = vmul.f32 %v6710, %v1070
    %v6847 = vmul.f32 %v6710, %v1074
    %v6848 = vmul.f32 %v6714, %v1054
    %v6849 = vmul.f32 %v6714, %v1058
    %v6850 = vmul.f32 %v6714, %v1062
    %v6851 = vmul.f32 %v6714, %v1066
    %v6852 = vmul.f32 %v6714, %v1070
    %v6853 = vmul.f32 %v6714, %v1074
    %v6854 = vmul.f32 %v6718, %v1054
    %v6855 = vmul.f32 %v6718, %v1058
    %v6856 = vmul.f32 %v6718, %v1062
    %v6857 = vmul.f32 %v6718, %v1066
    %v6858 = vmul.f32 %v6718, %v1070
    %v6859 = vmul.f32 %v6718, %v1074
    %v6860 = vmul.f32 %v6722, %v1054
    %v6861 = vmul.f32 %v6722, %v1058
    %v6862 = vmul.f32 %v6722, %v1062
    %v6863 = vmul.f32 %v6722, %v1066
    %v6864 = vmul.f32 %v6722, %v1070
    %v6865 = vmul.f32 %v6722, %v1074
    %v6866 = vmul.f32 %v6726, %v1054
    %v6867 = vmul.f32 %v6726, %v1058
    %v6868 = vmul.f32 %v6726, %v1062
    %v6869 = vmul.f32 %v6726, %v1066
    %v6870 = vmul.f32 %v6726, %v1070
    %v6871 = vmul.f32 %v6726, %v1074
    %v6872 = vmul.f32 %v6730, %v1054
    %v6873 = vmul.f32 %v6730, %v1058
    %v6874 = vmul.f32 %v6730, %v1062
    %v6875 = vmul.f32 %v6730, %v1066
    %v6876 = vmul.f32 %v6730, %v1070
    %v6877 = vmul.f32 %v6730, %v1074
    %v6878 = vmul.f32 %v6734, %v1054
    %v6879 = vmul.f32 %v6734, %v1058
    %v6880 = vmul.f32 %v6734, %v1062
    %v6881 = vmul.f32 %v6734, %v1066
    %v6882 = vmul.f32 %v6734, %v1070
    %v6883 = vmul.f32 %v6734, %v1074
    %v6884 = vmul.f32 %v6738, %v1054
    %v6885 = vmul.f32 %v6738, %v1058
    %v6886 = vmul.f32 %v6738, %v1062
    %v6887 = vmul.f32 %v6738, %v1066
    %v6888 = vmul.f32 %v6738, %v1070
    %v6889 = vmul.f32 %v6738, %v1074
    %v6890 = vmul.f32 %v6742, %v1054
    %v6891 = vmul.f32 %v6742, %v1058
    %v6892 = vmul.f32 %v6742, %v1062
    %v6893 = vmul.f32 %v6742, %v1066
    %v6894 = vmul.f32 %v6742, %v1070
    %v6895 = vmul.f32 %v6742, %v1074
    %v6896 = vmul.f32 %v6746, %v1054
    %v6897 = vmul.f32 %v6746, %v1058
    %v6898 = vmul.f32 %v6746, %v1062
    %v6899 = vmul.f32 %v6746, %v1066
    %v6900 = vmul.f32 %v6746, %v1070
    %v6901 = vmul.f32 %v6746, %v1074
    %v6902 = vmul.f32 %v6750, %v1054
    %v6903 = vmul.f32 %v6750, %v1058
    %v6904 = vmul.f32 %v6750, %v1062
    %v6905 = vmul.f32 %v6750, %v1066
    %v6906 = vmul.f32 %v6750, %v1070
    %v6907 = vmul.f32 %v6750, %v1074
    %v6908 = vmul.f32 %v6754, %v1054
    %v6909 = vmul.f32 %v6754, %v1058
    %v6910 = vmul.f32 %v6754, %v1062
    %v6911 = vmul.f32 %v6754, %v1066
    %v6912 = vmul.f32 %v6754, %v1070
    %v6913 = vmul.f32 %v6754, %v1074
    %v6914 = vmul.f32 %v6758, %v1054
    %v6915 = vmul.f32 %v6758, %v1058
    %v6916 = vmul.f32 %v6758, %v1062
    %v6917 = vmul.f32 %v6758, %v1066
    %v6918 = vmul.f32 %v6758, %v1070
    %v6919 = vmul.f32 %v6758, %v1074
    %v6920 = vmul.f32 %v6762, %v1054
    %v6921 = vmul.f32 %v6762, %v1058
    %v6922 = vmul.f32 %v6762, %v1062
    %v6923 = vmul.f32 %v6762, %v1066
    %v6924 = vmul.f32 %v6762, %v1070
    %v6925 = vmul.f32 %v6762, %v1074
    %v6926 = vmul.f32 %v6766, %v1054
    %v6927 = vmul.f32 %v6766, %v1058
    %v6928 = vmul.f32 %v6766, %v1062
    %v6929 = vmul.f32 %v6766, %v1066
    %v6930 = vmul.f32 %v6766, %v1070
    %v6931 = vmul.f32 %v6766, %v1074
    %v6932 = vmul.f32 %v6770, %v1054
    %v6933 = vmul.f32 %v6770, %v1058
    %v6934 = vmul.f32 %v6770, %v1062
    %v6935 = vmul.f32 %v6770, %v1066
    %v6936 = vmul.f32 %v6770, %v1070
    %v6937 = vmul.f32 %v6770, %v1074
    %v6938 = vmul.f32 %v6774, %v1054
    %v6939 = vmul.f32 %v6774, %v1058
    %v6940 = vmul.f32 %v6774, %v1062
    %v6941 = vmul.f32 %v6774, %v1066
    %v6942 = vmul.f32 %v6774, %v1070
    %v6943 = vmul.f32 %v6774, %v1074
    %v6944 = vmul.f32 %v6778, %v1054
    %v6945 = vmul.f32 %v6778, %v1058
    %v6946 = vmul.f32 %v6778, %v1062
    %v6947 = vmul.f32 %v6778, %v1066
    %v6948 = vmul.f32 %v6778, %v1070
    %v6949 = vmul.f32 %v6778, %v1074
    %v6950 = vmul.f32 %v6782, %v1054
    %v6951 = vmul.f32 %v6782, %v1058
    %v6952 = vmul.f32 %v6782, %v1062
    %v6953 = vmul.f32 %v6782, %v1066
    %v6954 = vmul.f32 %v6782, %v1070
    %v6955 = vmul.f32 %v6782, %v1074
    %v6956 = vmul.f32 %v6786, %v1054
    %v6957 = vmul.f32 %v6786, %v1058
    %v6958 = vmul.f32 %v6786, %v1062
    %v6959 = vmul.f32 %v6786, %v1066
    %v6960 = vmul.f32 %v6786, %v1070
    %v6961 = vmul.f32 %v6786, %v1074
    %v6962 = vmul.f32 %v6790, %v1054
    %v6963 = vmul.f32 %v6790, %v1058
    %v6964 = vmul.f32 %v6790, %v1062
    %v6965 = vmul.f32 %v6790, %v1066
    %v6966 = vmul.f32 %v6790, %v1070
    %v6967 = vmul.f32 %v6790, %v1074
    %v6968 = vmul.f32 %v6794, %v1054
    %v6969 = vmul.f32 %v6794, %v1058
    %v6970 = vmul.f32 %v6794, %v1062
    %v6971 = vmul.f32 %v6794, %v1066
    %v6972 = vmul.f32 %v6794, %v1070
    %v6973 = vmul.f32 %v6794, %v1074
    %v6974 = vmul.f32 %v6798, %v1054
    %v6975 = vmul.f32 %v6798, %v1058
    %v6976 = vmul.f32 %v6798, %v1062
    %v6977 = vmul.f32 %v6798, %v1066
    %v6978 = vmul.f32 %v6798, %v1070
    %v6979 = vmul.f32 %v6798, %v1074
    %v6980 = vadd.f32 %v6500, %v6800
    %v6981 = vadd.f32 %v6501, %v6801
    %v6982 = vadd.f32 %v6502, %v6802
    %v6983 = vadd.f32 %v6503, %v6803
    %v6984 = vadd.f32 %v6504, %v6804
    %v6985 = vadd.f32 %v6505, %v6805
    %v6986 = vadd.f32 %v6506, %v6806
    %v6987 = vadd.f32 %v6507, %v6807
    %v6988 = vadd.f32 %v6508, %v6808
    %v6989 = vadd.f32 %v6509, %v6809
    %v6990 = vadd.f32 %v6510, %v6810
    %v6991 = vadd.f32 %v6511, %v6811
    %v6992 = vadd.f32 %v6512, %v6812
    %v6993 = vadd.f32 %v6513, %v6813
    %v6994 = vadd.f32 %v6514, %v6814
    %v6995 = vadd.f32 %v6515, %v6815
    %v6996 = vadd.f32 %v6516, %v6816
    %v6997 = vadd.f32 %v6517, %v6817
    %v6998 = vadd.f32 %v6518, %v6818
    %v6999 = vadd.f32 %v6519, %v6819
    %v7000 = vadd.f32 %v6520, %v6820
    %v7001 = vadd.f32 %v6521, %v6821
    %v7002 = vadd.f32 %v6522, %v6822
    %v7003 = vadd.f32 %v6523, %v6823
    %v7004 = vadd.f32 %v6524, %v6824
    %v7005 = vadd.f32 %v6525, %v6825
    %v7006 = vadd.f32 %v6526, %v6826
    %v7007 = vadd.f32 %v6527, %v6827
    %v7008 = vadd.f32 %v6528, %v6828
    %v7009 = vadd.f32 %v6529, %v6829
    %v7010 = vadd.f32 %v6530, %v6830
    %v7011 = vadd.f32 %v6531, %v6831
    %v7012 = vadd.f32 %v6532, %v6832
    %v7013 = vadd.f32 %v6533, %v6833
    %v7014 = vadd.f32 %v6534, %v6834
    %v7015 = vadd.f32 %v6535, %v6835
    %v7016 = vadd.f32 %v6536, %v6836
    %v7017 = vadd.f32 %v6537, %v6837
    %v7018 = vadd.f32 %v6538, %v6838
    %v7019 = vadd.f32 %v6539, %v6839
    %v7020 = vadd.f32 %v6540, %v6840
    %v7021 = vadd.f32 %v6541, %v6841
    %v7022 = vadd.f32 %v6542, %v6842
    %v7023 = vadd.f32 %v6543, %v6843
    %v7024 = vadd.f32 %v6544, %v6844
    %v7025 = vadd.f32 %v6545, %v6845
    %v7026 = vadd.f32 %v6546, %v6846
    %v7027 = vadd.f32 %v6547, %v6847
    %v7028 = vadd.f32 %v6548, %v6848
    %v7029 = vadd.f32 %v6549, %v6849
    %v7030 = vadd.f32 %v6550, %v6850
    %v7031 = vadd.f32 %v6551, %v6851
    %v7032 = vadd.f32 %v6552, %v6852
    %v7033 = vadd.f32 %v6553, %v6853
    %v7034 = vadd.f32 %v6554, %v6854
    %v7035 = vadd.f32 %v6555, %v6855
    %v7036 = vadd.f32 %v6556, %v6856
    %v7037 = vadd.f32 %v6557, %v6857
    %v7038 = vadd.f32 %v6558, %v6858
    %v7039 = vadd.f32 %v6559, %v6859
    %v7040 = vadd.f32 %v6560, %v6860
    %v7041 = vadd.f32 %v6561, %v6861
    %v7042 = vadd.f32 %v6562, %v6862
    %v7043 = vadd.f32 %v6563, %v6863
    %v7044 = vadd.f32 %v6564, %v6864
    %v7045 = vadd.f32 %v6565, %v6865
    %v7046 = vadd.f32 %v6566, %v6866
    %v7047 = vadd.f32 %v6567, %v6867
    %v7048 = vadd.f32 %v6568, %v6868
    %v7049 = vadd.f32 %v6569, %v6869
    %v7050 = vadd.f32 %v6570, %v6870
    %v7051 = vadd.f32 %v6571, %v6871
    %v7052 = vadd.f32 %v6572, %v6872
    %v7053 = vadd.f32 %v6573, %v6873
    %v7054 = vadd.f32 %v6574, %v6874
    %v7055 = vadd.f32 %v6575, %v6875
    %v7056 = vadd.f32 %v6576, %v6876
    %v7057 = vadd.f32 %v6577, %v6877
    %v7058 = vadd.f32 %v6578, %v6878
    %v7059 = vadd.f32 %v6579, %v6879
    %v7060 = vadd.f32 %v6580, %v6880
    %v7061 = vadd.f32 %v6581, %v6881
    %v7062 = vadd.f32 %v6582, %v6882
    %v7063 = vadd.f32 %v6583, %v6883
    %v7064 = vadd.f32 %v6584, %v6884
    %v7065 = vadd.f32 %v6585, %v6885
    %v7066 = vadd.f32 %v6586, %v6886
    %v7067 = vadd.f32 %v6587, %v6887
    %v7068 = vadd.f32 %v6588, %v6888
    %v7069 = vadd.f32 %v6589, %v6889
    %v7070 = vadd.f32 %v6590, %v6890
    %v7071 = vadd.f32 %v6591, %v6891
    %v7072 = vadd.f32 %v6592, %v6892
    %v7073 = vadd.f32 %v6593, %v6893
    %v7074 = vadd.f32 %v6594, %v6894
    %v7075 = vadd.f32 %v6595, %v6895
    %v7076 = vadd.f32 %v6596, %v6896
    %v7077 = vadd.f32 %v6597, %v6897
    %v7078 = vadd.f32 %v6598, %v6898
    %v7079 = vadd.f32 %v6599, %v6899
    %v7080 = vadd.f32 %v6600, %v6900
    %v7081 = vadd.f32 %v6601, %v6901
    %v7082 = vadd.f32 %v6602, %v6902
    %v7083 = vadd.f32 %v6603, %v6903
    %v7084 = vadd.f32 %v6604, %v6904
    %v7085 = vadd.f32 %v6605, %v6905
    %v7086 = vadd.f32 %v6606, %v6906
    %v7087 = vadd.f32 %v6607, %v6907
    %v7088 = vadd.f32 %v6608, %v6908
    %v7089 = vadd.f32 %v6609, %v6909
    %v7090 = vadd.f32 %v6610, %v6910
    %v7091 = vadd.f32 %v6611, %v6911
    %v7092 = vadd.f32 %v6612, %v6912
    %v7093 = vadd.f32 %v6613, %v6913
    %v7094 = vadd.f32 %v6614, %v6914
    %v7095 = vadd.f32 %v6615, %v6915
    %v7096 = vadd.f32 %v6616, %v6916
    %v7097 = vadd.f32 %v6617, %v6917
    %v7098 = vadd.f32 %v6618, %v6918
    %v7099 = vadd.f32 %v6619, %v6919
    %v7100 = vadd.f32 %v6620, %v6920
    %v7101 = vadd.f32 %v6621, %v6921
    %v7102 = vadd.f32 %v6622, %v6922
    %v7103 = vadd.f32 %v6623, %v6923
    %v7104 = vadd.f32 %v6624, %v6924
    %v7105 = vadd.f32 %v6625, %v6925
    %v7106 = vadd.f32 %v6626, %v6926
    %v7107 = vadd.f32 %v6627, %v6927
    %v7108 = vadd.f32 %v6628, %v6928
    %v7109 = vadd.f32 %v6629, %v6929
    %v7110 = vadd.f32 %v6630, %v6930
    %v7111 = vadd.f32 %v6631, %v6931
    %v7112 = vadd.f32 %v6632, %v6932
    %v7113 = vadd.f32 %v6633, %v6933
    %v7114 = vadd.f32 %v6634, %v6934
    %v7115 = vadd.f32 %v6635, %v6935
    %v7116 = vadd.f32 %v6636, %v6936
    %v7117 = vadd.f32 %v6637, %v6937
    %v7118 = vadd.f32 %v6638, %v6938
    %v7119 = vadd.f32 %v6639, %v6939
    %v7120 = vadd.f32 %v6640, %v6940
    %v7121 = vadd.f32 %v6641, %v6941
    %v7122 = vadd.f32 %v6642, %v6942
    %v7123 = vadd.f32 %v6643, %v6943
    %v7124 = vadd.f32 %v6644, %v6944
    %v7125 = vadd.f32 %v6645, %v6945
    %v7126 = vadd.f32 %v6646, %v6946
    %v7127 = vadd.f32 %v6647, %v6947
    %v7128 = vadd.f32 %v6648, %v6948
    %v7129 = vadd.f32 %v6649, %v6949
    %v7130 = vadd.f32 %v6650, %v6950
    %v7131 = vadd.f32 %v6651, %v6951
    %v7132 = vadd.f32 %v6652, %v6952
    %v7133 = vadd.f32 %v6653, %v6953
    %v7134 = vadd.f32 %v6654, %v6954
    %v7135 = vadd.f32 %v6655, %v6955
    %v7136 = vadd.f32 %v6656, %v6956
    %v7137 = vadd.f32 %v6657, %v6957
    %v7138 = vadd.f32 %v6658, %v6958
    %v7139 = vadd.f32 %v6659, %v6959
    %v7140 = vadd.f32 %v6660, %v6960
    %v7141 = vadd.f32 %v6661, %v6961
    %v7142 = vadd.f32 %v6662, %v6962
    %v7143 = vadd.f32 %v6663, %v6963
    %v7144 = vadd.f32 %v6664, %v6964
    %v7145 = vadd.f32 %v6665, %v6965
    %v7146 = vadd.f32 %v6666, %v6966
    %v7147 = vadd.f32 %v6667, %v6967
    %v7148 = vadd.f32 %v6668, %v6968
    %v7149 = vadd.f32 %v6669, %v6969
    %v7150 = vadd.f32 %v6670, %v6970
    %v7151 = vadd.f32 %v6671, %v6971
    %v7152 = vadd.f32 %v6672, %v6972
    %v7153 = vadd.f32 %v6673, %v6973
    %v7154 = vadd.f32 %v6674, %v6974
    %v7155 = vadd.f32 %v6675, %v6975
    %v7156 = vadd.f32 %v6676, %v6976
    %v7157 = vadd.f32 %v6677, %v6977
    %v7158 = vadd.f32 %v6678, %v6978
    %v7159 = vadd.f32 %v6679, %v6979
    %v7160 = vadd.f32 %v6980, %v1445
    %v7161 = vadd.f32 %v6981, %v1449
    %v7162 = vadd.f32 %v6982, %v1453
    %v7163 = vadd.f32 %v6983, %v1457
    %v7164 = vadd.f32 %v6984, %v1461
    %v7165 = vadd.f32 %v6985, %v1465
    %v7166 = vadd.f32 %v6986, %v1445
    %v7167 = vadd.f32 %v6987, %v1449
    %v7168 = vadd.f32 %v6988, %v1453
    %v7169 = vadd.f32 %v6989, %v1457
    %v7170 = vadd.f32 %v6990, %v1461
    %v7171 = vadd.f32 %v6991, %v1465
    %v7172 = vadd.f32 %v6992, %v1445
    %v7173 = vadd.f32 %v6993, %v1449
    %v7174 = vadd.f32 %v6994, %v1453
    %v7175 = vadd.f32 %v6995, %v1457
    %v7176 = vadd.f32 %v6996, %v1461
    %v7177 = vadd.f32 %v6997, %v1465
    %v7178 = vadd.f32 %v6998, %v1445
    %v7179 = vadd.f32 %v6999, %v1449
    %v7180 = vadd.f32 %v7000, %v1453
    %v7181 = vadd.f32 %v7001, %v1457
    %v7182 = vadd.f32 %v7002, %v1461
    %v7183 = vadd.f32 %v7003, %v1465
    %v7184 = vadd.f32 %v7004, %v1445
    %v7185 = vadd.f32 %v7005, %v1449
    %v7186 = vadd.f32 %v7006, %v1453
    %v7187 = vadd.f32 %v7007, %v1457
    %v7188 = vadd.f32 %v7008, %v1461
    %v7189 = vadd.f32 %v7009, %v1465
    %v7190 = vadd.f32 %v7010, %v1445
    %v7191 = vadd.f32 %v7011, %v1449
    %v7192 = vadd.f32 %v7012, %v1453
    %v7193 = vadd.f32 %v7013, %v1457
    %v7194 = vadd.f32 %v7014, %v1461
    %v7195 = vadd.f32 %v7015, %v1465
    %v7196 = vadd.f32 %v7016, %v1445
    %v7197 = vadd.f32 %v7017, %v1449
    %v7198 = vadd.f32 %v7018, %v1453
    %v7199 = vadd.f32 %v7019, %v1457
    %v7200 = vadd.f32 %v7020, %v1461
    %v7201 = vadd.f32 %v7021, %v1465
    %v7202 = vadd.f32 %v7022, %v1445
    %v7203 = vadd.f32 %v7023, %v1449
    %v7204 = vadd.f32 %v7024, %v1453
    %v7205 = vadd.f32 %v7025, %v1457
    %v7206 = vadd.f32 %v7026, %v1461
    %v7207 = vadd.f32 %v7027, %v1465
    %v7208 = vadd.f32 %v7028, %v1445
    %v7209 = vadd.f32 %v7029, %v1449
    %v7210 = vadd.f32 %v7030, %v1453
    %v7211 = vadd.f32 %v7031, %v1457
    %v7212 = vadd.f32 %v7032, %v1461
    %v7213 = vadd.f32 %v7033, %v1465
    %v7214 = vadd.f32 %v7034, %v1445
    %v7215 = vadd.f32 %v7035, %v1449
    %v7216 = vadd.f32 %v7036, %v1453
    %v7217 = vadd.f32 %v7037, %v1457
    %v7218 = vadd.f32 %v7038, %v1461
    %v7219 = vadd.f32 %v7039, %v1465
    %v7220 = vadd.f32 %v7040, %v1445
    %v7221 = vadd.f32 %v7041, %v1449
    %v7222 = vadd.f32 %v7042, %v1453
    %v7223 = vadd.f32 %v7043, %v1457
    %v7224 = vadd.f32 %v7044, %v1461
    %v7225 = vadd.f32 %v7045, %v1465
    %v7226 = vadd.f32 %v7046, %v1445
    %v7227 = vadd.f32 %v7047, %v1449
    %v7228 = vadd.f32 %v7048, %v1453
    %v7229 = vadd.f32 %v7049, %v1457
    %v7230 = vadd.f32 %v7050, %v1461
    %v7231 = vadd.f32 %v7051, %v1465
    %v7232 = vadd.f32 %v7052, %v1445
    %v7233 = vadd.f32 %v7053, %v1449
    %v7234 = vadd.f32 %v7054, %v1453
    %v7235 = vadd.f32 %v7055, %v1457
    %v7236 = vadd.f32 %v7056, %v1461
    %v7237 = vadd.f32 %v7057, %v1465
    %v7238 = vadd.f32 %v7058, %v1445
    %v7239 = vadd.f32 %v7059, %v1449
    %v7240 = vadd.f32 %v7060, %v1453
    %v7241 = vadd.f32 %v7061, %v1457
    %v7242 = vadd.f32 %v7062, %v1461
    %v7243 = vadd.f32 %v7063, %v1465
    %v7244 = vadd.f32 %v7064, %v1445
    %v7245 = vadd.f32 %v7065, %v1449
    %v7246 = vadd.f32 %v7066, %v1453
    %v7247 = vadd.f32 %v7067, %v1457
    %v7248 = vadd.f32 %v7068, %v1461
    %v7249 = vadd.f32 %v7069, %v1465
    %v7250 = vadd.f32 %v7070, %v1445
    %v7251 = vadd.f32 %v7071, %v1449
    %v7252 = vadd.f32 %v7072, %v1453
    %v7253 = vadd.f32 %v7073, %v1457
    %v7254 = vadd.f32 %v7074, %v1461
    %v7255 = vadd.f32 %v7075, %v1465
    %v7256 = vadd.f32 %v7076, %v1445
    %v7257 = vadd.f32 %v7077, %v1449
    %v7258 = vadd.f32 %v7078, %v1453
    %v7259 = vadd.f32 %v7079, %v1457
    %v7260 = vadd.f32 %v7080, %v1461
    %v7261 = vadd.f32 %v7081, %v1465
    %v7262 = vadd.f32 %v7082, %v1445
    %v7263 = vadd.f32 %v7083, %v1449
    %v7264 = vadd.f32 %v7084, %v1453
    %v7265 = vadd.f32 %v7085, %v1457
    %v7266 = vadd.f32 %v7086, %v1461
    %v7267 = vadd.f32 %v7087, %v1465
    %v7268 = vadd.f32 %v7088, %v1445
    %v7269 = vadd.f32 %v7089, %v1449
    %v7270 = vadd.f32 %v7090, %v1453
    %v7271 = vadd.f32 %v7091, %v1457
    %v7272 = vadd.f32 %v7092, %v1461
    %v7273 = vadd.f32 %v7093, %v1465
    %v7274 = vadd.f32 %v7094, %v1445
    %v7275 = vadd.f32 %v7095, %v1449
    %v7276 = vadd.f32 %v7096, %v1453
    %v7277 = vadd.f32 %v7097, %v1457
    %v7278 = vadd.f32 %v7098, %v1461
    %v7279 = vadd.f32 %v7099, %v1465
    %v7280 = vadd.f32 %v7100, %v1445
    %v7281 = vadd.f32 %v7101, %v1449
    %v7282 = vadd.f32 %v7102, %v1453
    %v7283 = vadd.f32 %v7103, %v1457
    %v7284 = vadd.f32 %v7104, %v1461
    %v7285 = vadd.f32 %v7105, %v1465
    %v7286 = vadd.f32 %v7106, %v1445
    %v7287 = vadd.f32 %v7107, %v1449
    %v7288 = vadd.f32 %v7108, %v1453
    %v7289 = vadd.f32 %v7109, %v1457
    %v7290 = vadd.f32 %v7110, %v1461
    %v7291 = vadd.f32 %v7111, %v1465
    %v7292 = vadd.f32 %v7112, %v1445
    %v7293 = vadd.f32 %v7113, %v1449
    %v7294 = vadd.f32 %v7114, %v1453
    %v7295 = vadd.f32 %v7115, %v1457
    %v7296 = vadd.f32 %v7116, %v1461
    %v7297 = vadd.f32 %v7117, %v1465
    %v7298 = vadd.f32 %v7118, %v1445
    %v7299 = vadd.f32 %v7119, %v1449
    %v7300 = vadd.f32 %v7120, %v1453
    %v7301 = vadd.f32 %v7121, %v1457
    %v7302 = vadd.f32 %v7122, %v1461
    %v7303 = vadd.f32 %v7123, %v1465
    %v7304 = vadd.f32 %v7124, %v1445
    %v7305 = vadd.f32 %v7125, %v1449
    %v7306 = vadd.f32 %v7126, %v1453
    %v7307 = vadd.f32 %v7127, %v1457
    %v7308 = vadd.f32 %v7128, %v1461
    %v7309 = vadd.f32 %v7129, %v1465
    %v7310 = vadd.f32 %v7130, %v1445
    %v7311 = vadd.f32 %v7131, %v1449
    %v7312 = vadd.f32 %v7132, %v1453
    %v7313 = vadd.f32 %v7133, %v1457
    %v7314 = vadd.f32 %v7134, %v1461
    %v7315 = vadd.f32 %v7135, %v1465
    %v7316 = vadd.f32 %v7136, %v1445
    %v7317 = vadd.f32 %v7137, %v1449
    %v7318 = vadd.f32 %v7138, %v1453
    %v7319 = vadd.f32 %v7139, %v1457
    %v7320 = vadd.f32 %v7140, %v1461
    %v7321 = vadd.f32 %v7141, %v1465
    %v7322 = vadd.f32 %v7142, %v1445
    %v7323 = vadd.f32 %v7143, %v1449
    %v7324 = vadd.f32 %v7144, %v1453
    %v7325 = vadd.f32 %v7145, %v1457
    %v7326 = vadd.f32 %v7146, %v1461
    %v7327 = vadd.f32 %v7147, %v1465
    %v7328 = vadd.f32 %v7148, %v1445
    %v7329 = vadd.f32 %v7149, %v1449
    %v7330 = vadd.f32 %v7150, %v1453
    %v7331 = vadd.f32 %v7151, %v1457
    %v7332 = vadd.f32 %v7152, %v1461
    %v7333 = vadd.f32 %v7153, %v1465
    %v7334 = vadd.f32 %v7154, %v1445
    %v7335 = vadd.f32 %v7155, %v1449
    %v7336 = vadd.f32 %v7156, %v1453
    %v7337 = vadd.f32 %v7157, %v1457
    %v7338 = vadd.f32 %v7158, %v1461
    %v7339 = vadd.f32 %v7159, %v1465
    %v7340 = vmax.f32 %v7160, 0.0
    %v7341 = vmax.f32 %v7161, 0.0
    %v7342 = vmax.f32 %v7162, 0.0
    %v7343 = vmax.f32 %v7163, 0.0
    %v7344 = vmax.f32 %v7164, 0.0
    %v7345 = vmax.f32 %v7165, 0.0
    %v7346 = vmax.f32 %v7166, 0.0
    %v7347 = vmax.f32 %v7167, 0.0
    %v7348 = vmax.f32 %v7168, 0.0
    %v7349 = vmax.f32 %v7169, 0.0
    %v7350 = vmax.f32 %v7170, 0.0
    %v7351 = vmax.f32 %v7171, 0.0
    %v7352 = vmax.f32 %v7172, 0.0
    %v7353 = vmax.f32 %v7173, 0.0
    %v7354 = vmax.f32 %v7174, 0.0
    %v7355 = vmax.f32 %v7175, 0.0
    %v7356 = vmax.f32 %v7176, 0.0
    %v7357 = vmax.f32 %v7177, 0.0
    %v7358 = vmax.f32 %v7178, 0.0
    %v7359 = vmax.f32 %v7179, 0.0
    %v7360 = vmax.f32 %v7180, 0.0
    %v7361 = vmax.f32 %v7181, 0.0
    %v7362 = vmax.f32 %v7182, 0.0
    %v7363 = vmax.f32 %v7183, 0.0
    %v7364 = vmax.f32 %v7184, 0.0
    %v7365 = vmax.f32 %v7185, 0.0
    %v7366 = vmax.f32 %v7186, 0.0
    %v7367 = vmax.f32 %v7187, 0.0
    %v7368 = vmax.f32 %v7188, 0.0
    %v7369 = vmax.f32 %v7189, 0.0
    %v7370 = vmax.f32 %v7190, 0.0
    %v7371 = vmax.f32 %v7191, 0.0
    %v7372 = vmax.f32 %v7192, 0.0
    %v7373 = vmax.f32 %v7193, 0.0
    %v7374 = vmax.f32 %v7194, 0.0
    %v7375 = vmax.f32 %v7195, 0.0
    %v7376 = vmax.f32 %v7196, 0.0
    %v7377 = vmax.f32 %v7197, 0.0
    %v7378 = vmax.f32 %v7198, 0.0
    %v7379 = vmax.f32 %v7199, 0.0
    %v7380 = vmax.f32 %v7200, 0.0
    %v7381 = vmax.f32 %v7201, 0.0
    %v7382 = vmax.f32 %v7202, 0.0
    %v7383 = vmax.f32 %v7203, 0.0
    %v7384 = vmax.f32 %v7204, 0.0
    %v7385 = vmax.f32 %v7205, 0.0
    %v7386 = vmax.f32 %v7206, 0.0
    %v7387 = vmax.f32 %v7207, 0.0
    %v7388 = vmax.f32 %v7208, 0.0
    %v7389 = vmax.f32 %v7209, 0.0
    %v7390 = vmax.f32 %v7210, 0.0
    %v7391 = vmax.f32 %v7211, 0.0
    %v7392 = vmax.f32 %v7212, 0.0
    %v7393 = vmax.f32 %v7213, 0.0
    %v7394 = vmax.f32 %v7214, 0.0
    %v7395 = vmax.f32 %v7215, 0.0
    %v7396 = vmax.f32 %v7216, 0.0
    %v7397 = vmax.f32 %v7217, 0.0
    %v7398 = vmax.f32 %v7218, 0.0
    %v7399 = vmax.f32 %v7219, 0.0
    %v7400 = vmax.f32 %v7220, 0.0
    %v7401 = vmax.f32 %v7221, 0.0
    %v7402 = vmax.f32 %v7222, 0.0
    %v7403 = vmax.f32 %v7223, 0.0
    %v7404 = vmax.f32 %v7224, 0.0
    %v7405 = vmax.f32 %v7225, 0.0
    %v7406 = vmax.f32 %v7226, 0.0
    %v7407 = vmax.f32 %v7227, 0.0
    %v7408 = vmax.f32 %v7228, 0.0
    %v7409 = vmax.f32 %v7229, 0.0
    %v7410 = vmax.f32 %v7230, 0.0
    %v7411 = vmax.f32 %v7231, 0.0
    %v7412 = vmax.f32 %v7232, 0.0
    %v7413 = vmax.f32 %v7233, 0.0
    %v7414 = vmax.f32 %v7234, 0.0
    %v7415 = vmax.f32 %v7235, 0.0
    %v7416 = vmax.f32 %v7236, 0.0
    %v7417 = vmax.f32 %v7237, 0.0
    %v7418 = vmax.f32 %v7238, 0.0
    %v7419 = vmax.f32 %v7239, 0.0
    %v7420 = vmax.f32 %v7240, 0.0
    %v7421 = vmax.f32 %v7241, 0.0
    %v7422 = vmax.f32 %v7242, 0.0
    %v7423 = vmax.f32 %v7243, 0.0
    %v7424 = vmax.f32 %v7244, 0.0
    %v7425 = vmax.f32 %v7245, 0.0
    %v7426 = vmax.f32 %v7246, 0.0
    %v7427 = vmax.f32 %v7247, 0.0
    %v7428 = vmax.f32 %v7248, 0.0
    %v7429 = vmax.f32 %v7249, 0.0
    %v7430 = vmax.f32 %v7250, 0.0
    %v7431 = vmax.f32 %v7251, 0.0
    %v7432 = vmax.f32 %v7252, 0.0
    %v7433 = vmax.f32 %v7253, 0.0
    %v7434 = vmax.f32 %v7254, 0.0
    %v7435 = vmax.f32 %v7255, 0.0
    %v7436 = vmax.f32 %v7256, 0.0
    %v7437 = vmax.f32 %v7257, 0.0
    %v7438 = vmax.f32 %v7258, 0.0
    %v7439 = vmax.f32 %v7259, 0.0
    %v7440 = vmax.f32 %v7260, 0.0
    %v7441 = vmax.f32 %v7261, 0.0
    %v7442 = vmax.f32 %v7262, 0.0
    %v7443 = vmax.f32 %v7263, 0.0
    %v7444 = vmax.f32 %v7264, 0.0
    %v7445 = vmax.f32 %v7265, 0.0
    %v7446 = vmax.f32 %v7266, 0.0
    %v7447 = vmax.f32 %v7267, 0.0
    %v7448 = vmax.f32 %v7268, 0.0
    %v7449 = vmax.f32 %v7269, 0.0
    %v7450 = vmax.f32 %v7270, 0.0
    %v7451 = vmax.f32 %v7271, 0.0
    %v7452 = vmax.f32 %v7272, 0.0
    %v7453 = vmax.f32 %v7273, 0.0
    %v7454 = vmax.f32 %v7274, 0.0
    %v7455 = vmax.f32 %v7275, 0.0
    %v7456 = vmax.f32 %v7276, 0.0
    %v7457 = vmax.f32 %v7277, 0.0
    %v7458 = vmax.f32 %v7278, 0.0
    %v7459 = vmax.f32 %v7279, 0.0
    %v7460 = vmax.f32 %v7280, 0.0
    %v7461 = vmax.f32 %v7281, 0.0
    %v7462 = vmax.f32 %v7282, 0.0
    %v7463 = vmax.f32 %v7283, 0.0
    %v7464 = vmax.f32 %v7284, 0.0
    %v7465 = vmax.f32 %v7285, 0.0
    %v7466 = vmax.f32 %v7286, 0.0
    %v7467 = vmax.f32 %v7287, 0.0
    %v7468 = vmax.f32 %v7288, 0.0
    %v7469 = vmax.f32 %v7289, 0.0
    %v7470 = vmax.f32 %v7290, 0.0
    %v7471 = vmax.f32 %v7291, 0.0
    %v7472 = vmax.f32 %v7292, 0.0
    %v7473 = vmax.f32 %v7293, 0.0
    %v7474 = vmax.f32 %v7294, 0.0
    %v7475 = vmax.f32 %v7295, 0.0
    %v7476 = vmax.f32 %v7296, 0.0
    %v7477 = vmax.f32 %v7297, 0.0
    %v7478 = vmax.f32 %v7298, 0.0
    %v7479 = vmax.f32 %v7299, 0.0
    %v7480 = vmax.f32 %v7300, 0.0
    %v7481 = vmax.f32 %v7301, 0.0
    %v7482 = vmax.f32 %v7302, 0.0
    %v7483 = vmax.f32 %v7303, 0.0
    %v7484 = vmax.f32 %v7304, 0.0
    %v7485 = vmax.f32 %v7305, 0.0
    %v7486 = vmax.f32 %v7306, 0.0
    %v7487 = vmax.f32 %v7307, 0.0
    %v7488 = vmax.f32 %v7308, 0.0
    %v7489 = vmax.f32 %v7309, 0.0
    %v7490 = vmax.f32 %v7310, 0.0
    %v7491 = vmax.f32 %v7311, 0.0
    %v7492 = vmax.f32 %v7312, 0.0
    %v7493 = vmax.f32 %v7313, 0.0
    %v7494 = vmax.f32 %v7314, 0.0
    %v7495 = vmax.f32 %v7315, 0.0
    %v7496 = vmax.f32 %v7316, 0.0
    %v7497 = vmax.f32 %v7317, 0.0
    %v7498 = vmax.f32 %v7318, 0.0
    %v7499 = vmax.f32 %v7319, 0.0
    %v7500 = vmax.f32 %v7320, 0.0
    %v7501 = vmax.f32 %v7321, 0.0
    %v7502 = vmax.f32 %v7322, 0.0
    %v7503 = vmax.f32 %v7323, 0.0
    %v7504 = vmax.f32 %v7324, 0.0
    %v7505 = vmax.f32 %v7325, 0.0
    %v7506 = vmax.f32 %v7326, 0.0
    %v7507 = vmax.f32 %v7327, 0.0
    %v7508 = vmax.f32 %v7328, 0.0
    %v7509 = vmax.f32 %v7329, 0.0
    %v7510 = vmax.f32 %v7330, 0.0
    %v7511 = vmax.f32 %v7331, 0.0
    %v7512 = vmax.f32 %v7332, 0.0
    %v7513 = vmax.f32 %v7333, 0.0
    %v7514 = vmax.f32 %v7334, 0.0
    %v7515 = vmax.f32 %v7335, 0.0
    %v7516 = vmax.f32 %v7336, 0.0
    %v7517 = vmax.f32 %v7337, 0.0
    %v7518 = vmax.f32 %v7338, 0.0
    %v7519 = vmax.f32 %v7339, 0.0
    %v7520 = vadd.f32 %v7340, %v7346
    %v7521 = vadd.f32 %v7520, %v7352
    %v7522 = vadd.f32 %v7521, %v7358
    %v7523 = vadd.f32 %v7522, %v7364
    %v7524 = vadd.f32 %v7523, %v7370
    %v7525 = vadd.f32 %v7524, %v7376
    %v7526 = vadd.f32 %v7525, %v7382
    %v7527 = vadd.f32 %v7526, %v7388
    %v7528 = vadd.f32 %v7527, %v7394
    %v7529 = vadd.f32 %v7528, %v7400
    %v7530 = vadd.f32 %v7529, %v7406
    %v7531 = vadd.f32 %v7530, %v7412
    %v7532 = vadd.f32 %v7531, %v7418
    %v7533 = vadd.f32 %v7532, %v7424
    %v7534 = vadd.f32 %v7533, %v7430
    %v7535 = vadd.f32 %v7534, %v7436
    %v7536 = vadd.f32 %v7535, %v7442
    %v7537 = vadd.f32 %v7536, %v7448
    %v7538 = vadd.f32 %v7537, %v7454
    %v7539 = vadd.f32 %v7538, %v7460
    %v7540 = vadd.f32 %v7539, %v7466
    %v7541 = vadd.f32 %v7540, %v7472
    %v7542 = vadd.f32 %v7541, %v7478
    %v7543 = vadd.f32 %v7542, %v7484
    %v7544 = vadd.f32 %v7543, %v7490
    %v7545 = vadd.f32 %v7544, %v7496
    %v7546 = vadd.f32 %v7545, %v7502
    %v7547 = vadd.f32 %v7546, %v7508
    %v7548 = vadd.f32 %v7547, %v7514
    %v7549 = vrot.slane %v7548, 4
    %v7550 = vadd.f32 %v7548, %v7549
    %v7551 = vrot.slane %v7550, 2
    %v7552 = vadd.f32 %v7550, %v7551
    %v7553 = vrot.slane %v7552, 1
    %v7554 = vadd.f32 %v7552, %v7553
    %v7555 = vadd.f32 %v7341, %v7347
    %v7556 = vadd.f32 %v7555, %v7353
    %v7557 = vadd.f32 %v7556, %v7359
    %v7558 = vadd.f32 %v7557, %v7365
    %v7559 = vadd.f32 %v7558, %v7371
    %v7560 = vadd.f32 %v7559, %v7377
    %v7561 = vadd.f32 %v7560, %v7383
    %v7562 = vadd.f32 %v7561, %v7389
    %v7563 = vadd.f32 %v7562, %v7395
    %v7564 = vadd.f32 %v7563, %v7401
    %v7565 = vadd.f32 %v7564, %v7407
    %v7566 = vadd.f32 %v7565, %v7413
    %v7567 = vadd.f32 %v7566, %v7419
    %v7568 = vadd.f32 %v7567, %v7425
    %v7569 = vadd.f32 %v7568, %v7431
    %v7570 = vadd.f32 %v7569, %v7437
    %v7571 = vadd.f32 %v7570, %v7443
    %v7572 = vadd.f32 %v7571, %v7449
    %v7573 = vadd.f32 %v7572, %v7455
    %v7574 = vadd.f32 %v7573, %v7461
    %v7575 = vadd.f32 %v7574, %v7467
    %v7576 = vadd.f32 %v7575, %v7473
    %v7577 = vadd.f32 %v7576, %v7479
    %v7578 = vadd.f32 %v7577, %v7485
    %v7579 = vadd.f32 %v7578, %v7491
    %v7580 = vadd.f32 %v7579, %v7497
    %v7581 = vadd.f32 %v7580, %v7503
    %v7582 = vadd.f32 %v7581, %v7509
    %v7583 = vadd.f32 %v7582, %v7515
    %v7584 = vrot.slane %v7583, 4
    %v7585 = vadd.f32 %v7583, %v7584
    %v7586 = vrot.slane %v7585, 2
    %v7587 = vadd.f32 %v7585, %v7586
    %v7588 = vrot.slane %v7587, 1
    %v7589 = vadd.f32 %v7587, %v7588
    %v7590 = vadd.f32 %v7342, %v7348
    %v7591 = vadd.f32 %v7590, %v7354
    %v7592 = vadd.f32 %v7591, %v7360
    %v7593 = vadd.f32 %v7592, %v7366
    %v7594 = vadd.f32 %v7593, %v7372
    %v7595 = vadd.f32 %v7594, %v7378
    %v7596 = vadd.f32 %v7595, %v7384
    %v7597 = vadd.f32 %v7596, %v7390
    %v7598 = vadd.f32 %v7597, %v7396
    %v7599 = vadd.f32 %v7598, %v7402
    %v7600 = vadd.f32 %v7599, %v7408
    %v7601 = vadd.f32 %v7600, %v7414
    %v7602 = vadd.f32 %v7601, %v7420
    %v7603 = vadd.f32 %v7602, %v7426
    %v7604 = vadd.f32 %v7603, %v7432
    %v7605 = vadd.f32 %v7604, %v7438
    %v7606 = vadd.f32 %v7605, %v7444
    %v7607 = vadd.f32 %v7606, %v7450
    %v7608 = vadd.f32 %v7607, %v7456
    %v7609 = vadd.f32 %v7608, %v7462
    %v7610 = vadd.f32 %v7609, %v7468
    %v7611 = vadd.f32 %v7610, %v7474
    %v7612 = vadd.f32 %v7611, %v7480
    %v7613 = vadd.f32 %v7612, %v7486
    %v7614 = vadd.f32 %v7613, %v7492
    %v7615 = vadd.f32 %v7614, %v7498
    %v7616 = vadd.f32 %v7615, %v7504
    %v7617 = vadd.f32 %v7616, %v7510
    %v7618 = vadd.f32 %v7617, %v7516
    %v7619 = vrot.slane %v7618, 4
    %v7620 = vadd.f32 %v7618, %v7619
    %v7621 = vrot.slane %v7620, 2
    %v7622 = vadd.f32 %v7620, %v7621
    %v7623 = vrot.slane %v7622, 1
    %v7624 = vadd.f32 %v7622, %v7623
    %v7625 = vadd.f32 %v7343, %v7349
    %v7626 = vadd.f32 %v7625, %v7355
    %v7627 = vadd.f32 %v7626, %v7361
    %v7628 = vadd.f32 %v7627, %v7367
    %v7629 = vadd.f32 %v7628, %v7373
    %v7630 = vadd.f32 %v7629, %v7379
    %v7631 = vadd.f32 %v7630, %v7385
    %v7632 = vadd.f32 %v7631, %v7391
    %v7633 = vadd.f32 %v7632, %v7397
    %v7634 = vadd.f32 %v7633, %v7403
    %v7635 = vadd.f32 %v7634, %v7409
    %v7636 = vadd.f32 %v7635, %v7415
    %v7637 = vadd.f32 %v7636, %v7421
    %v7638 = vadd.f32 %v7637, %v7427
    %v7639 = vadd.f32 %v7638, %v7433
    %v7640 = vadd.f32 %v7639, %v7439
    %v7641 = vadd.f32 %v7640, %v7445
    %v7642 = vadd.f32 %v7641, %v7451
    %v7643 = vadd.f32 %v7642, %v7457
    %v7644 = vadd.f32 %v7643, %v7463
    %v7645 = vadd.f32 %v7644, %v7469
    %v7646 = vadd.f32 %v7645, %v7475
    %v7647 = vadd.f32 %v7646, %v7481
    %v7648 = vadd.f32 %v7647, %v7487
    %v7649 = vadd.f32 %v7648, %v7493
    %v7650 = vadd.f32 %v7649, %v7499
    %v7651 = vadd.f32 %v7650, %v7505
    %v7652 = vadd.f32 %v7651, %v7511
    %v7653 = vadd.f32 %v7652, %v7517
    %v7654 = vrot.slane %v7653, 4
    %v7655 = vadd.f32 %v7653, %v7654
    %v7656 = vrot.slane %v7655, 2
    %v7657 = vadd.f32 %v7655, %v7656
    %v7658 = vrot.slane %v7657, 1
    %v7659 = vadd.f32 %v7657, %v7658
    %v7660 = vadd.f32 %v7344, %v7350
    %v7661 = vadd.f32 %v7660, %v7356
    %v7662 = vadd.f32 %v7661, %v7362
    %v7663 = vadd.f32 %v7662, %v7368
    %v7664 = vadd.f32 %v7663, %v7374
    %v7665 = vadd.f32 %v7664, %v7380
    %v7666 = vadd.f32 %v7665, %v7386
    %v7667 = vadd.f32 %v7666, %v7392
    %v7668 = vadd.f32 %v7667, %v7398
    %v7669 = vadd.f32 %v7668, %v7404
    %v7670 = vadd.f32 %v7669, %v7410
    %v7671 = vadd.f32 %v7670, %v7416
    %v7672 = vadd.f32 %v7671, %v7422
    %v7673 = vadd.f32 %v7672, %v7428
    %v7674 = vadd.f32 %v7673, %v7434
    %v7675 = vadd.f32 %v7674, %v7440
    %v7676 = vadd.f32 %v7675, %v7446
    %v7677 = vadd.f32 %v7676, %v7452
    %v7678 = vadd.f32 %v7677, %v7458
    %v7679 = vadd.f32 %v7678, %v7464
    %v7680 = vadd.f32 %v7679, %v7470
    %v7681 = vadd.f32 %v7680, %v7476
    %v7682 = vadd.f32 %v7681, %v7482
    %v7683 = vadd.f32 %v7682, %v7488
    %v7684 = vadd.f32 %v7683, %v7494
    %v7685 = vadd.f32 %v7684, %v7500
    %v7686 = vadd.f32 %v7685, %v7506
    %v7687 = vadd.f32 %v7686, %v7512
    %v7688 = vadd.f32 %v7687, %v7518
    %v7689 = vrot.slane %v7688, 4
    %v7690 = vadd.f32 %v7688, %v7689
    %v7691 = vrot.slane %v7690, 2
    %v7692 = vadd.f32 %v7690, %v7691
    %v7693 = vrot.slane %v7692, 1
    %v7694 = vadd.f32 %v7692, %v7693
    %v7695 = vadd.f32 %v7345, %v7351
    %v7696 = vadd.f32 %v7695, %v7357
    %v7697 = vadd.f32 %v7696, %v7363
    %v7698 = vadd.f32 %v7697, %v7369
    %v7699 = vadd.f32 %v7698, %v7375
    %v7700 = vadd.f32 %v7699, %v7381
    %v7701 = vadd.f32 %v7700, %v7387
    %v7702 = vadd.f32 %v7701, %v7393
    %v7703 = vadd.f32 %v7702, %v7399
    %v7704 = vadd.f32 %v7703, %v7405
    %v7705 = vadd.f32 %v7704, %v7411
    %v7706 = vadd.f32 %v7705, %v7417
    %v7707 = vadd.f32 %v7706, %v7423
    %v7708 = vadd.f32 %v7707, %v7429
    %v7709 = vadd.f32 %v7708, %v7435
    %v7710 = vadd.f32 %v7709, %v7441
    %v7711 = vadd.f32 %v7710, %v7447
    %v7712 = vadd.f32 %v7711, %v7453
    %v7713 = vadd.f32 %v7712, %v7459
    %v7714 = vadd.f32 %v7713, %v7465
    %v7715 = vadd.f32 %v7714, %v7471
    %v7716 = vadd.f32 %v7715, %v7477
    %v7717 = vadd.f32 %v7716, %v7483
    %v7718 = vadd.f32 %v7717, %v7489
    %v7719 = vadd.f32 %v7718, %v7495
    %v7720 = vadd.f32 %v7719, %v7501
    %v7721 = vadd.f32 %v7720, %v7507
    %v7722 = vadd.f32 %v7721, %v7513
    %v7723 = vadd.f32 %v7722, %v7519
    %v7724 = vrot.slane %v7723, 4
    %v7725 = vadd.f32 %v7723, %v7724
    %v7726 = vrot.slane %v7725, 2
    %v7727 = vadd.f32 %v7725, %v7726
    %v7728 = vrot.slane %v7727, 1
    %v7729 = vadd.f32 %v7727, %v7728
    %v7730 = vadd.f32 %v7554, 0.0
    %v7731 = vadd.f32 %v7589, 0.0
    %v7732 = vadd.f32 %v7624, 0.0
    %v7733 = vadd.f32 %v7659, 0.0
    %v7734 = vadd.f32 %v7694, 0.0
    %v7735 = vadd.f32 %v7729, 0.0
    %v7736 = vld [vmem:[%s0 + $0x3c0] sm:$0xff]
    %v7737 = vld [vmem:[%s0 + $0x3c8] sm:$0xff]
    %v7738 = vld [vmem:[%s0 + $0x3d0] sm:$0xff]
    %v7739 = vld [vmem:[%s0 + $0x3d8] sm:$0xff]
    %v7740 = vld [vmem:[%s0 + $0x3e0] sm:$0xff]
    %v7741 = vld [vmem:[%s0 + $0x3e8] sm:$0xff]
    %v7742 = vld [vmem:[%s0 + $0x3f0] sm:$0xff]
    %v7743 = vld [vmem:[%s0 + $0x3f8] sm:$0xff]
    %v7744 = vld [vmem:[%s0 + $0x400] sm:$0xff]
    %v7745 = vld [vmem:[%s0 + $0x408] sm:$0xff]
    %v7746 = vld [vmem:[%s0 + $0x410] sm:$0xff]
    %v7747 = vld [vmem:[%s0 + $0x418] sm:$0xff]
    %v7748 = vld [vmem:[%s0 + $0x420] sm:$0xff]
    %v7749 = vld [vmem:[%s0 + $0x428] sm:$0xff]
    %v7750 = vld [vmem:[%s0 + $0x430] sm:$0xff]
    %v7751 = vld [vmem:[%s0 + $0x438] sm:$0xff]
    %v7752 = vld [vmem:[%s0 + $0x440] sm:$0xff]
    %v7753 = vld [vmem:[%s0 + $0x448] sm:$0xff]
    %v7754 = vld [vmem:[%s0 + $0x450] sm:$0xff]
    %v7755 = vld [vmem:[%s0 + $0x458] sm:$0xff]
    %v7756 = vld [vmem:[%s0 + $0x460] sm:$0xff]
    %v7757 = vld [vmem:[%s0 + $0x468] sm:$0xff]
    %v7758 = vld [vmem:[%s0 + $0x470] sm:$0xff]
    %v7759 = vld [vmem:[%s0 + $0x478] sm:$0xff]
    %v7760 = vld [vmem:[%s0 + $0x480] sm:$0xff]
    %v7761 = vld [vmem:[%s0 + $0x488] sm:$0xff]
    %v7762 = vld [vmem:[%s0 + $0x490] sm:$0xff]
    %v7763 = vld [vmem:[%s0 + $0x498] sm:$0xff]
    %v7764 = vld [vmem:[%s0 + $0x4a0] sm:$0xff]
    %v7765 = vld [vmem:[%s0 + $0x4a8] sm:$0xff]
    %7767 = vset.pattern.permute.xlu0 0
    %7768 = vperm.xlu0 %7767, %v7736
    %v7769 = vpop.permute.xlu0 %7768
    %7772 = vset.pattern.permute.xlu0 0
    %7773 = vperm.xlu0 %7772, %v7737
    %v7774 = vpop.permute.xlu0 %7773
    %7777 = vset.pattern.permute.xlu0 0
    %7778 = vperm.xlu0 %7777, %v7738
    %v7779 = vpop.permute.xlu0 %7778
    %7782 = vset.pattern.permute.xlu0 0
    %7783 = vperm.xlu0 %7782, %v7739
    %v7784 = vpop.permute.xlu0 %7783
    %7787 = vset.pattern.permute.xlu0 0
    %7788 = vperm.xlu0 %7787, %v7740
    %v7789 = vpop.permute.xlu0 %7788
    %7792 = vset.pattern.permute.xlu0 0
    %7793 = vperm.xlu0 %7792, %v7741
    %v7794 = vpop.permute.xlu0 %7793
    %7797 = vset.pattern.permute.xlu0 0
    %7798 = vperm.xlu0 %7797, %v7742
    %v7799 = vpop.permute.xlu0 %7798
    %7802 = vset.pattern.permute.xlu0 0
    %7803 = vperm.xlu0 %7802, %v7743
    %v7804 = vpop.permute.xlu0 %7803
    %7807 = vset.pattern.permute.xlu0 0
    %7808 = vperm.xlu0 %7807, %v7744
    %v7809 = vpop.permute.xlu0 %7808
    %7812 = vset.pattern.permute.xlu0 0
    %7813 = vperm.xlu0 %7812, %v7745
    %v7814 = vpop.permute.xlu0 %7813
    %7817 = vset.pattern.permute.xlu0 0
    %7818 = vperm.xlu0 %7817, %v7746
    %v7819 = vpop.permute.xlu0 %7818
    %7822 = vset.pattern.permute.xlu0 0
    %7823 = vperm.xlu0 %7822, %v7747
    %v7824 = vpop.permute.xlu0 %7823
    %7827 = vset.pattern.permute.xlu0 0
    %7828 = vperm.xlu0 %7827, %v7748
    %v7829 = vpop.permute.xlu0 %7828
    %7832 = vset.pattern.permute.xlu0 0
    %7833 = vperm.xlu0 %7832, %v7749
    %v7834 = vpop.permute.xlu0 %7833
    %7837 = vset.pattern.permute.xlu0 0
    %7838 = vperm.xlu0 %7837, %v7750
    %v7839 = vpop.permute.xlu0 %7838
    %7842 = vset.pattern.permute.xlu0 0
    %7843 = vperm.xlu0 %7842, %v7751
    %v7844 = vpop.permute.xlu0 %7843
    %7847 = vset.pattern.permute.xlu0 0
    %7848 = vperm.xlu0 %7847, %v7752
    %v7849 = vpop.permute.xlu0 %7848
    %7852 = vset.pattern.permute.xlu0 0
    %7853 = vperm.xlu0 %7852, %v7753
    %v7854 = vpop.permute.xlu0 %7853
    %7857 = vset.pattern.permute.xlu0 0
    %7858 = vperm.xlu0 %7857, %v7754
    %v7859 = vpop.permute.xlu0 %7858
    %7862 = vset.pattern.permute.xlu0 0
    %7863 = vperm.xlu0 %7862, %v7755
    %v7864 = vpop.permute.xlu0 %7863
    %7867 = vset.pattern.permute.xlu0 0
    %7868 = vperm.xlu0 %7867, %v7756
    %v7869 = vpop.permute.xlu0 %7868
    %7872 = vset.pattern.permute.xlu0 0
    %7873 = vperm.xlu0 %7872, %v7757
    %v7874 = vpop.permute.xlu0 %7873
    %7877 = vset.pattern.permute.xlu0 0
    %7878 = vperm.xlu0 %7877, %v7758
    %v7879 = vpop.permute.xlu0 %7878
    %7882 = vset.pattern.permute.xlu0 0
    %7883 = vperm.xlu0 %7882, %v7759
    %v7884 = vpop.permute.xlu0 %7883
    %7887 = vset.pattern.permute.xlu0 0
    %7888 = vperm.xlu0 %7887, %v7760
    %v7889 = vpop.permute.xlu0 %7888
    %7892 = vset.pattern.permute.xlu0 0
    %7893 = vperm.xlu0 %7892, %v7761
    %v7894 = vpop.permute.xlu0 %7893
    %7897 = vset.pattern.permute.xlu0 0
    %7898 = vperm.xlu0 %7897, %v7762
    %v7899 = vpop.permute.xlu0 %7898
    %7902 = vset.pattern.permute.xlu0 0
    %7903 = vperm.xlu0 %7902, %v7763
    %v7904 = vpop.permute.xlu0 %7903
    %7907 = vset.pattern.permute.xlu0 0
    %7908 = vperm.xlu0 %7907, %v7764
    %v7909 = vpop.permute.xlu0 %7908
    %7912 = vset.pattern.permute.xlu0 0
    %7913 = vperm.xlu0 %7912, %v7765
    %v7914 = vpop.permute.xlu0 %7913
    %v7916 = vmul.f32 %v7769, %v212
    %v7917 = vmul.f32 %v7769, %v216
    %v7918 = vmul.f32 %v7769, %v220
    %v7919 = vmul.f32 %v7769, %v224
    %v7920 = vmul.f32 %v7769, %v228
    %v7921 = vmul.f32 %v7769, %v232
    %v7922 = vmul.f32 %v7774, %v212
    %v7923 = vmul.f32 %v7774, %v216
    %v7924 = vmul.f32 %v7774, %v220
    %v7925 = vmul.f32 %v7774, %v224
    %v7926 = vmul.f32 %v7774, %v228
    %v7927 = vmul.f32 %v7774, %v232
    %v7928 = vmul.f32 %v7779, %v212
    %v7929 = vmul.f32 %v7779, %v216
    %v7930 = vmul.f32 %v7779, %v220
    %v7931 = vmul.f32 %v7779, %v224
    %v7932 = vmul.f32 %v7779, %v228
    %v7933 = vmul.f32 %v7779, %v232
    %v7934 = vmul.f32 %v7784, %v212
    %v7935 = vmul.f32 %v7784, %v216
    %v7936 = vmul.f32 %v7784, %v220
    %v7937 = vmul.f32 %v7784, %v224
    %v7938 = vmul.f32 %v7784, %v228
    %v7939 = vmul.f32 %v7784, %v232
    %v7940 = vmul.f32 %v7789, %v212
    %v7941 = vmul.f32 %v7789, %v216
    %v7942 = vmul.f32 %v7789, %v220
    %v7943 = vmul.f32 %v7789, %v224
    %v7944 = vmul.f32 %v7789, %v228
    %v7945 = vmul.f32 %v7789, %v232
    %v7946 = vmul.f32 %v7794, %v212
    %v7947 = vmul.f32 %v7794, %v216
    %v7948 = vmul.f32 %v7794, %v220
    %v7949 = vmul.f32 %v7794, %v224
    %v7950 = vmul.f32 %v7794, %v228
    %v7951 = vmul.f32 %v7794, %v232
    %v7952 = vmul.f32 %v7799, %v212
    %v7953 = vmul.f32 %v7799, %v216
    %v7954 = vmul.f32 %v7799, %v220
    %v7955 = vmul.f32 %v7799, %v224
    %v7956 = vmul.f32 %v7799, %v228
    %v7957 = vmul.f32 %v7799, %v232
    %v7958 = vmul.f32 %v7804, %v212
    %v7959 = vmul.f32 %v7804, %v216
    %v7960 = vmul.f32 %v7804, %v220
    %v7961 = vmul.f32 %v7804, %v224
    %v7962 = vmul.f32 %v7804, %v228
    %v7963 = vmul.f32 %v7804, %v232
    %v7964 = vmul.f32 %v7809, %v212
    %v7965 = vmul.f32 %v7809, %v216
    %v7966 = vmul.f32 %v7809, %v220
    %v7967 = vmul.f32 %v7809, %v224
    %v7968 = vmul.f32 %v7809, %v228
    %v7969 = vmul.f32 %v7809, %v232
    %v7970 = vmul.f32 %v7814, %v212
    %v7971 = vmul.f32 %v7814, %v216
    %v7972 = vmul.f32 %v7814, %v220
    %v7973 = vmul.f32 %v7814, %v224
    %v7974 = vmul.f32 %v7814, %v228
    %v7975 = vmul.f32 %v7814, %v232
    %v7976 = vmul.f32 %v7819, %v212
    %v7977 = vmul.f32 %v7819, %v216
    %v7978 = vmul.f32 %v7819, %v220
    %v7979 = vmul.f32 %v7819, %v224
    %v7980 = vmul.f32 %v7819, %v228
    %v7981 = vmul.f32 %v7819, %v232
    %v7982 = vmul.f32 %v7824, %v212
    %v7983 = vmul.f32 %v7824, %v216
    %v7984 = vmul.f32 %v7824, %v220
    %v7985 = vmul.f32 %v7824, %v224
    %v7986 = vmul.f32 %v7824, %v228
    %v7987 = vmul.f32 %v7824, %v232
    %v7988 = vmul.f32 %v7829, %v212
    %v7989 = vmul.f32 %v7829, %v216
    %v7990 = vmul.f32 %v7829, %v220
    %v7991 = vmul.f32 %v7829, %v224
    %v7992 = vmul.f32 %v7829, %v228
    %v7993 = vmul.f32 %v7829, %v232
    %v7994 = vmul.f32 %v7834, %v212
    %v7995 = vmul.f32 %v7834, %v216
    %v7996 = vmul.f32 %v7834, %v220
    %v7997 = vmul.f32 %v7834, %v224
    %v7998 = vmul.f32 %v7834, %v228
    %v7999 = vmul.f32 %v7834, %v232
    %v8000 = vmul.f32 %v7839, %v212
    %v8001 = vmul.f32 %v7839, %v216
    %v8002 = vmul.f32 %v7839, %v220
    %v8003 = vmul.f32 %v7839, %v224
    %v8004 = vmul.f32 %v7839, %v228
    %v8005 = vmul.f32 %v7839, %v232
    %v8006 = vmul.f32 %v7844, %v212
    %v8007 = vmul.f32 %v7844, %v216
    %v8008 = vmul.f32 %v7844, %v220
    %v8009 = vmul.f32 %v7844, %v224
    %v8010 = vmul.f32 %v7844, %v228
    %v8011 = vmul.f32 %v7844, %v232
    %v8012 = vmul.f32 %v7849, %v212
    %v8013 = vmul.f32 %v7849, %v216
    %v8014 = vmul.f32 %v7849, %v220
    %v8015 = vmul.f32 %v7849, %v224
    %v8016 = vmul.f32 %v7849, %v228
    %v8017 = vmul.f32 %v7849, %v232
    %v8018 = vmul.f32 %v7854, %v212
    %v8019 = vmul.f32 %v7854, %v216
    %v8020 = vmul.f32 %v7854, %v220
    %v8021 = vmul.f32 %v7854, %v224
    %v8022 = vmul.f32 %v7854, %v228
    %v8023 = vmul.f32 %v7854, %v232
    %v8024 = vmul.f32 %v7859, %v212
    %v8025 = vmul.f32 %v7859, %v216
    %v8026 = vmul.f32 %v7859, %v220
    %v8027 = vmul.f32 %v7859, %v224
    %v8028 = vmul.f32 %v7859, %v228
    %v8029 = vmul.f32 %v7859, %v232
    %v8030 = vmul.f32 %v7864, %v212
    %v8031 = vmul.f32 %v7864, %v216
    %v8032 = vmul.f32 %v7864, %v220
    %v8033 = vmul.f32 %v7864, %v224
    %v8034 = vmul.f32 %v7864, %v228
    %v8035 = vmul.f32 %v7864, %v232
    %v8036 = vmul.f32 %v7869, %v212
    %v8037 = vmul.f32 %v7869, %v216
    %v8038 = vmul.f32 %v7869, %v220
    %v8039 = vmul.f32 %v7869, %v224
    %v8040 = vmul.f32 %v7869, %v228
    %v8041 = vmul.f32 %v7869, %v232
    %v8042 = vmul.f32 %v7874, %v212
    %v8043 = vmul.f32 %v7874, %v216
    %v8044 = vmul.f32 %v7874, %v220
    %v8045 = vmul.f32 %v7874, %v224
    %v8046 = vmul.f32 %v7874, %v228
    %v8047 = vmul.f32 %v7874, %v232
    %v8048 = vmul.f32 %v7879, %v212
    %v8049 = vmul.f32 %v7879, %v216
    %v8050 = vmul.f32 %v7879, %v220
    %v8051 = vmul.f32 %v7879, %v224
    %v8052 = vmul.f32 %v7879, %v228
    %v8053 = vmul.f32 %v7879, %v232
    %v8054 = vmul.f32 %v7884, %v212
    %v8055 = vmul.f32 %v7884, %v216
    %v8056 = vmul.f32 %v7884, %v220
    %v8057 = vmul.f32 %v7884, %v224
    %v8058 = vmul.f32 %v7884, %v228
    %v8059 = vmul.f32 %v7884, %v232
    %v8060 = vmul.f32 %v7889, %v212
    %v8061 = vmul.f32 %v7889, %v216
    %v8062 = vmul.f32 %v7889, %v220
    %v8063 = vmul.f32 %v7889, %v224
    %v8064 = vmul.f32 %v7889, %v228
    %v8065 = vmul.f32 %v7889, %v232
    %v8066 = vmul.f32 %v7894, %v212
    %v8067 = vmul.f32 %v7894, %v216
    %v8068 = vmul.f32 %v7894, %v220
    %v8069 = vmul.f32 %v7894, %v224
    %v8070 = vmul.f32 %v7894, %v228
    %v8071 = vmul.f32 %v7894, %v232
    %v8072 = vmul.f32 %v7899, %v212
    %v8073 = vmul.f32 %v7899, %v216
    %v8074 = vmul.f32 %v7899, %v220
    %v8075 = vmul.f32 %v7899, %v224
    %v8076 = vmul.f32 %v7899, %v228
    %v8077 = vmul.f32 %v7899, %v232
    %v8078 = vmul.f32 %v7904, %v212
    %v8079 = vmul.f32 %v7904, %v216
    %v8080 = vmul.f32 %v7904, %v220
    %v8081 = vmul.f32 %v7904, %v224
    %v8082 = vmul.f32 %v7904, %v228
    %v8083 = vmul.f32 %v7904, %v232
    %v8084 = vmul.f32 %v7909, %v212
    %v8085 = vmul.f32 %v7909, %v216
    %v8086 = vmul.f32 %v7909, %v220
    %v8087 = vmul.f32 %v7909, %v224
    %v8088 = vmul.f32 %v7909, %v228
    %v8089 = vmul.f32 %v7909, %v232
    %v8090 = vmul.f32 %v7914, %v212
    %v8091 = vmul.f32 %v7914, %v216
    %v8092 = vmul.f32 %v7914, %v220
    %v8093 = vmul.f32 %v7914, %v224
    %v8094 = vmul.f32 %v7914, %v228
    %v8095 = vmul.f32 %v7914, %v232
    %8096 = vset.pattern.permute.xlu0 1
    %8097 = vperm.xlu0 %8096, %v7736
    %v8098 = vpop.permute.xlu0 %8097
    %8100 = vset.pattern.permute.xlu0 1
    %8101 = vperm.xlu0 %8100, %v7737
    %v8102 = vpop.permute.xlu0 %8101
    %8104 = vset.pattern.permute.xlu0 1
    %8105 = vperm.xlu0 %8104, %v7738
    %v8106 = vpop.permute.xlu0 %8105
    %8108 = vset.pattern.permute.xlu0 1
    %8109 = vperm.xlu0 %8108, %v7739
    %v8110 = vpop.permute.xlu0 %8109
    %8112 = vset.pattern.permute.xlu0 1
    %8113 = vperm.xlu0 %8112, %v7740
    %v8114 = vpop.permute.xlu0 %8113
    %8116 = vset.pattern.permute.xlu0 1
    %8117 = vperm.xlu0 %8116, %v7741
    %v8118 = vpop.permute.xlu0 %8117
    %8120 = vset.pattern.permute.xlu0 1
    %8121 = vperm.xlu0 %8120, %v7742
    %v8122 = vpop.permute.xlu0 %8121
    %8124 = vset.pattern.permute.xlu0 1
    %8125 = vperm.xlu0 %8124, %v7743
    %v8126 = vpop.permute.xlu0 %8125
    %8128 = vset.pattern.permute.xlu0 1
    %8129 = vperm.xlu0 %8128, %v7744
    %v8130 = vpop.permute.xlu0 %8129
    %8132 = vset.pattern.permute.xlu0 1
    %8133 = vperm.xlu0 %8132, %v7745
    %v8134 = vpop.permute.xlu0 %8133
    %8136 = vset.pattern.permute.xlu0 1
    %8137 = vperm.xlu0 %8136, %v7746
    %v8138 = vpop.permute.xlu0 %8137
    %8140 = vset.pattern.permute.xlu0 1
    %8141 = vperm.xlu0 %8140, %v7747
    %v8142 = vpop.permute.xlu0 %8141
    %8144 = vset.pattern.permute.xlu0 1
    %8145 = vperm.xlu0 %8144, %v7748
    %v8146 = vpop.permute.xlu0 %8145
    %8148 = vset.pattern.permute.xlu0 1
    %8149 = vperm.xlu0 %8148, %v7749
    %v8150 = vpop.permute.xlu0 %8149
    %8152 = vset.pattern.permute.xlu0 1
    %8153 = vperm.xlu0 %8152, %v7750
    %v8154 = vpop.permute.xlu0 %8153
    %8156 = vset.pattern.permute.xlu0 1
    %8157 = vperm.xlu0 %8156, %v7751
    %v8158 = vpop.permute.xlu0 %8157
    %8160 = vset.pattern.permute.xlu0 1
    %8161 = vperm.xlu0 %8160, %v7752
    %v8162 = vpop.permute.xlu0 %8161
    %8164 = vset.pattern.permute.xlu0 1
    %8165 = vperm.xlu0 %8164, %v7753
    %v8166 = vpop.permute.xlu0 %8165
    %8168 = vset.pattern.permute.xlu0 1
    %8169 = vperm.xlu0 %8168, %v7754
    %v8170 = vpop.permute.xlu0 %8169
    %8172 = vset.pattern.permute.xlu0 1
    %8173 = vperm.xlu0 %8172, %v7755
    %v8174 = vpop.permute.xlu0 %8173
    %8176 = vset.pattern.permute.xlu0 1
    %8177 = vperm.xlu0 %8176, %v7756
    %v8178 = vpop.permute.xlu0 %8177
    %8180 = vset.pattern.permute.xlu0 1
    %8181 = vperm.xlu0 %8180, %v7757
    %v8182 = vpop.permute.xlu0 %8181
    %8184 = vset.pattern.permute.xlu0 1
    %8185 = vperm.xlu0 %8184, %v7758
    %v8186 = vpop.permute.xlu0 %8185
    %8188 = vset.pattern.permute.xlu0 1
    %8189 = vperm.xlu0 %8188, %v7759
    %v8190 = vpop.permute.xlu0 %8189
    %8192 = vset.pattern.permute.xlu0 1
    %8193 = vperm.xlu0 %8192, %v7760
    %v8194 = vpop.permute.xlu0 %8193
    %8196 = vset.pattern.permute.xlu0 1
    %8197 = vperm.xlu0 %8196, %v7761
    %v8198 = vpop.permute.xlu0 %8197
    %8200 = vset.pattern.permute.xlu0 1
    %8201 = vperm.xlu0 %8200, %v7762
    %v8202 = vpop.permute.xlu0 %8201
    %8204 = vset.pattern.permute.xlu0 1
    %8205 = vperm.xlu0 %8204, %v7763
    %v8206 = vpop.permute.xlu0 %8205
    %8208 = vset.pattern.permute.xlu0 1
    %8209 = vperm.xlu0 %8208, %v7764
    %v8210 = vpop.permute.xlu0 %8209
    %8212 = vset.pattern.permute.xlu0 1
    %8213 = vperm.xlu0 %8212, %v7765
    %v8214 = vpop.permute.xlu0 %8213
    %v8216 = vmul.f32 %v8098, %v543
    %v8217 = vmul.f32 %v8098, %v547
    %v8218 = vmul.f32 %v8098, %v551
    %v8219 = vmul.f32 %v8098, %v555
    %v8220 = vmul.f32 %v8098, %v559
    %v8221 = vmul.f32 %v8098, %v563
    %v8222 = vmul.f32 %v8102, %v543
    %v8223 = vmul.f32 %v8102, %v547
    %v8224 = vmul.f32 %v8102, %v551
    %v8225 = vmul.f32 %v8102, %v555
    %v8226 = vmul.f32 %v8102, %v559
    %v8227 = vmul.f32 %v8102, %v563
    %v8228 = vmul.f32 %v8106, %v543
    %v8229 = vmul.f32 %v8106, %v547
    %v8230 = vmul.f32 %v8106, %v551
    %v8231 = vmul.f32 %v8106, %v555
    %v8232 = vmul.f32 %v8106, %v559
    %v8233 = vmul.f32 %v8106, %v563
    %v8234 = vmul.f32 %v8110, %v543
    %v8235 = vmul.f32 %v8110, %v547
    %v8236 = vmul.f32 %v8110, %v551
    %v8237 = vmul.f32 %v8110, %v555
    %v8238 = vmul.f32 %v8110, %v559
    %v8239 = vmul.f32 %v8110, %v563
    %v8240 = vmul.f32 %v8114, %v543
    %v8241 = vmul.f32 %v8114, %v547
    %v8242 = vmul.f32 %v8114, %v551
    %v8243 = vmul.f32 %v8114, %v555
    %v8244 = vmul.f32 %v8114, %v559
    %v8245 = vmul.f32 %v8114, %v563
    %v8246 = vmul.f32 %v8118, %v543
    %v8247 = vmul.f32 %v8118, %v547
    %v8248 = vmul.f32 %v8118, %v551
    %v8249 = vmul.f32 %v8118, %v555
    %v8250 = vmul.f32 %v8118, %v559
    %v8251 = vmul.f32 %v8118, %v563
    %v8252 = vmul.f32 %v8122, %v543
    %v8253 = vmul.f32 %v8122, %v547
    %v8254 = vmul.f32 %v8122, %v551
    %v8255 = vmul.f32 %v8122, %v555
    %v8256 = vmul.f32 %v8122, %v559
    %v8257 = vmul.f32 %v8122, %v563
    %v8258 = vmul.f32 %v8126, %v543
    %v8259 = vmul.f32 %v8126, %v547
    %v8260 = vmul.f32 %v8126, %v551
    %v8261 = vmul.f32 %v8126, %v555
    %v8262 = vmul.f32 %v8126, %v559
    %v8263 = vmul.f32 %v8126, %v563
    %v8264 = vmul.f32 %v8130, %v543
    %v8265 = vmul.f32 %v8130, %v547
    %v8266 = vmul.f32 %v8130, %v551
    %v8267 = vmul.f32 %v8130, %v555
    %v8268 = vmul.f32 %v8130, %v559
    %v8269 = vmul.f32 %v8130, %v563
    %v8270 = vmul.f32 %v8134, %v543
    %v8271 = vmul.f32 %v8134, %v547
    %v8272 = vmul.f32 %v8134, %v551
    %v8273 = vmul.f32 %v8134, %v555
    %v8274 = vmul.f32 %v8134, %v559
    %v8275 = vmul.f32 %v8134, %v563
    %v8276 = vmul.f32 %v8138, %v543
    %v8277 = vmul.f32 %v8138, %v547
    %v8278 = vmul.f32 %v8138, %v551
    %v8279 = vmul.f32 %v8138, %v555
    %v8280 = vmul.f32 %v8138, %v559
    %v8281 = vmul.f32 %v8138, %v563
    %v8282 = vmul.f32 %v8142, %v543
    %v8283 = vmul.f32 %v8142, %v547
    %v8284 = vmul.f32 %v8142, %v551
    %v8285 = vmul.f32 %v8142, %v555
    %v8286 = vmul.f32 %v8142, %v559
    %v8287 = vmul.f32 %v8142, %v563
    %v8288 = vmul.f32 %v8146, %v543
    %v8289 = vmul.f32 %v8146, %v547
    %v8290 = vmul.f32 %v8146, %v551
    %v8291 = vmul.f32 %v8146, %v555
    %v8292 = vmul.f32 %v8146, %v559
    %v8293 = vmul.f32 %v8146, %v563
    %v8294 = vmul.f32 %v8150, %v543
    %v8295 = vmul.f32 %v8150, %v547
    %v8296 = vmul.f32 %v8150, %v551
    %v8297 = vmul.f32 %v8150, %v555
    %v8298 = vmul.f32 %v8150, %v559
    %v8299 = vmul.f32 %v8150, %v563
    %v8300 = vmul.f32 %v8154, %v543
    %v8301 = vmul.f32 %v8154, %v547
    %v8302 = vmul.f32 %v8154, %v551
    %v8303 = vmul.f32 %v8154, %v555
    %v8304 = vmul.f32 %v8154, %v559
    %v8305 = vmul.f32 %v8154, %v563
    %v8306 = vmul.f32 %v8158, %v543
    %v8307 = vmul.f32 %v8158, %v547
    %v8308 = vmul.f32 %v8158, %v551
    %v8309 = vmul.f32 %v8158, %v555
    %v8310 = vmul.f32 %v8158, %v559
    %v8311 = vmul.f32 %v8158, %v563
    %v8312 = vmul.f32 %v8162, %v543
    %v8313 = vmul.f32 %v8162, %v547
    %v8314 = vmul.f32 %v8162, %v551
    %v8315 = vmul.f32 %v8162, %v555
    %v8316 = vmul.f32 %v8162, %v559
    %v8317 = vmul.f32 %v8162, %v563
    %v8318 = vmul.f32 %v8166, %v543
    %v8319 = vmul.f32 %v8166, %v547
    %v8320 = vmul.f32 %v8166, %v551
    %v8321 = vmul.f32 %v8166, %v555
    %v8322 = vmul.f32 %v8166, %v559
    %v8323 = vmul.f32 %v8166, %v563
    %v8324 = vmul.f32 %v8170, %v543
    %v8325 = vmul.f32 %v8170, %v547
    %v8326 = vmul.f32 %v8170, %v551
    %v8327 = vmul.f32 %v8170, %v555
    %v8328 = vmul.f32 %v8170, %v559
    %v8329 = vmul.f32 %v8170, %v563
    %v8330 = vmul.f32 %v8174, %v543
    %v8331 = vmul.f32 %v8174, %v547
    %v8332 = vmul.f32 %v8174, %v551
    %v8333 = vmul.f32 %v8174, %v555
    %v8334 = vmul.f32 %v8174, %v559
    %v8335 = vmul.f32 %v8174, %v563
    %v8336 = vmul.f32 %v8178, %v543
    %v8337 = vmul.f32 %v8178, %v547
    %v8338 = vmul.f32 %v8178, %v551
    %v8339 = vmul.f32 %v8178, %v555
    %v8340 = vmul.f32 %v8178, %v559
    %v8341 = vmul.f32 %v8178, %v563
    %v8342 = vmul.f32 %v8182, %v543
    %v8343 = vmul.f32 %v8182, %v547
    %v8344 = vmul.f32 %v8182, %v551
    %v8345 = vmul.f32 %v8182, %v555
    %v8346 = vmul.f32 %v8182, %v559
    %v8347 = vmul.f32 %v8182, %v563
    %v8348 = vmul.f32 %v8186, %v543
    %v8349 = vmul.f32 %v8186, %v547
    %v8350 = vmul.f32 %v8186, %v551
    %v8351 = vmul.f32 %v8186, %v555
    %v8352 = vmul.f32 %v8186, %v559
    %v8353 = vmul.f32 %v8186, %v563
    %v8354 = vmul.f32 %v8190, %v543
    %v8355 = vmul.f32 %v8190, %v547
    %v8356 = vmul.f32 %v8190, %v551
    %v8357 = vmul.f32 %v8190, %v555
    %v8358 = vmul.f32 %v8190, %v559
    %v8359 = vmul.f32 %v8190, %v563
    %v8360 = vmul.f32 %v8194, %v543
    %v8361 = vmul.f32 %v8194, %v547
    %v8362 = vmul.f32 %v8194, %v551
    %v8363 = vmul.f32 %v8194, %v555
    %v8364 = vmul.f32 %v8194, %v559
    %v8365 = vmul.f32 %v8194, %v563
    %v8366 = vmul.f32 %v8198, %v543
    %v8367 = vmul.f32 %v8198, %v547
    %v8368 = vmul.f32 %v8198, %v551
    %v8369 = vmul.f32 %v8198, %v555
    %v8370 = vmul.f32 %v8198, %v559
    %v8371 = vmul.f32 %v8198, %v563
    %v8372 = vmul.f32 %v8202, %v543
    %v8373 = vmul.f32 %v8202, %v547
    %v8374 = vmul.f32 %v8202, %v551
    %v8375 = vmul.f32 %v8202, %v555
    %v8376 = vmul.f32 %v8202, %v559
    %v8377 = vmul.f32 %v8202, %v563
    %v8378 = vmul.f32 %v8206, %v543
    %v8379 = vmul.f32 %v8206, %v547
    %v8380 = vmul.f32 %v8206, %v551
    %v8381 = vmul.f32 %v8206, %v555
    %v8382 = vmul.f32 %v8206, %v559
    %v8383 = vmul.f32 %v8206, %v563
    %v8384 = vmul.f32 %v8210, %v543
    %v8385 = vmul.f32 %v8210, %v547
    %v8386 = vmul.f32 %v8210, %v551
    %v8387 = vmul.f32 %v8210, %v555
    %v8388 = vmul.f32 %v8210, %v559
    %v8389 = vmul.f32 %v8210, %v563
    %v8390 = vmul.f32 %v8214, %v543
    %v8391 = vmul.f32 %v8214, %v547
    %v8392 = vmul.f32 %v8214, %v551
    %v8393 = vmul.f32 %v8214, %v555
    %v8394 = vmul.f32 %v8214, %v559
    %v8395 = vmul.f32 %v8214, %v563
    %v8396 = vadd.f32 %v7916, %v8216
    %v8397 = vadd.f32 %v7917, %v8217
    %v8398 = vadd.f32 %v7918, %v8218
    %v8399 = vadd.f32 %v7919, %v8219
    %v8400 = vadd.f32 %v7920, %v8220
    %v8401 = vadd.f32 %v7921, %v8221
    %v8402 = vadd.f32 %v7922, %v8222
    %v8403 = vadd.f32 %v7923, %v8223
    %v8404 = vadd.f32 %v7924, %v8224
    %v8405 = vadd.f32 %v7925, %v8225
    %v8406 = vadd.f32 %v7926, %v8226
    %v8407 = vadd.f32 %v7927, %v8227
    %v8408 = vadd.f32 %v7928, %v8228
    %v8409 = vadd.f32 %v7929, %v8229
    %v8410 = vadd.f32 %v7930, %v8230
    %v8411 = vadd.f32 %v7931, %v8231
    %v8412 = vadd.f32 %v7932, %v8232
    %v8413 = vadd.f32 %v7933, %v8233
    %v8414 = vadd.f32 %v7934, %v8234
    %v8415 = vadd.f32 %v7935, %v8235
    %v8416 = vadd.f32 %v7936, %v8236
    %v8417 = vadd.f32 %v7937, %v8237
    %v8418 = vadd.f32 %v7938, %v8238
    %v8419 = vadd.f32 %v7939, %v8239
    %v8420 = vadd.f32 %v7940, %v8240
    %v8421 = vadd.f32 %v7941, %v8241
    %v8422 = vadd.f32 %v7942, %v8242
    %v8423 = vadd.f32 %v7943, %v8243
    %v8424 = vadd.f32 %v7944, %v8244
    %v8425 = vadd.f32 %v7945, %v8245
    %v8426 = vadd.f32 %v7946, %v8246
    %v8427 = vadd.f32 %v7947, %v8247
    %v8428 = vadd.f32 %v7948, %v8248
    %v8429 = vadd.f32 %v7949, %v8249
    %v8430 = vadd.f32 %v7950, %v8250
    %v8431 = vadd.f32 %v7951, %v8251
    %v8432 = vadd.f32 %v7952, %v8252
    %v8433 = vadd.f32 %v7953, %v8253
    %v8434 = vadd.f32 %v7954, %v8254
    %v8435 = vadd.f32 %v7955, %v8255
    %v8436 = vadd.f32 %v7956, %v8256
    %v8437 = vadd.f32 %v7957, %v8257
    %v8438 = vadd.f32 %v7958, %v8258
    %v8439 = vadd.f32 %v7959, %v8259
    %v8440 = vadd.f32 %v7960, %v8260
    %v8441 = vadd.f32 %v7961, %v8261
    %v8442 = vadd.f32 %v7962, %v8262
    %v8443 = vadd.f32 %v7963, %v8263
    %v8444 = vadd.f32 %v7964, %v8264
    %v8445 = vadd.f32 %v7965, %v8265
    %v8446 = vadd.f32 %v7966, %v8266
    %v8447 = vadd.f32 %v7967, %v8267
    %v8448 = vadd.f32 %v7968, %v8268
    %v8449 = vadd.f32 %v7969, %v8269
    %v8450 = vadd.f32 %v7970, %v8270
    %v8451 = vadd.f32 %v7971, %v8271
    %v8452 = vadd.f32 %v7972, %v8272
    %v8453 = vadd.f32 %v7973, %v8273
    %v8454 = vadd.f32 %v7974, %v8274
    %v8455 = vadd.f32 %v7975, %v8275
    %v8456 = vadd.f32 %v7976, %v8276
    %v8457 = vadd.f32 %v7977, %v8277
    %v8458 = vadd.f32 %v7978, %v8278
    %v8459 = vadd.f32 %v7979, %v8279
    %v8460 = vadd.f32 %v7980, %v8280
    %v8461 = vadd.f32 %v7981, %v8281
    %v8462 = vadd.f32 %v7982, %v8282
    %v8463 = vadd.f32 %v7983, %v8283
    %v8464 = vadd.f32 %v7984, %v8284
    %v8465 = vadd.f32 %v7985, %v8285
    %v8466 = vadd.f32 %v7986, %v8286
    %v8467 = vadd.f32 %v7987, %v8287
    %v8468 = vadd.f32 %v7988, %v8288
    %v8469 = vadd.f32 %v7989, %v8289
    %v8470 = vadd.f32 %v7990, %v8290
    %v8471 = vadd.f32 %v7991, %v8291
    %v8472 = vadd.f32 %v7992, %v8292
    %v8473 = vadd.f32 %v7993, %v8293
    %v8474 = vadd.f32 %v7994, %v8294
    %v8475 = vadd.f32 %v7995, %v8295
    %v8476 = vadd.f32 %v7996, %v8296
    %v8477 = vadd.f32 %v7997, %v8297
    %v8478 = vadd.f32 %v7998, %v8298
    %v8479 = vadd.f32 %v7999, %v8299
    %v8480 = vadd.f32 %v8000, %v8300
    %v8481 = vadd.f32 %v8001, %v8301
    %v8482 = vadd.f32 %v8002, %v8302
    %v8483 = vadd.f32 %v8003, %v8303
    %v8484 = vadd.f32 %v8004, %v8304
    %v8485 = vadd.f32 %v8005, %v8305
    %v8486 = vadd.f32 %v8006, %v8306
    %v8487 = vadd.f32 %v8007, %v8307
    %v8488 = vadd.f32 %v8008, %v8308
    %v8489 = vadd.f32 %v8009, %v8309
    %v8490 = vadd.f32 %v8010, %v8310
    %v8491 = vadd.f32 %v8011, %v8311
    %v8492 = vadd.f32 %v8012, %v8312
    %v8493 = vadd.f32 %v8013, %v8313
    %v8494 = vadd.f32 %v8014, %v8314
    %v8495 = vadd.f32 %v8015, %v8315
    %v8496 = vadd.f32 %v8016, %v8316
    %v8497 = vadd.f32 %v8017, %v8317
    %v8498 = vadd.f32 %v8018, %v8318
    %v8499 = vadd.f32 %v8019, %v8319
    %v8500 = vadd.f32 %v8020, %v8320
    %v8501 = vadd.f32 %v8021, %v8321
    %v8502 = vadd.f32 %v8022, %v8322
    %v8503 = vadd.f32 %v8023, %v8323
    %v8504 = vadd.f32 %v8024, %v8324
    %v8505 = vadd.f32 %v8025, %v8325
    %v8506 = vadd.f32 %v8026, %v8326
    %v8507 = vadd.f32 %v8027, %v8327
    %v8508 = vadd.f32 %v8028, %v8328
    %v8509 = vadd.f32 %v8029, %v8329
    %v8510 = vadd.f32 %v8030, %v8330
    %v8511 = vadd.f32 %v8031, %v8331
    %v8512 = vadd.f32 %v8032, %v8332
    %v8513 = vadd.f32 %v8033, %v8333
    %v8514 = vadd.f32 %v8034, %v8334
    %v8515 = vadd.f32 %v8035, %v8335
    %v8516 = vadd.f32 %v8036, %v8336
    %v8517 = vadd.f32 %v8037, %v8337
    %v8518 = vadd.f32 %v8038, %v8338
    %v8519 = vadd.f32 %v8039, %v8339
    %v8520 = vadd.f32 %v8040, %v8340
    %v8521 = vadd.f32 %v8041, %v8341
    %v8522 = vadd.f32 %v8042, %v8342
    %v8523 = vadd.f32 %v8043, %v8343
    %v8524 = vadd.f32 %v8044, %v8344
    %v8525 = vadd.f32 %v8045, %v8345
    %v8526 = vadd.f32 %v8046, %v8346
    %v8527 = vadd.f32 %v8047, %v8347
    %v8528 = vadd.f32 %v8048, %v8348
    %v8529 = vadd.f32 %v8049, %v8349
    %v8530 = vadd.f32 %v8050, %v8350
    %v8531 = vadd.f32 %v8051, %v8351
    %v8532 = vadd.f32 %v8052, %v8352
    %v8533 = vadd.f32 %v8053, %v8353
    %v8534 = vadd.f32 %v8054, %v8354
    %v8535 = vadd.f32 %v8055, %v8355
    %v8536 = vadd.f32 %v8056, %v8356
    %v8537 = vadd.f32 %v8057, %v8357
    %v8538 = vadd.f32 %v8058, %v8358
    %v8539 = vadd.f32 %v8059, %v8359
    %v8540 = vadd.f32 %v8060, %v8360
    %v8541 = vadd.f32 %v8061, %v8361
    %v8542 = vadd.f32 %v8062, %v8362
    %v8543 = vadd.f32 %v8063, %v8363
    %v8544 = vadd.f32 %v8064, %v8364
    %v8545 = vadd.f32 %v8065, %v8365
    %v8546 = vadd.f32 %v8066, %v8366
    %v8547 = vadd.f32 %v8067, %v8367
    %v8548 = vadd.f32 %v8068, %v8368
    %v8549 = vadd.f32 %v8069, %v8369
    %v8550 = vadd.f32 %v8070, %v8370
    %v8551 = vadd.f32 %v8071, %v8371
    %v8552 = vadd.f32 %v8072, %v8372
    %v8553 = vadd.f32 %v8073, %v8373
    %v8554 = vadd.f32 %v8074, %v8374
    %v8555 = vadd.f32 %v8075, %v8375
    %v8556 = vadd.f32 %v8076, %v8376
    %v8557 = vadd.f32 %v8077, %v8377
    %v8558 = vadd.f32 %v8078, %v8378
    %v8559 = vadd.f32 %v8079, %v8379
    %v8560 = vadd.f32 %v8080, %v8380
    %v8561 = vadd.f32 %v8081, %v8381
    %v8562 = vadd.f32 %v8082, %v8382
    %v8563 = vadd.f32 %v8083, %v8383
    %v8564 = vadd.f32 %v8084, %v8384
    %v8565 = vadd.f32 %v8085, %v8385
    %v8566 = vadd.f32 %v8086, %v8386
    %v8567 = vadd.f32 %v8087, %v8387
    %v8568 = vadd.f32 %v8088, %v8388
    %v8569 = vadd.f32 %v8089, %v8389
    %v8570 = vadd.f32 %v8090, %v8390
    %v8571 = vadd.f32 %v8091, %v8391
    %v8572 = vadd.f32 %v8092, %v8392
    %v8573 = vadd.f32 %v8093, %v8393
    %v8574 = vadd.f32 %v8094, %v8394
    %v8575 = vadd.f32 %v8095, %v8395
    %8576 = vset.pattern.permute.xlu0 2
    %8577 = vperm.xlu0 %8576, %v7736
    %v8578 = vpop.permute.xlu0 %8577
    %8580 = vset.pattern.permute.xlu0 2
    %8581 = vperm.xlu0 %8580, %v7737
    %v8582 = vpop.permute.xlu0 %8581
    %8584 = vset.pattern.permute.xlu0 2
    %8585 = vperm.xlu0 %8584, %v7738
    %v8586 = vpop.permute.xlu0 %8585
    %8588 = vset.pattern.permute.xlu0 2
    %8589 = vperm.xlu0 %8588, %v7739
    %v8590 = vpop.permute.xlu0 %8589
    %8592 = vset.pattern.permute.xlu0 2
    %8593 = vperm.xlu0 %8592, %v7740
    %v8594 = vpop.permute.xlu0 %8593
    %8596 = vset.pattern.permute.xlu0 2
    %8597 = vperm.xlu0 %8596, %v7741
    %v8598 = vpop.permute.xlu0 %8597
    %8600 = vset.pattern.permute.xlu0 2
    %8601 = vperm.xlu0 %8600, %v7742
    %v8602 = vpop.permute.xlu0 %8601
    %8604 = vset.pattern.permute.xlu0 2
    %8605 = vperm.xlu0 %8604, %v7743
    %v8606 = vpop.permute.xlu0 %8605
    %8608 = vset.pattern.permute.xlu0 2
    %8609 = vperm.xlu0 %8608, %v7744
    %v8610 = vpop.permute.xlu0 %8609
    %8612 = vset.pattern.permute.xlu0 2
    %8613 = vperm.xlu0 %8612, %v7745
    %v8614 = vpop.permute.xlu0 %8613
    %8616 = vset.pattern.permute.xlu0 2
    %8617 = vperm.xlu0 %8616, %v7746
    %v8618 = vpop.permute.xlu0 %8617
    %8620 = vset.pattern.permute.xlu0 2
    %8621 = vperm.xlu0 %8620, %v7747
    %v8622 = vpop.permute.xlu0 %8621
    %8624 = vset.pattern.permute.xlu0 2
    %8625 = vperm.xlu0 %8624, %v7748
    %v8626 = vpop.permute.xlu0 %8625
    %8628 = vset.pattern.permute.xlu0 2
    %8629 = vperm.xlu0 %8628, %v7749
    %v8630 = vpop.permute.xlu0 %8629
    %8632 = vset.pattern.permute.xlu0 2
    %8633 = vperm.xlu0 %8632, %v7750
    %v8634 = vpop.permute.xlu0 %8633
    %8636 = vset.pattern.permute.xlu0 2
    %8637 = vperm.xlu0 %8636, %v7751
    %v8638 = vpop.permute.xlu0 %8637
    %8640 = vset.pattern.permute.xlu0 2
    %8641 = vperm.xlu0 %8640, %v7752
    %v8642 = vpop.permute.xlu0 %8641
    %8644 = vset.pattern.permute.xlu0 2
    %8645 = vperm.xlu0 %8644, %v7753
    %v8646 = vpop.permute.xlu0 %8645
    %8648 = vset.pattern.permute.xlu0 2
    %8649 = vperm.xlu0 %8648, %v7754
    %v8650 = vpop.permute.xlu0 %8649
    %8652 = vset.pattern.permute.xlu0 2
    %8653 = vperm.xlu0 %8652, %v7755
    %v8654 = vpop.permute.xlu0 %8653
    %8656 = vset.pattern.permute.xlu0 2
    %8657 = vperm.xlu0 %8656, %v7756
    %v8658 = vpop.permute.xlu0 %8657
    %8660 = vset.pattern.permute.xlu0 2
    %8661 = vperm.xlu0 %8660, %v7757
    %v8662 = vpop.permute.xlu0 %8661
    %8664 = vset.pattern.permute.xlu0 2
    %8665 = vperm.xlu0 %8664, %v7758
    %v8666 = vpop.permute.xlu0 %8665
    %8668 = vset.pattern.permute.xlu0 2
    %8669 = vperm.xlu0 %8668, %v7759
    %v8670 = vpop.permute.xlu0 %8669
    %8672 = vset.pattern.permute.xlu0 2
    %8673 = vperm.xlu0 %8672, %v7760
    %v8674 = vpop.permute.xlu0 %8673
    %8676 = vset.pattern.permute.xlu0 2
    %8677 = vperm.xlu0 %8676, %v7761
    %v8678 = vpop.permute.xlu0 %8677
    %8680 = vset.pattern.permute.xlu0 2
    %8681 = vperm.xlu0 %8680, %v7762
    %v8682 = vpop.permute.xlu0 %8681
    %8684 = vset.pattern.permute.xlu0 2
    %8685 = vperm.xlu0 %8684, %v7763
    %v8686 = vpop.permute.xlu0 %8685
    %8688 = vset.pattern.permute.xlu0 2
    %8689 = vperm.xlu0 %8688, %v7764
    %v8690 = vpop.permute.xlu0 %8689
    %8692 = vset.pattern.permute.xlu0 2
    %8693 = vperm.xlu0 %8692, %v7765
    %v8694 = vpop.permute.xlu0 %8693
    %v8696 = vmul.f32 %v8578, %v1054
    %v8697 = vmul.f32 %v8578, %v1058
    %v8698 = vmul.f32 %v8578, %v1062
    %v8699 = vmul.f32 %v8578, %v1066
    %v8700 = vmul.f32 %v8578, %v1070
    %v8701 = vmul.f32 %v8578, %v1074
    %v8702 = vmul.f32 %v8582, %v1054
    %v8703 = vmul.f32 %v8582, %v1058
    %v8704 = vmul.f32 %v8582, %v1062
    %v8705 = vmul.f32 %v8582, %v1066
    %v8706 = vmul.f32 %v8582, %v1070
    %v8707 = vmul.f32 %v8582, %v1074
    %v8708 = vmul.f32 %v8586, %v1054
    %v8709 = vmul.f32 %v8586, %v1058
    %v8710 = vmul.f32 %v8586, %v1062
    %v8711 = vmul.f32 %v8586, %v1066
    %v8712 = vmul.f32 %v8586, %v1070
    %v8713 = vmul.f32 %v8586, %v1074
    %v8714 = vmul.f32 %v8590, %v1054
    %v8715 = vmul.f32 %v8590, %v1058
    %v8716 = vmul.f32 %v8590, %v1062
    %v8717 = vmul.f32 %v8590, %v1066
    %v8718 = vmul.f32 %v8590, %v1070
    %v8719 = vmul.f32 %v8590, %v1074
    %v8720 = vmul.f32 %v8594, %v1054
    %v8721 = vmul.f32 %v8594, %v1058
    %v8722 = vmul.f32 %v8594, %v1062
    %v8723 = vmul.f32 %v8594, %v1066
    %v8724 = vmul.f32 %v8594, %v1070
    %v8725 = vmul.f32 %v8594, %v1074
    %v8726 = vmul.f32 %v8598, %v1054
    %v8727 = vmul.f32 %v8598, %v1058
    %v8728 = vmul.f32 %v8598, %v1062
    %v8729 = vmul.f32 %v8598, %v1066
    %v8730 = vmul.f32 %v8598, %v1070
    %v8731 = vmul.f32 %v8598, %v1074
    %v8732 = vmul.f32 %v8602, %v1054
    %v8733 = vmul.f32 %v8602, %v1058
    %v8734 = vmul.f32 %v8602, %v1062
    %v8735 = vmul.f32 %v8602, %v1066
    %v8736 = vmul.f32 %v8602, %v1070
    %v8737 = vmul.f32 %v8602, %v1074
    %v8738 = vmul.f32 %v8606, %v1054
    %v8739 = vmul.f32 %v8606, %v1058
    %v8740 = vmul.f32 %v8606, %v1062
    %v8741 = vmul.f32 %v8606, %v1066
    %v8742 = vmul.f32 %v8606, %v1070
    %v8743 = vmul.f32 %v8606, %v1074
    %v8744 = vmul.f32 %v8610, %v1054
    %v8745 = vmul.f32 %v8610, %v1058
    %v8746 = vmul.f32 %v8610, %v1062
    %v8747 = vmul.f32 %v8610, %v1066
    %v8748 = vmul.f32 %v8610, %v1070
    %v8749 = vmul.f32 %v8610, %v1074
    %v8750 = vmul.f32 %v8614, %v1054
    %v8751 = vmul.f32 %v8614, %v1058
    %v8752 = vmul.f32 %v8614, %v1062
    %v8753 = vmul.f32 %v8614, %v1066
    %v8754 = vmul.f32 %v8614, %v1070
    %v8755 = vmul.f32 %v8614, %v1074
    %v8756 = vmul.f32 %v8618, %v1054
    %v8757 = vmul.f32 %v8618, %v1058
    %v8758 = vmul.f32 %v8618, %v1062
    %v8759 = vmul.f32 %v8618, %v1066
    %v8760 = vmul.f32 %v8618, %v1070
    %v8761 = vmul.f32 %v8618, %v1074
    %v8762 = vmul.f32 %v8622, %v1054
    %v8763 = vmul.f32 %v8622, %v1058
    %v8764 = vmul.f32 %v8622, %v1062
    %v8765 = vmul.f32 %v8622, %v1066
    %v8766 = vmul.f32 %v8622, %v1070
    %v8767 = vmul.f32 %v8622, %v1074
    %v8768 = vmul.f32 %v8626, %v1054
    %v8769 = vmul.f32 %v8626, %v1058
    %v8770 = vmul.f32 %v8626, %v1062
    %v8771 = vmul.f32 %v8626, %v1066
    %v8772 = vmul.f32 %v8626, %v1070
    %v8773 = vmul.f32 %v8626, %v1074
    %v8774 = vmul.f32 %v8630, %v1054
    %v8775 = vmul.f32 %v8630, %v1058
    %v8776 = vmul.f32 %v8630, %v1062
    %v8777 = vmul.f32 %v8630, %v1066
    %v8778 = vmul.f32 %v8630, %v1070
    %v8779 = vmul.f32 %v8630, %v1074
    %v8780 = vmul.f32 %v8634, %v1054
    %v8781 = vmul.f32 %v8634, %v1058
    %v8782 = vmul.f32 %v8634, %v1062
    %v8783 = vmul.f32 %v8634, %v1066
    %v8784 = vmul.f32 %v8634, %v1070
    %v8785 = vmul.f32 %v8634, %v1074
    %v8786 = vmul.f32 %v8638, %v1054
    %v8787 = vmul.f32 %v8638, %v1058
    %v8788 = vmul.f32 %v8638, %v1062
    %v8789 = vmul.f32 %v8638, %v1066
    %v8790 = vmul.f32 %v8638, %v1070
    %v8791 = vmul.f32 %v8638, %v1074
    %v8792 = vmul.f32 %v8642, %v1054
    %v8793 = vmul.f32 %v8642, %v1058
    %v8794 = vmul.f32 %v8642, %v1062
    %v8795 = vmul.f32 %v8642, %v1066
    %v8796 = vmul.f32 %v8642, %v1070
    %v8797 = vmul.f32 %v8642, %v1074
    %v8798 = vmul.f32 %v8646, %v1054
    %v8799 = vmul.f32 %v8646, %v1058
    %v8800 = vmul.f32 %v8646, %v1062
    %v8801 = vmul.f32 %v8646, %v1066
    %v8802 = vmul.f32 %v8646, %v1070
    %v8803 = vmul.f32 %v8646, %v1074
    %v8804 = vmul.f32 %v8650, %v1054
    %v8805 = vmul.f32 %v8650, %v1058
    %v8806 = vmul.f32 %v8650, %v1062
    %v8807 = vmul.f32 %v8650, %v1066
    %v8808 = vmul.f32 %v8650, %v1070
    %v8809 = vmul.f32 %v8650, %v1074
    %v8810 = vmul.f32 %v8654, %v1054
    %v8811 = vmul.f32 %v8654, %v1058
    %v8812 = vmul.f32 %v8654, %v1062
    %v8813 = vmul.f32 %v8654, %v1066
    %v8814 = vmul.f32 %v8654, %v1070
    %v8815 = vmul.f32 %v8654, %v1074
    %v8816 = vmul.f32 %v8658, %v1054
    %v8817 = vmul.f32 %v8658, %v1058
    %v8818 = vmul.f32 %v8658, %v1062
    %v8819 = vmul.f32 %v8658, %v1066
    %v8820 = vmul.f32 %v8658, %v1070
    %v8821 = vmul.f32 %v8658, %v1074
    %v8822 = vmul.f32 %v8662, %v1054
    %v8823 = vmul.f32 %v8662, %v1058
    %v8824 = vmul.f32 %v8662, %v1062
    %v8825 = vmul.f32 %v8662, %v1066
    %v8826 = vmul.f32 %v8662, %v1070
    %v8827 = vmul.f32 %v8662, %v1074
    %v8828 = vmul.f32 %v8666, %v1054
    %v8829 = vmul.f32 %v8666, %v1058
    %v8830 = vmul.f32 %v8666, %v1062
    %v8831 = vmul.f32 %v8666, %v1066
    %v8832 = vmul.f32 %v8666, %v1070
    %v8833 = vmul.f32 %v8666, %v1074
    %v8834 = vmul.f32 %v8670, %v1054
    %v8835 = vmul.f32 %v8670, %v1058
    %v8836 = vmul.f32 %v8670, %v1062
    %v8837 = vmul.f32 %v8670, %v1066
    %v8838 = vmul.f32 %v8670, %v1070
    %v8839 = vmul.f32 %v8670, %v1074
    %v8840 = vmul.f32 %v8674, %v1054
    %v8841 = vmul.f32 %v8674, %v1058
    %v8842 = vmul.f32 %v8674, %v1062
    %v8843 = vmul.f32 %v8674, %v1066
    %v8844 = vmul.f32 %v8674, %v1070
    %v8845 = vmul.f32 %v8674, %v1074
    %v8846 = vmul.f32 %v8678, %v1054
    %v8847 = vmul.f32 %v8678, %v1058
    %v8848 = vmul.f32 %v8678, %v1062
    %v8849 = vmul.f32 %v8678, %v1066
    %v8850 = vmul.f32 %v8678, %v1070
    %v8851 = vmul.f32 %v8678, %v1074
    %v8852 = vmul.f32 %v8682, %v1054
    %v8853 = vmul.f32 %v8682, %v1058
    %v8854 = vmul.f32 %v8682, %v1062
    %v8855 = vmul.f32 %v8682, %v1066
    %v8856 = vmul.f32 %v8682, %v1070
    %v8857 = vmul.f32 %v8682, %v1074
    %v8858 = vmul.f32 %v8686, %v1054
    %v8859 = vmul.f32 %v8686, %v1058
    %v8860 = vmul.f32 %v8686, %v1062
    %v8861 = vmul.f32 %v8686, %v1066
    %v8862 = vmul.f32 %v8686, %v1070
    %v8863 = vmul.f32 %v8686, %v1074
    %v8864 = vmul.f32 %v8690, %v1054
    %v8865 = vmul.f32 %v8690, %v1058
    %v8866 = vmul.f32 %v8690, %v1062
    %v8867 = vmul.f32 %v8690, %v1066
    %v8868 = vmul.f32 %v8690, %v1070
    %v8869 = vmul.f32 %v8690, %v1074
    %v8870 = vmul.f32 %v8694, %v1054
    %v8871 = vmul.f32 %v8694, %v1058
    %v8872 = vmul.f32 %v8694, %v1062
    %v8873 = vmul.f32 %v8694, %v1066
    %v8874 = vmul.f32 %v8694, %v1070
    %v8875 = vmul.f32 %v8694, %v1074
    %v8876 = vadd.f32 %v8396, %v8696
    %v8877 = vadd.f32 %v8397, %v8697
    %v8878 = vadd.f32 %v8398, %v8698
    %v8879 = vadd.f32 %v8399, %v8699
    %v8880 = vadd.f32 %v8400, %v8700
    %v8881 = vadd.f32 %v8401, %v8701
    %v8882 = vadd.f32 %v8402, %v8702
    %v8883 = vadd.f32 %v8403, %v8703
    %v8884 = vadd.f32 %v8404, %v8704
    %v8885 = vadd.f32 %v8405, %v8705
    %v8886 = vadd.f32 %v8406, %v8706
    %v8887 = vadd.f32 %v8407, %v8707
    %v8888 = vadd.f32 %v8408, %v8708
    %v8889 = vadd.f32 %v8409, %v8709
    %v8890 = vadd.f32 %v8410, %v8710
    %v8891 = vadd.f32 %v8411, %v8711
    %v8892 = vadd.f32 %v8412, %v8712
    %v8893 = vadd.f32 %v8413, %v8713
    %v8894 = vadd.f32 %v8414, %v8714
    %v8895 = vadd.f32 %v8415, %v8715
    %v8896 = vadd.f32 %v8416, %v8716
    %v8897 = vadd.f32 %v8417, %v8717
    %v8898 = vadd.f32 %v8418, %v8718
    %v8899 = vadd.f32 %v8419, %v8719
    %v8900 = vadd.f32 %v8420, %v8720
    %v8901 = vadd.f32 %v8421, %v8721
    %v8902 = vadd.f32 %v8422, %v8722
    %v8903 = vadd.f32 %v8423, %v8723
    %v8904 = vadd.f32 %v8424, %v8724
    %v8905 = vadd.f32 %v8425, %v8725
    %v8906 = vadd.f32 %v8426, %v8726
    %v8907 = vadd.f32 %v8427, %v8727
    %v8908 = vadd.f32 %v8428, %v8728
    %v8909 = vadd.f32 %v8429, %v8729
    %v8910 = vadd.f32 %v8430, %v8730
    %v8911 = vadd.f32 %v8431, %v8731
    %v8912 = vadd.f32 %v8432, %v8732
    %v8913 = vadd.f32 %v8433, %v8733
    %v8914 = vadd.f32 %v8434, %v8734
    %v8915 = vadd.f32 %v8435, %v8735
    %v8916 = vadd.f32 %v8436, %v8736
    %v8917 = vadd.f32 %v8437, %v8737
    %v8918 = vadd.f32 %v8438, %v8738
    %v8919 = vadd.f32 %v8439, %v8739
    %v8920 = vadd.f32 %v8440, %v8740
    %v8921 = vadd.f32 %v8441, %v8741
    %v8922 = vadd.f32 %v8442, %v8742
    %v8923 = vadd.f32 %v8443, %v8743
    %v8924 = vadd.f32 %v8444, %v8744
    %v8925 = vadd.f32 %v8445, %v8745
    %v8926 = vadd.f32 %v8446, %v8746
    %v8927 = vadd.f32 %v8447, %v8747
    %v8928 = vadd.f32 %v8448, %v8748
    %v8929 = vadd.f32 %v8449, %v8749
    %v8930 = vadd.f32 %v8450, %v8750
    %v8931 = vadd.f32 %v8451, %v8751
    %v8932 = vadd.f32 %v8452, %v8752
    %v8933 = vadd.f32 %v8453, %v8753
    %v8934 = vadd.f32 %v8454, %v8754
    %v8935 = vadd.f32 %v8455, %v8755
    %v8936 = vadd.f32 %v8456, %v8756
    %v8937 = vadd.f32 %v8457, %v8757
    %v8938 = vadd.f32 %v8458, %v8758
    %v8939 = vadd.f32 %v8459, %v8759
    %v8940 = vadd.f32 %v8460, %v8760
    %v8941 = vadd.f32 %v8461, %v8761
    %v8942 = vadd.f32 %v8462, %v8762
    %v8943 = vadd.f32 %v8463, %v8763
    %v8944 = vadd.f32 %v8464, %v8764
    %v8945 = vadd.f32 %v8465, %v8765
    %v8946 = vadd.f32 %v8466, %v8766
    %v8947 = vadd.f32 %v8467, %v8767
    %v8948 = vadd.f32 %v8468, %v8768
    %v8949 = vadd.f32 %v8469, %v8769
    %v8950 = vadd.f32 %v8470, %v8770
    %v8951 = vadd.f32 %v8471, %v8771
    %v8952 = vadd.f32 %v8472, %v8772
    %v8953 = vadd.f32 %v8473, %v8773
    %v8954 = vadd.f32 %v8474, %v8774
    %v8955 = vadd.f32 %v8475, %v8775
    %v8956 = vadd.f32 %v8476, %v8776
    %v8957 = vadd.f32 %v8477, %v8777
    %v8958 = vadd.f32 %v8478, %v8778
    %v8959 = vadd.f32 %v8479, %v8779
    %v8960 = vadd.f32 %v8480, %v8780
    %v8961 = vadd.f32 %v8481, %v8781
    %v8962 = vadd.f32 %v8482, %v8782
    %v8963 = vadd.f32 %v8483, %v8783
    %v8964 = vadd.f32 %v8484, %v8784
    %v8965 = vadd.f32 %v8485, %v8785
    %v8966 = vadd.f32 %v8486, %v8786
    %v8967 = vadd.f32 %v8487, %v8787
    %v8968 = vadd.f32 %v8488, %v8788
    %v8969 = vadd.f32 %v8489, %v8789
    %v8970 = vadd.f32 %v8490, %v8790
    %v8971 = vadd.f32 %v8491, %v8791
    %v8972 = vadd.f32 %v8492, %v8792
    %v8973 = vadd.f32 %v8493, %v8793
    %v8974 = vadd.f32 %v8494, %v8794
    %v8975 = vadd.f32 %v8495, %v8795
    %v8976 = vadd.f32 %v8496, %v8796
    %v8977 = vadd.f32 %v8497, %v8797
    %v8978 = vadd.f32 %v8498, %v8798
    %v8979 = vadd.f32 %v8499, %v8799
    %v8980 = vadd.f32 %v8500, %v8800
    %v8981 = vadd.f32 %v8501, %v8801
    %v8982 = vadd.f32 %v8502, %v8802
    %v8983 = vadd.f32 %v8503, %v8803
    %v8984 = vadd.f32 %v8504, %v8804
    %v8985 = vadd.f32 %v8505, %v8805
    %v8986 = vadd.f32 %v8506, %v8806
    %v8987 = vadd.f32 %v8507, %v8807
    %v8988 = vadd.f32 %v8508, %v8808
    %v8989 = vadd.f32 %v8509, %v8809
    %v8990 = vadd.f32 %v8510, %v8810
    %v8991 = vadd.f32 %v8511, %v8811
    %v8992 = vadd.f32 %v8512, %v8812
    %v8993 = vadd.f32 %v8513, %v8813
    %v8994 = vadd.f32 %v8514, %v8814
    %v8995 = vadd.f32 %v8515, %v8815
    %v8996 = vadd.f32 %v8516, %v8816
    %v8997 = vadd.f32 %v8517, %v8817
    %v8998 = vadd.f32 %v8518, %v8818
    %v8999 = vadd.f32 %v8519, %v8819
    %v9000 = vadd.f32 %v8520, %v8820
    %v9001 = vadd.f32 %v8521, %v8821
    %v9002 = vadd.f32 %v8522, %v8822
    %v9003 = vadd.f32 %v8523, %v8823
    %v9004 = vadd.f32 %v8524, %v8824
    %v9005 = vadd.f32 %v8525, %v8825
    %v9006 = vadd.f32 %v8526, %v8826
    %v9007 = vadd.f32 %v8527, %v8827
    %v9008 = vadd.f32 %v8528, %v8828
    %v9009 = vadd.f32 %v8529, %v8829
    %v9010 = vadd.f32 %v8530, %v8830
    %v9011 = vadd.f32 %v8531, %v8831
    %v9012 = vadd.f32 %v8532, %v8832
    %v9013 = vadd.f32 %v8533, %v8833
    %v9014 = vadd.f32 %v8534, %v8834
    %v9015 = vadd.f32 %v8535, %v8835
    %v9016 = vadd.f32 %v8536, %v8836
    %v9017 = vadd.f32 %v8537, %v8837
    %v9018 = vadd.f32 %v8538, %v8838
    %v9019 = vadd.f32 %v8539, %v8839
    %v9020 = vadd.f32 %v8540, %v8840
    %v9021 = vadd.f32 %v8541, %v8841
    %v9022 = vadd.f32 %v8542, %v8842
    %v9023 = vadd.f32 %v8543, %v8843
    %v9024 = vadd.f32 %v8544, %v8844
    %v9025 = vadd.f32 %v8545, %v8845
    %v9026 = vadd.f32 %v8546, %v8846
    %v9027 = vadd.f32 %v8547, %v8847
    %v9028 = vadd.f32 %v8548, %v8848
    %v9029 = vadd.f32 %v8549, %v8849
    %v9030 = vadd.f32 %v8550, %v8850
    %v9031 = vadd.f32 %v8551, %v8851
    %v9032 = vadd.f32 %v8552, %v8852
    %v9033 = vadd.f32 %v8553, %v8853
    %v9034 = vadd.f32 %v8554, %v8854
    %v9035 = vadd.f32 %v8555, %v8855
    %v9036 = vadd.f32 %v8556, %v8856
    %v9037 = vadd.f32 %v8557, %v8857
    %v9038 = vadd.f32 %v8558, %v8858
    %v9039 = vadd.f32 %v8559, %v8859
    %v9040 = vadd.f32 %v8560, %v8860
    %v9041 = vadd.f32 %v8561, %v8861
    %v9042 = vadd.f32 %v8562, %v8862
    %v9043 = vadd.f32 %v8563, %v8863
    %v9044 = vadd.f32 %v8564, %v8864
    %v9045 = vadd.f32 %v8565, %v8865
    %v9046 = vadd.f32 %v8566, %v8866
    %v9047 = vadd.f32 %v8567, %v8867
    %v9048 = vadd.f32 %v8568, %v8868
    %v9049 = vadd.f32 %v8569, %v8869
    %v9050 = vadd.f32 %v8570, %v8870
    %v9051 = vadd.f32 %v8571, %v8871
    %v9052 = vadd.f32 %v8572, %v8872
    %v9053 = vadd.f32 %v8573, %v8873
    %v9054 = vadd.f32 %v8574, %v8874
    %v9055 = vadd.f32 %v8575, %v8875
    %v9056 = vadd.f32 %v8876, %v1445
    %v9057 = vadd.f32 %v8877, %v1449
    %v9058 = vadd.f32 %v8878, %v1453
    %v9059 = vadd.f32 %v8879, %v1457
    %v9060 = vadd.f32 %v8880, %v1461
    %v9061 = vadd.f32 %v8881, %v1465
    %v9062 = vadd.f32 %v8882, %v1445
    %v9063 = vadd.f32 %v8883, %v1449
    %v9064 = vadd.f32 %v8884, %v1453
    %v9065 = vadd.f32 %v8885, %v1457
    %v9066 = vadd.f32 %v8886, %v1461
    %v9067 = vadd.f32 %v8887, %v1465
    %v9068 = vadd.f32 %v8888, %v1445
    %v9069 = vadd.f32 %v8889, %v1449
    %v9070 = vadd.f32 %v8890, %v1453
    %v9071 = vadd.f32 %v8891, %v1457
    %v9072 = vadd.f32 %v8892, %v1461
    %v9073 = vadd.f32 %v8893, %v1465
    %v9074 = vadd.f32 %v8894, %v1445
    %v9075 = vadd.f32 %v8895, %v1449
    %v9076 = vadd.f32 %v8896, %v1453
    %v9077 = vadd.f32 %v8897, %v1457
    %v9078 = vadd.f32 %v8898, %v1461
    %v9079 = vadd.f32 %v8899, %v1465
    %v9080 = vadd.f32 %v8900, %v1445
    %v9081 = vadd.f32 %v8901, %v1449
    %v9082 = vadd.f32 %v8902, %v1453
    %v9083 = vadd.f32 %v8903, %v1457
    %v9084 = vadd.f32 %v8904, %v1461
    %v9085 = vadd.f32 %v8905, %v1465
    %v9086 = vadd.f32 %v8906, %v1445
    %v9087 = vadd.f32 %v8907, %v1449
    %v9088 = vadd.f32 %v8908, %v1453
    %v9089 = vadd.f32 %v8909, %v1457
    %v9090 = vadd.f32 %v8910, %v1461
    %v9091 = vadd.f32 %v8911, %v1465
    %v9092 = vadd.f32 %v8912, %v1445
    %v9093 = vadd.f32 %v8913, %v1449
    %v9094 = vadd.f32 %v8914, %v1453
    %v9095 = vadd.f32 %v8915, %v1457
    %v9096 = vadd.f32 %v8916, %v1461
    %v9097 = vadd.f32 %v8917, %v1465
    %v9098 = vadd.f32 %v8918, %v1445
    %v9099 = vadd.f32 %v8919, %v1449
    %v9100 = vadd.f32 %v8920, %v1453
    %v9101 = vadd.f32 %v8921, %v1457
    %v9102 = vadd.f32 %v8922, %v1461
    %v9103 = vadd.f32 %v8923, %v1465
    %v9104 = vadd.f32 %v8924, %v1445
    %v9105 = vadd.f32 %v8925, %v1449
    %v9106 = vadd.f32 %v8926, %v1453
    %v9107 = vadd.f32 %v8927, %v1457
    %v9108 = vadd.f32 %v8928, %v1461
    %v9109 = vadd.f32 %v8929, %v1465
    %v9110 = vadd.f32 %v8930, %v1445
    %v9111 = vadd.f32 %v8931, %v1449
    %v9112 = vadd.f32 %v8932, %v1453
    %v9113 = vadd.f32 %v8933, %v1457
    %v9114 = vadd.f32 %v8934, %v1461
    %v9115 = vadd.f32 %v8935, %v1465
    %v9116 = vadd.f32 %v8936, %v1445
    %v9117 = vadd.f32 %v8937, %v1449
    %v9118 = vadd.f32 %v8938, %v1453
    %v9119 = vadd.f32 %v8939, %v1457
    %v9120 = vadd.f32 %v8940, %v1461
    %v9121 = vadd.f32 %v8941, %v1465
    %v9122 = vadd.f32 %v8942, %v1445
    %v9123 = vadd.f32 %v8943, %v1449
    %v9124 = vadd.f32 %v8944, %v1453
    %v9125 = vadd.f32 %v8945, %v1457
    %v9126 = vadd.f32 %v8946, %v1461
    %v9127 = vadd.f32 %v8947, %v1465
    %v9128 = vadd.f32 %v8948, %v1445
    %v9129 = vadd.f32 %v8949, %v1449
    %v9130 = vadd.f32 %v8950, %v1453
    %v9131 = vadd.f32 %v8951, %v1457
    %v9132 = vadd.f32 %v8952, %v1461
    %v9133 = vadd.f32 %v8953, %v1465
    %v9134 = vadd.f32 %v8954, %v1445
    %v9135 = vadd.f32 %v8955, %v1449
    %v9136 = vadd.f32 %v8956, %v1453
    %v9137 = vadd.f32 %v8957, %v1457
    %v9138 = vadd.f32 %v8958, %v1461
    %v9139 = vadd.f32 %v8959, %v1465
    %v9140 = vadd.f32 %v8960, %v1445
    %v9141 = vadd.f32 %v8961, %v1449
    %v9142 = vadd.f32 %v8962, %v1453
    %v9143 = vadd.f32 %v8963, %v1457
    %v9144 = vadd.f32 %v8964, %v1461
    %v9145 = vadd.f32 %v8965, %v1465
    %v9146 = vadd.f32 %v8966, %v1445
    %v9147 = vadd.f32 %v8967, %v1449
    %v9148 = vadd.f32 %v8968, %v1453
    %v9149 = vadd.f32 %v8969, %v1457
    %v9150 = vadd.f32 %v8970, %v1461
    %v9151 = vadd.f32 %v8971, %v1465
    %v9152 = vadd.f32 %v8972, %v1445
    %v9153 = vadd.f32 %v8973, %v1449
    %v9154 = vadd.f32 %v8974, %v1453
    %v9155 = vadd.f32 %v8975, %v1457
    %v9156 = vadd.f32 %v8976, %v1461
    %v9157 = vadd.f32 %v8977, %v1465
    %v9158 = vadd.f32 %v8978, %v1445
    %v9159 = vadd.f32 %v8979, %v1449
    %v9160 = vadd.f32 %v8980, %v1453
    %v9161 = vadd.f32 %v8981, %v1457
    %v9162 = vadd.f32 %v8982, %v1461
    %v9163 = vadd.f32 %v8983, %v1465
    %v9164 = vadd.f32 %v8984, %v1445
    %v9165 = vadd.f32 %v8985, %v1449
    %v9166 = vadd.f32 %v8986, %v1453
    %v9167 = vadd.f32 %v8987, %v1457
    %v9168 = vadd.f32 %v8988, %v1461
    %v9169 = vadd.f32 %v8989, %v1465
    %v9170 = vadd.f32 %v8990, %v1445
    %v9171 = vadd.f32 %v8991, %v1449
    %v9172 = vadd.f32 %v8992, %v1453
    %v9173 = vadd.f32 %v8993, %v1457
    %v9174 = vadd.f32 %v8994, %v1461
    %v9175 = vadd.f32 %v8995, %v1465
    %v9176 = vadd.f32 %v8996, %v1445
    %v9177 = vadd.f32 %v8997, %v1449
    %v9178 = vadd.f32 %v8998, %v1453
    %v9179 = vadd.f32 %v8999, %v1457
    %v9180 = vadd.f32 %v9000, %v1461
    %v9181 = vadd.f32 %v9001, %v1465
    %v9182 = vadd.f32 %v9002, %v1445
    %v9183 = vadd.f32 %v9003, %v1449
    %v9184 = vadd.f32 %v9004, %v1453
    %v9185 = vadd.f32 %v9005, %v1457
    %v9186 = vadd.f32 %v9006, %v1461
    %v9187 = vadd.f32 %v9007, %v1465
    %v9188 = vadd.f32 %v9008, %v1445
    %v9189 = vadd.f32 %v9009, %v1449
    %v9190 = vadd.f32 %v9010, %v1453
    %v9191 = vadd.f32 %v9011, %v1457
    %v9192 = vadd.f32 %v9012, %v1461
    %v9193 = vadd.f32 %v9013, %v1465
    %v9194 = vadd.f32 %v9014, %v1445
    %v9195 = vadd.f32 %v9015, %v1449
    %v9196 = vadd.f32 %v9016, %v1453
    %v9197 = vadd.f32 %v9017, %v1457
    %v9198 = vadd.f32 %v9018, %v1461
    %v9199 = vadd.f32 %v9019, %v1465
    %v9200 = vadd.f32 %v9020, %v1445
    %v9201 = vadd.f32 %v9021, %v1449
    %v9202 = vadd.f32 %v9022, %v1453
    %v9203 = vadd.f32 %v9023, %v1457
    %v9204 = vadd.f32 %v9024, %v1461
    %v9205 = vadd.f32 %v9025, %v1465
    %v9206 = vadd.f32 %v9026, %v1445
    %v9207 = vadd.f32 %v9027, %v1449
    %v9208 = vadd.f32 %v9028, %v1453
    %v9209 = vadd.f32 %v9029, %v1457
    %v9210 = vadd.f32 %v9030, %v1461
    %v9211 = vadd.f32 %v9031, %v1465
    %v9212 = vadd.f32 %v9032, %v1445
    %v9213 = vadd.f32 %v9033, %v1449
    %v9214 = vadd.f32 %v9034, %v1453
    %v9215 = vadd.f32 %v9035, %v1457
    %v9216 = vadd.f32 %v9036, %v1461
    %v9217 = vadd.f32 %v9037, %v1465
    %v9218 = vadd.f32 %v9038, %v1445
    %v9219 = vadd.f32 %v9039, %v1449
    %v9220 = vadd.f32 %v9040, %v1453
    %v9221 = vadd.f32 %v9041, %v1457
    %v9222 = vadd.f32 %v9042, %v1461
    %v9223 = vadd.f32 %v9043, %v1465
    %v9224 = vadd.f32 %v9044, %v1445
    %v9225 = vadd.f32 %v9045, %v1449
    %v9226 = vadd.f32 %v9046, %v1453
    %v9227 = vadd.f32 %v9047, %v1457
    %v9228 = vadd.f32 %v9048, %v1461
    %v9229 = vadd.f32 %v9049, %v1465
    %v9230 = vadd.f32 %v9050, %v1445
    %v9231 = vadd.f32 %v9051, %v1449
    %v9232 = vadd.f32 %v9052, %v1453
    %v9233 = vadd.f32 %v9053, %v1457
    %v9234 = vadd.f32 %v9054, %v1461
    %v9235 = vadd.f32 %v9055, %v1465
    %v9236 = vmax.f32 %v9056, 0.0
    %v9237 = vmax.f32 %v9057, 0.0
    %v9238 = vmax.f32 %v9058, 0.0
    %v9239 = vmax.f32 %v9059, 0.0
    %v9240 = vmax.f32 %v9060, 0.0
    %v9241 = vmax.f32 %v9061, 0.0
    %v9242 = vmax.f32 %v9062, 0.0
    %v9243 = vmax.f32 %v9063, 0.0
    %v9244 = vmax.f32 %v9064, 0.0
    %v9245 = vmax.f32 %v9065, 0.0
    %v9246 = vmax.f32 %v9066, 0.0
    %v9247 = vmax.f32 %v9067, 0.0
    %v9248 = vmax.f32 %v9068, 0.0
    %v9249 = vmax.f32 %v9069, 0.0
    %v9250 = vmax.f32 %v9070, 0.0
    %v9251 = vmax.f32 %v9071, 0.0
    %v9252 = vmax.f32 %v9072, 0.0
    %v9253 = vmax.f32 %v9073, 0.0
    %v9254 = vmax.f32 %v9074, 0.0
    %v9255 = vmax.f32 %v9075, 0.0
    %v9256 = vmax.f32 %v9076, 0.0
    %v9257 = vmax.f32 %v9077, 0.0
    %v9258 = vmax.f32 %v9078, 0.0
    %v9259 = vmax.f32 %v9079, 0.0
    %v9260 = vmax.f32 %v9080, 0.0
    %v9261 = vmax.f32 %v9081, 0.0
    %v9262 = vmax.f32 %v9082, 0.0
    %v9263 = vmax.f32 %v9083, 0.0
    %v9264 = vmax.f32 %v9084, 0.0
    %v9265 = vmax.f32 %v9085, 0.0
    %v9266 = vmax.f32 %v9086, 0.0
    %v9267 = vmax.f32 %v9087, 0.0
    %v9268 = vmax.f32 %v9088, 0.0
    %v9269 = vmax.f32 %v9089, 0.0
    %v9270 = vmax.f32 %v9090, 0.0
    %v9271 = vmax.f32 %v9091, 0.0
    %v9272 = vmax.f32 %v9092, 0.0
    %v9273 = vmax.f32 %v9093, 0.0
    %v9274 = vmax.f32 %v9094, 0.0
    %v9275 = vmax.f32 %v9095, 0.0
    %v9276 = vmax.f32 %v9096, 0.0
    %v9277 = vmax.f32 %v9097, 0.0
    %v9278 = vmax.f32 %v9098, 0.0
    %v9279 = vmax.f32 %v9099, 0.0
    %v9280 = vmax.f32 %v9100, 0.0
    %v9281 = vmax.f32 %v9101, 0.0
    %v9282 = vmax.f32 %v9102, 0.0
    %v9283 = vmax.f32 %v9103, 0.0
    %v9284 = vmax.f32 %v9104, 0.0
    %v9285 = vmax.f32 %v9105, 0.0
    %v9286 = vmax.f32 %v9106, 0.0
    %v9287 = vmax.f32 %v9107, 0.0
    %v9288 = vmax.f32 %v9108, 0.0
    %v9289 = vmax.f32 %v9109, 0.0
    %v9290 = vmax.f32 %v9110, 0.0
    %v9291 = vmax.f32 %v9111, 0.0
    %v9292 = vmax.f32 %v9112, 0.0
    %v9293 = vmax.f32 %v9113, 0.0
    %v9294 = vmax.f32 %v9114, 0.0
    %v9295 = vmax.f32 %v9115, 0.0
    %v9296 = vmax.f32 %v9116, 0.0
    %v9297 = vmax.f32 %v9117, 0.0
    %v9298 = vmax.f32 %v9118, 0.0
    %v9299 = vmax.f32 %v9119, 0.0
    %v9300 = vmax.f32 %v9120, 0.0
    %v9301 = vmax.f32 %v9121, 0.0
    %v9302 = vmax.f32 %v9122, 0.0
    %v9303 = vmax.f32 %v9123, 0.0
    %v9304 = vmax.f32 %v9124, 0.0
    %v9305 = vmax.f32 %v9125, 0.0
    %v9306 = vmax.f32 %v9126, 0.0
    %v9307 = vmax.f32 %v9127, 0.0
    %v9308 = vmax.f32 %v9128, 0.0
    %v9309 = vmax.f32 %v9129, 0.0
    %v9310 = vmax.f32 %v9130, 0.0
    %v9311 = vmax.f32 %v9131, 0.0
    %v9312 = vmax.f32 %v9132, 0.0
    %v9313 = vmax.f32 %v9133, 0.0
    %v9314 = vmax.f32 %v9134, 0.0
    %v9315 = vmax.f32 %v9135, 0.0
    %v9316 = vmax.f32 %v9136, 0.0
    %v9317 = vmax.f32 %v9137, 0.0
    %v9318 = vmax.f32 %v9138, 0.0
    %v9319 = vmax.f32 %v9139, 0.0
    %v9320 = vmax.f32 %v9140, 0.0
    %v9321 = vmax.f32 %v9141, 0.0
    %v9322 = vmax.f32 %v9142, 0.0
    %v9323 = vmax.f32 %v9143, 0.0
    %v9324 = vmax.f32 %v9144, 0.0
    %v9325 = vmax.f32 %v9145, 0.0
    %v9326 = vmax.f32 %v9146, 0.0
    %v9327 = vmax.f32 %v9147, 0.0
    %v9328 = vmax.f32 %v9148, 0.0
    %v9329 = vmax.f32 %v9149, 0.0
    %v9330 = vmax.f32 %v9150, 0.0
    %v9331 = vmax.f32 %v9151, 0.0
    %v9332 = vmax.f32 %v9152, 0.0
    %v9333 = vmax.f32 %v9153, 0.0
    %v9334 = vmax.f32 %v9154, 0.0
    %v9335 = vmax.f32 %v9155, 0.0
    %v9336 = vmax.f32 %v9156, 0.0
    %v9337 = vmax.f32 %v9157, 0.0
    %v9338 = vmax.f32 %v9158, 0.0
    %v9339 = vmax.f32 %v9159, 0.0
    %v9340 = vmax.f32 %v9160, 0.0
    %v9341 = vmax.f32 %v9161, 0.0
    %v9342 = vmax.f32 %v9162, 0.0
    %v9343 = vmax.f32 %v9163, 0.0
    %v9344 = vmax.f32 %v9164, 0.0
    %v9345 = vmax.f32 %v9165, 0.0
    %v9346 = vmax.f32 %v9166, 0.0
    %v9347 = vmax.f32 %v9167, 0.0
    %v9348 = vmax.f32 %v9168, 0.0
    %v9349 = vmax.f32 %v9169, 0.0
    %v9350 = vmax.f32 %v9170, 0.0
    %v9351 = vmax.f32 %v9171, 0.0
    %v9352 = vmax.f32 %v9172, 0.0
    %v9353 = vmax.f32 %v9173, 0.0
    %v9354 = vmax.f32 %v9174, 0.0
    %v9355 = vmax.f32 %v9175, 0.0
    %v9356 = vmax.f32 %v9176, 0.0
    %v9357 = vmax.f32 %v9177, 0.0
    %v9358 = vmax.f32 %v9178, 0.0
    %v9359 = vmax.f32 %v9179, 0.0
    %v9360 = vmax.f32 %v9180, 0.0
    %v9361 = vmax.f32 %v9181, 0.0
    %v9362 = vmax.f32 %v9182, 0.0
    %v9363 = vmax.f32 %v9183, 0.0
    %v9364 = vmax.f32 %v9184, 0.0
    %v9365 = vmax.f32 %v9185, 0.0
    %v9366 = vmax.f32 %v9186, 0.0
    %v9367 = vmax.f32 %v9187, 0.0
    %v9368 = vmax.f32 %v9188, 0.0
    %v9369 = vmax.f32 %v9189, 0.0
    %v9370 = vmax.f32 %v9190, 0.0
    %v9371 = vmax.f32 %v9191, 0.0
    %v9372 = vmax.f32 %v9192, 0.0
    %v9373 = vmax.f32 %v9193, 0.0
    %v9374 = vmax.f32 %v9194, 0.0
    %v9375 = vmax.f32 %v9195, 0.0
    %v9376 = vmax.f32 %v9196, 0.0
    %v9377 = vmax.f32 %v9197, 0.0
    %v9378 = vmax.f32 %v9198, 0.0
    %v9379 = vmax.f32 %v9199, 0.0
    %v9380 = vmax.f32 %v9200, 0.0
    %v9381 = vmax.f32 %v9201, 0.0
    %v9382 = vmax.f32 %v9202, 0.0
    %v9383 = vmax.f32 %v9203, 0.0
    %v9384 = vmax.f32 %v9204, 0.0
    %v9385 = vmax.f32 %v9205, 0.0
    %v9386 = vmax.f32 %v9206, 0.0
    %v9387 = vmax.f32 %v9207, 0.0
    %v9388 = vmax.f32 %v9208, 0.0
    %v9389 = vmax.f32 %v9209, 0.0
    %v9390 = vmax.f32 %v9210, 0.0
    %v9391 = vmax.f32 %v9211, 0.0
    %v9392 = vmax.f32 %v9212, 0.0
    %v9393 = vmax.f32 %v9213, 0.0
    %v9394 = vmax.f32 %v9214, 0.0
    %v9395 = vmax.f32 %v9215, 0.0
    %v9396 = vmax.f32 %v9216, 0.0
    %v9397 = vmax.f32 %v9217, 0.0
    %v9398 = vmax.f32 %v9218, 0.0
    %v9399 = vmax.f32 %v9219, 0.0
    %v9400 = vmax.f32 %v9220, 0.0
    %v9401 = vmax.f32 %v9221, 0.0
    %v9402 = vmax.f32 %v9222, 0.0
    %v9403 = vmax.f32 %v9223, 0.0
    %v9404 = vmax.f32 %v9224, 0.0
    %v9405 = vmax.f32 %v9225, 0.0
    %v9406 = vmax.f32 %v9226, 0.0
    %v9407 = vmax.f32 %v9227, 0.0
    %v9408 = vmax.f32 %v9228, 0.0
    %v9409 = vmax.f32 %v9229, 0.0
    %v9410 = vmax.f32 %v9230, 0.0
    %v9411 = vmax.f32 %v9231, 0.0
    %v9412 = vmax.f32 %v9232, 0.0
    %v9413 = vmax.f32 %v9233, 0.0
    %v9414 = vmax.f32 %v9234, 0.0
    %v9415 = vmax.f32 %v9235, 0.0
    %v9416 = vadd.f32 %v9236, %v9242
    %v9417 = vadd.f32 %v9416, %v9248
    %v9418 = vadd.f32 %v9417, %v9254
    %v9419 = vadd.f32 %v9418, %v9260
    %v9420 = vadd.f32 %v9419, %v9266
    %v9421 = vadd.f32 %v9420, %v9272
    %v9422 = vadd.f32 %v9421, %v9278
    %v9423 = vadd.f32 %v9422, %v9284
    %v9424 = vadd.f32 %v9423, %v9290
    %v9425 = vadd.f32 %v9424, %v9296
    %v9426 = vadd.f32 %v9425, %v9302
    %v9427 = vadd.f32 %v9426, %v9308
    %v9428 = vadd.f32 %v9427, %v9314
    %v9429 = vadd.f32 %v9428, %v9320
    %v9430 = vadd.f32 %v9429, %v9326
    %v9431 = vadd.f32 %v9430, %v9332
    %v9432 = vadd.f32 %v9431, %v9338
    %v9433 = vadd.f32 %v9432, %v9344
    %v9434 = vadd.f32 %v9433, %v9350
    %v9435 = vadd.f32 %v9434, %v9356
    %v9436 = vadd.f32 %v9435, %v9362
    %v9437 = vadd.f32 %v9436, %v9368
    %v9438 = vadd.f32 %v9437, %v9374
    %v9439 = vadd.f32 %v9438, %v9380
    %v9440 = vadd.f32 %v9439, %v9386
    %v9441 = vadd.f32 %v9440, %v9392
    %v9442 = vadd.f32 %v9441, %v9398
    %v9443 = vadd.f32 %v9442, %v9404
    %v9444 = vadd.f32 %v9443, %v9410
    %v9445 = vrot.slane %v9444, 4
    %v9446 = vadd.f32 %v9444, %v9445
    %v9447 = vrot.slane %v9446, 2
    %v9448 = vadd.f32 %v9446, %v9447
    %v9449 = vrot.slane %v9448, 1
    %v9450 = vadd.f32 %v9448, %v9449
    %v9451 = vadd.f32 %v9237, %v9243
    %v9452 = vadd.f32 %v9451, %v9249
    %v9453 = vadd.f32 %v9452, %v9255
    %v9454 = vadd.f32 %v9453, %v9261
    %v9455 = vadd.f32 %v9454, %v9267
    %v9456 = vadd.f32 %v9455, %v9273
    %v9457 = vadd.f32 %v9456, %v9279
    %v9458 = vadd.f32 %v9457, %v9285
    %v9459 = vadd.f32 %v9458, %v9291
    %v9460 = vadd.f32 %v9459, %v9297
    %v9461 = vadd.f32 %v9460, %v9303
    %v9462 = vadd.f32 %v9461, %v9309
    %v9463 = vadd.f32 %v9462, %v9315
    %v9464 = vadd.f32 %v9463, %v9321
    %v9465 = vadd.f32 %v9464, %v9327
    %v9466 = vadd.f32 %v9465, %v9333
    %v9467 = vadd.f32 %v9466, %v9339
    %v9468 = vadd.f32 %v9467, %v9345
    %v9469 = vadd.f32 %v9468, %v9351
    %v9470 = vadd.f32 %v9469, %v9357
    %v9471 = vadd.f32 %v9470, %v9363
    %v9472 = vadd.f32 %v9471, %v9369
    %v9473 = vadd.f32 %v9472, %v9375
    %v9474 = vadd.f32 %v9473, %v9381
    %v9475 = vadd.f32 %v9474, %v9387
    %v9476 = vadd.f32 %v9475, %v9393
    %v9477 = vadd.f32 %v9476, %v9399
    %v9478 = vadd.f32 %v9477, %v9405
    %v9479 = vadd.f32 %v9478, %v9411
    %v9480 = vrot.slane %v9479, 4
    %v9481 = vadd.f32 %v9479, %v9480
    %v9482 = vrot.slane %v9481, 2
    %v9483 = vadd.f32 %v9481, %v9482
    %v9484 = vrot.slane %v9483, 1
    %v9485 = vadd.f32 %v9483, %v9484
    %v9486 = vadd.f32 %v9238, %v9244
    %v9487 = vadd.f32 %v9486, %v9250
    %v9488 = vadd.f32 %v9487, %v9256
    %v9489 = vadd.f32 %v9488, %v9262
    %v9490 = vadd.f32 %v9489, %v9268
    %v9491 = vadd.f32 %v9490, %v9274
    %v9492 = vadd.f32 %v9491, %v9280
    %v9493 = vadd.f32 %v9492, %v9286
    %v9494 = vadd.f32 %v9493, %v9292
    %v9495 = vadd.f32 %v9494, %v9298
    %v9496 = vadd.f32 %v9495, %v9304
    %v9497 = vadd.f32 %v9496, %v9310
    %v9498 = vadd.f32 %v9497, %v9316
    %v9499 = vadd.f32 %v9498, %v9322
    %v9500 = vadd.f32 %v9499, %v9328
    %v9501 = vadd.f32 %v9500, %v9334
    %v9502 = vadd.f32 %v9501, %v9340
    %v9503 = vadd.f32 %v9502, %v9346
    %v9504 = vadd.f32 %v9503, %v9352
    %v9505 = vadd.f32 %v9504, %v9358
    %v9506 = vadd.f32 %v9505, %v9364
    %v9507 = vadd.f32 %v9506, %v9370
    %v9508 = vadd.f32 %v9507, %v9376
    %v9509 = vadd.f32 %v9508, %v9382
    %v9510 = vadd.f32 %v9509, %v9388
    %v9511 = vadd.f32 %v9510, %v9394
    %v9512 = vadd.f32 %v9511, %v9400
    %v9513 = vadd.f32 %v9512, %v9406
    %v9514 = vadd.f32 %v9513, %v9412
    %v9515 = vrot.slane %v9514, 4
    %v9516 = vadd.f32 %v9514, %v9515
    %v9517 = vrot.slane %v9516, 2
    %v9518 = vadd.f32 %v9516, %v9517
    %v9519 = vrot.slane %v9518, 1
    %v9520 = vadd.f32 %v9518, %v9519
    %v9521 = vadd.f32 %v9239, %v9245
    %v9522 = vadd.f32 %v9521, %v9251
    %v9523 = vadd.f32 %v9522, %v9257
    %v9524 = vadd.f32 %v9523, %v9263
    %v9525 = vadd.f32 %v9524, %v9269
    %v9526 = vadd.f32 %v9525, %v9275
    %v9527 = vadd.f32 %v9526, %v9281
    %v9528 = vadd.f32 %v9527, %v9287
    %v9529 = vadd.f32 %v9528, %v9293
    %v9530 = vadd.f32 %v9529, %v9299
    %v9531 = vadd.f32 %v9530, %v9305
    %v9532 = vadd.f32 %v9531, %v9311
    %v9533 = vadd.f32 %v9532, %v9317
    %v9534 = vadd.f32 %v9533, %v9323
    %v9535 = vadd.f32 %v9534, %v9329
    %v9536 = vadd.f32 %v9535, %v9335
    %v9537 = vadd.f32 %v9536, %v9341
    %v9538 = vadd.f32 %v9537, %v9347
    %v9539 = vadd.f32 %v9538, %v9353
    %v9540 = vadd.f32 %v9539, %v9359
    %v9541 = vadd.f32 %v9540, %v9365
    %v9542 = vadd.f32 %v9541, %v9371
    %v9543 = vadd.f32 %v9542, %v9377
    %v9544 = vadd.f32 %v9543, %v9383
    %v9545 = vadd.f32 %v9544, %v9389
    %v9546 = vadd.f32 %v9545, %v9395
    %v9547 = vadd.f32 %v9546, %v9401
    %v9548 = vadd.f32 %v9547, %v9407
    %v9549 = vadd.f32 %v9548, %v9413
    %v9550 = vrot.slane %v9549, 4
    %v9551 = vadd.f32 %v9549, %v9550
    %v9552 = vrot.slane %v9551, 2
    %v9553 = vadd.f32 %v9551, %v9552
    %v9554 = vrot.slane %v9553, 1
    %v9555 = vadd.f32 %v9553, %v9554
    %v9556 = vadd.f32 %v9240, %v9246
    %v9557 = vadd.f32 %v9556, %v9252
    %v9558 = vadd.f32 %v9557, %v9258
    %v9559 = vadd.f32 %v9558, %v9264
    %v9560 = vadd.f32 %v9559, %v9270
    %v9561 = vadd.f32 %v9560, %v9276
    %v9562 = vadd.f32 %v9561, %v9282
    %v9563 = vadd.f32 %v9562, %v9288
    %v9564 = vadd.f32 %v9563, %v9294
    %v9565 = vadd.f32 %v9564, %v9300
    %v9566 = vadd.f32 %v9565, %v9306
    %v9567 = vadd.f32 %v9566, %v9312
    %v9568 = vadd.f32 %v9567, %v9318
    %v9569 = vadd.f32 %v9568, %v9324
    %v9570 = vadd.f32 %v9569, %v9330
    %v9571 = vadd.f32 %v9570, %v9336
    %v9572 = vadd.f32 %v9571, %v9342
    %v9573 = vadd.f32 %v9572, %v9348
    %v9574 = vadd.f32 %v9573, %v9354
    %v9575 = vadd.f32 %v9574, %v9360
    %v9576 = vadd.f32 %v9575, %v9366
    %v9577 = vadd.f32 %v9576, %v9372
    %v9578 = vadd.f32 %v9577, %v9378
    %v9579 = vadd.f32 %v9578, %v9384
    %v9580 = vadd.f32 %v9579, %v9390
    %v9581 = vadd.f32 %v9580, %v9396
    %v9582 = vadd.f32 %v9581, %v9402
    %v9583 = vadd.f32 %v9582, %v9408
    %v9584 = vadd.f32 %v9583, %v9414
    %v9585 = vrot.slane %v9584, 4
    %v9586 = vadd.f32 %v9584, %v9585
    %v9587 = vrot.slane %v9586, 2
    %v9588 = vadd.f32 %v9586, %v9587
    %v9589 = vrot.slane %v9588, 1
    %v9590 = vadd.f32 %v9588, %v9589
    %v9591 = vadd.f32 %v9241, %v9247
    %v9592 = vadd.f32 %v9591, %v9253
    %v9593 = vadd.f32 %v9592, %v9259
    %v9594 = vadd.f32 %v9593, %v9265
    %v9595 = vadd.f32 %v9594, %v9271
    %v9596 = vadd.f32 %v9595, %v9277
    %v9597 = vadd.f32 %v9596, %v9283
    %v9598 = vadd.f32 %v9597, %v9289
    %v9599 = vadd.f32 %v9598, %v9295
    %v9600 = vadd.f32 %v9599, %v9301
    %v9601 = vadd.f32 %v9600, %v9307
    %v9602 = vadd.f32 %v9601, %v9313
    %v9603 = vadd.f32 %v9602, %v9319
    %v9604 = vadd.f32 %v9603, %v9325
    %v9605 = vadd.f32 %v9604, %v9331
    %v9606 = vadd.f32 %v9605, %v9337
    %v9607 = vadd.f32 %v9606, %v9343
    %v9608 = vadd.f32 %v9607, %v9349
    %v9609 = vadd.f32 %v9608, %v9355
    %v9610 = vadd.f32 %v9609, %v9361
    %v9611 = vadd.f32 %v9610, %v9367
    %v9612 = vadd.f32 %v9611, %v9373
    %v9613 = vadd.f32 %v9612, %v9379
    %v9614 = vadd.f32 %v9613, %v9385
    %v9615 = vadd.f32 %v9614, %v9391
    %v9616 = vadd.f32 %v9615, %v9397
    %v9617 = vadd.f32 %v9616, %v9403
    %v9618 = vadd.f32 %v9617, %v9409
    %v9619 = vadd.f32 %v9618, %v9415
    %v9620 = vrot.slane %v9619, 4
    %v9621 = vadd.f32 %v9619, %v9620
    %v9622 = vrot.slane %v9621, 2
    %v9623 = vadd.f32 %v9621, %v9622
    %v9624 = vrot.slane %v9623, 1
    %v9625 = vadd.f32 %v9623, %v9624
    %v9626 = vadd.f32 %v7730, %v9450
    %v9627 = vadd.f32 %v7731, %v9485
    %v9628 = vadd.f32 %v7732, %v9520
    %v9629 = vadd.f32 %v7733, %v9555
    %v9630 = vadd.f32 %v7734, %v9590
    %v9631 = vadd.f32 %v7735, %v9625
    %v9632 = vld [vmem:[%s0 + $0x4b0] sm:$0xff]
    %v9633 = vld [vmem:[%s0 + $0x4b8] sm:$0xff]
    %v9634 = vld [vmem:[%s0 + $0x4c0] sm:$0xff]
    %v9635 = vld [vmem:[%s0 + $0x4c8] sm:$0xff]
    %v9636 = vld [vmem:[%s0 + $0x4d0] sm:$0xff]
    %v9637 = vld [vmem:[%s0 + $0x4d8] sm:$0xff]
    %v9638 = vld [vmem:[%s0 + $0x4e0] sm:$0xff]
    %v9639 = vld [vmem:[%s0 + $0x4e8] sm:$0xff]
    %v9640 = vld [vmem:[%s0 + $0x4f0] sm:$0xff]
    %v9641 = vld [vmem:[%s0 + $0x4f8] sm:$0xff]
    %v9642 = vld [vmem:[%s0 + $0x500] sm:$0xff]
    %v9643 = vld [vmem:[%s0 + $0x508] sm:$0xff]
    %v9644 = vld [vmem:[%s0 + $0x510] sm:$0xff]
    %v9645 = vld [vmem:[%s0 + $0x518] sm:$0xff]
    %v9646 = vld [vmem:[%s0 + $0x520] sm:$0xff]
    %v9647 = vld [vmem:[%s0 + $0x528] sm:$0xff]
    %v9648 = vld [vmem:[%s0 + $0x530] sm:$0xff]
    %v9649 = vld [vmem:[%s0 + $0x538] sm:$0xff]
    %v9650 = vld [vmem:[%s0 + $0x540] sm:$0xff]
    %v9651 = vld [vmem:[%s0 + $0x548] sm:$0xff]
    %v9652 = vld [vmem:[%s0 + $0x550] sm:$0xff]
    %v9653 = vld [vmem:[%s0 + $0x558] sm:$0xff]
    %v9654 = vld [vmem:[%s0 + $0x560] sm:$0xff]
    %v9655 = vld [vmem:[%s0 + $0x568] sm:$0xff]
    %v9656 = vld [vmem:[%s0 + $0x570] sm:$0xff]
    %v9657 = vld [vmem:[%s0 + $0x578] sm:$0xff]
    %v9658 = vld [vmem:[%s0 + $0x580] sm:$0xff]
    %v9659 = vld [vmem:[%s0 + $0x588] sm:$0xff]
    %v9660 = vld [vmem:[%s0 + $0x590] sm:$0xff]
    %v9661 = vld [vmem:[%s0 + $0x598] sm:$0xff]
    %9663 = vset.pattern.permute.xlu0 0
    %9664 = vperm.xlu0 %9663, %v9632
    %v9665 = vpop.permute.xlu0 %9664
    %9668 = vset.pattern.permute.xlu0 0
    %9669 = vperm.xlu0 %9668, %v9633
    %v9670 = vpop.permute.xlu0 %9669
    %9673 = vset.pattern.permute.xlu0 0
    %9674 = vperm.xlu0 %9673, %v9634
    %v9675 = vpop.permute.xlu0 %9674
    %9678 = vset.pattern.permute.xlu0 0
    %9679 = vperm.xlu0 %9678, %v9635
    %v9680 = vpop.permute.xlu0 %9679
    %9683 = vset.pattern.permute.xlu0 0
    %9684 = vperm.xlu0 %9683, %v9636
    %v9685 = vpop.permute.xlu0 %9684
    %9688 = vset.pattern.permute.xlu0 0
    %9689 = vperm.xlu0 %9688, %v9637
    %v9690 = vpop.permute.xlu0 %9689
    %9693 = vset.pattern.permute.xlu0 0
    %9694 = vperm.xlu0 %9693, %v9638
    %v9695 = vpop.permute.xlu0 %9694
    %9698 = vset.pattern.permute.xlu0 0
    %9699 = vperm.xlu0 %9698, %v9639
    %v9700 = vpop.permute.xlu0 %9699
    %9703 = vset.pattern.permute.xlu0 0
    %9704 = vperm.xlu0 %9703, %v9640
    %v9705 = vpop.permute.xlu0 %9704
    %9708 = vset.pattern.permute.xlu0 0
    %9709 = vperm.xlu0 %9708, %v9641
    %v9710 = vpop.permute.xlu0 %9709
    %9713 = vset.pattern.permute.xlu0 0
    %9714 = vperm.xlu0 %9713, %v9642
    %v9715 = vpop.permute.xlu0 %9714
    %9718 = vset.pattern.permute.xlu0 0
    %9719 = vperm.xlu0 %9718, %v9643
    %v9720 = vpop.permute.xlu0 %9719
    %9723 = vset.pattern.permute.xlu0 0
    %9724 = vperm.xlu0 %9723, %v9644
    %v9725 = vpop.permute.xlu0 %9724
    %9728 = vset.pattern.permute.xlu0 0
    %9729 = vperm.xlu0 %9728, %v9645
    %v9730 = vpop.permute.xlu0 %9729
    %9733 = vset.pattern.permute.xlu0 0
    %9734 = vperm.xlu0 %9733, %v9646
    %v9735 = vpop.permute.xlu0 %9734
    %9738 = vset.pattern.permute.xlu0 0
    %9739 = vperm.xlu0 %9738, %v9647
    %v9740 = vpop.permute.xlu0 %9739
    %9743 = vset.pattern.permute.xlu0 0
    %9744 = vperm.xlu0 %9743, %v9648
    %v9745 = vpop.permute.xlu0 %9744
    %9748 = vset.pattern.permute.xlu0 0
    %9749 = vperm.xlu0 %9748, %v9649
    %v9750 = vpop.permute.xlu0 %9749
    %9753 = vset.pattern.permute.xlu0 0
    %9754 = vperm.xlu0 %9753, %v9650
    %v9755 = vpop.permute.xlu0 %9754
    %9758 = vset.pattern.permute.xlu0 0
    %9759 = vperm.xlu0 %9758, %v9651
    %v9760 = vpop.permute.xlu0 %9759
    %9763 = vset.pattern.permute.xlu0 0
    %9764 = vperm.xlu0 %9763, %v9652
    %v9765 = vpop.permute.xlu0 %9764
    %9768 = vset.pattern.permute.xlu0 0
    %9769 = vperm.xlu0 %9768, %v9653
    %v9770 = vpop.permute.xlu0 %9769
    %9773 = vset.pattern.permute.xlu0 0
    %9774 = vperm.xlu0 %9773, %v9654
    %v9775 = vpop.permute.xlu0 %9774
    %9778 = vset.pattern.permute.xlu0 0
    %9779 = vperm.xlu0 %9778, %v9655
    %v9780 = vpop.permute.xlu0 %9779
    %9783 = vset.pattern.permute.xlu0 0
    %9784 = vperm.xlu0 %9783, %v9656
    %v9785 = vpop.permute.xlu0 %9784
    %9788 = vset.pattern.permute.xlu0 0
    %9789 = vperm.xlu0 %9788, %v9657
    %v9790 = vpop.permute.xlu0 %9789
    %9793 = vset.pattern.permute.xlu0 0
    %9794 = vperm.xlu0 %9793, %v9658
    %v9795 = vpop.permute.xlu0 %9794
    %9798 = vset.pattern.permute.xlu0 0
    %9799 = vperm.xlu0 %9798, %v9659
    %v9800 = vpop.permute.xlu0 %9799
    %9803 = vset.pattern.permute.xlu0 0
    %9804 = vperm.xlu0 %9803, %v9660
    %v9805 = vpop.permute.xlu0 %9804
    %9808 = vset.pattern.permute.xlu0 0
    %9809 = vperm.xlu0 %9808, %v9661
    %v9810 = vpop.permute.xlu0 %9809
    %v9812 = vmul.f32 %v9665, %v212
    %v9813 = vmul.f32 %v9665, %v216
    %v9814 = vmul.f32 %v9665, %v220
    %v9815 = vmul.f32 %v9665, %v224
    %v9816 = vmul.f32 %v9665, %v228
    %v9817 = vmul.f32 %v9665, %v232
    %v9818 = vmul.f32 %v9670, %v212
    %v9819 = vmul.f32 %v9670, %v216
    %v9820 = vmul.f32 %v9670, %v220
    %v9821 = vmul.f32 %v9670, %v224
    %v9822 = vmul.f32 %v9670, %v228
    %v9823 = vmul.f32 %v9670, %v232
    %v9824 = vmul.f32 %v9675, %v212
    %v9825 = vmul.f32 %v9675, %v216
    %v9826 = vmul.f32 %v9675, %v220
    %v9827 = vmul.f32 %v9675, %v224
    %v9828 = vmul.f32 %v9675, %v228
    %v9829 = vmul.f32 %v9675, %v232
    %v9830 = vmul.f32 %v9680, %v212
    %v9831 = vmul.f32 %v9680, %v216
    %v9832 = vmul.f32 %v9680, %v220
    %v9833 = vmul.f32 %v9680, %v224
    %v9834 = vmul.f32 %v9680, %v228
    %v9835 = vmul.f32 %v9680, %v232
    %v9836 = vmul.f32 %v9685, %v212
    %v9837 = vmul.f32 %v9685, %v216
    %v9838 = vmul.f32 %v9685, %v220
    %v9839 = vmul.f32 %v9685, %v224
    %v9840 = vmul.f32 %v9685, %v228
    %v9841 = vmul.f32 %v9685, %v232
    %v9842 = vmul.f32 %v9690, %v212
    %v9843 = vmul.f32 %v9690, %v216
    %v9844 = vmul.f32 %v9690, %v220
    %v9845 = vmul.f32 %v9690, %v224
    %v9846 = vmul.f32 %v9690, %v228
    %v9847 = vmul.f32 %v9690, %v232
    %v9848 = vmul.f32 %v9695, %v212
    %v9849 = vmul.f32 %v9695, %v216
    %v9850 = vmul.f32 %v9695, %v220
    %v9851 = vmul.f32 %v9695, %v224
    %v9852 = vmul.f32 %v9695, %v228
    %v9853 = vmul.f32 %v9695, %v232
    %v9854 = vmul.f32 %v9700, %v212
    %v9855 = vmul.f32 %v9700, %v216
    %v9856 = vmul.f32 %v9700, %v220
    %v9857 = vmul.f32 %v9700, %v224
    %v9858 = vmul.f32 %v9700, %v228
    %v9859 = vmul.f32 %v9700, %v232
    %v9860 = vmul.f32 %v9705, %v212
    %v9861 = vmul.f32 %v9705, %v216
    %v9862 = vmul.f32 %v9705, %v220
    %v9863 = vmul.f32 %v9705, %v224
    %v9864 = vmul.f32 %v9705, %v228
    %v9865 = vmul.f32 %v9705, %v232
    %v9866 = vmul.f32 %v9710, %v212
    %v9867 = vmul.f32 %v9710, %v216
    %v9868 = vmul.f32 %v9710, %v220
    %v9869 = vmul.f32 %v9710, %v224
    %v9870 = vmul.f32 %v9710, %v228
    %v9871 = vmul.f32 %v9710, %v232
    %v9872 = vmul.f32 %v9715, %v212
    %v9873 = vmul.f32 %v9715, %v216
    %v9874 = vmul.f32 %v9715, %v220
    %v9875 = vmul.f32 %v9715, %v224
    %v9876 = vmul.f32 %v9715, %v228
    %v9877 = vmul.f32 %v9715, %v232
    %v9878 = vmul.f32 %v9720, %v212
    %v9879 = vmul.f32 %v9720, %v216
    %v9880 = vmul.f32 %v9720, %v220
    %v9881 = vmul.f32 %v9720, %v224
    %v9882 = vmul.f32 %v9720, %v228
    %v9883 = vmul.f32 %v9720, %v232
    %v9884 = vmul.f32 %v9725, %v212
    %v9885 = vmul.f32 %v9725, %v216
    %v9886 = vmul.f32 %v9725, %v220
    %v9887 = vmul.f32 %v9725, %v224
    %v9888 = vmul.f32 %v9725, %v228
    %v9889 = vmul.f32 %v9725, %v232
    %v9890 = vmul.f32 %v9730, %v212
    %v9891 = vmul.f32 %v9730, %v216
    %v9892 = vmul.f32 %v9730, %v220
    %v9893 = vmul.f32 %v9730, %v224
    %v9894 = vmul.f32 %v9730, %v228
    %v9895 = vmul.f32 %v9730, %v232
    %v9896 = vmul.f32 %v9735, %v212
    %v9897 = vmul.f32 %v9735, %v216
    %v9898 = vmul.f32 %v9735, %v220
    %v9899 = vmul.f32 %v9735, %v224
    %v9900 = vmul.f32 %v9735, %v228
    %v9901 = vmul.f32 %v9735, %v232
    %v9902 = vmul.f32 %v9740, %v212
    %v9903 = vmul.f32 %v9740, %v216
    %v9904 = vmul.f32 %v9740, %v220
    %v9905 = vmul.f32 %v9740, %v224
    %v9906 = vmul.f32 %v9740, %v228
    %v9907 = vmul.f32 %v9740, %v232
    %v9908 = vmul.f32 %v9745, %v212
    %v9909 = vmul.f32 %v9745, %v216
    %v9910 = vmul.f32 %v9745, %v220
    %v9911 = vmul.f32 %v9745, %v224
    %v9912 = vmul.f32 %v9745, %v228
    %v9913 = vmul.f32 %v9745, %v232
    %v9914 = vmul.f32 %v9750, %v212
    %v9915 = vmul.f32 %v9750, %v216
    %v9916 = vmul.f32 %v9750, %v220
    %v9917 = vmul.f32 %v9750, %v224
    %v9918 = vmul.f32 %v9750, %v228
    %v9919 = vmul.f32 %v9750, %v232
    %v9920 = vmul.f32 %v9755, %v212
    %v9921 = vmul.f32 %v9755, %v216
    %v9922 = vmul.f32 %v9755, %v220
    %v9923 = vmul.f32 %v9755, %v224
    %v9924 = vmul.f32 %v9755, %v228
    %v9925 = vmul.f32 %v9755, %v232
    %v9926 = vmul.f32 %v9760, %v212
    %v9927 = vmul.f32 %v9760, %v216
    %v9928 = vmul.f32 %v9760, %v220
    %v9929 = vmul.f32 %v9760, %v224
    %v9930 = vmul.f32 %v9760, %v228
    %v9931 = vmul.f32 %v9760, %v232
    %v9932 = vmul.f32 %v9765, %v212
    %v9933 = vmul.f32 %v9765, %v216
    %v9934 = vmul.f32 %v9765, %v220
    %v9935 = vmul.f32 %v9765, %v224
    %v9936 = vmul.f32 %v9765, %v228
    %v9937 = vmul.f32 %v9765, %v232
    %v9938 = vmul.f32 %v9770, %v212
    %v9939 = vmul.f32 %v9770, %v216
    %v9940 = vmul.f32 %v9770, %v220
    %v9941 = vmul.f32 %v9770, %v224
    %v9942 = vmul.f32 %v9770, %v228
    %v9943 = vmul.f32 %v9770, %v232
    %v9944 = vmul.f32 %v9775, %v212
    %v9945 = vmul.f32 %v9775, %v216
    %v9946 = vmul.f32 %v9775, %v220
    %v9947 = vmul.f32 %v9775, %v224
    %v9948 = vmul.f32 %v9775, %v228
    %v9949 = vmul.f32 %v9775, %v232
    %v9950 = vmul.f32 %v9780, %v212
    %v9951 = vmul.f32 %v9780, %v216
    %v9952 = vmul.f32 %v9780, %v220
    %v9953 = vmul.f32 %v9780, %v224
    %v9954 = vmul.f32 %v9780, %v228
    %v9955 = vmul.f32 %v9780, %v232
    %v9956 = vmul.f32 %v9785, %v212
    %v9957 = vmul.f32 %v9785, %v216
    %v9958 = vmul.f32 %v9785, %v220
    %v9959 = vmul.f32 %v9785, %v224
    %v9960 = vmul.f32 %v9785, %v228
    %v9961 = vmul.f32 %v9785, %v232
    %v9962 = vmul.f32 %v9790, %v212
    %v9963 = vmul.f32 %v9790, %v216
    %v9964 = vmul.f32 %v9790, %v220
    %v9965 = vmul.f32 %v9790, %v224
    %v9966 = vmul.f32 %v9790, %v228
    %v9967 = vmul.f32 %v9790, %v232
    %v9968 = vmul.f32 %v9795, %v212
    %v9969 = vmul.f32 %v9795, %v216
    %v9970 = vmul.f32 %v9795, %v220
    %v9971 = vmul.f32 %v9795, %v224
    %v9972 = vmul.f32 %v9795, %v228
    %v9973 = vmul.f32 %v9795, %v232
    %v9974 = vmul.f32 %v9800, %v212
    %v9975 = vmul.f32 %v9800, %v216
    %v9976 = vmul.f32 %v9800, %v220
    %v9977 = vmul.f32 %v9800, %v224
    %v9978 = vmul.f32 %v9800, %v228
    %v9979 = vmul.f32 %v9800, %v232
    %v9980 = vmul.f32 %v9805, %v212
    %v9981 = vmul.f32 %v9805, %v216
    %v9982 = vmul.f32 %v9805, %v220
    %v9983 = vmul.f32 %v9805, %v224
    %v9984 = vmul.f32 %v9805, %v228
    %v9985 = vmul.f32 %v9805, %v232
    %v9986 = vmul.f32 %v9810, %v212
    %v9987 = vmul.f32 %v9810, %v216
    %v9988 = vmul.f32 %v9810, %v220
    %v9989 = vmul.f32 %v9810, %v224
    %v9990 = vmul.f32 %v9810, %v228
    %v9991 = vmul.f32 %v9810, %v232
    %9992 = vset.pattern.permute.xlu0 1
    %9993 = vperm.xlu0 %9992, %v9632
    %v9994 = vpop.permute.xlu0 %9993
    %9996 = vset.pattern.permute.xlu0 1
    %9997 = vperm.xlu0 %9996, %v9633
    %v9998 = vpop.permute.xlu0 %9997
    %10000 = vset.pattern.permute.xlu0 1
    %10001 = vperm.xlu0 %10000, %v9634
    %v10002 = vpop.permute.xlu0 %10001
    %10004 = vset.pattern.permute.xlu0 1
    %10005 = vperm.xlu0 %10004, %v9635
    %v10006 = vpop.permute.xlu0 %10005
    %10008 = vset.pattern.permute.xlu0 1
    %10009 = vperm.xlu0 %10008, %v9636
    %v10010 = vpop.permute.xlu0 %10009
    %10012 = vset.pattern.permute.xlu0 1
    %10013 = vperm.xlu0 %10012, %v9637
    %v10014 = vpop.permute.xlu0 %10013
    %10016 = vset.pattern.permute.xlu0 1
    %10017 = vperm.xlu0 %10016, %v9638
    %v10018 = vpop.permute.xlu0 %10017
    %10020 = vset.pattern.permute.xlu0 1
    %10021 = vperm.xlu0 %10020, %v9639
    %v10022 = vpop.permute.xlu0 %10021
    %10024 = vset.pattern.permute.xlu0 1
    %10025 = vperm.xlu0 %10024, %v9640
    %v10026 = vpop.permute.xlu0 %10025
    %10028 = vset.pattern.permute.xlu0 1
    %10029 = vperm.xlu0 %10028, %v9641
    %v10030 = vpop.permute.xlu0 %10029
    %10032 = vset.pattern.permute.xlu0 1
    %10033 = vperm.xlu0 %10032, %v9642
    %v10034 = vpop.permute.xlu0 %10033
    %10036 = vset.pattern.permute.xlu0 1
    %10037 = vperm.xlu0 %10036, %v9643
    %v10038 = vpop.permute.xlu0 %10037
    %10040 = vset.pattern.permute.xlu0 1
    %10041 = vperm.xlu0 %10040, %v9644
    %v10042 = vpop.permute.xlu0 %10041
    %10044 = vset.pattern.permute.xlu0 1
    %10045 = vperm.xlu0 %10044, %v9645
    %v10046 = vpop.permute.xlu0 %10045
    %10048 = vset.pattern.permute.xlu0 1
    %10049 = vperm.xlu0 %10048, %v9646
    %v10050 = vpop.permute.xlu0 %10049
    %10052 = vset.pattern.permute.xlu0 1
    %10053 = vperm.xlu0 %10052, %v9647
    %v10054 = vpop.permute.xlu0 %10053
    %10056 = vset.pattern.permute.xlu0 1
    %10057 = vperm.xlu0 %10056, %v9648
    %v10058 = vpop.permute.xlu0 %10057
    %10060 = vset.pattern.permute.xlu0 1
    %10061 = vperm.xlu0 %10060, %v9649
    %v10062 = vpop.permute.xlu0 %10061
    %10064 = vset.pattern.permute.xlu0 1
    %10065 = vperm.xlu0 %10064, %v9650
    %v10066 = vpop.permute.xlu0 %10065
    %10068 = vset.pattern.permute.xlu0 1
    %10069 = vperm.xlu0 %10068, %v9651
    %v10070 = vpop.permute.xlu0 %10069
    %10072 = vset.pattern.permute.xlu0 1
    %10073 = vperm.xlu0 %10072, %v9652
    %v10074 = vpop.permute.xlu0 %10073
    %10076 = vset.pattern.permute.xlu0 1
    %10077 = vperm.xlu0 %10076, %v9653
    %v10078 = vpop.permute.xlu0 %10077
    %10080 = vset.pattern.permute.xlu0 1
    %10081 = vperm.xlu0 %10080, %v9654
    %v10082 = vpop.permute.xlu0 %10081
    %10084 = vset.pattern.permute.xlu0 1
    %10085 = vperm.xlu0 %10084, %v9655
    %v10086 = vpop.permute.xlu0 %10085
    %10088 = vset.pattern.permute.xlu0 1
    %10089 = vperm.xlu0 %10088, %v9656
    %v10090 = vpop.permute.xlu0 %10089
    %10092 = vset.pattern.permute.xlu0 1
    %10093 = vperm.xlu0 %10092, %v9657
    %v10094 = vpop.permute.xlu0 %10093
    %10096 = vset.pattern.permute.xlu0 1
    %10097 = vperm.xlu0 %10096, %v9658
    %v10098 = vpop.permute.xlu0 %10097
    %10100 = vset.pattern.permute.xlu0 1
    %10101 = vperm.xlu0 %10100, %v9659
    %v10102 = vpop.permute.xlu0 %10101
    %10104 = vset.pattern.permute.xlu0 1
    %10105 = vperm.xlu0 %10104, %v9660
    %v10106 = vpop.permute.xlu0 %10105
    %10108 = vset.pattern.permute.xlu0 1
    %10109 = vperm.xlu0 %10108, %v9661
    %v10110 = vpop.permute.xlu0 %10109
    %v10112 = vmul.f32 %v9994, %v543
    %v10113 = vmul.f32 %v9994, %v547
    %v10114 = vmul.f32 %v9994, %v551
    %v10115 = vmul.f32 %v9994, %v555
    %v10116 = vmul.f32 %v9994, %v559
    %v10117 = vmul.f32 %v9994, %v563
    %v10118 = vmul.f32 %v9998, %v543
    %v10119 = vmul.f32 %v9998, %v547
    %v10120 = vmul.f32 %v9998, %v551
    %v10121 = vmul.f32 %v9998, %v555
    %v10122 = vmul.f32 %v9998, %v559
    %v10123 = vmul.f32 %v9998, %v563
    %v10124 = vmul.f32 %v10002, %v543
    %v10125 = vmul.f32 %v10002, %v547
    %v10126 = vmul.f32 %v10002, %v551
    %v10127 = vmul.f32 %v10002, %v555
    %v10128 = vmul.f32 %v10002, %v559
    %v10129 = vmul.f32 %v10002, %v563
    %v10130 = vmul.f32 %v10006, %v543
    %v10131 = vmul.f32 %v10006, %v547
    %v10132 = vmul.f32 %v10006, %v551
    %v10133 = vmul.f32 %v10006, %v555
    %v10134 = vmul.f32 %v10006, %v559
    %v10135 = vmul.f32 %v10006, %v563
    %v10136 = vmul.f32 %v10010, %v543
    %v10137 = vmul.f32 %v10010, %v547
    %v10138 = vmul.f32 %v10010, %v551
    %v10139 = vmul.f32 %v10010, %v555
    %v10140 = vmul.f32 %v10010, %v559
    %v10141 = vmul.f32 %v10010, %v563
    %v10142 = vmul.f32 %v10014, %v543
    %v10143 = vmul.f32 %v10014, %v547
    %v10144 = vmul.f32 %v10014, %v551
    %v10145 = vmul.f32 %v10014, %v555
    %v10146 = vmul.f32 %v10014, %v559
    %v10147 = vmul.f32 %v10014, %v563
    %v10148 = vmul.f32 %v10018, %v543
    %v10149 = vmul.f32 %v10018, %v547
    %v10150 = vmul.f32 %v10018, %v551
    %v10151 = vmul.f32 %v10018, %v555
    %v10152 = vmul.f32 %v10018, %v559
    %v10153 = vmul.f32 %v10018, %v563
    %v10154 = vmul.f32 %v10022, %v543
    %v10155 = vmul.f32 %v10022, %v547
    %v10156 = vmul.f32 %v10022, %v551
    %v10157 = vmul.f32 %v10022, %v555
    %v10158 = vmul.f32 %v10022, %v559
    %v10159 = vmul.f32 %v10022, %v563
    %v10160 = vmul.f32 %v10026, %v543
    %v10161 = vmul.f32 %v10026, %v547
    %v10162 = vmul.f32 %v10026, %v551
    %v10163 = vmul.f32 %v10026, %v555
    %v10164 = vmul.f32 %v10026, %v559
    %v10165 = vmul.f32 %v10026, %v563
    %v10166 = vmul.f32 %v10030, %v543
    %v10167 = vmul.f32 %v10030, %v547
    %v10168 = vmul.f32 %v10030, %v551
    %v10169 = vmul.f32 %v10030, %v555
    %v10170 = vmul.f32 %v10030, %v559
    %v10171 = vmul.f32 %v10030, %v563
    %v10172 = vmul.f32 %v10034, %v543
    %v10173 = vmul.f32 %v10034, %v547
    %v10174 = vmul.f32 %v10034, %v551
    %v10175 = vmul.f32 %v10034, %v555
    %v10176 = vmul.f32 %v10034, %v559
    %v10177 = vmul.f32 %v10034, %v563
    %v10178 = vmul.f32 %v10038, %v543
    %v10179 = vmul.f32 %v10038, %v547
    %v10180 = vmul.f32 %v10038, %v551
    %v10181 = vmul.f32 %v10038, %v555
    %v10182 = vmul.f32 %v10038, %v559
    %v10183 = vmul.f32 %v10038, %v563
    %v10184 = vmul.f32 %v10042, %v543
    %v10185 = vmul.f32 %v10042, %v547
    %v10186 = vmul.f32 %v10042, %v551
    %v10187 = vmul.f32 %v10042, %v555
    %v10188 = vmul.f32 %v10042, %v559
    %v10189 = vmul.f32 %v10042, %v563
    %v10190 = vmul.f32 %v10046, %v543
    %v10191 = vmul.f32 %v10046, %v547
    %v10192 = vmul.f32 %v10046, %v551
    %v10193 = vmul.f32 %v10046, %v555
    %v10194 = vmul.f32 %v10046, %v559
    %v10195 = vmul.f32 %v10046, %v563
    %v10196 = vmul.f32 %v10050, %v543
    %v10197 = vmul.f32 %v10050, %v547
    %v10198 = vmul.f32 %v10050, %v551
    %v10199 = vmul.f32 %v10050, %v555
    %v10200 = vmul.f32 %v10050, %v559
    %v10201 = vmul.f32 %v10050, %v563
    %v10202 = vmul.f32 %v10054, %v543
    %v10203 = vmul.f32 %v10054, %v547
    %v10204 = vmul.f32 %v10054, %v551
    %v10205 = vmul.f32 %v10054, %v555
    %v10206 = vmul.f32 %v10054, %v559
    %v10207 = vmul.f32 %v10054, %v563
    %v10208 = vmul.f32 %v10058, %v543
    %v10209 = vmul.f32 %v10058, %v547
    %v10210 = vmul.f32 %v10058, %v551
    %v10211 = vmul.f32 %v10058, %v555
    %v10212 = vmul.f32 %v10058, %v559
    %v10213 = vmul.f32 %v10058, %v563
    %v10214 = vmul.f32 %v10062, %v543
    %v10215 = vmul.f32 %v10062, %v547
    %v10216 = vmul.f32 %v10062, %v551
    %v10217 = vmul.f32 %v10062, %v555
    %v10218 = vmul.f32 %v10062, %v559
    %v10219 = vmul.f32 %v10062, %v563
    %v10220 = vmul.f32 %v10066, %v543
    %v10221 = vmul.f32 %v10066, %v547
    %v10222 = vmul.f32 %v10066, %v551
    %v10223 = vmul.f32 %v10066, %v555
    %v10224 = vmul.f32 %v10066, %v559
    %v10225 = vmul.f32 %v10066, %v563
    %v10226 = vmul.f32 %v10070, %v543
    %v10227 = vmul.f32 %v10070, %v547
    %v10228 = vmul.f32 %v10070, %v551
    %v10229 = vmul.f32 %v10070, %v555
    %v10230 = vmul.f32 %v10070, %v559
    %v10231 = vmul.f32 %v10070, %v563
    %v10232 = vmul.f32 %v10074, %v543
    %v10233 = vmul.f32 %v10074, %v547
    %v10234 = vmul.f32 %v10074, %v551
    %v10235 = vmul.f32 %v10074, %v555
    %v10236 = vmul.f32 %v10074, %v559
    %v10237 = vmul.f32 %v10074, %v563
    %v10238 = vmul.f32 %v10078, %v543
    %v10239 = vmul.f32 %v10078, %v547
    %v10240 = vmul.f32 %v10078, %v551
    %v10241 = vmul.f32 %v10078, %v555
    %v10242 = vmul.f32 %v10078, %v559
    %v10243 = vmul.f32 %v10078, %v563
    %v10244 = vmul.f32 %v10082, %v543
    %v10245 = vmul.f32 %v10082, %v547
    %v10246 = vmul.f32 %v10082, %v551
    %v10247 = vmul.f32 %v10082, %v555
    %v10248 = vmul.f32 %v10082, %v559
    %v10249 = vmul.f32 %v10082, %v563
    %v10250 = vmul.f32 %v10086, %v543
    %v10251 = vmul.f32 %v10086, %v547
    %v10252 = vmul.f32 %v10086, %v551
    %v10253 = vmul.f32 %v10086, %v555
    %v10254 = vmul.f32 %v10086, %v559
    %v10255 = vmul.f32 %v10086, %v563
    %v10256 = vmul.f32 %v10090, %v543
    %v10257 = vmul.f32 %v10090, %v547
    %v10258 = vmul.f32 %v10090, %v551
    %v10259 = vmul.f32 %v10090, %v555
    %v10260 = vmul.f32 %v10090, %v559
    %v10261 = vmul.f32 %v10090, %v563
    %v10262 = vmul.f32 %v10094, %v543
    %v10263 = vmul.f32 %v10094, %v547
    %v10264 = vmul.f32 %v10094, %v551
    %v10265 = vmul.f32 %v10094, %v555
    %v10266 = vmul.f32 %v10094, %v559
    %v10267 = vmul.f32 %v10094, %v563
    %v10268 = vmul.f32 %v10098, %v543
    %v10269 = vmul.f32 %v10098, %v547
    %v10270 = vmul.f32 %v10098, %v551
    %v10271 = vmul.f32 %v10098, %v555
    %v10272 = vmul.f32 %v10098, %v559
    %v10273 = vmul.f32 %v10098, %v563
    %v10274 = vmul.f32 %v10102, %v543
    %v10275 = vmul.f32 %v10102, %v547
    %v10276 = vmul.f32 %v10102, %v551
    %v10277 = vmul.f32 %v10102, %v555
    %v10278 = vmul.f32 %v10102, %v559
    %v10279 = vmul.f32 %v10102, %v563
    %v10280 = vmul.f32 %v10106, %v543
    %v10281 = vmul.f32 %v10106, %v547
    %v10282 = vmul.f32 %v10106, %v551
    %v10283 = vmul.f32 %v10106, %v555
    %v10284 = vmul.f32 %v10106, %v559
    %v10285 = vmul.f32 %v10106, %v563
    %v10286 = vmul.f32 %v10110, %v543
    %v10287 = vmul.f32 %v10110, %v547
    %v10288 = vmul.f32 %v10110, %v551
    %v10289 = vmul.f32 %v10110, %v555
    %v10290 = vmul.f32 %v10110, %v559
    %v10291 = vmul.f32 %v10110, %v563
    %v10292 = vadd.f32 %v9812, %v10112
    %v10293 = vadd.f32 %v9813, %v10113
    %v10294 = vadd.f32 %v9814, %v10114
    %v10295 = vadd.f32 %v9815, %v10115
    %v10296 = vadd.f32 %v9816, %v10116
    %v10297 = vadd.f32 %v9817, %v10117
    %v10298 = vadd.f32 %v9818, %v10118
    %v10299 = vadd.f32 %v9819, %v10119
    %v10300 = vadd.f32 %v9820, %v10120
    %v10301 = vadd.f32 %v9821, %v10121
    %v10302 = vadd.f32 %v9822, %v10122
    %v10303 = vadd.f32 %v9823, %v10123
    %v10304 = vadd.f32 %v9824, %v10124
    %v10305 = vadd.f32 %v9825, %v10125
    %v10306 = vadd.f32 %v9826, %v10126
    %v10307 = vadd.f32 %v9827, %v10127
    %v10308 = vadd.f32 %v9828, %v10128
    %v10309 = vadd.f32 %v9829, %v10129
    %v10310 = vadd.f32 %v9830, %v10130
    %v10311 = vadd.f32 %v9831, %v10131
    %v10312 = vadd.f32 %v9832, %v10132
    %v10313 = vadd.f32 %v9833, %v10133
    %v10314 = vadd.f32 %v9834, %v10134
    %v10315 = vadd.f32 %v9835, %v10135
    %v10316 = vadd.f32 %v9836, %v10136
    %v10317 = vadd.f32 %v9837, %v10137
    %v10318 = vadd.f32 %v9838, %v10138
    %v10319 = vadd.f32 %v9839, %v10139
    %v10320 = vadd.f32 %v9840, %v10140
    %v10321 = vadd.f32 %v9841, %v10141
    %v10322 = vadd.f32 %v9842, %v10142
    %v10323 = vadd.f32 %v9843, %v10143
    %v10324 = vadd.f32 %v9844, %v10144
    %v10325 = vadd.f32 %v9845, %v10145
    %v10326 = vadd.f32 %v9846, %v10146
    %v10327 = vadd.f32 %v9847, %v10147
    %v10328 = vadd.f32 %v9848, %v10148
    %v10329 = vadd.f32 %v9849, %v10149
    %v10330 = vadd.f32 %v9850, %v10150
    %v10331 = vadd.f32 %v9851, %v10151
    %v10332 = vadd.f32 %v9852, %v10152
    %v10333 = vadd.f32 %v9853, %v10153
    %v10334 = vadd.f32 %v9854, %v10154
    %v10335 = vadd.f32 %v9855, %v10155
    %v10336 = vadd.f32 %v9856, %v10156
    %v10337 = vadd.f32 %v9857, %v10157
    %v10338 = vadd.f32 %v9858, %v10158
    %v10339 = vadd.f32 %v9859, %v10159
    %v10340 = vadd.f32 %v9860, %v10160
    %v10341 = vadd.f32 %v9861, %v10161
    %v10342 = vadd.f32 %v9862, %v10162
    %v10343 = vadd.f32 %v9863, %v10163
    %v10344 = vadd.f32 %v9864, %v10164
    %v10345 = vadd.f32 %v9865, %v10165
    %v10346 = vadd.f32 %v9866, %v10166
    %v10347 = vadd.f32 %v9867, %v10167
    %v10348 = vadd.f32 %v9868, %v10168
    %v10349 = vadd.f32 %v9869, %v10169
    %v10350 = vadd.f32 %v9870, %v10170
    %v10351 = vadd.f32 %v9871, %v10171
    %v10352 = vadd.f32 %v9872, %v10172
    %v10353 = vadd.f32 %v9873, %v10173
    %v10354 = vadd.f32 %v9874, %v10174
    %v10355 = vadd.f32 %v9875, %v10175
    %v10356 = vadd.f32 %v9876, %v10176
    %v10357 = vadd.f32 %v9877, %v10177
    %v10358 = vadd.f32 %v9878, %v10178
    %v10359 = vadd.f32 %v9879, %v10179
    %v10360 = vadd.f32 %v9880, %v10180
    %v10361 = vadd.f32 %v9881, %v10181
    %v10362 = vadd.f32 %v9882, %v10182
    %v10363 = vadd.f32 %v9883, %v10183
    %v10364 = vadd.f32 %v9884, %v10184
    %v10365 = vadd.f32 %v9885, %v10185
    %v10366 = vadd.f32 %v9886, %v10186
    %v10367 = vadd.f32 %v9887, %v10187
    %v10368 = vadd.f32 %v9888, %v10188
    %v10369 = vadd.f32 %v9889, %v10189
    %v10370 = vadd.f32 %v9890, %v10190
    %v10371 = vadd.f32 %v9891, %v10191
    %v10372 = vadd.f32 %v9892, %v10192
    %v10373 = vadd.f32 %v9893, %v10193
    %v10374 = vadd.f32 %v9894, %v10194
    %v10375 = vadd.f32 %v9895, %v10195
    %v10376 = vadd.f32 %v9896, %v10196
    %v10377 = vadd.f32 %v9897, %v10197
    %v10378 = vadd.f32 %v9898, %v10198
    %v10379 = vadd.f32 %v9899, %v10199
    %v10380 = vadd.f32 %v9900, %v10200
    %v10381 = vadd.f32 %v9901, %v10201
    %v10382 = vadd.f32 %v9902, %v10202
    %v10383 = vadd.f32 %v9903, %v10203
    %v10384 = vadd.f32 %v9904, %v10204
    %v10385 = vadd.f32 %v9905, %v10205
    %v10386 = vadd.f32 %v9906, %v10206
    %v10387 = vadd.f32 %v9907, %v10207
    %v10388 = vadd.f32 %v9908, %v10208
    %v10389 = vadd.f32 %v9909, %v10209
    %v10390 = vadd.f32 %v9910, %v10210
    %v10391 = vadd.f32 %v9911, %v10211
    %v10392 = vadd.f32 %v9912, %v10212
    %v10393 = vadd.f32 %v9913, %v10213
    %v10394 = vadd.f32 %v9914, %v10214
    %v10395 = vadd.f32 %v9915, %v10215
    %v10396 = vadd.f32 %v9916, %v10216
    %v10397 = vadd.f32 %v9917, %v10217
    %v10398 = vadd.f32 %v9918, %v10218
    %v10399 = vadd.f32 %v9919, %v10219
    %v10400 = vadd.f32 %v9920, %v10220
    %v10401 = vadd.f32 %v9921, %v10221
    %v10402 = vadd.f32 %v9922, %v10222
    %v10403 = vadd.f32 %v9923, %v10223
    %v10404 = vadd.f32 %v9924, %v10224
    %v10405 = vadd.f32 %v9925, %v10225
    %v10406 = vadd.f32 %v9926, %v10226
    %v10407 = vadd.f32 %v9927, %v10227
    %v10408 = vadd.f32 %v9928, %v10228
    %v10409 = vadd.f32 %v9929, %v10229
    %v10410 = vadd.f32 %v9930, %v10230
    %v10411 = vadd.f32 %v9931, %v10231
    %v10412 = vadd.f32 %v9932, %v10232
    %v10413 = vadd.f32 %v9933, %v10233
    %v10414 = vadd.f32 %v9934, %v10234
    %v10415 = vadd.f32 %v9935, %v10235
    %v10416 = vadd.f32 %v9936, %v10236
    %v10417 = vadd.f32 %v9937, %v10237
    %v10418 = vadd.f32 %v9938, %v10238
    %v10419 = vadd.f32 %v9939, %v10239
    %v10420 = vadd.f32 %v9940, %v10240
    %v10421 = vadd.f32 %v9941, %v10241
    %v10422 = vadd.f32 %v9942, %v10242
    %v10423 = vadd.f32 %v9943, %v10243
    %v10424 = vadd.f32 %v9944, %v10244
    %v10425 = vadd.f32 %v9945, %v10245
    %v10426 = vadd.f32 %v9946, %v10246
    %v10427 = vadd.f32 %v9947, %v10247
    %v10428 = vadd.f32 %v9948, %v10248
    %v10429 = vadd.f32 %v9949, %v10249
    %v10430 = vadd.f32 %v9950, %v10250
    %v10431 = vadd.f32 %v9951, %v10251
    %v10432 = vadd.f32 %v9952, %v10252
    %v10433 = vadd.f32 %v9953, %v10253
    %v10434 = vadd.f32 %v9954, %v10254
    %v10435 = vadd.f32 %v9955, %v10255
    %v10436 = vadd.f32 %v9956, %v10256
    %v10437 = vadd.f32 %v9957, %v10257
    %v10438 = vadd.f32 %v9958, %v10258
    %v10439 = vadd.f32 %v9959, %v10259
    %v10440 = vadd.f32 %v9960, %v10260
    %v10441 = vadd.f32 %v9961, %v10261
    %v10442 = vadd.f32 %v9962, %v10262
    %v10443 = vadd.f32 %v9963, %v10263
    %v10444 = vadd.f32 %v9964, %v10264
    %v10445 = vadd.f32 %v9965, %v10265
    %v10446 = vadd.f32 %v9966, %v10266
    %v10447 = vadd.f32 %v9967, %v10267
    %v10448 = vadd.f32 %v9968, %v10268
    %v10449 = vadd.f32 %v9969, %v10269
    %v10450 = vadd.f32 %v9970, %v10270
    %v10451 = vadd.f32 %v9971, %v10271
    %v10452 = vadd.f32 %v9972, %v10272
    %v10453 = vadd.f32 %v9973, %v10273
    %v10454 = vadd.f32 %v9974, %v10274
    %v10455 = vadd.f32 %v9975, %v10275
    %v10456 = vadd.f32 %v9976, %v10276
    %v10457 = vadd.f32 %v9977, %v10277
    %v10458 = vadd.f32 %v9978, %v10278
    %v10459 = vadd.f32 %v9979, %v10279
    %v10460 = vadd.f32 %v9980, %v10280
    %v10461 = vadd.f32 %v9981, %v10281
    %v10462 = vadd.f32 %v9982, %v10282
    %v10463 = vadd.f32 %v9983, %v10283
    %v10464 = vadd.f32 %v9984, %v10284
    %v10465 = vadd.f32 %v9985, %v10285
    %v10466 = vadd.f32 %v9986, %v10286
    %v10467 = vadd.f32 %v9987, %v10287
    %v10468 = vadd.f32 %v9988, %v10288
    %v10469 = vadd.f32 %v9989, %v10289
    %v10470 = vadd.f32 %v9990, %v10290
    %v10471 = vadd.f32 %v9991, %v10291
    %10472 = vset.pattern.permute.xlu0 2
    %10473 = vperm.xlu0 %10472, %v9632
    %v10474 = vpop.permute.xlu0 %10473
    %10476 = vset.pattern.permute.xlu0 2
    %10477 = vperm.xlu0 %10476, %v9633
    %v10478 = vpop.permute.xlu0 %10477
    %10480 = vset.pattern.permute.xlu0 2
    %10481 = vperm.xlu0 %10480, %v9634
    %v10482 = vpop.permute.xlu0 %10481
    %10484 = vset.pattern.permute.xlu0 2
    %10485 = vperm.xlu0 %10484, %v9635
    %v10486 = vpop.permute.xlu0 %10485
    %10488 = vset.pattern.permute.xlu0 2
    %10489 = vperm.xlu0 %10488, %v9636
    %v10490 = vpop.permute.xlu0 %10489
    %10492 = vset.pattern.permute.xlu0 2
    %10493 = vperm.xlu0 %10492, %v9637
    %v10494 = vpop.permute.xlu0 %10493
    %10496 = vset.pattern.permute.xlu0 2
    %10497 = vperm.xlu0 %10496, %v9638
    %v10498 = vpop.permute.xlu0 %10497
    %10500 = vset.pattern.permute.xlu0 2
    %10501 = vperm.xlu0 %10500, %v9639
    %v10502 = vpop.permute.xlu0 %10501
    %10504 = vset.pattern.permute.xlu0 2
    %10505 = vperm.xlu0 %10504, %v9640
    %v10506 = vpop.permute.xlu0 %10505
    %10508 = vset.pattern.permute.xlu0 2
    %10509 = vperm.xlu0 %10508, %v9641
    %v10510 = vpop.permute.xlu0 %10509
    %10512 = vset.pattern.permute.xlu0 2
    %10513 = vperm.xlu0 %10512, %v9642
    %v10514 = vpop.permute.xlu0 %10513
    %10516 = vset.pattern.permute.xlu0 2
    %10517 = vperm.xlu0 %10516, %v9643
    %v10518 = vpop.permute.xlu0 %10517
    %10520 = vset.pattern.permute.xlu0 2
    %10521 = vperm.xlu0 %10520, %v9644
    %v10522 = vpop.permute.xlu0 %10521
    %10524 = vset.pattern.permute.xlu0 2
    %10525 = vperm.xlu0 %10524, %v9645
    %v10526 = vpop.permute.xlu0 %10525
    %10528 = vset.pattern.permute.xlu0 2
    %10529 = vperm.xlu0 %10528, %v9646
    %v10530 = vpop.permute.xlu0 %10529
    %10532 = vset.pattern.permute.xlu0 2
    %10533 = vperm.xlu0 %10532, %v9647
    %v10534 = vpop.permute.xlu0 %10533
    %10536 = vset.pattern.permute.xlu0 2
    %10537 = vperm.xlu0 %10536, %v9648
    %v10538 = vpop.permute.xlu0 %10537
    %10540 = vset.pattern.permute.xlu0 2
    %10541 = vperm.xlu0 %10540, %v9649
    %v10542 = vpop.permute.xlu0 %10541
    %10544 = vset.pattern.permute.xlu0 2
    %10545 = vperm.xlu0 %10544, %v9650
    %v10546 = vpop.permute.xlu0 %10545
    %10548 = vset.pattern.permute.xlu0 2
    %10549 = vperm.xlu0 %10548, %v9651
    %v10550 = vpop.permute.xlu0 %10549
    %10552 = vset.pattern.permute.xlu0 2
    %10553 = vperm.xlu0 %10552, %v9652
    %v10554 = vpop.permute.xlu0 %10553
    %10556 = vset.pattern.permute.xlu0 2
    %10557 = vperm.xlu0 %10556, %v9653
    %v10558 = vpop.permute.xlu0 %10557
    %10560 = vset.pattern.permute.xlu0 2
    %10561 = vperm.xlu0 %10560, %v9654
    %v10562 = vpop.permute.xlu0 %10561
    %10564 = vset.pattern.permute.xlu0 2
    %10565 = vperm.xlu0 %10564, %v9655
    %v10566 = vpop.permute.xlu0 %10565
    %10568 = vset.pattern.permute.xlu0 2
    %10569 = vperm.xlu0 %10568, %v9656
    %v10570 = vpop.permute.xlu0 %10569
    %10572 = vset.pattern.permute.xlu0 2
    %10573 = vperm.xlu0 %10572, %v9657
    %v10574 = vpop.permute.xlu0 %10573
    %10576 = vset.pattern.permute.xlu0 2
    %10577 = vperm.xlu0 %10576, %v9658
    %v10578 = vpop.permute.xlu0 %10577
    %10580 = vset.pattern.permute.xlu0 2
    %10581 = vperm.xlu0 %10580, %v9659
    %v10582 = vpop.permute.xlu0 %10581
    %10584 = vset.pattern.permute.xlu0 2
    %10585 = vperm.xlu0 %10584, %v9660
    %v10586 = vpop.permute.xlu0 %10585
    %10588 = vset.pattern.permute.xlu0 2
    %10589 = vperm.xlu0 %10588, %v9661
    %v10590 = vpop.permute.xlu0 %10589
    %v10592 = vmul.f32 %v10474, %v1054
    %v10593 = vmul.f32 %v10474, %v1058
    %v10594 = vmul.f32 %v10474, %v1062
    %v10595 = vmul.f32 %v10474, %v1066
    %v10596 = vmul.f32 %v10474, %v1070
    %v10597 = vmul.f32 %v10474, %v1074
    %v10598 = vmul.f32 %v10478, %v1054
    %v10599 = vmul.f32 %v10478, %v1058
    %v10600 = vmul.f32 %v10478, %v1062
    %v10601 = vmul.f32 %v10478, %v1066
    %v10602 = vmul.f32 %v10478, %v1070
    %v10603 = vmul.f32 %v10478, %v1074
    %v10604 = vmul.f32 %v10482, %v1054
    %v10605 = vmul.f32 %v10482, %v1058
    %v10606 = vmul.f32 %v10482, %v1062
    %v10607 = vmul.f32 %v10482, %v1066
    %v10608 = vmul.f32 %v10482, %v1070
    %v10609 = vmul.f32 %v10482, %v1074
    %v10610 = vmul.f32 %v10486, %v1054
    %v10611 = vmul.f32 %v10486, %v1058
    %v10612 = vmul.f32 %v10486, %v1062
    %v10613 = vmul.f32 %v10486, %v1066
    %v10614 = vmul.f32 %v10486, %v1070
    %v10615 = vmul.f32 %v10486, %v1074
    %v10616 = vmul.f32 %v10490, %v1054
    %v10617 = vmul.f32 %v10490, %v1058
    %v10618 = vmul.f32 %v10490, %v1062
    %v10619 = vmul.f32 %v10490, %v1066
    %v10620 = vmul.f32 %v10490, %v1070
    %v10621 = vmul.f32 %v10490, %v1074
    %v10622 = vmul.f32 %v10494, %v1054
    %v10623 = vmul.f32 %v10494, %v1058
    %v10624 = vmul.f32 %v10494, %v1062
    %v10625 = vmul.f32 %v10494, %v1066
    %v10626 = vmul.f32 %v10494, %v1070
    %v10627 = vmul.f32 %v10494, %v1074
    %v10628 = vmul.f32 %v10498, %v1054
    %v10629 = vmul.f32 %v10498, %v1058
    %v10630 = vmul.f32 %v10498, %v1062
    %v10631 = vmul.f32 %v10498, %v1066
    %v10632 = vmul.f32 %v10498, %v1070
    %v10633 = vmul.f32 %v10498, %v1074
    %v10634 = vmul.f32 %v10502, %v1054
    %v10635 = vmul.f32 %v10502, %v1058
    %v10636 = vmul.f32 %v10502, %v1062
    %v10637 = vmul.f32 %v10502, %v1066
    %v10638 = vmul.f32 %v10502, %v1070
    %v10639 = vmul.f32 %v10502, %v1074
    %v10640 = vmul.f32 %v10506, %v1054
    %v10641 = vmul.f32 %v10506, %v1058
    %v10642 = vmul.f32 %v10506, %v1062
    %v10643 = vmul.f32 %v10506, %v1066
    %v10644 = vmul.f32 %v10506, %v1070
    %v10645 = vmul.f32 %v10506, %v1074
    %v10646 = vmul.f32 %v10510, %v1054
    %v10647 = vmul.f32 %v10510, %v1058
    %v10648 = vmul.f32 %v10510, %v1062
    %v10649 = vmul.f32 %v10510, %v1066
    %v10650 = vmul.f32 %v10510, %v1070
    %v10651 = vmul.f32 %v10510, %v1074
    %v10652 = vmul.f32 %v10514, %v1054
    %v10653 = vmul.f32 %v10514, %v1058
    %v10654 = vmul.f32 %v10514, %v1062
    %v10655 = vmul.f32 %v10514, %v1066
    %v10656 = vmul.f32 %v10514, %v1070
    %v10657 = vmul.f32 %v10514, %v1074
    %v10658 = vmul.f32 %v10518, %v1054
    %v10659 = vmul.f32 %v10518, %v1058
    %v10660 = vmul.f32 %v10518, %v1062
    %v10661 = vmul.f32 %v10518, %v1066
    %v10662 = vmul.f32 %v10518, %v1070
    %v10663 = vmul.f32 %v10518, %v1074
    %v10664 = vmul.f32 %v10522, %v1054
    %v10665 = vmul.f32 %v10522, %v1058
    %v10666 = vmul.f32 %v10522, %v1062
    %v10667 = vmul.f32 %v10522, %v1066
    %v10668 = vmul.f32 %v10522, %v1070
    %v10669 = vmul.f32 %v10522, %v1074
    %v10670 = vmul.f32 %v10526, %v1054
    %v10671 = vmul.f32 %v10526, %v1058
    %v10672 = vmul.f32 %v10526, %v1062
    %v10673 = vmul.f32 %v10526, %v1066
    %v10674 = vmul.f32 %v10526, %v1070
    %v10675 = vmul.f32 %v10526, %v1074
    %v10676 = vmul.f32 %v10530, %v1054
    %v10677 = vmul.f32 %v10530, %v1058
    %v10678 = vmul.f32 %v10530, %v1062
    %v10679 = vmul.f32 %v10530, %v1066
    %v10680 = vmul.f32 %v10530, %v1070
    %v10681 = vmul.f32 %v10530, %v1074
    %v10682 = vmul.f32 %v10534, %v1054
    %v10683 = vmul.f32 %v10534, %v1058
    %v10684 = vmul.f32 %v10534, %v1062
    %v10685 = vmul.f32 %v10534, %v1066
    %v10686 = vmul.f32 %v10534, %v1070
    %v10687 = vmul.f32 %v10534, %v1074
    %v10688 = vmul.f32 %v10538, %v1054
    %v10689 = vmul.f32 %v10538, %v1058
    %v10690 = vmul.f32 %v10538, %v1062
    %v10691 = vmul.f32 %v10538, %v1066
    %v10692 = vmul.f32 %v10538, %v1070
    %v10693 = vmul.f32 %v10538, %v1074
    %v10694 = vmul.f32 %v10542, %v1054
    %v10695 = vmul.f32 %v10542, %v1058
    %v10696 = vmul.f32 %v10542, %v1062
    %v10697 = vmul.f32 %v10542, %v1066
    %v10698 = vmul.f32 %v10542, %v1070
    %v10699 = vmul.f32 %v10542, %v1074
    %v10700 = vmul.f32 %v10546, %v1054
    %v10701 = vmul.f32 %v10546, %v1058
    %v10702 = vmul.f32 %v10546, %v1062
    %v10703 = vmul.f32 %v10546, %v1066
    %v10704 = vmul.f32 %v10546, %v1070
    %v10705 = vmul.f32 %v10546, %v1074
    %v10706 = vmul.f32 %v10550, %v1054
    %v10707 = vmul.f32 %v10550, %v1058
    %v10708 = vmul.f32 %v10550, %v1062
    %v10709 = vmul.f32 %v10550, %v1066
    %v10710 = vmul.f32 %v10550, %v1070
    %v10711 = vmul.f32 %v10550, %v1074
    %v10712 = vmul.f32 %v10554, %v1054
    %v10713 = vmul.f32 %v10554, %v1058
    %v10714 = vmul.f32 %v10554, %v1062
    %v10715 = vmul.f32 %v10554, %v1066
    %v10716 = vmul.f32 %v10554, %v1070
    %v10717 = vmul.f32 %v10554, %v1074
    %v10718 = vmul.f32 %v10558, %v1054
    %v10719 = vmul.f32 %v10558, %v1058
    %v10720 = vmul.f32 %v10558, %v1062
    %v10721 = vmul.f32 %v10558, %v1066
    %v10722 = vmul.f32 %v10558, %v1070
    %v10723 = vmul.f32 %v10558, %v1074
    %v10724 = vmul.f32 %v10562, %v1054
    %v10725 = vmul.f32 %v10562, %v1058
    %v10726 = vmul.f32 %v10562, %v1062
    %v10727 = vmul.f32 %v10562, %v1066
    %v10728 = vmul.f32 %v10562, %v1070
    %v10729 = vmul.f32 %v10562, %v1074
    %v10730 = vmul.f32 %v10566, %v1054
    %v10731 = vmul.f32 %v10566, %v1058
    %v10732 = vmul.f32 %v10566, %v1062
    %v10733 = vmul.f32 %v10566, %v1066
    %v10734 = vmul.f32 %v10566, %v1070
    %v10735 = vmul.f32 %v10566, %v1074
    %v10736 = vmul.f32 %v10570, %v1054
    %v10737 = vmul.f32 %v10570, %v1058
    %v10738 = vmul.f32 %v10570, %v1062
    %v10739 = vmul.f32 %v10570, %v1066
    %v10740 = vmul.f32 %v10570, %v1070
    %v10741 = vmul.f32 %v10570, %v1074
    %v10742 = vmul.f32 %v10574, %v1054
    %v10743 = vmul.f32 %v10574, %v1058
    %v10744 = vmul.f32 %v10574, %v1062
    %v10745 = vmul.f32 %v10574, %v1066
    %v10746 = vmul.f32 %v10574, %v1070
    %v10747 = vmul.f32 %v10574, %v1074
    %v10748 = vmul.f32 %v10578, %v1054
    %v10749 = vmul.f32 %v10578, %v1058
    %v10750 = vmul.f32 %v10578, %v1062
    %v10751 = vmul.f32 %v10578, %v1066
    %v10752 = vmul.f32 %v10578, %v1070
    %v10753 = vmul.f32 %v10578, %v1074
    %v10754 = vmul.f32 %v10582, %v1054
    %v10755 = vmul.f32 %v10582, %v1058
    %v10756 = vmul.f32 %v10582, %v1062
    %v10757 = vmul.f32 %v10582, %v1066
    %v10758 = vmul.f32 %v10582, %v1070
    %v10759 = vmul.f32 %v10582, %v1074
    %v10760 = vmul.f32 %v10586, %v1054
    %v10761 = vmul.f32 %v10586, %v1058
    %v10762 = vmul.f32 %v10586, %v1062
    %v10763 = vmul.f32 %v10586, %v1066
    %v10764 = vmul.f32 %v10586, %v1070
    %v10765 = vmul.f32 %v10586, %v1074
    %v10766 = vmul.f32 %v10590, %v1054
    %v10767 = vmul.f32 %v10590, %v1058
    %v10768 = vmul.f32 %v10590, %v1062
    %v10769 = vmul.f32 %v10590, %v1066
    %v10770 = vmul.f32 %v10590, %v1070
    %v10771 = vmul.f32 %v10590, %v1074
    %v10772 = vadd.f32 %v10292, %v10592
    %v10773 = vadd.f32 %v10293, %v10593
    %v10774 = vadd.f32 %v10294, %v10594
    %v10775 = vadd.f32 %v10295, %v10595
    %v10776 = vadd.f32 %v10296, %v10596
    %v10777 = vadd.f32 %v10297, %v10597
    %v10778 = vadd.f32 %v10298, %v10598
    %v10779 = vadd.f32 %v10299, %v10599
    %v10780 = vadd.f32 %v10300, %v10600
    %v10781 = vadd.f32 %v10301, %v10601
    %v10782 = vadd.f32 %v10302, %v10602
    %v10783 = vadd.f32 %v10303, %v10603
    %v10784 = vadd.f32 %v10304, %v10604
    %v10785 = vadd.f32 %v10305, %v10605
    %v10786 = vadd.f32 %v10306, %v10606
    %v10787 = vadd.f32 %v10307, %v10607
    %v10788 = vadd.f32 %v10308, %v10608
    %v10789 = vadd.f32 %v10309, %v10609
    %v10790 = vadd.f32 %v10310, %v10610
    %v10791 = vadd.f32 %v10311, %v10611
    %v10792 = vadd.f32 %v10312, %v10612
    %v10793 = vadd.f32 %v10313, %v10613
    %v10794 = vadd.f32 %v10314, %v10614
    %v10795 = vadd.f32 %v10315, %v10615
    %v10796 = vadd.f32 %v10316, %v10616
    %v10797 = vadd.f32 %v10317, %v10617
    %v10798 = vadd.f32 %v10318, %v10618
    %v10799 = vadd.f32 %v10319, %v10619
    %v10800 = vadd.f32 %v10320, %v10620
    %v10801 = vadd.f32 %v10321, %v10621
    %v10802 = vadd.f32 %v10322, %v10622
    %v10803 = vadd.f32 %v10323, %v10623
    %v10804 = vadd.f32 %v10324, %v10624
    %v10805 = vadd.f32 %v10325, %v10625
    %v10806 = vadd.f32 %v10326, %v10626
    %v10807 = vadd.f32 %v10327, %v10627
    %v10808 = vadd.f32 %v10328, %v10628
    %v10809 = vadd.f32 %v10329, %v10629
    %v10810 = vadd.f32 %v10330, %v10630
    %v10811 = vadd.f32 %v10331, %v10631
    %v10812 = vadd.f32 %v10332, %v10632
    %v10813 = vadd.f32 %v10333, %v10633
    %v10814 = vadd.f32 %v10334, %v10634
    %v10815 = vadd.f32 %v10335, %v10635
    %v10816 = vadd.f32 %v10336, %v10636
    %v10817 = vadd.f32 %v10337, %v10637
    %v10818 = vadd.f32 %v10338, %v10638
    %v10819 = vadd.f32 %v10339, %v10639
    %v10820 = vadd.f32 %v10340, %v10640
    %v10821 = vadd.f32 %v10341, %v10641
    %v10822 = vadd.f32 %v10342, %v10642
    %v10823 = vadd.f32 %v10343, %v10643
    %v10824 = vadd.f32 %v10344, %v10644
    %v10825 = vadd.f32 %v10345, %v10645
    %v10826 = vadd.f32 %v10346, %v10646
    %v10827 = vadd.f32 %v10347, %v10647
    %v10828 = vadd.f32 %v10348, %v10648
    %v10829 = vadd.f32 %v10349, %v10649
    %v10830 = vadd.f32 %v10350, %v10650
    %v10831 = vadd.f32 %v10351, %v10651
    %v10832 = vadd.f32 %v10352, %v10652
    %v10833 = vadd.f32 %v10353, %v10653
    %v10834 = vadd.f32 %v10354, %v10654
    %v10835 = vadd.f32 %v10355, %v10655
    %v10836 = vadd.f32 %v10356, %v10656
    %v10837 = vadd.f32 %v10357, %v10657
    %v10838 = vadd.f32 %v10358, %v10658
    %v10839 = vadd.f32 %v10359, %v10659
    %v10840 = vadd.f32 %v10360, %v10660
    %v10841 = vadd.f32 %v10361, %v10661
    %v10842 = vadd.f32 %v10362, %v10662
    %v10843 = vadd.f32 %v10363, %v10663
    %v10844 = vadd.f32 %v10364, %v10664
    %v10845 = vadd.f32 %v10365, %v10665
    %v10846 = vadd.f32 %v10366, %v10666
    %v10847 = vadd.f32 %v10367, %v10667
    %v10848 = vadd.f32 %v10368, %v10668
    %v10849 = vadd.f32 %v10369, %v10669
    %v10850 = vadd.f32 %v10370, %v10670
    %v10851 = vadd.f32 %v10371, %v10671
    %v10852 = vadd.f32 %v10372, %v10672
    %v10853 = vadd.f32 %v10373, %v10673
    %v10854 = vadd.f32 %v10374, %v10674
    %v10855 = vadd.f32 %v10375, %v10675
    %v10856 = vadd.f32 %v10376, %v10676
    %v10857 = vadd.f32 %v10377, %v10677
    %v10858 = vadd.f32 %v10378, %v10678
    %v10859 = vadd.f32 %v10379, %v10679
    %v10860 = vadd.f32 %v10380, %v10680
    %v10861 = vadd.f32 %v10381, %v10681
    %v10862 = vadd.f32 %v10382, %v10682
    %v10863 = vadd.f32 %v10383, %v10683
    %v10864 = vadd.f32 %v10384, %v10684
    %v10865 = vadd.f32 %v10385, %v10685
    %v10866 = vadd.f32 %v10386, %v10686
    %v10867 = vadd.f32 %v10387, %v10687
    %v10868 = vadd.f32 %v10388, %v10688
    %v10869 = vadd.f32 %v10389, %v10689
    %v10870 = vadd.f32 %v10390, %v10690
    %v10871 = vadd.f32 %v10391, %v10691
    %v10872 = vadd.f32 %v10392, %v10692
    %v10873 = vadd.f32 %v10393, %v10693
    %v10874 = vadd.f32 %v10394, %v10694
    %v10875 = vadd.f32 %v10395, %v10695
    %v10876 = vadd.f32 %v10396, %v10696
    %v10877 = vadd.f32 %v10397, %v10697
    %v10878 = vadd.f32 %v10398, %v10698
    %v10879 = vadd.f32 %v10399, %v10699
    %v10880 = vadd.f32 %v10400, %v10700
    %v10881 = vadd.f32 %v10401, %v10701
    %v10882 = vadd.f32 %v10402, %v10702
    %v10883 = vadd.f32 %v10403, %v10703
    %v10884 = vadd.f32 %v10404, %v10704
    %v10885 = vadd.f32 %v10405, %v10705
    %v10886 = vadd.f32 %v10406, %v10706
    %v10887 = vadd.f32 %v10407, %v10707
    %v10888 = vadd.f32 %v10408, %v10708
    %v10889 = vadd.f32 %v10409, %v10709
    %v10890 = vadd.f32 %v10410, %v10710
    %v10891 = vadd.f32 %v10411, %v10711
    %v10892 = vadd.f32 %v10412, %v10712
    %v10893 = vadd.f32 %v10413, %v10713
    %v10894 = vadd.f32 %v10414, %v10714
    %v10895 = vadd.f32 %v10415, %v10715
    %v10896 = vadd.f32 %v10416, %v10716
    %v10897 = vadd.f32 %v10417, %v10717
    %v10898 = vadd.f32 %v10418, %v10718
    %v10899 = vadd.f32 %v10419, %v10719
    %v10900 = vadd.f32 %v10420, %v10720
    %v10901 = vadd.f32 %v10421, %v10721
    %v10902 = vadd.f32 %v10422, %v10722
    %v10903 = vadd.f32 %v10423, %v10723
    %v10904 = vadd.f32 %v10424, %v10724
    %v10905 = vadd.f32 %v10425, %v10725
    %v10906 = vadd.f32 %v10426, %v10726
    %v10907 = vadd.f32 %v10427, %v10727
    %v10908 = vadd.f32 %v10428, %v10728
    %v10909 = vadd.f32 %v10429, %v10729
    %v10910 = vadd.f32 %v10430, %v10730
    %v10911 = vadd.f32 %v10431, %v10731
    %v10912 = vadd.f32 %v10432, %v10732
    %v10913 = vadd.f32 %v10433, %v10733
    %v10914 = vadd.f32 %v10434, %v10734
    %v10915 = vadd.f32 %v10435, %v10735
    %v10916 = vadd.f32 %v10436, %v10736
    %v10917 = vadd.f32 %v10437, %v10737
    %v10918 = vadd.f32 %v10438, %v10738
    %v10919 = vadd.f32 %v10439, %v10739
    %v10920 = vadd.f32 %v10440, %v10740
    %v10921 = vadd.f32 %v10441, %v10741
    %v10922 = vadd.f32 %v10442, %v10742
    %v10923 = vadd.f32 %v10443, %v10743
    %v10924 = vadd.f32 %v10444, %v10744
    %v10925 = vadd.f32 %v10445, %v10745
    %v10926 = vadd.f32 %v10446, %v10746
    %v10927 = vadd.f32 %v10447, %v10747
    %v10928 = vadd.f32 %v10448, %v10748
    %v10929 = vadd.f32 %v10449, %v10749
    %v10930 = vadd.f32 %v10450, %v10750
    %v10931 = vadd.f32 %v10451, %v10751
    %v10932 = vadd.f32 %v10452, %v10752
    %v10933 = vadd.f32 %v10453, %v10753
    %v10934 = vadd.f32 %v10454, %v10754
    %v10935 = vadd.f32 %v10455, %v10755
    %v10936 = vadd.f32 %v10456, %v10756
    %v10937 = vadd.f32 %v10457, %v10757
    %v10938 = vadd.f32 %v10458, %v10758
    %v10939 = vadd.f32 %v10459, %v10759
    %v10940 = vadd.f32 %v10460, %v10760
    %v10941 = vadd.f32 %v10461, %v10761
    %v10942 = vadd.f32 %v10462, %v10762
    %v10943 = vadd.f32 %v10463, %v10763
    %v10944 = vadd.f32 %v10464, %v10764
    %v10945 = vadd.f32 %v10465, %v10765
    %v10946 = vadd.f32 %v10466, %v10766
    %v10947 = vadd.f32 %v10467, %v10767
    %v10948 = vadd.f32 %v10468, %v10768
    %v10949 = vadd.f32 %v10469, %v10769
    %v10950 = vadd.f32 %v10470, %v10770
    %v10951 = vadd.f32 %v10471, %v10771
    %v10952 = vadd.f32 %v10772, %v1445
    %v10953 = vadd.f32 %v10773, %v1449
    %v10954 = vadd.f32 %v10774, %v1453
    %v10955 = vadd.f32 %v10775, %v1457
    %v10956 = vadd.f32 %v10776, %v1461
    %v10957 = vadd.f32 %v10777, %v1465
    %v10958 = vadd.f32 %v10778, %v1445
    %v10959 = vadd.f32 %v10779, %v1449
    %v10960 = vadd.f32 %v10780, %v1453
    %v10961 = vadd.f32 %v10781, %v1457
    %v10962 = vadd.f32 %v10782, %v1461
    %v10963 = vadd.f32 %v10783, %v1465
    %v10964 = vadd.f32 %v10784, %v1445
    %v10965 = vadd.f32 %v10785, %v1449
    %v10966 = vadd.f32 %v10786, %v1453
    %v10967 = vadd.f32 %v10787, %v1457
    %v10968 = vadd.f32 %v10788, %v1461
    %v10969 = vadd.f32 %v10789, %v1465
    %v10970 = vadd.f32 %v10790, %v1445
    %v10971 = vadd.f32 %v10791, %v1449
    %v10972 = vadd.f32 %v10792, %v1453
    %v10973 = vadd.f32 %v10793, %v1457
    %v10974 = vadd.f32 %v10794, %v1461
    %v10975 = vadd.f32 %v10795, %v1465
    %v10976 = vadd.f32 %v10796, %v1445
    %v10977 = vadd.f32 %v10797, %v1449
    %v10978 = vadd.f32 %v10798, %v1453
    %v10979 = vadd.f32 %v10799, %v1457
    %v10980 = vadd.f32 %v10800, %v1461
    %v10981 = vadd.f32 %v10801, %v1465
    %v10982 = vadd.f32 %v10802, %v1445
    %v10983 = vadd.f32 %v10803, %v1449
    %v10984 = vadd.f32 %v10804, %v1453
    %v10985 = vadd.f32 %v10805, %v1457
    %v10986 = vadd.f32 %v10806, %v1461
    %v10987 = vadd.f32 %v10807, %v1465
    %v10988 = vadd.f32 %v10808, %v1445
    %v10989 = vadd.f32 %v10809, %v1449
    %v10990 = vadd.f32 %v10810, %v1453
    %v10991 = vadd.f32 %v10811, %v1457
    %v10992 = vadd.f32 %v10812, %v1461
    %v10993 = vadd.f32 %v10813, %v1465
    %v10994 = vadd.f32 %v10814, %v1445
    %v10995 = vadd.f32 %v10815, %v1449
    %v10996 = vadd.f32 %v10816, %v1453
    %v10997 = vadd.f32 %v10817, %v1457
    %v10998 = vadd.f32 %v10818, %v1461
    %v10999 = vadd.f32 %v10819, %v1465
    %v11000 = vadd.f32 %v10820, %v1445
    %v11001 = vadd.f32 %v10821, %v1449
    %v11002 = vadd.f32 %v10822, %v1453
    %v11003 = vadd.f32 %v10823, %v1457
    %v11004 = vadd.f32 %v10824, %v1461
    %v11005 = vadd.f32 %v10825, %v1465
    %v11006 = vadd.f32 %v10826, %v1445
    %v11007 = vadd.f32 %v10827, %v1449
    %v11008 = vadd.f32 %v10828, %v1453
    %v11009 = vadd.f32 %v10829, %v1457
    %v11010 = vadd.f32 %v10830, %v1461
    %v11011 = vadd.f32 %v10831, %v1465
    %v11012 = vadd.f32 %v10832, %v1445
    %v11013 = vadd.f32 %v10833, %v1449
    %v11014 = vadd.f32 %v10834, %v1453
    %v11015 = vadd.f32 %v10835, %v1457
    %v11016 = vadd.f32 %v10836, %v1461
    %v11017 = vadd.f32 %v10837, %v1465
    %v11018 = vadd.f32 %v10838, %v1445
    %v11019 = vadd.f32 %v10839, %v1449
    %v11020 = vadd.f32 %v10840, %v1453
    %v11021 = vadd.f32 %v10841, %v1457
    %v11022 = vadd.f32 %v10842, %v1461
    %v11023 = vadd.f32 %v10843, %v1465
    %v11024 = vadd.f32 %v10844, %v1445
    %v11025 = vadd.f32 %v10845, %v1449
    %v11026 = vadd.f32 %v10846, %v1453
    %v11027 = vadd.f32 %v10847, %v1457
    %v11028 = vadd.f32 %v10848, %v1461
    %v11029 = vadd.f32 %v10849, %v1465
    %v11030 = vadd.f32 %v10850, %v1445
    %v11031 = vadd.f32 %v10851, %v1449
    %v11032 = vadd.f32 %v10852, %v1453
    %v11033 = vadd.f32 %v10853, %v1457
    %v11034 = vadd.f32 %v10854, %v1461
    %v11035 = vadd.f32 %v10855, %v1465
    %v11036 = vadd.f32 %v10856, %v1445
    %v11037 = vadd.f32 %v10857, %v1449
    %v11038 = vadd.f32 %v10858, %v1453
    %v11039 = vadd.f32 %v10859, %v1457
    %v11040 = vadd.f32 %v10860, %v1461
    %v11041 = vadd.f32 %v10861, %v1465
    %v11042 = vadd.f32 %v10862, %v1445
    %v11043 = vadd.f32 %v10863, %v1449
    %v11044 = vadd.f32 %v10864, %v1453
    %v11045 = vadd.f32 %v10865, %v1457
    %v11046 = vadd.f32 %v10866, %v1461
    %v11047 = vadd.f32 %v10867, %v1465
    %v11048 = vadd.f32 %v10868, %v1445
    %v11049 = vadd.f32 %v10869, %v1449
    %v11050 = vadd.f32 %v10870, %v1453
    %v11051 = vadd.f32 %v10871, %v1457
    %v11052 = vadd.f32 %v10872, %v1461
    %v11053 = vadd.f32 %v10873, %v1465
    %v11054 = vadd.f32 %v10874, %v1445
    %v11055 = vadd.f32 %v10875, %v1449
    %v11056 = vadd.f32 %v10876, %v1453
    %v11057 = vadd.f32 %v10877, %v1457
    %v11058 = vadd.f32 %v10878, %v1461
    %v11059 = vadd.f32 %v10879, %v1465
    %v11060 = vadd.f32 %v10880, %v1445
    %v11061 = vadd.f32 %v10881, %v1449
    %v11062 = vadd.f32 %v10882, %v1453
    %v11063 = vadd.f32 %v10883, %v1457
    %v11064 = vadd.f32 %v10884, %v1461
    %v11065 = vadd.f32 %v10885, %v1465
    %v11066 = vadd.f32 %v10886, %v1445
    %v11067 = vadd.f32 %v10887, %v1449
    %v11068 = vadd.f32 %v10888, %v1453
    %v11069 = vadd.f32 %v10889, %v1457
    %v11070 = vadd.f32 %v10890, %v1461
    %v11071 = vadd.f32 %v10891, %v1465
    %v11072 = vadd.f32 %v10892, %v1445
    %v11073 = vadd.f32 %v10893, %v1449
    %v11074 = vadd.f32 %v10894, %v1453
    %v11075 = vadd.f32 %v10895, %v1457
    %v11076 = vadd.f32 %v10896, %v1461
    %v11077 = vadd.f32 %v10897, %v1465
    %v11078 = vadd.f32 %v10898, %v1445
    %v11079 = vadd.f32 %v10899, %v1449
    %v11080 = vadd.f32 %v10900, %v1453
    %v11081 = vadd.f32 %v10901, %v1457
    %v11082 = vadd.f32 %v10902, %v1461
    %v11083 = vadd.f32 %v10903, %v1465
    %v11084 = vadd.f32 %v10904, %v1445
    %v11085 = vadd.f32 %v10905, %v1449
    %v11086 = vadd.f32 %v10906, %v1453
    %v11087 = vadd.f32 %v10907, %v1457
    %v11088 = vadd.f32 %v10908, %v1461
    %v11089 = vadd.f32 %v10909, %v1465
    %v11090 = vadd.f32 %v10910, %v1445
    %v11091 = vadd.f32 %v10911, %v1449
    %v11092 = vadd.f32 %v10912, %v1453
    %v11093 = vadd.f32 %v10913, %v1457
    %v11094 = vadd.f32 %v10914, %v1461
    %v11095 = vadd.f32 %v10915, %v1465
    %v11096 = vadd.f32 %v10916, %v1445
    %v11097 = vadd.f32 %v10917, %v1449
    %v11098 = vadd.f32 %v10918, %v1453
    %v11099 = vadd.f32 %v10919, %v1457
    %v11100 = vadd.f32 %v10920, %v1461
    %v11101 = vadd.f32 %v10921, %v1465
    %v11102 = vadd.f32 %v10922, %v1445
    %v11103 = vadd.f32 %v10923, %v1449
    %v11104 = vadd.f32 %v10924, %v1453
    %v11105 = vadd.f32 %v10925, %v1457
    %v11106 = vadd.f32 %v10926, %v1461
    %v11107 = vadd.f32 %v10927, %v1465
    %v11108 = vadd.f32 %v10928, %v1445
    %v11109 = vadd.f32 %v10929, %v1449
    %v11110 = vadd.f32 %v10930, %v1453
    %v11111 = vadd.f32 %v10931, %v1457
    %v11112 = vadd.f32 %v10932, %v1461
    %v11113 = vadd.f32 %v10933, %v1465
    %v11114 = vadd.f32 %v10934, %v1445
    %v11115 = vadd.f32 %v10935, %v1449
    %v11116 = vadd.f32 %v10936, %v1453
    %v11117 = vadd.f32 %v10937, %v1457
    %v11118 = vadd.f32 %v10938, %v1461
    %v11119 = vadd.f32 %v10939, %v1465
    %v11120 = vadd.f32 %v10940, %v1445
    %v11121 = vadd.f32 %v10941, %v1449
    %v11122 = vadd.f32 %v10942, %v1453
    %v11123 = vadd.f32 %v10943, %v1457
    %v11124 = vadd.f32 %v10944, %v1461
    %v11125 = vadd.f32 %v10945, %v1465
    %v11126 = vadd.f32 %v10946, %v1445
    %v11127 = vadd.f32 %v10947, %v1449
    %v11128 = vadd.f32 %v10948, %v1453
    %v11129 = vadd.f32 %v10949, %v1457
    %v11130 = vadd.f32 %v10950, %v1461
    %v11131 = vadd.f32 %v10951, %v1465
    %v11132 = vmax.f32 %v10952, 0.0
    %v11133 = vmax.f32 %v10953, 0.0
    %v11134 = vmax.f32 %v10954, 0.0
    %v11135 = vmax.f32 %v10955, 0.0
    %v11136 = vmax.f32 %v10956, 0.0
    %v11137 = vmax.f32 %v10957, 0.0
    %v11138 = vmax.f32 %v10958, 0.0
    %v11139 = vmax.f32 %v10959, 0.0
    %v11140 = vmax.f32 %v10960, 0.0
    %v11141 = vmax.f32 %v10961, 0.0
    %v11142 = vmax.f32 %v10962, 0.0
    %v11143 = vmax.f32 %v10963, 0.0
    %v11144 = vmax.f32 %v10964, 0.0
    %v11145 = vmax.f32 %v10965, 0.0
    %v11146 = vmax.f32 %v10966, 0.0
    %v11147 = vmax.f32 %v10967, 0.0
    %v11148 = vmax.f32 %v10968, 0.0
    %v11149 = vmax.f32 %v10969, 0.0
    %v11150 = vmax.f32 %v10970, 0.0
    %v11151 = vmax.f32 %v10971, 0.0
    %v11152 = vmax.f32 %v10972, 0.0
    %v11153 = vmax.f32 %v10973, 0.0
    %v11154 = vmax.f32 %v10974, 0.0
    %v11155 = vmax.f32 %v10975, 0.0
    %v11156 = vmax.f32 %v10976, 0.0
    %v11157 = vmax.f32 %v10977, 0.0
    %v11158 = vmax.f32 %v10978, 0.0
    %v11159 = vmax.f32 %v10979, 0.0
    %v11160 = vmax.f32 %v10980, 0.0
    %v11161 = vmax.f32 %v10981, 0.0
    %v11162 = vmax.f32 %v10982, 0.0
    %v11163 = vmax.f32 %v10983, 0.0
    %v11164 = vmax.f32 %v10984, 0.0
    %v11165 = vmax.f32 %v10985, 0.0
    %v11166 = vmax.f32 %v10986, 0.0
    %v11167 = vmax.f32 %v10987, 0.0
    %v11168 = vmax.f32 %v10988, 0.0
    %v11169 = vmax.f32 %v10989, 0.0
    %v11170 = vmax.f32 %v10990, 0.0
    %v11171 = vmax.f32 %v10991, 0.0
    %v11172 = vmax.f32 %v10992, 0.0
    %v11173 = vmax.f32 %v10993, 0.0
    %v11174 = vmax.f32 %v10994, 0.0
    %v11175 = vmax.f32 %v10995, 0.0
    %v11176 = vmax.f32 %v10996, 0.0
    %v11177 = vmax.f32 %v10997, 0.0
    %v11178 = vmax.f32 %v10998, 0.0
    %v11179 = vmax.f32 %v10999, 0.0
    %v11180 = vmax.f32 %v11000, 0.0
    %v11181 = vmax.f32 %v11001, 0.0
    %v11182 = vmax.f32 %v11002, 0.0
    %v11183 = vmax.f32 %v11003, 0.0
    %v11184 = vmax.f32 %v11004, 0.0
    %v11185 = vmax.f32 %v11005, 0.0
    %v11186 = vmax.f32 %v11006, 0.0
    %v11187 = vmax.f32 %v11007, 0.0
    %v11188 = vmax.f32 %v11008, 0.0
    %v11189 = vmax.f32 %v11009, 0.0
    %v11190 = vmax.f32 %v11010, 0.0
    %v11191 = vmax.f32 %v11011, 0.0
    %v11192 = vmax.f32 %v11012, 0.0
    %v11193 = vmax.f32 %v11013, 0.0
    %v11194 = vmax.f32 %v11014, 0.0
    %v11195 = vmax.f32 %v11015, 0.0
    %v11196 = vmax.f32 %v11016, 0.0
    %v11197 = vmax.f32 %v11017, 0.0
    %v11198 = vmax.f32 %v11018, 0.0
    %v11199 = vmax.f32 %v11019, 0.0
    %v11200 = vmax.f32 %v11020, 0.0
    %v11201 = vmax.f32 %v11021, 0.0
    %v11202 = vmax.f32 %v11022, 0.0
    %v11203 = vmax.f32 %v11023, 0.0
    %v11204 = vmax.f32 %v11024, 0.0
    %v11205 = vmax.f32 %v11025, 0.0
    %v11206 = vmax.f32 %v11026, 0.0
    %v11207 = vmax.f32 %v11027, 0.0
    %v11208 = vmax.f32 %v11028, 0.0
    %v11209 = vmax.f32 %v11029, 0.0
    %v11210 = vmax.f32 %v11030, 0.0
    %v11211 = vmax.f32 %v11031, 0.0
    %v11212 = vmax.f32 %v11032, 0.0
    %v11213 = vmax.f32 %v11033, 0.0
    %v11214 = vmax.f32 %v11034, 0.0
    %v11215 = vmax.f32 %v11035, 0.0
    %v11216 = vmax.f32 %v11036, 0.0
    %v11217 = vmax.f32 %v11037, 0.0
    %v11218 = vmax.f32 %v11038, 0.0
    %v11219 = vmax.f32 %v11039, 0.0
    %v11220 = vmax.f32 %v11040, 0.0
    %v11221 = vmax.f32 %v11041, 0.0
    %v11222 = vmax.f32 %v11042, 0.0
    %v11223 = vmax.f32 %v11043, 0.0
    %v11224 = vmax.f32 %v11044, 0.0
    %v11225 = vmax.f32 %v11045, 0.0
    %v11226 = vmax.f32 %v11046, 0.0
    %v11227 = vmax.f32 %v11047, 0.0
    %v11228 = vmax.f32 %v11048, 0.0
    %v11229 = vmax.f32 %v11049, 0.0
    %v11230 = vmax.f32 %v11050, 0.0
    %v11231 = vmax.f32 %v11051, 0.0
    %v11232 = vmax.f32 %v11052, 0.0
    %v11233 = vmax.f32 %v11053, 0.0
    %v11234 = vmax.f32 %v11054, 0.0
    %v11235 = vmax.f32 %v11055, 0.0
    %v11236 = vmax.f32 %v11056, 0.0
    %v11237 = vmax.f32 %v11057, 0.0
    %v11238 = vmax.f32 %v11058, 0.0
    %v11239 = vmax.f32 %v11059, 0.0
    %v11240 = vmax.f32 %v11060, 0.0
    %v11241 = vmax.f32 %v11061, 0.0
    %v11242 = vmax.f32 %v11062, 0.0
    %v11243 = vmax.f32 %v11063, 0.0
    %v11244 = vmax.f32 %v11064, 0.0
    %v11245 = vmax.f32 %v11065, 0.0
    %v11246 = vmax.f32 %v11066, 0.0
    %v11247 = vmax.f32 %v11067, 0.0
    %v11248 = vmax.f32 %v11068, 0.0
    %v11249 = vmax.f32 %v11069, 0.0
    %v11250 = vmax.f32 %v11070, 0.0
    %v11251 = vmax.f32 %v11071, 0.0
    %v11252 = vmax.f32 %v11072, 0.0
    %v11253 = vmax.f32 %v11073, 0.0
    %v11254 = vmax.f32 %v11074, 0.0
    %v11255 = vmax.f32 %v11075, 0.0
    %v11256 = vmax.f32 %v11076, 0.0
    %v11257 = vmax.f32 %v11077, 0.0
    %v11258 = vmax.f32 %v11078, 0.0
    %v11259 = vmax.f32 %v11079, 0.0
    %v11260 = vmax.f32 %v11080, 0.0
    %v11261 = vmax.f32 %v11081, 0.0
    %v11262 = vmax.f32 %v11082, 0.0
    %v11263 = vmax.f32 %v11083, 0.0
    %v11264 = vmax.f32 %v11084, 0.0
    %v11265 = vmax.f32 %v11085, 0.0
    %v11266 = vmax.f32 %v11086, 0.0
    %v11267 = vmax.f32 %v11087, 0.0
    %v11268 = vmax.f32 %v11088, 0.0
    %v11269 = vmax.f32 %v11089, 0.0
    %v11270 = vmax.f32 %v11090, 0.0
    %v11271 = vmax.f32 %v11091, 0.0
    %v11272 = vmax.f32 %v11092, 0.0
    %v11273 = vmax.f32 %v11093, 0.0
    %v11274 = vmax.f32 %v11094, 0.0
    %v11275 = vmax.f32 %v11095, 0.0
    %v11276 = vmax.f32 %v11096, 0.0
    %v11277 = vmax.f32 %v11097, 0.0
    %v11278 = vmax.f32 %v11098, 0.0
    %v11279 = vmax.f32 %v11099, 0.0
    %v11280 = vmax.f32 %v11100, 0.0
    %v11281 = vmax.f32 %v11101, 0.0
    %v11282 = vmax.f32 %v11102, 0.0
    %v11283 = vmax.f32 %v11103, 0.0
    %v11284 = vmax.f32 %v11104, 0.0
    %v11285 = vmax.f32 %v11105, 0.0
    %v11286 = vmax.f32 %v11106, 0.0
    %v11287 = vmax.f32 %v11107, 0.0
    %v11288 = vmax.f32 %v11108, 0.0
    %v11289 = vmax.f32 %v11109, 0.0
    %v11290 = vmax.f32 %v11110, 0.0
    %v11291 = vmax.f32 %v11111, 0.0
    %v11292 = vmax.f32 %v11112, 0.0
    %v11293 = vmax.f32 %v11113, 0.0
    %v11294 = vmax.f32 %v11114, 0.0
    %v11295 = vmax.f32 %v11115, 0.0
    %v11296 = vmax.f32 %v11116, 0.0
    %v11297 = vmax.f32 %v11117, 0.0
    %v11298 = vmax.f32 %v11118, 0.0
    %v11299 = vmax.f32 %v11119, 0.0
    %v11300 = vmax.f32 %v11120, 0.0
    %v11301 = vmax.f32 %v11121, 0.0
    %v11302 = vmax.f32 %v11122, 0.0
    %v11303 = vmax.f32 %v11123, 0.0
    %v11304 = vmax.f32 %v11124, 0.0
    %v11305 = vmax.f32 %v11125, 0.0
    %v11306 = vmax.f32 %v11126, 0.0
    %v11307 = vmax.f32 %v11127, 0.0
    %v11308 = vmax.f32 %v11128, 0.0
    %v11309 = vmax.f32 %v11129, 0.0
    %v11310 = vmax.f32 %v11130, 0.0
    %v11311 = vmax.f32 %v11131, 0.0
    %v11312 = vadd.f32 %v11132, %v11138
    %v11313 = vadd.f32 %v11312, %v11144
    %v11314 = vadd.f32 %v11313, %v11150
    %v11315 = vadd.f32 %v11314, %v11156
    %v11316 = vadd.f32 %v11315, %v11162
    %v11317 = vadd.f32 %v11316, %v11168
    %v11318 = vadd.f32 %v11317, %v11174
    %v11319 = vadd.f32 %v11318, %v11180
    %v11320 = vadd.f32 %v11319, %v11186
    %v11321 = vadd.f32 %v11320, %v11192
    %v11322 = vadd.f32 %v11321, %v11198
    %v11323 = vadd.f32 %v11322, %v11204
    %v11324 = vadd.f32 %v11323, %v11210
    %v11325 = vadd.f32 %v11324, %v11216
    %v11326 = vadd.f32 %v11325, %v11222
    %v11327 = vadd.f32 %v11326, %v11228
    %v11328 = vadd.f32 %v11327, %v11234
    %v11329 = vadd.f32 %v11328, %v11240
    %v11330 = vadd.f32 %v11329, %v11246
    %v11331 = vadd.f32 %v11330, %v11252
    %v11332 = vadd.f32 %v11331, %v11258
    %v11333 = vadd.f32 %v11332, %v11264
    %v11334 = vadd.f32 %v11333, %v11270
    %v11335 = vadd.f32 %v11334, %v11276
    %v11336 = vadd.f32 %v11335, %v11282
    %v11337 = vadd.f32 %v11336, %v11288
    %v11338 = vadd.f32 %v11337, %v11294
    %v11339 = vadd.f32 %v11338, %v11300
    %v11340 = vadd.f32 %v11339, %v11306
    %v11341 = vrot.slane %v11340, 4
    %v11342 = vadd.f32 %v11340, %v11341
    %v11343 = vrot.slane %v11342, 2
    %v11344 = vadd.f32 %v11342, %v11343
    %v11345 = vrot.slane %v11344, 1
    %v11346 = vadd.f32 %v11344, %v11345
    %v11347 = vadd.f32 %v11133, %v11139
    %v11348 = vadd.f32 %v11347, %v11145
    %v11349 = vadd.f32 %v11348, %v11151
    %v11350 = vadd.f32 %v11349, %v11157
    %v11351 = vadd.f32 %v11350, %v11163
    %v11352 = vadd.f32 %v11351, %v11169
    %v11353 = vadd.f32 %v11352, %v11175
    %v11354 = vadd.f32 %v11353, %v11181
    %v11355 = vadd.f32 %v11354, %v11187
    %v11356 = vadd.f32 %v11355, %v11193
    %v11357 = vadd.f32 %v11356, %v11199
    %v11358 = vadd.f32 %v11357, %v11205
    %v11359 = vadd.f32 %v11358, %v11211
    %v11360 = vadd.f32 %v11359, %v11217
    %v11361 = vadd.f32 %v11360, %v11223
    %v11362 = vadd.f32 %v11361, %v11229
    %v11363 = vadd.f32 %v11362, %v11235
    %v11364 = vadd.f32 %v11363, %v11241
    %v11365 = vadd.f32 %v11364, %v11247
    %v11366 = vadd.f32 %v11365, %v11253
    %v11367 = vadd.f32 %v11366, %v11259
    %v11368 = vadd.f32 %v11367, %v11265
    %v11369 = vadd.f32 %v11368, %v11271
    %v11370 = vadd.f32 %v11369, %v11277
    %v11371 = vadd.f32 %v11370, %v11283
    %v11372 = vadd.f32 %v11371, %v11289
    %v11373 = vadd.f32 %v11372, %v11295
    %v11374 = vadd.f32 %v11373, %v11301
    %v11375 = vadd.f32 %v11374, %v11307
    %v11376 = vrot.slane %v11375, 4
    %v11377 = vadd.f32 %v11375, %v11376
    %v11378 = vrot.slane %v11377, 2
    %v11379 = vadd.f32 %v11377, %v11378
    %v11380 = vrot.slane %v11379, 1
    %v11381 = vadd.f32 %v11379, %v11380
    %v11382 = vadd.f32 %v11134, %v11140
    %v11383 = vadd.f32 %v11382, %v11146
    %v11384 = vadd.f32 %v11383, %v11152
    %v11385 = vadd.f32 %v11384, %v11158
    %v11386 = vadd.f32 %v11385, %v11164
    %v11387 = vadd.f32 %v11386, %v11170
    %v11388 = vadd.f32 %v11387, %v11176
    %v11389 = vadd.f32 %v11388, %v11182
    %v11390 = vadd.f32 %v11389, %v11188
    %v11391 = vadd.f32 %v11390, %v11194
    %v11392 = vadd.f32 %v11391, %v11200
    %v11393 = vadd.f32 %v11392, %v11206
    %v11394 = vadd.f32 %v11393, %v11212
    %v11395 = vadd.f32 %v11394, %v11218
    %v11396 = vadd.f32 %v11395, %v11224
    %v11397 = vadd.f32 %v11396, %v11230
    %v11398 = vadd.f32 %v11397, %v11236
    %v11399 = vadd.f32 %v11398, %v11242
    %v11400 = vadd.f32 %v11399, %v11248
    %v11401 = vadd.f32 %v11400, %v11254
    %v11402 = vadd.f32 %v11401, %v11260
    %v11403 = vadd.f32 %v11402, %v11266
    %v11404 = vadd.f32 %v11403, %v11272
    %v11405 = vadd.f32 %v11404, %v11278
    %v11406 = vadd.f32 %v11405, %v11284
    %v11407 = vadd.f32 %v11406, %v11290
    %v11408 = vadd.f32 %v11407, %v11296
    %v11409 = vadd.f32 %v11408, %v11302
    %v11410 = vadd.f32 %v11409, %v11308
    %v11411 = vrot.slane %v11410, 4
    %v11412 = vadd.f32 %v11410, %v11411
    %v11413 = vrot.slane %v11412, 2
    %v11414 = vadd.f32 %v11412, %v11413
    %v11415 = vrot.slane %v11414, 1
    %v11416 = vadd.f32 %v11414, %v11415
    %v11417 = vadd.f32 %v11135, %v11141
    %v11418 = vadd.f32 %v11417, %v11147
    %v11419 = vadd.f32 %v11418, %v11153
    %v11420 = vadd.f32 %v11419, %v11159
    %v11421 = vadd.f32 %v11420, %v11165
    %v11422 = vadd.f32 %v11421, %v11171
    %v11423 = vadd.f32 %v11422, %v11177
    %v11424 = vadd.f32 %v11423, %v11183
    %v11425 = vadd.f32 %v11424, %v11189
    %v11426 = vadd.f32 %v11425, %v11195
    %v11427 = vadd.f32 %v11426, %v11201
    %v11428 = vadd.f32 %v11427, %v11207
    %v11429 = vadd.f32 %v11428, %v11213
    %v11430 = vadd.f32 %v11429, %v11219
    %v11431 = vadd.f32 %v11430, %v11225
    %v11432 = vadd.f32 %v11431, %v11231
    %v11433 = vadd.f32 %v11432, %v11237
    %v11434 = vadd.f32 %v11433, %v11243
    %v11435 = vadd.f32 %v11434, %v11249
    %v11436 = vadd.f32 %v11435, %v11255
    %v11437 = vadd.f32 %v11436, %v11261
    %v11438 = vadd.f32 %v11437, %v11267
    %v11439 = vadd.f32 %v11438, %v11273
    %v11440 = vadd.f32 %v11439, %v11279
    %v11441 = vadd.f32 %v11440, %v11285
    %v11442 = vadd.f32 %v11441, %v11291
    %v11443 = vadd.f32 %v11442, %v11297
    %v11444 = vadd.f32 %v11443, %v11303
    %v11445 = vadd.f32 %v11444, %v11309
    %v11446 = vrot.slane %v11445, 4
    %v11447 = vadd.f32 %v11445, %v11446
    %v11448 = vrot.slane %v11447, 2
    %v11449 = vadd.f32 %v11447, %v11448
    %v11450 = vrot.slane %v11449, 1
    %v11451 = vadd.f32 %v11449, %v11450
    %v11452 = vadd.f32 %v11136, %v11142
    %v11453 = vadd.f32 %v11452, %v11148
    %v11454 = vadd.f32 %v11453, %v11154
    %v11455 = vadd.f32 %v11454, %v11160
    %v11456 = vadd.f32 %v11455, %v11166
    %v11457 = vadd.f32 %v11456, %v11172
    %v11458 = vadd.f32 %v11457, %v11178
    %v11459 = vadd.f32 %v11458, %v11184
    %v11460 = vadd.f32 %v11459, %v11190
    %v11461 = vadd.f32 %v11460, %v11196
    %v11462 = vadd.f32 %v11461, %v11202
    %v11463 = vadd.f32 %v11462, %v11208
    %v11464 = vadd.f32 %v11463, %v11214
    %v11465 = vadd.f32 %v11464, %v11220
    %v11466 = vadd.f32 %v11465, %v11226
    %v11467 = vadd.f32 %v11466, %v11232
    %v11468 = vadd.f32 %v11467, %v11238
    %v11469 = vadd.f32 %v11468, %v11244
    %v11470 = vadd.f32 %v11469, %v11250
    %v11471 = vadd.f32 %v11470, %v11256
    %v11472 = vadd.f32 %v11471, %v11262
    %v11473 = vadd.f32 %v11472, %v11268
    %v11474 = vadd.f32 %v11473, %v11274
    %v11475 = vadd.f32 %v11474, %v11280
    %v11476 = vadd.f32 %v11475, %v11286
    %v11477 = vadd.f32 %v11476, %v11292
    %v11478 = vadd.f32 %v11477, %v11298
    %v11479 = vadd.f32 %v11478, %v11304
    %v11480 = vadd.f32 %v11479, %v11310
    %v11481 = vrot.slane %v11480, 4
    %v11482 = vadd.f32 %v11480, %v11481
    %v11483 = vrot.slane %v11482, 2
    %v11484 = vadd.f32 %v11482, %v11483
    %v11485 = vrot.slane %v11484, 1
    %v11486 = vadd.f32 %v11484, %v11485
    %v11487 = vadd.f32 %v11137, %v11143
    %v11488 = vadd.f32 %v11487, %v11149
    %v11489 = vadd.f32 %v11488, %v11155
    %v11490 = vadd.f32 %v11489, %v11161
    %v11491 = vadd.f32 %v11490, %v11167
    %v11492 = vadd.f32 %v11491, %v11173
    %v11493 = vadd.f32 %v11492, %v11179
    %v11494 = vadd.f32 %v11493, %v11185
    %v11495 = vadd.f32 %v11494, %v11191
    %v11496 = vadd.f32 %v11495, %v11197
    %v11497 = vadd.f32 %v11496, %v11203
    %v11498 = vadd.f32 %v11497, %v11209
    %v11499 = vadd.f32 %v11498, %v11215
    %v11500 = vadd.f32 %v11499, %v11221
    %v11501 = vadd.f32 %v11500, %v11227
    %v11502 = vadd.f32 %v11501, %v11233
    %v11503 = vadd.f32 %v11502, %v11239
    %v11504 = vadd.f32 %v11503, %v11245
    %v11505 = vadd.f32 %v11504, %v11251
    %v11506 = vadd.f32 %v11505, %v11257
    %v11507 = vadd.f32 %v11506, %v11263
    %v11508 = vadd.f32 %v11507, %v11269
    %v11509 = vadd.f32 %v11508, %v11275
    %v11510 = vadd.f32 %v11509, %v11281
    %v11511 = vadd.f32 %v11510, %v11287
    %v11512 = vadd.f32 %v11511, %v11293
    %v11513 = vadd.f32 %v11512, %v11299
    %v11514 = vadd.f32 %v11513, %v11305
    %v11515 = vadd.f32 %v11514, %v11311
    %v11516 = vrot.slane %v11515, 4
    %v11517 = vadd.f32 %v11515, %v11516
    %v11518 = vrot.slane %v11517, 2
    %v11519 = vadd.f32 %v11517, %v11518
    %v11520 = vrot.slane %v11519, 1
    %v11521 = vadd.f32 %v11519, %v11520
    %v11522 = vadd.f32 %v9626, %v11346
    %v11523 = vadd.f32 %v9627, %v11381
    %v11524 = vadd.f32 %v9628, %v11416
    %v11525 = vadd.f32 %v9629, %v11451
    %v11526 = vadd.f32 %v9630, %v11486
    %v11527 = vadd.f32 %v9631, %v11521
    %vm11528 = vcmask 1040384
    %v11529 = vsel %vm11528, %v5834, %v11522
    %v11530 = vsel %vm11528, %v5835, %v11523
    %v11531 = vsel %vm11528, %v5836, %v11524
    %v11532 = vsel %vm11528, %v5837, %v11525
    %v11533 = vsel %vm11528, %v5838, %v11526
    %v11534 = vsel %vm11528, %v5839, %v11527
    %v11535 = vmul.f32 %v11529, 0.0013888889
    %v11536 = vmul.f32 %v11530, 0.0013888889
    %v11537 = vmul.f32 %v11531, 0.0013888889
    %v11538 = vmul.f32 %v11532, 0.0013888889
    %v11539 = vmul.f32 %v11533, 0.0013888889
    %v11540 = vmul.f32 %v11534, 0.0013888889
    %v11541 = vpack.c.bf16 %v11535, %v11535
    %v11542 = vpack.c.bf16 %v11536, %v11536
    %v11543 = vpack.c.bf16 %v11537, %v11537
    %v11544 = vpack.c.bf16 %v11538, %v11538
    %v11545 = vpack.c.bf16 %v11539, %v11539
    %v11546 = vpack.c.bf16 %v11540, %v11540
    %v11547 = vld [vmem:[%s3] sm:$0xf]
    %v11548 = vld [vmem:[%s3 + $0x4] sm:$0xf]
    %v11549 = vld [vmem:[%s3 + $0x8] sm:$0xf]
    %v11550 = vld [vmem:[%s3 + $0xc] sm:$0xf]
    %v11551 = vld [vmem:[%s3 + $0x10] sm:$0xf]
    %v11552 = vld [vmem:[%s3 + $0x14] sm:$0xf]
    %v11553 = vld [vmem:[%s3 + $0x18] sm:$0xf]
    %v11554 = vld [vmem:[%s3 + $0x1c] sm:$0xf]
    %v11555 = vld [vmem:[%s3 + $0x20] sm:$0xf]
    %v11556 = vld [vmem:[%s3 + $0x24] sm:$0xf]
    %v11557 = vld [vmem:[%s3 + $0x28] sm:$0xf]
    %v11558 = vld [vmem:[%s3 + $0x2c] sm:$0xf]
    %v11559 = vld [vmem:[%s3 + $0x30] sm:$0xf]
    %v11560 = vld [vmem:[%s3 + $0x34] sm:$0xf]
    %v11561 = vld [vmem:[%s3 + $0x38] sm:$0xf]
    %v11562 = vld [vmem:[%s3 + $0x3c] sm:$0xf]
    %v11563 = vld [vmem:[%s3 + $0x40] sm:$0xf]
    %v11564 = vld [vmem:[%s3 + $0x44] sm:$0xf]
    %v11565 = vld [vmem:[%s3 + $0x48] sm:$0xf]
    %v11566 = vld [vmem:[%s3 + $0x4c] sm:$0xf]
    %v11567 = vld [vmem:[%s3 + $0x50] sm:$0xf]
    %v11568 = vld [vmem:[%s3 + $0x54] sm:$0xf]
    %v11569 = vld [vmem:[%s3 + $0x58] sm:$0xf]
    %v11570 = vld [vmem:[%s3 + $0x5c] sm:$0xf]
    %v11571 = vld [vmem:[%s3 + $0x60] sm:$0xf]
    %v11572 = vld [vmem:[%s3 + $0x64] sm:$0xf]
    %v11573 = vld [vmem:[%s3 + $0x68] sm:$0xf]
    %v11574 = vld [vmem:[%s3 + $0x6c] sm:$0xf]
    %v11575 = vld [vmem:[%s3 + $0x70] sm:$0xf]
    %v11576 = vld [vmem:[%s3 + $0x74] sm:$0xf]
    %v11577 = vld [vmem:[%s3 + $0x78] sm:$0xf]
    %v11578 = vld [vmem:[%s3 + $0x7c] sm:$0xf]
    %v11579 = vld [vmem:[%s3 + $0x80] sm:$0xf]
    %v11580 = vld [vmem:[%s3 + $0x84] sm:$0xf]
    %v11581 = vld [vmem:[%s3 + $0x88] sm:$0xf]
    %v11582 = vld [vmem:[%s3 + $0x8c] sm:$0xf]
    %v11583 = vld [vmem:[%s3 + $0x90] sm:$0xf]
    %v11584 = vld [vmem:[%s3 + $0x94] sm:$0xf]
    %v11585 = vld [vmem:[%s3 + $0x98] sm:$0xf]
    %v11586 = vld [vmem:[%s3 + $0x9c] sm:$0xf]
    %v11587 = vld [vmem:[%s3 + $0xa0] sm:$0xf]
    %v11588 = vld [vmem:[%s3 + $0xa4] sm:$0xf]
    %v11589 = vld [vmem:[%s3 + $0xa8] sm:$0xf]
    %v11590 = vld [vmem:[%s3 + $0xac] sm:$0xf]
    %v11591 = vld [vmem:[%s3 + $0xb0] sm:$0xf]
    %v11592 = vld [vmem:[%s3 + $0xb4] sm:$0xf]
    %v11593 = vld [vmem:[%s3 + $0xb8] sm:$0xf]
    %v11594 = vld [vmem:[%s3 + $0xbc] sm:$0xf]
    %v11595 = vld [vmem:[%s3 + $0xc0] sm:$0xf]
    %v11596 = vld [vmem:[%s3 + $0xc4] sm:$0xf]
    %v11597 = vld [vmem:[%s3 + $0xc8] sm:$0xf]
    %v11598 = vld [vmem:[%s3 + $0xcc] sm:$0xf]
    %v11599 = vld [vmem:[%s3 + $0xd0] sm:$0xf]
    %v11600 = vld [vmem:[%s3 + $0xd4] sm:$0xf]
    %v11601 = vld [vmem:[%s3 + $0xd8] sm:$0xf]
    %v11602 = vld [vmem:[%s3 + $0xdc] sm:$0xf]
    %v11603 = vld [vmem:[%s3 + $0xe0] sm:$0xf]
    %v11604 = vld [vmem:[%s3 + $0xe4] sm:$0xf]
    %v11605 = vld [vmem:[%s3 + $0xe8] sm:$0xf]
    %v11606 = vld [vmem:[%s3 + $0xec] sm:$0xf]
    %v11607 = vld [vmem:[%s3 + $0xf0] sm:$0xf]
    %v11608 = vld [vmem:[%s3 + $0xf4] sm:$0xf]
    %v11609 = vld [vmem:[%s3 + $0xf8] sm:$0xf]
    %v11610 = vld [vmem:[%s3 + $0xfc] sm:$0xf]
    %v11611 = vld [vmem:[%s3 + $0x100] sm:$0xf]
    %v11612 = vld [vmem:[%s3 + $0x104] sm:$0xf]
    %v11613 = vld [vmem:[%s3 + $0x108] sm:$0xf]
    %v11614 = vld [vmem:[%s3 + $0x10c] sm:$0xf]
    %v11615 = vld [vmem:[%s3 + $0x110] sm:$0xf]
    %v11616 = vld [vmem:[%s3 + $0x114] sm:$0xf]
    %v11617 = vld [vmem:[%s3 + $0x118] sm:$0xf]
    %v11618 = vld [vmem:[%s3 + $0x11c] sm:$0xf]
    %v11619 = vld [vmem:[%s3 + $0x120] sm:$0xf]
    %v11620 = vld [vmem:[%s3 + $0x124] sm:$0xf]
    %v11621 = vld [vmem:[%s3 + $0x128] sm:$0xf]
    %v11622 = vld [vmem:[%s3 + $0x12c] sm:$0xf]
    %v11623 = vld [vmem:[%s3 + $0x130] sm:$0xf]
    %v11624 = vld [vmem:[%s3 + $0x134] sm:$0xf]
    %v11625 = vld [vmem:[%s3 + $0x138] sm:$0xf]
    %v11626 = vld [vmem:[%s3 + $0x13c] sm:$0xf]
    %v11627 = vld [vmem:[%s3 + $0x140] sm:$0xf]
    %v11628 = vld [vmem:[%s3 + $0x144] sm:$0xf]
    %v11629 = vld [vmem:[%s3 + $0x148] sm:$0xf]
    %v11630 = vld [vmem:[%s3 + $0x14c] sm:$0xf]
    %v11631 = vld [vmem:[%s3 + $0x150] sm:$0xf]
    %v11632 = vld [vmem:[%s3 + $0x154] sm:$0xf]
    %v11633 = vld [vmem:[%s3 + $0x158] sm:$0xf]
    %v11634 = vld [vmem:[%s3 + $0x15c] sm:$0xf]
    %v11635 = vld [vmem:[%s3 + $0x160] sm:$0xf]
    %v11636 = vld [vmem:[%s3 + $0x164] sm:$0xf]
    %v11637 = vld [vmem:[%s3 + $0x168] sm:$0xf]
    %v11638 = vld [vmem:[%s3 + $0x16c] sm:$0xf]
    %v11639 = vld [vmem:[%s3 + $0x170] sm:$0xf]
    %v11640 = vld [vmem:[%s3 + $0x174] sm:$0xf]
    %v11641 = vld [vmem:[%s3 + $0x178] sm:$0xf]
    %v11642 = vld [vmem:[%s3 + $0x17c] sm:$0xf]
    %v11643 = vld [vmem:[%s4] sm:$0x1]
    %v11645 = vlaneseq
    %v11646 = vshrl.u32 %v11645, 7
    %v11647 = vsub.s32 0, %v11646
    %v11648 = vrot.slane %v11643, %v11647
    %v11746 = vunpack.c.l.b16 %v11547
    %v11747 = vunpack.c.l.b16 %v11548
    %v11748 = vunpack.c.l.b16 %v11549
    %v11749 = vunpack.c.l.b16 %v11550
    %v11750 = vunpack.c.l.b16 %v11551
    %v11751 = vunpack.c.l.b16 %v11552
    %v11752 = vunpack.c.l.b16 %v11553
    %v11753 = vunpack.c.l.b16 %v11554
    %v11754 = vunpack.c.l.b16 %v11555
    %v11755 = vunpack.c.l.b16 %v11556
    %v11756 = vunpack.c.l.b16 %v11557
    %v11757 = vunpack.c.l.b16 %v11558
    %v11758 = vunpack.c.l.b16 %v11559
    %v11759 = vunpack.c.l.b16 %v11560
    %v11760 = vunpack.c.l.b16 %v11561
    %v11761 = vunpack.c.l.b16 %v11562
    %v11762 = vunpack.c.l.b16 %v11563
    %v11763 = vunpack.c.l.b16 %v11564
    %v11764 = vunpack.c.l.b16 %v11565
    %v11765 = vunpack.c.l.b16 %v11566
    %v11766 = vunpack.c.l.b16 %v11567
    %v11767 = vunpack.c.l.b16 %v11568
    %v11768 = vunpack.c.l.b16 %v11569
    %v11769 = vunpack.c.l.b16 %v11570
    %v11770 = vunpack.c.l.b16 %v11571
    %v11771 = vunpack.c.l.b16 %v11572
    %v11772 = vunpack.c.l.b16 %v11573
    %v11773 = vunpack.c.l.b16 %v11574
    %v11774 = vunpack.c.l.b16 %v11575
    %v11775 = vunpack.c.l.b16 %v11576
    %v11776 = vunpack.c.l.b16 %v11577
    %v11777 = vunpack.c.l.b16 %v11578
    %v11778 = vunpack.c.l.b16 %v11579
    %v11779 = vunpack.c.l.b16 %v11580
    %v11780 = vunpack.c.l.b16 %v11581
    %v11781 = vunpack.c.l.b16 %v11582
    %v11782 = vunpack.c.l.b16 %v11583
    %v11783 = vunpack.c.l.b16 %v11584
    %v11784 = vunpack.c.l.b16 %v11585
    %v11785 = vunpack.c.l.b16 %v11586
    %v11786 = vunpack.c.l.b16 %v11587
    %v11787 = vunpack.c.l.b16 %v11588
    %v11788 = vunpack.c.l.b16 %v11589
    %v11789 = vunpack.c.l.b16 %v11590
    %v11790 = vunpack.c.l.b16 %v11591
    %v11791 = vunpack.c.l.b16 %v11592
    %v11792 = vunpack.c.l.b16 %v11593
    %v11793 = vunpack.c.l.b16 %v11594
    %v11794 = vunpack.c.l.b16 %v11595
    %v11795 = vunpack.c.l.b16 %v11596
    %v11796 = vunpack.c.l.b16 %v11597
    %v11797 = vunpack.c.l.b16 %v11598
    %v11798 = vunpack.c.l.b16 %v11599
    %v11799 = vunpack.c.l.b16 %v11600
    %v11800 = vunpack.c.l.b16 %v11601
    %v11801 = vunpack.c.l.b16 %v11602
    %v11802 = vunpack.c.l.b16 %v11603
    %v11803 = vunpack.c.l.b16 %v11604
    %v11804 = vunpack.c.l.b16 %v11605
    %v11805 = vunpack.c.l.b16 %v11606
    %v11806 = vunpack.c.l.b16 %v11607
    %v11807 = vunpack.c.l.b16 %v11608
    %v11808 = vunpack.c.l.b16 %v11609
    %v11809 = vunpack.c.l.b16 %v11610
    %v11810 = vunpack.c.l.b16 %v11611
    %v11811 = vunpack.c.l.b16 %v11612
    %v11812 = vunpack.c.l.b16 %v11613
    %v11813 = vunpack.c.l.b16 %v11614
    %v11814 = vunpack.c.l.b16 %v11615
    %v11815 = vunpack.c.l.b16 %v11616
    %v11816 = vunpack.c.l.b16 %v11617
    %v11817 = vunpack.c.l.b16 %v11618
    %v11818 = vunpack.c.l.b16 %v11619
    %v11819 = vunpack.c.l.b16 %v11620
    %v11820 = vunpack.c.l.b16 %v11621
    %v11821 = vunpack.c.l.b16 %v11622
    %v11822 = vunpack.c.l.b16 %v11623
    %v11823 = vunpack.c.l.b16 %v11624
    %v11824 = vunpack.c.l.b16 %v11625
    %v11825 = vunpack.c.l.b16 %v11626
    %v11826 = vunpack.c.l.b16 %v11627
    %v11827 = vunpack.c.l.b16 %v11628
    %v11828 = vunpack.c.l.b16 %v11629
    %v11829 = vunpack.c.l.b16 %v11630
    %v11830 = vunpack.c.l.b16 %v11631
    %v11831 = vunpack.c.l.b16 %v11632
    %v11832 = vunpack.c.l.b16 %v11633
    %v11833 = vunpack.c.l.b16 %v11634
    %v11834 = vunpack.c.l.b16 %v11635
    %v11835 = vunpack.c.l.b16 %v11636
    %v11836 = vunpack.c.l.b16 %v11637
    %v11837 = vunpack.c.l.b16 %v11638
    %v11838 = vunpack.c.l.b16 %v11639
    %v11839 = vunpack.c.l.b16 %v11640
    %v11840 = vunpack.c.l.b16 %v11641
    %v11841 = vunpack.c.l.b16 %v11642
    %v11842 = vpack.c.b16 %v11747, %v11746
    %v11843 = vpack.c.b16 %v11749, %v11748
    %v11844 = vpack.c.b16 %v11751, %v11750
    %v11845 = vpack.c.b16 %v11753, %v11752
    %v11846 = vpack.c.b16 %v11755, %v11754
    %v11847 = vpack.c.b16 %v11757, %v11756
    %v11848 = vpack.c.b16 %v11759, %v11758
    %v11849 = vpack.c.b16 %v11761, %v11760
    %v11850 = vpack.c.b16 %v11763, %v11762
    %v11851 = vpack.c.b16 %v11765, %v11764
    %v11852 = vpack.c.b16 %v11767, %v11766
    %v11853 = vpack.c.b16 %v11769, %v11768
    %v11854 = vpack.c.b16 %v11771, %v11770
    %v11855 = vpack.c.b16 %v11773, %v11772
    %v11856 = vpack.c.b16 %v11775, %v11774
    %v11857 = vpack.c.b16 %v11777, %v11776
    %v11858 = vpack.c.b16 %v11779, %v11778
    %v11859 = vpack.c.b16 %v11781, %v11780
    %v11860 = vpack.c.b16 %v11783, %v11782
    %v11861 = vpack.c.b16 %v11785, %v11784
    %v11862 = vpack.c.b16 %v11787, %v11786
    %v11863 = vpack.c.b16 %v11789, %v11788
    %v11864 = vpack.c.b16 %v11791, %v11790
    %v11865 = vpack.c.b16 %v11793, %v11792
    %v11866 = vpack.c.b16 %v11795, %v11794
    %v11867 = vpack.c.b16 %v11797, %v11796
    %v11868 = vpack.c.b16 %v11799, %v11798
    %v11869 = vpack.c.b16 %v11801, %v11800
    %v11870 = vpack.c.b16 %v11803, %v11802
    %v11871 = vpack.c.b16 %v11805, %v11804
    %v11872 = vpack.c.b16 %v11807, %v11806
    %v11873 = vpack.c.b16 %v11809, %v11808
    %v11874 = vpack.c.b16 %v11811, %v11810
    %v11875 = vpack.c.b16 %v11813, %v11812
    %v11876 = vpack.c.b16 %v11815, %v11814
    %v11877 = vpack.c.b16 %v11817, %v11816
    %v11878 = vpack.c.b16 %v11819, %v11818
    %v11879 = vpack.c.b16 %v11821, %v11820
    %v11880 = vpack.c.b16 %v11823, %v11822
    %v11881 = vpack.c.b16 %v11825, %v11824
    %v11882 = vpack.c.b16 %v11827, %v11826
    %v11883 = vpack.c.b16 %v11829, %v11828
    %v11884 = vpack.c.b16 %v11831, %v11830
    %v11885 = vpack.c.b16 %v11833, %v11832
    %v11886 = vpack.c.b16 %v11835, %v11834
    %v11887 = vpack.c.b16 %v11837, %v11836
    %v11888 = vpack.c.b16 %v11839, %v11838
    %v11889 = vpack.c.b16 %v11841, %v11840
    %11938 = vmatprep.subr.bf16.mxu0 0
    %11939 = vmatpush1.bf16.msra.mxu0 %v11842
    %11940 = vmatprep.subr.bf16.mxu0 0
    %11941 = vmatpush1.bf16.msra.mxu0 %v11843
    %11942 = vmatprep.subr.bf16.mxu0 0
    %11943 = vmatpush1.bf16.msra.mxu0 %v11844
    %11944 = vmatprep.subr.bf16.mxu0 0
    %11945 = vmatpush1.bf16.msra.mxu0 %v11845
    %11946 = vmatprep.subr.bf16.mxu0 0
    %11947 = vmatpush1.bf16.msra.mxu0 %v11846
    %11948 = vmatprep.subr.bf16.mxu0 0
    %11949 = vmatpush1.bf16.msra.mxu0 %v11847
    %11950 = vmatprep.subr.bf16.mxu0 0
    %11951 = vmatpush1.bf16.msra.mxu0 %v11848
    %11952 = vmatprep.subr.bf16.mxu0 0
    %11953 = vmatpush1.bf16.msra.mxu0 %v11849
    %11954 = vmatprep.subr.bf16.mxu0 0
    %11955 = vmatpush1.bf16.msra.mxu0 %v11850
    %11956 = vmatprep.subr.bf16.mxu0 0
    %11957 = vmatpush1.bf16.msra.mxu0 %v11851
    %11958 = vmatprep.subr.bf16.mxu0 0
    %11959 = vmatpush1.bf16.msra.mxu0 %v11852
    %11960 = vmatprep.subr.bf16.mxu0 0
    %11961 = vmatpush1.bf16.msra.mxu0 %v11853
    %11962 = vmatprep.subr.bf16.mxu0 0
    %11963 = vmatpush1.bf16.msra.mxu0 %v11854
    %11964 = vmatprep.subr.bf16.mxu0 0
    %11965 = vmatpush1.bf16.msra.mxu0 %v11855
    %11966 = vmatprep.subr.bf16.mxu0 0
    %11967 = vmatpush1.bf16.msra.mxu0 %v11856
    %11968 = vmatprep.subr.bf16.mxu0 0
    %11969 = vmatpush1.bf16.msra.mxu0 %v11857
    %11970 = vmatprep.mubr.bf16.mxu0 %v11542
    %11971 = vmatmul.mubr.bf16.gmra.mrb[0].mxu0 %v11541
    %v11972 = vpop.f32.mrb[0].mxu0
    %v11973 = vadd.f32 %v11648, %v11972
    %v11974 = vpop.f32.mrb[0].mxu0
    %v11975 = vpop.f32.mrb[0].mxu0
    %v11976 = vpop.f32.mrb[0].mxu0
    %11977 = vdwg.mxu0
    %11978 = vmatprep.subr.bf16.mxu0 0
    %11979 = vmatpush1.bf16.msra.mxu0 %v11858
    %11980 = vmatprep.subr.bf16.mxu0 0
    %11981 = vmatpush1.bf16.msra.mxu0 %v11859
    %11982 = vmatprep.subr.bf16.mxu0 0
    %11983 = vmatpush1.bf16.msra.mxu0 %v11860
    %11984 = vmatprep.subr.bf16.mxu0 0
    %11985 = vmatpush1.bf16.msra.mxu0 %v11861
    %11986 = vmatprep.subr.bf16.mxu0 0
    %11987 = vmatpush1.bf16.msra.mxu0 %v11862
    %11988 = vmatprep.subr.bf16.mxu0 0
    %11989 = vmatpush1.bf16.msra.mxu0 %v11863
    %11990 = vmatprep.subr.bf16.mxu0 0
    %11991 = vmatpush1.bf16.msra.mxu0 %v11864
    %11992 = vmatprep.subr.bf16.mxu0 0
    %11993 = vmatpush1.bf16.msra.mxu0 %v11865
    %11994 = vmatprep.subr.bf16.mxu0 0
    %11995 = vmatpush1.bf16.msra.mxu0 %v11866
    %11996 = vmatprep.subr.bf16.mxu0 0
    %11997 = vmatpush1.bf16.msra.mxu0 %v11867
    %11998 = vmatprep.subr.bf16.mxu0 0
    %11999 = vmatpush1.bf16.msra.mxu0 %v11868
    %12000 = vmatprep.subr.bf16.mxu0 0
    %12001 = vmatpush1.bf16.msra.mxu0 %v11869
    %12002 = vmatprep.subr.bf16.mxu0 0
    %12003 = vmatpush1.bf16.msra.mxu0 %v11870
    %12004 = vmatprep.subr.bf16.mxu0 0
    %12005 = vmatpush1.bf16.msra.mxu0 %v11871
    %12006 = vmatprep.subr.bf16.mxu0 0
    %12007 = vmatpush1.bf16.msra.mxu0 %v11872
    %12008 = vmatprep.subr.bf16.mxu0 0
    %12009 = vmatpush1.bf16.msra.mxu0 %v11873
    %12010 = vmatprep.mubr.bf16.mxu0 %v11544
    %12011 = vmatmul.mubr.bf16.gmra.mrb[0].mxu0 %v11543
    %v12012 = vpop.f32.mrb[0].mxu0
    %v12013 = vadd.f32 %v11973, %v12012
    %v12014 = vpop.f32.mrb[0].mxu0
    %v12015 = vpop.f32.mrb[0].mxu0
    %v12016 = vpop.f32.mrb[0].mxu0
    %12017 = vdwg.mxu0
    %12018 = vmatprep.subr.bf16.mxu0 0
    %12019 = vmatpush1.bf16.msra.mxu0 %v11874
    %12020 = vmatprep.subr.bf16.mxu0 0
    %12021 = vmatpush1.bf16.msra.mxu0 %v11875
    %12022 = vmatprep.subr.bf16.mxu0 0
    %12023 = vmatpush1.bf16.msra.mxu0 %v11876
    %12024 = vmatprep.subr.bf16.mxu0 0
    %12025 = vmatpush1.bf16.msra.mxu0 %v11877
    %12026 = vmatprep.subr.bf16.mxu0 0
    %12027 = vmatpush1.bf16.msra.mxu0 %v11878
    %12028 = vmatprep.subr.bf16.mxu0 0
    %12029 = vmatpush1.bf16.msra.mxu0 %v11879
    %12030 = vmatprep.subr.bf16.mxu0 0
    %12031 = vmatpush1.bf16.msra.mxu0 %v11880
    %12032 = vmatprep.subr.bf16.mxu0 0
    %12033 = vmatpush1.bf16.msra.mxu0 %v11881
    %12034 = vmatprep.subr.bf16.mxu0 0
    %12035 = vmatpush1.bf16.msra.mxu0 %v11882
    %12036 = vmatprep.subr.bf16.mxu0 0
    %12037 = vmatpush1.bf16.msra.mxu0 %v11883
    %12038 = vmatprep.subr.bf16.mxu0 0
    %12039 = vmatpush1.bf16.msra.mxu0 %v11884
    %12040 = vmatprep.subr.bf16.mxu0 0
    %12041 = vmatpush1.bf16.msra.mxu0 %v11885
    %12042 = vmatprep.subr.bf16.mxu0 0
    %12043 = vmatpush1.bf16.msra.mxu0 %v11886
    %12044 = vmatprep.subr.bf16.mxu0 0
    %12045 = vmatpush1.bf16.msra.mxu0 %v11887
    %12046 = vmatprep.subr.bf16.mxu0 0
    %12047 = vmatpush1.bf16.msra.mxu0 %v11888
    %12048 = vmatprep.subr.bf16.mxu0 0
    %12049 = vmatpush1.bf16.msra.mxu0 %v11889
    %12050 = vmatprep.mubr.bf16.mxu0 %v11546
    %12051 = vmatmul.mubr.bf16.gmra.mrb[0].mxu0 %v11545
    %v12052 = vpop.f32.mrb[0].mxu0
    %v12053 = vadd.f32 %v12013, %v12052
    %v12054 = vpop.f32.mrb[0].mxu0
    %v12055 = vpop.f32.mrb[0].mxu0
    %v12056 = vpop.f32.mrb[0].mxu0
    %12057 = vdwg.mxu0
    %12058 = vst [vmem:[#allocation2] sm:$0x3] %v12053
    // Predicated region
    $region22: #{in_frame_forward.1} parent=1 // pred_check
      _
    $region23: #{in_frame_forward.1} parent=1 // pred_check_branch
      %12060 = sbr.rel (0) target = $region25
    $region24: #{in_frame_forward.1} parent=1 // pred_region
      %s12062 = ssub.s32 32, 32
      %12063 = vsyncadd [#allocation3], %s12062
      %s12065 = sshll.u32 [#allocation2], 4
      %s12066 = int_to_ptr.vmem [resolvable:$true] %s12065
      %12068 = dma.vmem_to_hbm [thread:$0]  %s12066, 32, %s5, [#allocation3]
    $region25: #{in_frame_forward.1} parent=1 // pred_fallthru
      _
    // Predicated region
    $region26: #{in_frame_forward.1} parent=1 // pred_check
      _
    $region27: #{in_frame_forward.1} parent=1 // pred_check_branch
      %12070 = sbr.rel (0) target = $region29
    $region28: #{in_frame_forward.1} parent=1 // pred_region
      %12071 = dma.done [#allocation3], 32
    $region29: #{in_frame_forward.1} parent=1 // pred_fallthru
      _
    %12072 = vsyncpa [#allocation3], 1

</llo_original>
